<compile_context>
chip_gen: v6e
topology: v6e:2x2x1
jax: 0.10.0
libtpu: 0.0.40
codegen_flags: <defaults>
</compile_context>

<pallas_src>
import functools

import jax
import jax.numpy as jnp
import numpy as np
from jax import lax
from jax.experimental import pallas as pl
from jax.experimental.pallas import tpu as pltpu

LANE = 128   # each gate gets its own 128-lane slab in the gate buffer
SUB = 8      # batch / contraction dims padded to a multiple of 8 (sublane)


def _round_up(v, m):
    return ((v + m - 1) // m) * m


# ----------------------------------------------------------------------------
# Fused Pallas kernel: 3 LSTM layers + linear head, everything VMEM-resident
# ----------------------------------------------------------------------------
def _fused_kernel(x_ref,
                  wih1_ref, whh1_ref, b1_ref,
                  wih2_ref, whh2_ref, b2_ref,
                  wih3_ref, whh3_ref, b3_ref,
                  wout_ref, bout_ref,
                  out_ref,
                  gbuf_ref, ha_ref, hb_ref):
    T, Bp, _ = x_ref.shape
    P = LANE
    TB = T * Bp

    def run_layer(in_flat, wih_ref, b_ref, whh_ref, hseq_ref):
        """in_flat: (T*Bp, K) value.  Writes this layer's h sequence to hseq_ref."""
        H = whh_ref.shape[0]   # dense contraction width of the recurrent weight

        # --- Non-recurrent part: ONE batched MXU matmul over all timesteps. ---
        proj = (jnp.dot(in_flat, wih_ref[...], preferred_element_type=jnp.float32)
                + b_ref[...])                       # (T*Bp, 4P), bias broadcast once
        gbuf_ref[...] = proj.reshape(T, Bp, 4 * P)

        # --- Serial recurrence: only h@W_hh + cell math on the critical path. ---
        whh = whh_ref[...]                          # load recurrent weight once

        def step(t, carry):
            h, c = carry
            g = gbuf_ref[t] + jnp.dot(h[:, :H], whh,
                                      preferred_element_type=jnp.float32)
            i = jax.nn.sigmoid(g[:, 0 * P:1 * P])
            f = jax.nn.sigmoid(g[:, 1 * P:2 * P])
            gg = jnp.tanh(g[:, 2 * P:3 * P])
            o = jax.nn.sigmoid(g[:, 3 * P:4 * P])
            c = f * c + i * gg                      # padded lanes of c stay exactly 0
            h = o * jnp.tanh(c)                     # -> padded lanes of h stay exactly 0
            hseq_ref[t] = h
            return (h, c)

        z = jnp.zeros((Bp, P), jnp.float32)
        lax.fori_loop(0, T, step, (z, z), unroll=min(T, 8))
        return hseq_ref[...].reshape(TB, P)

    x_flat = x_ref[...].reshape(TB, x_ref.shape[2])
    h1_flat = run_layer(x_flat, wih1_ref, b1_ref, whh1_ref, ha_ref)
    h2_flat = run_layer(h1_flat, wih2_ref, b2_ref, whh2_ref, hb_ref)
    h3_flat = run_layer(h2_flat, wih3_ref, b3_ref, whh3_ref, ha_ref)

    # Linear head: one batched matmul + one lane-dense unmasked store.
    y = (jnp.dot(h3_flat, wout_ref[...], preferred_element_type=jnp.float32)
         + bout_ref[...])
    out_ref[...] = y.reshape(T, Bp, P)


# ----------------------------------------------------------------------------
# Padding helpers (const-folded under jit since params are captured constants)
# ----------------------------------------------------------------------------
def _pad_gate_weight(w_t, h, k_pad):
    """(d_in, 4h) -> (k_pad, 4*LANE): each gate in its own 128-lane slab, zero padded.
    k_pad is the (dense) contraction size actually stored — no 128-row K padding."""
    d_in = w_t.shape[0]
    out = jnp.zeros((k_pad, 4 * LANE), jnp.float32)
    for g in range(4):
        out = out.at[:d_in, g * LANE:g * LANE + h].set(w_t[:, g * h:(g + 1) * h])
    return out


def _pad_gate_bias(b, h):
    """(1, 4h) -> (1, 4*LANE) matching the padded gate layout."""
    b = b.reshape(1, 4 * h)
    out = jnp.zeros((1, 4 * LANE), jnp.float32)
    for g in range(4):
        out = out.at[:, g * LANE:g * LANE + h].set(b[:, g * h:(g + 1) * h])
    return out


# ----------------------------------------------------------------------------
# Wrapper
# ----------------------------------------------------------------------------
def stacked_easy_lstm_forward(x, params):
    """x: (B, T, nx) batch-first (matches PyTorch batch_first=True). Returns (B, T, ny)."""
    B, T, nx = x.shape
    ny = params["linear"]["w_t"].shape[1]
    Bp = _round_up(B, SUB)
    NXP = _round_up(nx, SUB)          # dense input width (no 128-lane zero slab)
    P = LANE
    G = 4 * LANE

    h1 = params["lstm1"]["w_hh_t"].shape[0]
    h2 = params["lstm2"]["w_hh_t"].shape[0]
    h3 = params["lstm3"]["w_hh_t"].shape[0]
    kh1, kh2, kh3 = _round_up(h1, SUB), _round_up(h2, SUB), _round_up(h3, SUB)

    # Layer 1: dense-K input weight (K = NXP) and dense-K recurrent weight (K = h1).
    wih1 = _pad_gate_weight(params["lstm1"]["w_ih_t"], h1, NXP)
    whh1 = _pad_gate_weight(params["lstm1"]["w_hh_t"], h1, kh1)
    b1 = _pad_gate_bias(params["lstm1"]["bias"], h1)
    # Layers 2/3: input projections read the 128-lane h sequence (one-time batched
    # matmuls), so their W_ih keep K = 128 (zero rows beyond the true hidden size);
    # the per-step recurrent weights stay dense-K.
    wih2 = _pad_gate_weight(params["lstm2"]["w_ih_t"], h2, P)
    whh2 = _pad_gate_weight(params["lstm2"]["w_hh_t"], h2, kh2)
    b2 = _pad_gate_bias(params["lstm2"]["bias"], h2)
    wih3 = _pad_gate_weight(params["lstm3"]["w_ih_t"], h3, P)
    whh3 = _pad_gate_weight(params["lstm3"]["w_hh_t"], h3, kh3)
    b3 = _pad_gate_bias(params["lstm3"]["bias"], h3)

    w_out = jnp.zeros((P, P), jnp.float32).at[:h3, :ny].set(params["linear"]["w_t"])
    b_out = jnp.zeros((1, P), jnp.float32).at[:, :ny].set(
        params["linear"]["b"].reshape(1, ny))

    # Input: time-major, batch padded to 8 sublanes, features padded only to 8 lanes.
    x_tm = jnp.transpose(x, (1, 0, 2)).astype(jnp.float32)            # (T, B, nx)
    x_pad = jnp.zeros((T, Bp, NXP), jnp.float32).at[:, :B, :nx].set(x_tm)

    def full(shape):
        return pl.BlockSpec(shape, lambda: (0,) * len(shape))

    out_pad = pl.pallas_call(
        _fused_kernel,
        out_shape=jax.ShapeDtypeStruct((T, Bp, P), jnp.float32),
        in_specs=[
            full((T, Bp, NXP)),                                 # x
            full((NXP, G)), full((kh1, G)), full((1, G)),       # lstm1
            full((P, G)),   full((kh2, G)), full((1, G)),       # lstm2
            full((P, G)),   full((kh3, G)), full((1, G)),       # lstm3
            full((P, P)), full((1, P)),                         # linear head
        ],
        out_specs=full((T, Bp, P)),
        scratch_shapes=[
            pltpu.VMEM((T, Bp, G), jnp.float32),   # batched gate projections (reused per layer)
            pltpu.VMEM((T, Bp, P), jnp.float32),   # h-sequence scratch A (layers 1 & 3)
            pltpu.VMEM((T, Bp, P), jnp.float32),   # h-sequence scratch B (layer 2)
        ],
        compiler_params=pltpu.CompilerParams(vmem_limit_bytes=32 * 1024 * 1024),
    )(x_pad, wih1, whh1, b1, wih2, whh2, b2, wih3, whh3, b3, w_out, b_out)
    # TODO(synk): for very long sequences (T >~ a few thousand) add a time-chunked
    # 'arbitrary' grid with h/c carried in scratch, and a 'parallel' batch axis on v7x.

    out = out_pad[:, :B, :ny]                 # strip batch/lane padding
    return jnp.transpose(out, (1, 0, 2))      # (B, T, ny)


# ----------------------------------------------------------------------------
# Deterministic parameter initialization (mirrors the module's _init_weights)
# ----------------------------------------------------------------------------
def _init_lstm_params(key, input_size, hidden_size):
    k_ih, k_hh = jax.random.split(key)
    G = 4 * hidden_size
    # weight_ih: xavier uniform on (4H, D)  -> stored transposed (D, 4H)
    w_ih = jax.nn.initializers.glorot_uniform()(k_ih, (G, input_size), jnp.float32)
    # weight_hh: orthogonal on (4H, H)      -> stored transposed (H, 4H)
    w_hh = jax.nn.initializers.orthogonal()(k_hh, (G, hidden_size), jnp.float32)
    # bias_ih + bias_hh, zeros with unit forget-gate bias each (=> 2.0 combined)
    bias = jnp.zeros((G,), jnp.float32)
    bias = bias.at[hidden_size:2 * hidden_size].set(2.0)
    return {
        "w_ih_t": jnp.asarray(w_ih.T),
        "w_hh_t": jnp.asarray(w_hh.T),
        "bias": bias.reshape(1, G),
    }


def make_params(key, nx, ny, hidden_size):
    k1, k2, k3, k4 = jax.random.split(key, 4)
    h1, h2, h3 = hidden_size, hidden_size // 2, hidden_size // 4
    w_out = jax.nn.initializers.glorot_uniform()(k4, (ny, h3), jnp.float32)
    return {
        "lstm1": _init_lstm_params(k1, nx, h1),
        "lstm2": _init_lstm_params(k2, h1, h2),
        "lstm3": _init_lstm_params(k3, h2, h3),
        "linear": {"w_t": jnp.asarray(w_out.T), "b": jnp.zeros((1, ny), jnp.float32)},
    }


# ----------------------------------------------------------------------------
# Pure-JAX reference (lax.scan) used to validate the Pallas kernel
# ----------------------------------------------------------------------------
def _ref_lstm_layer(x_tm, p):
    H = p["w_hh_t"].shape[0]

    def step(carry, x_t):
        h, c = carry
        gates = x_t @ p["w_ih_t"] + h @ p["w_hh_t"] + p["bias"]
        i = jax.nn.sigmoid(gates[:, :H])
        f = jax.nn.sigmoid(gates[:, H:2 * H])
        g = jnp.tanh(gates[:, 2 * H:3 * H])
        o = jax.nn.sigmoid(gates[:, 3 * H:])
        c_new = f * c + i * g
        h_new = o * jnp.tanh(c_new)
        return (h_new, c_new), h_new

    B = x_tm.shape[1]
    init = (jnp.zeros((B, H), jnp.float32), jnp.zeros((B, H), jnp.float32))
    _, ys = lax.scan(step, init, x_tm)
    return ys


def reference_forward(x, params):
    h = jnp.transpose(x, (1, 0, 2)).astype(jnp.float32)
    for layer in ("lstm1", "lstm2", "lstm3"):
        h = _ref_lstm_layer(h, params[layer])
    out = h @ params["linear"]["w_t"] + params["linear"]["b"]
    return jnp.transpose(out, (1, 0, 2))


# ----------------------------------------------------------------------------
if __name__ == "__main__":
    nx, ny, hidden_size = 4, 2, 32
    batch, seq = 2, 8

    key = jax.random.PRNGKey(0)
    k_x, k_p = jax.random.split(key)
    x = jax.random.normal(k_x, (batch, seq, nx), dtype=jnp.float32)
    params = make_params(k_p, nx, ny, hidden_size)

    fwd = jax.jit(functools.partial(stacked_easy_lstm_forward, params=params))
    out = fwd(x)
    jax.block_until_ready(out)

    ref = reference_forward(x, params)
    assert out.shape == (batch, seq, ny), out.shape
    np.testing.assert_allclose(np.asarray(out), np.asarray(ref), rtol=1e-4, atol=1e-4)

    print("KERNEL_OK")
</pallas_src>

<mosaic_0001>
module attributes {stable_mosaic.version = 11 : i64} {
  func.func @_fused_kernel(%arg0: memref<8x8x8xf32, #tpu.memory_space<vmem>>, %arg1: memref<8x512xf32, #tpu.memory_space<vmem>>, %arg2: memref<32x512xf32, #tpu.memory_space<vmem>>, %arg3: memref<1x512xf32, #tpu.memory_space<vmem>>, %arg4: memref<128x512xf32, #tpu.memory_space<vmem>>, %arg5: memref<16x512xf32, #tpu.memory_space<vmem>>, %arg6: memref<1x512xf32, #tpu.memory_space<vmem>>, %arg7: memref<128x512xf32, #tpu.memory_space<vmem>>, %arg8: memref<8x512xf32, #tpu.memory_space<vmem>>, %arg9: memref<1x512xf32, #tpu.memory_space<vmem>>, %arg10: memref<128x128xf32, #tpu.memory_space<vmem>>, %arg11: memref<1x128xf32, #tpu.memory_space<vmem>>, %arg12: memref<8x8x128xf32, #tpu.memory_space<vmem>>, %arg13: memref<8x8x512xf32, #tpu.memory_space<vmem>>, %arg14: memref<8x8x128xf32, #tpu.memory_space<vmem>>, %arg15: memref<8x8x128xf32, #tpu.memory_space<vmem>>) attributes {dimension_semantics = [], scalar_prefetch = 0 : i64, scratch_operands = 3 : i64, tpu.core_type = #tpu.core_type<tc>} {
    %c0 = arith.constant 0 : index
    %c0_0 = arith.constant 0 : index
    %c0_1 = arith.constant 0 : index
    %0 = vector.load %arg0[%c0, %c0_0, %c0_1] : memref<8x8x8xf32, #tpu.memory_space<vmem>>, vector<8x8x8xf32>
    %1 = vector.shape_cast %0 : vector<8x8x8xf32> to vector<64x8xf32>
    %c0_2 = arith.constant 0 : index
    %c0_3 = arith.constant 0 : index
    %2 = vector.load %arg1[%c0_2, %c0_3] : memref<8x512xf32, #tpu.memory_space<vmem>>, vector<8x512xf32>
    %cst = arith.constant dense<0.000000e+00> : vector<64x512xf32>
    %3 = tpu.matmul %1, %2, %cst {dimension_numbers = #tpu.dot_dimension_numbers<[1], [0], [0], [1], [0, 0, 1, 1], [], []>} : vector<64x8xf32>, vector<8x512xf32>, vector<64x512xf32> -> vector<64x512xf32>
    %c0_4 = arith.constant 0 : index
    %c0_5 = arith.constant 0 : index
    %4 = vector.load %arg3[%c0_4, %c0_5] : memref<1x512xf32, #tpu.memory_space<vmem>>, vector<1x512xf32>
    %5 = vector.broadcast %4 : vector<1x512xf32> to vector<64x512xf32>
    %6 = arith.addf %3, %5 : vector<64x512xf32>
    %7 = vector.shape_cast %6 : vector<64x512xf32> to vector<8x8x512xf32>
    %c0_6 = arith.constant 0 : index
    %c0_7 = arith.constant 0 : index
    %c0_8 = arith.constant 0 : index
    %8 = vector.load %arg13[%c0_6, %c0_7, %c0_8] : memref<8x8x512xf32, #tpu.memory_space<vmem>>, vector<8x8x512xf32>
    tpu.vector_store %arg13[%c0_6, %c0_7, %c0_8], %7 {strides = array<i32>} : memref<8x8x512xf32, #tpu.memory_space<vmem>>, vector<8x8x512xf32>,
    %c0_9 = arith.constant 0 : index
    %c0_10 = arith.constant 0 : index
    %9 = vector.load %arg2[%c0_9, %c0_10] : memref<32x512xf32, #tpu.memory_space<vmem>>, vector<32x512xf32>
    %cst_11 = arith.constant 0.000000e+00 : f32
    %10 = vector.broadcast %cst_11 : f32 to vector<8x128xf32>
    %c0_i32 = arith.constant 0 : i32
    %11 = arith.index_cast %c0_i32 : i32 to index
    %c0_12 = arith.constant 0 : index
    %c0_13 = arith.constant 0 : index
    %12 = vector.load %arg13[%11, %c0_12, %c0_13] : memref<8x8x512xf32, #tpu.memory_space<vmem>>, vector<1x8x512xf32>
    %13 = vector.shape_cast %12 : vector<1x8x512xf32> to vector<8x512xf32>
    %14 = vector.extract_strided_slice %10 {offsets = [0, 0], sizes = [8, 32], strides = [1, 1]} : vector<8x128xf32> to vector<8x32xf32>
    %cst_14 = arith.constant dense<0.000000e+00> : vector<8x512xf32>
    %15 = tpu.matmul %14, %9, %cst_14 {dimension_numbers = #tpu.dot_dimension_numbers<[1], [0], [0], [1], [0, 0, 1, 1], [], []>} : vector<8x32xf32>, vector<32x512xf32>, vector<8x512xf32> -> vector<8x512xf32>
    %16 = arith.addf %13, %15 : vector<8x512xf32>
    %17 = vector.extract_strided_slice %16 {offsets = [0, 0], sizes = [8, 128], strides = [1, 1]} : vector<8x512xf32> to vector<8x128xf32>
    %18 = arith.negf %17 : vector<8x128xf32>
    %19 = math.exp %18 : vector<8x128xf32>
    %cst_15 = arith.constant 1.000000e+00 : f32
    %20 = vector.broadcast %cst_15 : f32 to vector<8x128xf32>
    %21 = arith.addf %20, %19 : vector<8x128xf32>
    %22 = arith.divf %20, %21 : vector<8x128xf32>
    %23 = vector.extract_strided_slice %16 {offsets = [0, 128], sizes = [8, 128], strides = [1, 1]} : vector<8x512xf32> to vector<8x128xf32>
    %24 = arith.negf %23 : vector<8x128xf32>
    %25 = math.exp %24 : vector<8x128xf32>
    %cst_16 = arith.constant 1.000000e+00 : f32
    %26 = vector.broadcast %cst_16 : f32 to vector<8x128xf32>
    %27 = arith.addf %26, %25 : vector<8x128xf32>
    %28 = arith.divf %26, %27 : vector<8x128xf32>
    %29 = vector.extract_strided_slice %16 {offsets = [0, 256], sizes = [8, 128], strides = [1, 1]} : vector<8x512xf32> to vector<8x128xf32>
    %30 = math.tanh %29 : vector<8x128xf32>
    %31 = vector.extract_strided_slice %16 {offsets = [0, 384], sizes = [8, 128], strides = [1, 1]} : vector<8x512xf32> to vector<8x128xf32>
    %32 = arith.negf %31 : vector<8x128xf32>
    %33 = math.exp %32 : vector<8x128xf32>
    %cst_17 = arith.constant 1.000000e+00 : f32
    %34 = vector.broadcast %cst_17 : f32 to vector<8x128xf32>
    %35 = arith.addf %34, %33 : vector<8x128xf32>
    %36 = arith.divf %34, %35 : vector<8x128xf32>
    %37 = arith.mulf %28, %10 : vector<8x128xf32>
    %38 = arith.mulf %22, %30 : vector<8x128xf32>
    %39 = arith.addf %37, %38 : vector<8x128xf32>
    %40 = math.tanh %39 : vector<8x128xf32>
    %41 = arith.mulf %36, %40 : vector<8x128xf32>
    %42 = arith.index_cast %c0_i32 : i32 to index
    %c0_18 = arith.constant 0 : index
    %c0_19 = arith.constant 0 : index
    %43 = vector.load %arg14[%42, %c0_18, %c0_19] : memref<8x8x128xf32, #tpu.memory_space<vmem>>, vector<1x8x128xf32>
    %44 = vector.shape_cast %43 : vector<1x8x128xf32> to vector<8x128xf32>
    %45 = vector.shape_cast %41 : vector<8x128xf32> to vector<1x8x128xf32>
    tpu.vector_store %arg14[%42, %c0_18, %c0_19], %45 {strides = array<i32>} : memref<8x8x128xf32, #tpu.memory_space<vmem>>, vector<1x8x128xf32>,
    %c1_i32 = arith.constant 1 : i32
    %46 = arith.index_cast %c1_i32 : i32 to index
    %c0_20 = arith.constant 0 : index
    %c0_21 = arith.constant 0 : index
    %47 = vector.load %arg13[%46, %c0_20, %c0_21] : memref<8x8x512xf32, #tpu.memory_space<vmem>>, vector<1x8x512xf32>
    %48 = vector.shape_cast %47 : vector<1x8x512xf32> to vector<8x512xf32>
    %49 = vector.extract_strided_slice %41 {offsets = [0, 0], sizes = [8, 32], strides = [1, 1]} : vector<8x128xf32> to vector<8x32xf32>
    %cst_22 = arith.constant dense<0.000000e+00> : vector<8x512xf32>
    %50 = tpu.matmul %49, %9, %cst_22 {dimension_numbers = #tpu.dot_dimension_numbers<[1], [0], [0], [1], [0, 0, 1, 1], [], []>} : vector<8x32xf32>, vector<32x512xf32>, vector<8x512xf32> -> vector<8x512xf32>
    %51 = arith.addf %48, %50 : vector<8x512xf32>
    %52 = vector.extract_strided_slice %51 {offsets = [0, 0], sizes = [8, 128], strides = [1, 1]} : vector<8x512xf32> to vector<8x128xf32>
    %53 = arith.negf %52 : vector<8x128xf32>
    %54 = math.exp %53 : vector<8x128xf32>
    %cst_23 = arith.constant 1.000000e+00 : f32
    %55 = vector.broadcast %cst_23 : f32 to vector<8x128xf32>
    %56 = arith.addf %55, %54 : vector<8x128xf32>
    %57 = arith.divf %55, %56 : vector<8x128xf32>
    %58 = vector.extract_strided_slice %51 {offsets = [0, 128], sizes = [8, 128], strides = [1, 1]} : vector<8x512xf32> to vector<8x128xf32>
    %59 = arith.negf %58 : vector<8x128xf32>
    %60 = math.exp %59 : vector<8x128xf32>
    %cst_24 = arith.constant 1.000000e+00 : f32
    %61 = vector.broadcast %cst_24 : f32 to vector<8x128xf32>
    %62 = arith.addf %61, %60 : vector<8x128xf32>
    %63 = arith.divf %61, %62 : vector<8x128xf32>
    %64 = vector.extract_strided_slice %51 {offsets = [0, 256], sizes = [8, 128], strides = [1, 1]} : vector<8x512xf32> to vector<8x128xf32>
    %65 = math.tanh %64 : vector<8x128xf32>
    %66 = vector.extract_strided_slice %51 {offsets = [0, 384], sizes = [8, 128], strides = [1, 1]} : vector<8x512xf32> to vector<8x128xf32>
    %67 = arith.negf %66 : vector<8x128xf32>
    %68 = math.exp %67 : vector<8x128xf32>
    %cst_25 = arith.constant 1.000000e+00 : f32
    %69 = vector.broadcast %cst_25 : f32 to vector<8x128xf32>
    %70 = arith.addf %69, %68 : vector<8x128xf32>
    %71 = arith.divf %69, %70 : vector<8x128xf32>
    %72 = arith.mulf %63, %39 : vector<8x128xf32>
    %73 = arith.mulf %57, %65 : vector<8x128xf32>
    %74 = arith.addf %72, %73 : vector<8x128xf32>
    %75 = math.tanh %74 : vector<8x128xf32>
    %76 = arith.mulf %71, %75 : vector<8x128xf32>
    %77 = arith.index_cast %c1_i32 : i32 to index
    %c0_26 = arith.constant 0 : index
    %c0_27 = arith.constant 0 : index
    %78 = vector.load %arg14[%77, %c0_26, %c0_27] : memref<8x8x128xf32, #tpu.memory_space<vmem>>, vector<1x8x128xf32>
    %79 = vector.shape_cast %78 : vector<1x8x128xf32> to vector<8x128xf32>
    %80 = vector.shape_cast %76 : vector<8x128xf32> to vector<1x8x128xf32>
    tpu.vector_store %arg14[%77, %c0_26, %c0_27], %80 {strides = array<i32>} : memref<8x8x128xf32, #tpu.memory_space<vmem>>, vector<1x8x128xf32>,
    %c2_i32 = arith.constant 2 : i32
    %81 = arith.index_cast %c2_i32 : i32 to index
    %c0_28 = arith.constant 0 : index
    %c0_29 = arith.constant 0 : index
    %82 = vector.load %arg13[%81, %c0_28, %c0_29] : memref<8x8x512xf32, #tpu.memory_space<vmem>>, vector<1x8x512xf32>
    %83 = vector.shape_cast %82 : vector<1x8x512xf32> to vector<8x512xf32>
    %84 = vector.extract_strided_slice %76 {offsets = [0, 0], sizes = [8, 32], strides = [1, 1]} : vector<8x128xf32> to vector<8x32xf32>
    %cst_30 = arith.constant dense<0.000000e+00> : vector<8x512xf32>
    %85 = tpu.matmul %84, %9, %cst_30 {dimension_numbers = #tpu.dot_dimension_numbers<[1], [0], [0], [1], [0, 0, 1, 1], [], []>} : vector<8x32xf32>, vector<32x512xf32>, vector<8x512xf32> -> vector<8x512xf32>
    %86 = arith.addf %83, %85 : vector<8x512xf32>
    %87 = vector.extract_strided_slice %86 {offsets = [0, 0], sizes = [8, 128], strides = [1, 1]} : vector<8x512xf32> to vector<8x128xf32>
    %88 = arith.negf %87 : vector<8x128xf32>
    %89 = math.exp %88 : vector<8x128xf32>
    %cst_31 = arith.constant 1.000000e+00 : f32
    %90 = vector.broadcast %cst_31 : f32 to vector<8x128xf32>
    %91 = arith.addf %90, %89 : vector<8x128xf32>
    %92 = arith.divf %90, %91 : vector<8x128xf32>
    %93 = vector.extract_strided_slice %86 {offsets = [0, 128], sizes = [8, 128], strides = [1, 1]} : vector<8x512xf32> to vector<8x128xf32>
    %94 = arith.negf %93 : vector<8x128xf32>
    %95 = math.exp %94 : vector<8x128xf32>
    %cst_32 = arith.constant 1.000000e+00 : f32
    %96 = vector.broadcast %cst_32 : f32 to vector<8x128xf32>
    %97 = arith.addf %96, %95 : vector<8x128xf32>
    %98 = arith.divf %96, %97 : vector<8x128xf32>
    %99 = vector.extract_strided_slice %86 {offsets = [0, 256], sizes = [8, 128], strides = [1, 1]} : vector<8x512xf32> to vector<8x128xf32>
    %100 = math.tanh %99 : vector<8x128xf32>
    %101 = vector.extract_strided_slice %86 {offsets = [0, 384], sizes = [8, 128], strides = [1, 1]} : vector<8x512xf32> to vector<8x128xf32>
    %102 = arith.negf %101 : vector<8x128xf32>
    %103 = math.exp %102 : vector<8x128xf32>
    %cst_33 = arith.constant 1.000000e+00 : f32
    %104 = vector.broadcast %cst_33 : f32 to vector<8x128xf32>
    %105 = arith.addf %104, %103 : vector<8x128xf32>
    %106 = arith.divf %104, %105 : vector<8x128xf32>
    %107 = arith.mulf %98, %74 : vector<8x128xf32>
    %108 = arith.mulf %92, %100 : vector<8x128xf32>
    %109 = arith.addf %107, %108 : vector<8x128xf32>
    %110 = math.tanh %109 : vector<8x128xf32>
    %111 = arith.mulf %106, %110 : vector<8x128xf32>
    %112 = arith.index_cast %c2_i32 : i32 to index
    %c0_34 = arith.constant 0 : index
    %c0_35 = arith.constant 0 : index
    %113 = vector.load %arg14[%112, %c0_34, %c0_35] : memref<8x8x128xf32, #tpu.memory_space<vmem>>, vector<1x8x128xf32>
    %114 = vector.shape_cast %113 : vector<1x8x128xf32> to vector<8x128xf32>
    %115 = vector.shape_cast %111 : vector<8x128xf32> to vector<1x8x128xf32>
    tpu.vector_store %arg14[%112, %c0_34, %c0_35], %115 {strides = array<i32>} : memref<8x8x128xf32, #tpu.memory_space<vmem>>, vector<1x8x128xf32>,
    %c3_i32 = arith.constant 3 : i32
    %116 = arith.index_cast %c3_i32 : i32 to index
    %c0_36 = arith.constant 0 : index
    %c0_37 = arith.constant 0 : index
    %117 = vector.load %arg13[%116, %c0_36, %c0_37] : memref<8x8x512xf32, #tpu.memory_space<vmem>>, vector<1x8x512xf32>
    %118 = vector.shape_cast %117 : vector<1x8x512xf32> to vector<8x512xf32>
    %119 = vector.extract_strided_slice %111 {offsets = [0, 0], sizes = [8, 32], strides = [1, 1]} : vector<8x128xf32> to vector<8x32xf32>
    %cst_38 = arith.constant dense<0.000000e+00> : vector<8x512xf32>
    %120 = tpu.matmul %119, %9, %cst_38 {dimension_numbers = #tpu.dot_dimension_numbers<[1], [0], [0], [1], [0, 0, 1, 1], [], []>} : vector<8x32xf32>, vector<32x512xf32>, vector<8x512xf32> -> vector<8x512xf32>
    %121 = arith.addf %118, %120 : vector<8x512xf32>
    %122 = vector.extract_strided_slice %121 {offsets = [0, 0], sizes = [8, 128], strides = [1, 1]} : vector<8x512xf32> to vector<8x128xf32>
    %123 = arith.negf %122 : vector<8x128xf32>
    %124 = math.exp %123 : vector<8x128xf32>
    %cst_39 = arith.constant 1.000000e+00 : f32
    %125 = vector.broadcast %cst_39 : f32 to vector<8x128xf32>
    %126 = arith.addf %125, %124 : vector<8x128xf32>
    %127 = arith.divf %125, %126 : vector<8x128xf32>
    %128 = vector.extract_strided_slice %121 {offsets = [0, 128], sizes = [8, 128], strides = [1, 1]} : vector<8x512xf32> to vector<8x128xf32>
    %129 = arith.negf %128 : vector<8x128xf32>
    %130 = math.exp %129 : vector<8x128xf32>
    %cst_40 = arith.constant 1.000000e+00 : f32
    %131 = vector.broadcast %cst_40 : f32 to vector<8x128xf32>
    %132 = arith.addf %131, %130 : vector<8x128xf32>
    %133 = arith.divf %131, %132 : vector<8x128xf32>
    %134 = vector.extract_strided_slice %121 {offsets = [0, 256], sizes = [8, 128], strides = [1, 1]} : vector<8x512xf32> to vector<8x128xf32>
    %135 = math.tanh %134 : vector<8x128xf32>
    %136 = vector.extract_strided_slice %121 {offsets = [0, 384], sizes = [8, 128], strides = [1, 1]} : vector<8x512xf32> to vector<8x128xf32>
    %137 = arith.negf %136 : vector<8x128xf32>
    %138 = math.exp %137 : vector<8x128xf32>
    %cst_41 = arith.constant 1.000000e+00 : f32
    %139 = vector.broadcast %cst_41 : f32 to vector<8x128xf32>
    %140 = arith.addf %139, %138 : vector<8x128xf32>
    %141 = arith.divf %139, %140 : vector<8x128xf32>
    %142 = arith.mulf %133, %109 : vector<8x128xf32>
    %143 = arith.mulf %127, %135 : vector<8x128xf32>
    %144 = arith.addf %142, %143 : vector<8x128xf32>
    %145 = math.tanh %144 : vector<8x128xf32>
    %146 = arith.mulf %141, %145 : vector<8x128xf32>
    %147 = arith.index_cast %c3_i32 : i32 to index
    %c0_42 = arith.constant 0 : index
    %c0_43 = arith.constant 0 : index
    %148 = vector.load %arg14[%147, %c0_42, %c0_43] : memref<8x8x128xf32, #tpu.memory_space<vmem>>, vector<1x8x128xf32>
    %149 = vector.shape_cast %148 : vector<1x8x128xf32> to vector<8x128xf32>
    %150 = vector.shape_cast %146 : vector<8x128xf32> to vector<1x8x128xf32>
    tpu.vector_store %arg14[%147, %c0_42, %c0_43], %150 {strides = array<i32>} : memref<8x8x128xf32, #tpu.memory_space<vmem>>, vector<1x8x128xf32>,
    %c4_i32 = arith.constant 4 : i32
    %151 = arith.index_cast %c4_i32 : i32 to index
    %c0_44 = arith.constant 0 : index
    %c0_45 = arith.constant 0 : index
    %152 = vector.load %arg13[%151, %c0_44, %c0_45] : memref<8x8x512xf32, #tpu.memory_space<vmem>>, vector<1x8x512xf32>
    %153 = vector.shape_cast %152 : vector<1x8x512xf32> to vector<8x512xf32>
    %154 = vector.extract_strided_slice %146 {offsets = [0, 0], sizes = [8, 32], strides = [1, 1]} : vector<8x128xf32> to vector<8x32xf32>
    %cst_46 = arith.constant dense<0.000000e+00> : vector<8x512xf32>
    %155 = tpu.matmul %154, %9, %cst_46 {dimension_numbers = #tpu.dot_dimension_numbers<[1], [0], [0], [1], [0, 0, 1, 1], [], []>} : vector<8x32xf32>, vector<32x512xf32>, vector<8x512xf32> -> vector<8x512xf32>
    %156 = arith.addf %153, %155 : vector<8x512xf32>
    %157 = vector.extract_strided_slice %156 {offsets = [0, 0], sizes = [8, 128], strides = [1, 1]} : vector<8x512xf32> to vector<8x128xf32>
    %158 = arith.negf %157 : vector<8x128xf32>
    %159 = math.exp %158 : vector<8x128xf32>
    %cst_47 = arith.constant 1.000000e+00 : f32
    %160 = vector.broadcast %cst_47 : f32 to vector<8x128xf32>
    %161 = arith.addf %160, %159 : vector<8x128xf32>
    %162 = arith.divf %160, %161 : vector<8x128xf32>
    %163 = vector.extract_strided_slice %156 {offsets = [0, 128], sizes = [8, 128], strides = [1, 1]} : vector<8x512xf32> to vector<8x128xf32>
    %164 = arith.negf %163 : vector<8x128xf32>
    %165 = math.exp %164 : vector<8x128xf32>
    %cst_48 = arith.constant 1.000000e+00 : f32
    %166 = vector.broadcast %cst_48 : f32 to vector<8x128xf32>
    %167 = arith.addf %166, %165 : vector<8x128xf32>
    %168 = arith.divf %166, %167 : vector<8x128xf32>
    %169 = vector.extract_strided_slice %156 {offsets = [0, 256], sizes = [8, 128], strides = [1, 1]} : vector<8x512xf32> to vector<8x128xf32>
    %170 = math.tanh %169 : vector<8x128xf32>
    %171 = vector.extract_strided_slice %156 {offsets = [0, 384], sizes = [8, 128], strides = [1, 1]} : vector<8x512xf32> to vector<8x128xf32>
    %172 = arith.negf %171 : vector<8x128xf32>
    %173 = math.exp %172 : vector<8x128xf32>
    %cst_49 = arith.constant 1.000000e+00 : f32
    %174 = vector.broadcast %cst_49 : f32 to vector<8x128xf32>
    %175 = arith.addf %174, %173 : vector<8x128xf32>
    %176 = arith.divf %174, %175 : vector<8x128xf32>
    %177 = arith.mulf %168, %144 : vector<8x128xf32>
    %178 = arith.mulf %162, %170 : vector<8x128xf32>
    %179 = arith.addf %177, %178 : vector<8x128xf32>
    %180 = math.tanh %179 : vector<8x128xf32>
    %181 = arith.mulf %176, %180 : vector<8x128xf32>
    %182 = arith.index_cast %c4_i32 : i32 to index
    %c0_50 = arith.constant 0 : index
    %c0_51 = arith.constant 0 : index
    %183 = vector.load %arg14[%182, %c0_50, %c0_51] : memref<8x8x128xf32, #tpu.memory_space<vmem>>, vector<1x8x128xf32>
    %184 = vector.shape_cast %183 : vector<1x8x128xf32> to vector<8x128xf32>
    %185 = vector.shape_cast %181 : vector<8x128xf32> to vector<1x8x128xf32>
    tpu.vector_store %arg14[%182, %c0_50, %c0_51], %185 {strides = array<i32>} : memref<8x8x128xf32, #tpu.memory_space<vmem>>, vector<1x8x128xf32>,
    %c5_i32 = arith.constant 5 : i32
    %186 = arith.index_cast %c5_i32 : i32 to index
    %c0_52 = arith.constant 0 : index
    %c0_53 = arith.constant 0 : index
    %187 = vector.load %arg13[%186, %c0_52, %c0_53] : memref<8x8x512xf32, #tpu.memory_space<vmem>>, vector<1x8x512xf32>
    %188 = vector.shape_cast %187 : vector<1x8x512xf32> to vector<8x512xf32>
    %189 = vector.extract_strided_slice %181 {offsets = [0, 0], sizes = [8, 32], strides = [1, 1]} : vector<8x128xf32> to vector<8x32xf32>
    %cst_54 = arith.constant dense<0.000000e+00> : vector<8x512xf32>
    %190 = tpu.matmul %189, %9, %cst_54 {dimension_numbers = #tpu.dot_dimension_numbers<[1], [0], [0], [1], [0, 0, 1, 1], [], []>} : vector<8x32xf32>, vector<32x512xf32>, vector<8x512xf32> -> vector<8x512xf32>
    %191 = arith.addf %188, %190 : vector<8x512xf32>
    %192 = vector.extract_strided_slice %191 {offsets = [0, 0], sizes = [8, 128], strides = [1, 1]} : vector<8x512xf32> to vector<8x128xf32>
    %193 = arith.negf %192 : vector<8x128xf32>
    %194 = math.exp %193 : vector<8x128xf32>
    %cst_55 = arith.constant 1.000000e+00 : f32
    %195 = vector.broadcast %cst_55 : f32 to vector<8x128xf32>
    %196 = arith.addf %195, %194 : vector<8x128xf32>
    %197 = arith.divf %195, %196 : vector<8x128xf32>
    %198 = vector.extract_strided_slice %191 {offsets = [0, 128], sizes = [8, 128], strides = [1, 1]} : vector<8x512xf32> to vector<8x128xf32>
    %199 = arith.negf %198 : vector<8x128xf32>
    %200 = math.exp %199 : vector<8x128xf32>
    %cst_56 = arith.constant 1.000000e+00 : f32
    %201 = vector.broadcast %cst_56 : f32 to vector<8x128xf32>
    %202 = arith.addf %201, %200 : vector<8x128xf32>
    %203 = arith.divf %201, %202 : vector<8x128xf32>
    %204 = vector.extract_strided_slice %191 {offsets = [0, 256], sizes = [8, 128], strides = [1, 1]} : vector<8x512xf32> to vector<8x128xf32>
    %205 = math.tanh %204 : vector<8x128xf32>
    %206 = vector.extract_strided_slice %191 {offsets = [0, 384], sizes = [8, 128], strides = [1, 1]} : vector<8x512xf32> to vector<8x128xf32>
    %207 = arith.negf %206 : vector<8x128xf32>
    %208 = math.exp %207 : vector<8x128xf32>
    %cst_57 = arith.constant 1.000000e+00 : f32
    %209 = vector.broadcast %cst_57 : f32 to vector<8x128xf32>
    %210 = arith.addf %209, %208 : vector<8x128xf32>
    %211 = arith.divf %209, %210 : vector<8x128xf32>
    %212 = arith.mulf %203, %179 : vector<8x128xf32>
    %213 = arith.mulf %197, %205 : vector<8x128xf32>
    %214 = arith.addf %212, %213 : vector<8x128xf32>
    %215 = math.tanh %214 : vector<8x128xf32>
    %216 = arith.mulf %211, %215 : vector<8x128xf32>
    %217 = arith.index_cast %c5_i32 : i32 to index
    %c0_58 = arith.constant 0 : index
    %c0_59 = arith.constant 0 : index
    %218 = vector.load %arg14[%217, %c0_58, %c0_59] : memref<8x8x128xf32, #tpu.memory_space<vmem>>, vector<1x8x128xf32>
    %219 = vector.shape_cast %218 : vector<1x8x128xf32> to vector<8x128xf32>
    %220 = vector.shape_cast %216 : vector<8x128xf32> to vector<1x8x128xf32>
    tpu.vector_store %arg14[%217, %c0_58, %c0_59], %220 {strides = array<i32>} : memref<8x8x128xf32, #tpu.memory_space<vmem>>, vector<1x8x128xf32>,
    %c6_i32 = arith.constant 6 : i32
    %221 = arith.index_cast %c6_i32 : i32 to index
    %c0_60 = arith.constant 0 : index
    %c0_61 = arith.constant 0 : index
    %222 = vector.load %arg13[%221, %c0_60, %c0_61] : memref<8x8x512xf32, #tpu.memory_space<vmem>>, vector<1x8x512xf32>
    %223 = vector.shape_cast %222 : vector<1x8x512xf32> to vector<8x512xf32>
    %224 = vector.extract_strided_slice %216 {offsets = [0, 0], sizes = [8, 32], strides = [1, 1]} : vector<8x128xf32> to vector<8x32xf32>
    %cst_62 = arith.constant dense<0.000000e+00> : vector<8x512xf32>
    %225 = tpu.matmul %224, %9, %cst_62 {dimension_numbers = #tpu.dot_dimension_numbers<[1], [0], [0], [1], [0, 0, 1, 1], [], []>} : vector<8x32xf32>, vector<32x512xf32>, vector<8x512xf32> -> vector<8x512xf32>
    %226 = arith.addf %223, %225 : vector<8x512xf32>
    %227 = vector.extract_strided_slice %226 {offsets = [0, 0], sizes = [8, 128], strides = [1, 1]} : vector<8x512xf32> to vector<8x128xf32>
    %228 = arith.negf %227 : vector<8x128xf32>
    %229 = math.exp %228 : vector<8x128xf32>
    %cst_63 = arith.constant 1.000000e+00 : f32
    %230 = vector.broadcast %cst_63 : f32 to vector<8x128xf32>
    %231 = arith.addf %230, %229 : vector<8x128xf32>
    %232 = arith.divf %230, %231 : vector<8x128xf32>
    %233 = vector.extract_strided_slice %226 {offsets = [0, 128], sizes = [8, 128], strides = [1, 1]} : vector<8x512xf32> to vector<8x128xf32>
    %234 = arith.negf %233 : vector<8x128xf32>
    %235 = math.exp %234 : vector<8x128xf32>
    %cst_64 = arith.constant 1.000000e+00 : f32
    %236 = vector.broadcast %cst_64 : f32 to vector<8x128xf32>
    %237 = arith.addf %236, %235 : vector<8x128xf32>
    %238 = arith.divf %236, %237 : vector<8x128xf32>
    %239 = vector.extract_strided_slice %226 {offsets = [0, 256], sizes = [8, 128], strides = [1, 1]} : vector<8x512xf32> to vector<8x128xf32>
    %240 = math.tanh %239 : vector<8x128xf32>
    %241 = vector.extract_strided_slice %226 {offsets = [0, 384], sizes = [8, 128], strides = [1, 1]} : vector<8x512xf32> to vector<8x128xf32>
    %242 = arith.negf %241 : vector<8x128xf32>
    %243 = math.exp %242 : vector<8x128xf32>
    %cst_65 = arith.constant 1.000000e+00 : f32
    %244 = vector.broadcast %cst_65 : f32 to vector<8x128xf32>
    %245 = arith.addf %244, %243 : vector<8x128xf32>
    %246 = arith.divf %244, %245 : vector<8x128xf32>
    %247 = arith.mulf %238, %214 : vector<8x128xf32>
    %248 = arith.mulf %232, %240 : vector<8x128xf32>
    %249 = arith.addf %247, %248 : vector<8x128xf32>
    %250 = math.tanh %249 : vector<8x128xf32>
    %251 = arith.mulf %246, %250 : vector<8x128xf32>
    %252 = arith.index_cast %c6_i32 : i32 to index
    %c0_66 = arith.constant 0 : index
    %c0_67 = arith.constant 0 : index
    %253 = vector.load %arg14[%252, %c0_66, %c0_67] : memref<8x8x128xf32, #tpu.memory_space<vmem>>, vector<1x8x128xf32>
    %254 = vector.shape_cast %253 : vector<1x8x128xf32> to vector<8x128xf32>
    %255 = vector.shape_cast %251 : vector<8x128xf32> to vector<1x8x128xf32>
    tpu.vector_store %arg14[%252, %c0_66, %c0_67], %255 {strides = array<i32>} : memref<8x8x128xf32, #tpu.memory_space<vmem>>, vector<1x8x128xf32>,
    %c7_i32 = arith.constant 7 : i32
    %256 = arith.index_cast %c7_i32 : i32 to index
    %c0_68 = arith.constant 0 : index
    %c0_69 = arith.constant 0 : index
    %257 = vector.load %arg13[%256, %c0_68, %c0_69] : memref<8x8x512xf32, #tpu.memory_space<vmem>>, vector<1x8x512xf32>
    %258 = vector.shape_cast %257 : vector<1x8x512xf32> to vector<8x512xf32>
    %259 = vector.extract_strided_slice %251 {offsets = [0, 0], sizes = [8, 32], strides = [1, 1]} : vector<8x128xf32> to vector<8x32xf32>
    %cst_70 = arith.constant dense<0.000000e+00> : vector<8x512xf32>
    %260 = tpu.matmul %259, %9, %cst_70 {dimension_numbers = #tpu.dot_dimension_numbers<[1], [0], [0], [1], [0, 0, 1, 1], [], []>} : vector<8x32xf32>, vector<32x512xf32>, vector<8x512xf32> -> vector<8x512xf32>
    %261 = arith.addf %258, %260 : vector<8x512xf32>
    %262 = vector.extract_strided_slice %261 {offsets = [0, 0], sizes = [8, 128], strides = [1, 1]} : vector<8x512xf32> to vector<8x128xf32>
    %263 = arith.negf %262 : vector<8x128xf32>
    %264 = math.exp %263 : vector<8x128xf32>
    %cst_71 = arith.constant 1.000000e+00 : f32
    %265 = vector.broadcast %cst_71 : f32 to vector<8x128xf32>
    %266 = arith.addf %265, %264 : vector<8x128xf32>
    %267 = arith.divf %265, %266 : vector<8x128xf32>
    %268 = vector.extract_strided_slice %261 {offsets = [0, 128], sizes = [8, 128], strides = [1, 1]} : vector<8x512xf32> to vector<8x128xf32>
    %269 = arith.negf %268 : vector<8x128xf32>
    %270 = math.exp %269 : vector<8x128xf32>
    %cst_72 = arith.constant 1.000000e+00 : f32
    %271 = vector.broadcast %cst_72 : f32 to vector<8x128xf32>
    %272 = arith.addf %271, %270 : vector<8x128xf32>
    %273 = arith.divf %271, %272 : vector<8x128xf32>
    %274 = vector.extract_strided_slice %261 {offsets = [0, 256], sizes = [8, 128], strides = [1, 1]} : vector<8x512xf32> to vector<8x128xf32>
    %275 = math.tanh %274 : vector<8x128xf32>
    %276 = vector.extract_strided_slice %261 {offsets = [0, 384], sizes = [8, 128], strides = [1, 1]} : vector<8x512xf32> to vector<8x128xf32>
    %277 = arith.negf %276 : vector<8x128xf32>
    %278 = math.exp %277 : vector<8x128xf32>
    %cst_73 = arith.constant 1.000000e+00 : f32
    %279 = vector.broadcast %cst_73 : f32 to vector<8x128xf32>
    %280 = arith.addf %279, %278 : vector<8x128xf32>
    %281 = arith.divf %279, %280 : vector<8x128xf32>
    %282 = arith.mulf %273, %249 : vector<8x128xf32>
    %283 = arith.mulf %267, %275 : vector<8x128xf32>
    %284 = arith.addf %282, %283 : vector<8x128xf32>
    %285 = math.tanh %284 : vector<8x128xf32>
    %286 = arith.mulf %281, %285 : vector<8x128xf32>
    %287 = arith.index_cast %c7_i32 : i32 to index
    %c0_74 = arith.constant 0 : index
    %c0_75 = arith.constant 0 : index
    %288 = vector.load %arg14[%287, %c0_74, %c0_75] : memref<8x8x128xf32, #tpu.memory_space<vmem>>, vector<1x8x128xf32>
    %289 = vector.shape_cast %288 : vector<1x8x128xf32> to vector<8x128xf32>
    %290 = vector.shape_cast %286 : vector<8x128xf32> to vector<1x8x128xf32>
    tpu.vector_store %arg14[%287, %c0_74, %c0_75], %290 {strides = array<i32>} : memref<8x8x128xf32, #tpu.memory_space<vmem>>, vector<1x8x128xf32>,
    %c8_i32 = arith.constant 8 : i32
    %c0_76 = arith.constant 0 : index
    %c0_77 = arith.constant 0 : index
    %c0_78 = arith.constant 0 : index
    %291 = vector.load %arg14[%c0_76, %c0_77, %c0_78] : memref<8x8x128xf32, #tpu.memory_space<vmem>>, vector<8x8x128xf32>
    %292 = vector.shape_cast %291 : vector<8x8x128xf32> to vector<64x128xf32>
    %c0_79 = arith.constant 0 : index
    %c0_80 = arith.constant 0 : index
    %293 = vector.load %arg4[%c0_79, %c0_80] : memref<128x512xf32, #tpu.memory_space<vmem>>, vector<128x512xf32>
    %cst_81 = arith.constant dense<0.000000e+00> : vector<64x512xf32>
    %294 = tpu.matmul %292, %293, %cst_81 {dimension_numbers = #tpu.dot_dimension_numbers<[1], [0], [0], [1], [0, 0, 1, 1], [], []>} : vector<64x128xf32>, vector<128x512xf32>, vector<64x512xf32> -> vector<64x512xf32>
    %c0_82 = arith.constant 0 : index
    %c0_83 = arith.constant 0 : index
    %295 = vector.load %arg6[%c0_82, %c0_83] : memref<1x512xf32, #tpu.memory_space<vmem>>, vector<1x512xf32>
    %296 = vector.broadcast %295 : vector<1x512xf32> to vector<64x512xf32>
    %297 = arith.addf %294, %296 : vector<64x512xf32>
    %298 = vector.shape_cast %297 : vector<64x512xf32> to vector<8x8x512xf32>
    %c0_84 = arith.constant 0 : index
    %c0_85 = arith.constant 0 : index
    %c0_86 = arith.constant 0 : index
    %299 = vector.load %arg13[%c0_84, %c0_85, %c0_86] : memref<8x8x512xf32, #tpu.memory_space<vmem>>, vector<8x8x512xf32>
    tpu.vector_store %arg13[%c0_84, %c0_85, %c0_86], %298 {strides = array<i32>} : memref<8x8x512xf32, #tpu.memory_space<vmem>>, vector<8x8x512xf32>,
    %c0_87 = arith.constant 0 : index
    %c0_88 = arith.constant 0 : index
    %300 = vector.load %arg5[%c0_87, %c0_88] : memref<16x512xf32, #tpu.memory_space<vmem>>, vector<16x512xf32>
    %cst_89 = arith.constant 0.000000e+00 : f32
    %301 = vector.broadcast %cst_89 : f32 to vector<8x128xf32>
    %c0_i32_90 = arith.constant 0 : i32
    %302 = arith.index_cast %c0_i32_90 : i32 to index
    %c0_91 = arith.constant 0 : index
    %c0_92 = arith.constant 0 : index
    %303 = vector.load %arg13[%302, %c0_91, %c0_92] : memref<8x8x512xf32, #tpu.memory_space<vmem>>, vector<1x8x512xf32>
    %304 = vector.shape_cast %303 : vector<1x8x512xf32> to vector<8x512xf32>
    %305 = vector.extract_strided_slice %301 {offsets = [0, 0], sizes = [8, 16], strides = [1, 1]} : vector<8x128xf32> to vector<8x16xf32>
    %cst_93 = arith.constant dense<0.000000e+00> : vector<8x512xf32>
    %306 = tpu.matmul %305, %300, %cst_93 {dimension_numbers = #tpu.dot_dimension_numbers<[1], [0], [0], [1], [0, 0, 1, 1], [], []>} : vector<8x16xf32>, vector<16x512xf32>, vector<8x512xf32> -> vector<8x512xf32>
    %307 = arith.addf %304, %306 : vector<8x512xf32>
    %308 = vector.extract_strided_slice %307 {offsets = [0, 0], sizes = [8, 128], strides = [1, 1]} : vector<8x512xf32> to vector<8x128xf32>
    %309 = arith.negf %308 : vector<8x128xf32>
    %310 = math.exp %309 : vector<8x128xf32>
    %cst_94 = arith.constant 1.000000e+00 : f32
    %311 = vector.broadcast %cst_94 : f32 to vector<8x128xf32>
    %312 = arith.addf %311, %310 : vector<8x128xf32>
    %313 = arith.divf %311, %312 : vector<8x128xf32>
    %314 = vector.extract_strided_slice %307 {offsets = [0, 128], sizes = [8, 128], strides = [1, 1]} : vector<8x512xf32> to vector<8x128xf32>
    %315 = arith.negf %314 : vector<8x128xf32>
    %316 = math.exp %315 : vector<8x128xf32>
    %cst_95 = arith.constant 1.000000e+00 : f32
    %317 = vector.broadcast %cst_95 : f32 to vector<8x128xf32>
    %318 = arith.addf %317, %316 : vector<8x128xf32>
    %319 = arith.divf %317, %318 : vector<8x128xf32>
    %320 = vector.extract_strided_slice %307 {offsets = [0, 256], sizes = [8, 128], strides = [1, 1]} : vector<8x512xf32> to vector<8x128xf32>
    %321 = math.tanh %320 : vector<8x128xf32>
    %322 = vector.extract_strided_slice %307 {offsets = [0, 384], sizes = [8, 128], strides = [1, 1]} : vector<8x512xf32> to vector<8x128xf32>
    %323 = arith.negf %322 : vector<8x128xf32>
    %324 = math.exp %323 : vector<8x128xf32>
    %cst_96 = arith.constant 1.000000e+00 : f32
    %325 = vector.broadcast %cst_96 : f32 to vector<8x128xf32>
    %326 = arith.addf %325, %324 : vector<8x128xf32>
    %327 = arith.divf %325, %326 : vector<8x128xf32>
    %328 = arith.mulf %319, %301 : vector<8x128xf32>
    %329 = arith.mulf %313, %321 : vector<8x128xf32>
    %330 = arith.addf %328, %329 : vector<8x128xf32>
    %331 = math.tanh %330 : vector<8x128xf32>
    %332 = arith.mulf %327, %331 : vector<8x128xf32>
    %333 = arith.index_cast %c0_i32_90 : i32 to index
    %c0_97 = arith.constant 0 : index
    %c0_98 = arith.constant 0 : index
    %334 = vector.load %arg15[%333, %c0_97, %c0_98] : memref<8x8x128xf32, #tpu.memory_space<vmem>>, vector<1x8x128xf32>
    %335 = vector.shape_cast %334 : vector<1x8x128xf32> to vector<8x128xf32>
    %336 = vector.shape_cast %332 : vector<8x128xf32> to vector<1x8x128xf32>
    tpu.vector_store %arg15[%333, %c0_97, %c0_98], %336 {strides = array<i32>} : memref<8x8x128xf32, #tpu.memory_space<vmem>>, vector<1x8x128xf32>,
    %c1_i32_99 = arith.constant 1 : i32
    %337 = arith.index_cast %c1_i32_99 : i32 to index
    %c0_100 = arith.constant 0 : index
    %c0_101 = arith.constant 0 : index
    %338 = vector.load %arg13[%337, %c0_100, %c0_101] : memref<8x8x512xf32, #tpu.memory_space<vmem>>, vector<1x8x512xf32>
    %339 = vector.shape_cast %338 : vector<1x8x512xf32> to vector<8x512xf32>
    %340 = vector.extract_strided_slice %332 {offsets = [0, 0], sizes = [8, 16], strides = [1, 1]} : vector<8x128xf32> to vector<8x16xf32>
    %cst_102 = arith.constant dense<0.000000e+00> : vector<8x512xf32>
    %341 = tpu.matmul %340, %300, %cst_102 {dimension_numbers = #tpu.dot_dimension_numbers<[1], [0], [0], [1], [0, 0, 1, 1], [], []>} : vector<8x16xf32>, vector<16x512xf32>, vector<8x512xf32> -> vector<8x512xf32>
    %342 = arith.addf %339, %341 : vector<8x512xf32>
    %343 = vector.extract_strided_slice %342 {offsets = [0, 0], sizes = [8, 128], strides = [1, 1]} : vector<8x512xf32> to vector<8x128xf32>
    %344 = arith.negf %343 : vector<8x128xf32>
    %345 = math.exp %344 : vector<8x128xf32>
    %cst_103 = arith.constant 1.000000e+00 : f32
    %346 = vector.broadcast %cst_103 : f32 to vector<8x128xf32>
    %347 = arith.addf %346, %345 : vector<8x128xf32>
    %348 = arith.divf %346, %347 : vector<8x128xf32>
    %349 = vector.extract_strided_slice %342 {offsets = [0, 128], sizes = [8, 128], strides = [1, 1]} : vector<8x512xf32> to vector<8x128xf32>
    %350 = arith.negf %349 : vector<8x128xf32>
    %351 = math.exp %350 : vector<8x128xf32>
    %cst_104 = arith.constant 1.000000e+00 : f32
    %352 = vector.broadcast %cst_104 : f32 to vector<8x128xf32>
    %353 = arith.addf %352, %351 : vector<8x128xf32>
    %354 = arith.divf %352, %353 : vector<8x128xf32>
    %355 = vector.extract_strided_slice %342 {offsets = [0, 256], sizes = [8, 128], strides = [1, 1]} : vector<8x512xf32> to vector<8x128xf32>
    %356 = math.tanh %355 : vector<8x128xf32>
    %357 = vector.extract_strided_slice %342 {offsets = [0, 384], sizes = [8, 128], strides = [1, 1]} : vector<8x512xf32> to vector<8x128xf32>
    %358 = arith.negf %357 : vector<8x128xf32>
    %359 = math.exp %358 : vector<8x128xf32>
    %cst_105 = arith.constant 1.000000e+00 : f32
    %360 = vector.broadcast %cst_105 : f32 to vector<8x128xf32>
    %361 = arith.addf %360, %359 : vector<8x128xf32>
    %362 = arith.divf %360, %361 : vector<8x128xf32>
    %363 = arith.mulf %354, %330 : vector<8x128xf32>
    %364 = arith.mulf %348, %356 : vector<8x128xf32>
    %365 = arith.addf %363, %364 : vector<8x128xf32>
    %366 = math.tanh %365 : vector<8x128xf32>
    %367 = arith.mulf %362, %366 : vector<8x128xf32>
    %368 = arith.index_cast %c1_i32_99 : i32 to index
    %c0_106 = arith.constant 0 : index
    %c0_107 = arith.constant 0 : index
    %369 = vector.load %arg15[%368, %c0_106, %c0_107] : memref<8x8x128xf32, #tpu.memory_space<vmem>>, vector<1x8x128xf32>
    %370 = vector.shape_cast %369 : vector<1x8x128xf32> to vector<8x128xf32>
    %371 = vector.shape_cast %367 : vector<8x128xf32> to vector<1x8x128xf32>
    tpu.vector_store %arg15[%368, %c0_106, %c0_107], %371 {strides = array<i32>} : memref<8x8x128xf32, #tpu.memory_space<vmem>>, vector<1x8x128xf32>,
    %c2_i32_108 = arith.constant 2 : i32
    %372 = arith.index_cast %c2_i32_108 : i32 to index
    %c0_109 = arith.constant 0 : index
    %c0_110 = arith.constant 0 : index
    %373 = vector.load %arg13[%372, %c0_109, %c0_110] : memref<8x8x512xf32, #tpu.memory_space<vmem>>, vector<1x8x512xf32>
    %374 = vector.shape_cast %373 : vector<1x8x512xf32> to vector<8x512xf32>
    %375 = vector.extract_strided_slice %367 {offsets = [0, 0], sizes = [8, 16], strides = [1, 1]} : vector<8x128xf32> to vector<8x16xf32>
    %cst_111 = arith.constant dense<0.000000e+00> : vector<8x512xf32>
    %376 = tpu.matmul %375, %300, %cst_111 {dimension_numbers = #tpu.dot_dimension_numbers<[1], [0], [0], [1], [0, 0, 1, 1], [], []>} : vector<8x16xf32>, vector<16x512xf32>, vector<8x512xf32> -> vector<8x512xf32>
    %377 = arith.addf %374, %376 : vector<8x512xf32>
    %378 = vector.extract_strided_slice %377 {offsets = [0, 0], sizes = [8, 128], strides = [1, 1]} : vector<8x512xf32> to vector<8x128xf32>
    %379 = arith.negf %378 : vector<8x128xf32>
    %380 = math.exp %379 : vector<8x128xf32>
    %cst_112 = arith.constant 1.000000e+00 : f32
    %381 = vector.broadcast %cst_112 : f32 to vector<8x128xf32>
    %382 = arith.addf %381, %380 : vector<8x128xf32>
    %383 = arith.divf %381, %382 : vector<8x128xf32>
    %384 = vector.extract_strided_slice %377 {offsets = [0, 128], sizes = [8, 128], strides = [1, 1]} : vector<8x512xf32> to vector<8x128xf32>
    %385 = arith.negf %384 : vector<8x128xf32>
    %386 = math.exp %385 : vector<8x128xf32>
    %cst_113 = arith.constant 1.000000e+00 : f32
    %387 = vector.broadcast %cst_113 : f32 to vector<8x128xf32>
    %388 = arith.addf %387, %386 : vector<8x128xf32>
    %389 = arith.divf %387, %388 : vector<8x128xf32>
    %390 = vector.extract_strided_slice %377 {offsets = [0, 256], sizes = [8, 128], strides = [1, 1]} : vector<8x512xf32> to vector<8x128xf32>
    %391 = math.tanh %390 : vector<8x128xf32>
    %392 = vector.extract_strided_slice %377 {offsets = [0, 384], sizes = [8, 128], strides = [1, 1]} : vector<8x512xf32> to vector<8x128xf32>
    %393 = arith.negf %392 : vector<8x128xf32>
    %394 = math.exp %393 : vector<8x128xf32>
    %cst_114 = arith.constant 1.000000e+00 : f32
    %395 = vector.broadcast %cst_114 : f32 to vector<8x128xf32>
    %396 = arith.addf %395, %394 : vector<8x128xf32>
    %397 = arith.divf %395, %396 : vector<8x128xf32>
    %398 = arith.mulf %389, %365 : vector<8x128xf32>
    %399 = arith.mulf %383, %391 : vector<8x128xf32>
    %400 = arith.addf %398, %399 : vector<8x128xf32>
    %401 = math.tanh %400 : vector<8x128xf32>
    %402 = arith.mulf %397, %401 : vector<8x128xf32>
    %403 = arith.index_cast %c2_i32_108 : i32 to index
    %c0_115 = arith.constant 0 : index
    %c0_116 = arith.constant 0 : index
    %404 = vector.load %arg15[%403, %c0_115, %c0_116] : memref<8x8x128xf32, #tpu.memory_space<vmem>>, vector<1x8x128xf32>
    %405 = vector.shape_cast %404 : vector<1x8x128xf32> to vector<8x128xf32>
    %406 = vector.shape_cast %402 : vector<8x128xf32> to vector<1x8x128xf32>
    tpu.vector_store %arg15[%403, %c0_115, %c0_116], %406 {strides = array<i32>} : memref<8x8x128xf32, #tpu.memory_space<vmem>>, vector<1x8x128xf32>,
    %c3_i32_117 = arith.constant 3 : i32
    %407 = arith.index_cast %c3_i32_117 : i32 to index
    %c0_118 = arith.constant 0 : index
    %c0_119 = arith.constant 0 : index
    %408 = vector.load %arg13[%407, %c0_118, %c0_119] : memref<8x8x512xf32, #tpu.memory_space<vmem>>, vector<1x8x512xf32>
    %409 = vector.shape_cast %408 : vector<1x8x512xf32> to vector<8x512xf32>
    %410 = vector.extract_strided_slice %402 {offsets = [0, 0], sizes = [8, 16], strides = [1, 1]} : vector<8x128xf32> to vector<8x16xf32>
    %cst_120 = arith.constant dense<0.000000e+00> : vector<8x512xf32>
    %411 = tpu.matmul %410, %300, %cst_120 {dimension_numbers = #tpu.dot_dimension_numbers<[1], [0], [0], [1], [0, 0, 1, 1], [], []>} : vector<8x16xf32>, vector<16x512xf32>, vector<8x512xf32> -> vector<8x512xf32>
    %412 = arith.addf %409, %411 : vector<8x512xf32>
    %413 = vector.extract_strided_slice %412 {offsets = [0, 0], sizes = [8, 128], strides = [1, 1]} : vector<8x512xf32> to vector<8x128xf32>
    %414 = arith.negf %413 : vector<8x128xf32>
    %415 = math.exp %414 : vector<8x128xf32>
    %cst_121 = arith.constant 1.000000e+00 : f32
    %416 = vector.broadcast %cst_121 : f32 to vector<8x128xf32>
    %417 = arith.addf %416, %415 : vector<8x128xf32>
    %418 = arith.divf %416, %417 : vector<8x128xf32>
    %419 = vector.extract_strided_slice %412 {offsets = [0, 128], sizes = [8, 128], strides = [1, 1]} : vector<8x512xf32> to vector<8x128xf32>
    %420 = arith.negf %419 : vector<8x128xf32>
    %421 = math.exp %420 : vector<8x128xf32>
    %cst_122 = arith.constant 1.000000e+00 : f32
    %422 = vector.broadcast %cst_122 : f32 to vector<8x128xf32>
    %423 = arith.addf %422, %421 : vector<8x128xf32>
    %424 = arith.divf %422, %423 : vector<8x128xf32>
    %425 = vector.extract_strided_slice %412 {offsets = [0, 256], sizes = [8, 128], strides = [1, 1]} : vector<8x512xf32> to vector<8x128xf32>
    %426 = math.tanh %425 : vector<8x128xf32>
    %427 = vector.extract_strided_slice %412 {offsets = [0, 384], sizes = [8, 128], strides = [1, 1]} : vector<8x512xf32> to vector<8x128xf32>
    %428 = arith.negf %427 : vector<8x128xf32>
    %429 = math.exp %428 : vector<8x128xf32>
    %cst_123 = arith.constant 1.000000e+00 : f32
    %430 = vector.broadcast %cst_123 : f32 to vector<8x128xf32>
    %431 = arith.addf %430, %429 : vector<8x128xf32>
    %432 = arith.divf %430, %431 : vector<8x128xf32>
    %433 = arith.mulf %424, %400 : vector<8x128xf32>
    %434 = arith.mulf %418, %426 : vector<8x128xf32>
    %435 = arith.addf %433, %434 : vector<8x128xf32>
    %436 = math.tanh %435 : vector<8x128xf32>
    %437 = arith.mulf %432, %436 : vector<8x128xf32>
    %438 = arith.index_cast %c3_i32_117 : i32 to index
    %c0_124 = arith.constant 0 : index
    %c0_125 = arith.constant 0 : index
    %439 = vector.load %arg15[%438, %c0_124, %c0_125] : memref<8x8x128xf32, #tpu.memory_space<vmem>>, vector<1x8x128xf32>
    %440 = vector.shape_cast %439 : vector<1x8x128xf32> to vector<8x128xf32>
    %441 = vector.shape_cast %437 : vector<8x128xf32> to vector<1x8x128xf32>
    tpu.vector_store %arg15[%438, %c0_124, %c0_125], %441 {strides = array<i32>} : memref<8x8x128xf32, #tpu.memory_space<vmem>>, vector<1x8x128xf32>,
    %c4_i32_126 = arith.constant 4 : i32
    %442 = arith.index_cast %c4_i32_126 : i32 to index
    %c0_127 = arith.constant 0 : index
    %c0_128 = arith.constant 0 : index
    %443 = vector.load %arg13[%442, %c0_127, %c0_128] : memref<8x8x512xf32, #tpu.memory_space<vmem>>, vector<1x8x512xf32>
    %444 = vector.shape_cast %443 : vector<1x8x512xf32> to vector<8x512xf32>
    %445 = vector.extract_strided_slice %437 {offsets = [0, 0], sizes = [8, 16], strides = [1, 1]} : vector<8x128xf32> to vector<8x16xf32>
    %cst_129 = arith.constant dense<0.000000e+00> : vector<8x512xf32>
    %446 = tpu.matmul %445, %300, %cst_129 {dimension_numbers = #tpu.dot_dimension_numbers<[1], [0], [0], [1], [0, 0, 1, 1], [], []>} : vector<8x16xf32>, vector<16x512xf32>, vector<8x512xf32> -> vector<8x512xf32>
    %447 = arith.addf %444, %446 : vector<8x512xf32>
    %448 = vector.extract_strided_slice %447 {offsets = [0, 0], sizes = [8, 128], strides = [1, 1]} : vector<8x512xf32> to vector<8x128xf32>
    %449 = arith.negf %448 : vector<8x128xf32>
    %450 = math.exp %449 : vector<8x128xf32>
    %cst_130 = arith.constant 1.000000e+00 : f32
    %451 = vector.broadcast %cst_130 : f32 to vector<8x128xf32>
    %452 = arith.addf %451, %450 : vector<8x128xf32>
    %453 = arith.divf %451, %452 : vector<8x128xf32>
    %454 = vector.extract_strided_slice %447 {offsets = [0, 128], sizes = [8, 128], strides = [1, 1]} : vector<8x512xf32> to vector<8x128xf32>
    %455 = arith.negf %454 : vector<8x128xf32>
    %456 = math.exp %455 : vector<8x128xf32>
    %cst_131 = arith.constant 1.000000e+00 : f32
    %457 = vector.broadcast %cst_131 : f32 to vector<8x128xf32>
    %458 = arith.addf %457, %456 : vector<8x128xf32>
    %459 = arith.divf %457, %458 : vector<8x128xf32>
    %460 = vector.extract_strided_slice %447 {offsets = [0, 256], sizes = [8, 128], strides = [1, 1]} : vector<8x512xf32> to vector<8x128xf32>
    %461 = math.tanh %460 : vector<8x128xf32>
    %462 = vector.extract_strided_slice %447 {offsets = [0, 384], sizes = [8, 128], strides = [1, 1]} : vector<8x512xf32> to vector<8x128xf32>
    %463 = arith.negf %462 : vector<8x128xf32>
    %464 = math.exp %463 : vector<8x128xf32>
    %cst_132 = arith.constant 1.000000e+00 : f32
    %465 = vector.broadcast %cst_132 : f32 to vector<8x128xf32>
    %466 = arith.addf %465, %464 : vector<8x128xf32>
    %467 = arith.divf %465, %466 : vector<8x128xf32>
    %468 = arith.mulf %459, %435 : vector<8x128xf32>
    %469 = arith.mulf %453, %461 : vector<8x128xf32>
    %470 = arith.addf %468, %469 : vector<8x128xf32>
    %471 = math.tanh %470 : vector<8x128xf32>
    %472 = arith.mulf %467, %471 : vector<8x128xf32>
    %473 = arith.index_cast %c4_i32_126 : i32 to index
    %c0_133 = arith.constant 0 : index
    %c0_134 = arith.constant 0 : index
    %474 = vector.load %arg15[%473, %c0_133, %c0_134] : memref<8x8x128xf32, #tpu.memory_space<vmem>>, vector<1x8x128xf32>
    %475 = vector.shape_cast %474 : vector<1x8x128xf32> to vector<8x128xf32>
    %476 = vector.shape_cast %472 : vector<8x128xf32> to vector<1x8x128xf32>
    tpu.vector_store %arg15[%473, %c0_133, %c0_134], %476 {strides = array<i32>} : memref<8x8x128xf32, #tpu.memory_space<vmem>>, vector<1x8x128xf32>,
    %c5_i32_135 = arith.constant 5 : i32
    %477 = arith.index_cast %c5_i32_135 : i32 to index
    %c0_136 = arith.constant 0 : index
    %c0_137 = arith.constant 0 : index
    %478 = vector.load %arg13[%477, %c0_136, %c0_137] : memref<8x8x512xf32, #tpu.memory_space<vmem>>, vector<1x8x512xf32>
    %479 = vector.shape_cast %478 : vector<1x8x512xf32> to vector<8x512xf32>
    %480 = vector.extract_strided_slice %472 {offsets = [0, 0], sizes = [8, 16], strides = [1, 1]} : vector<8x128xf32> to vector<8x16xf32>
    %cst_138 = arith.constant dense<0.000000e+00> : vector<8x512xf32>
    %481 = tpu.matmul %480, %300, %cst_138 {dimension_numbers = #tpu.dot_dimension_numbers<[1], [0], [0], [1], [0, 0, 1, 1], [], []>} : vector<8x16xf32>, vector<16x512xf32>, vector<8x512xf32> -> vector<8x512xf32>
    %482 = arith.addf %479, %481 : vector<8x512xf32>
    %483 = vector.extract_strided_slice %482 {offsets = [0, 0], sizes = [8, 128], strides = [1, 1]} : vector<8x512xf32> to vector<8x128xf32>
    %484 = arith.negf %483 : vector<8x128xf32>
    %485 = math.exp %484 : vector<8x128xf32>
    %cst_139 = arith.constant 1.000000e+00 : f32
    %486 = vector.broadcast %cst_139 : f32 to vector<8x128xf32>
    %487 = arith.addf %486, %485 : vector<8x128xf32>
    %488 = arith.divf %486, %487 : vector<8x128xf32>
    %489 = vector.extract_strided_slice %482 {offsets = [0, 128], sizes = [8, 128], strides = [1, 1]} : vector<8x512xf32> to vector<8x128xf32>
    %490 = arith.negf %489 : vector<8x128xf32>
    %491 = math.exp %490 : vector<8x128xf32>
    %cst_140 = arith.constant 1.000000e+00 : f32
    %492 = vector.broadcast %cst_140 : f32 to vector<8x128xf32>
    %493 = arith.addf %492, %491 : vector<8x128xf32>
    %494 = arith.divf %492, %493 : vector<8x128xf32>
    %495 = vector.extract_strided_slice %482 {offsets = [0, 256], sizes = [8, 128], strides = [1, 1]} : vector<8x512xf32> to vector<8x128xf32>
    %496 = math.tanh %495 : vector<8x128xf32>
    %497 = vector.extract_strided_slice %482 {offsets = [0, 384], sizes = [8, 128], strides = [1, 1]} : vector<8x512xf32> to vector<8x128xf32>
    %498 = arith.negf %497 : vector<8x128xf32>
    %499 = math.exp %498 : vector<8x128xf32>
    %cst_141 = arith.constant 1.000000e+00 : f32
    %500 = vector.broadcast %cst_141 : f32 to vector<8x128xf32>
    %501 = arith.addf %500, %499 : vector<8x128xf32>
    %502 = arith.divf %500, %501 : vector<8x128xf32>
    %503 = arith.mulf %494, %470 : vector<8x128xf32>
    %504 = arith.mulf %488, %496 : vector<8x128xf32>
    %505 = arith.addf %503, %504 : vector<8x128xf32>
    %506 = math.tanh %505 : vector<8x128xf32>
    %507 = arith.mulf %502, %506 : vector<8x128xf32>
    %508 = arith.index_cast %c5_i32_135 : i32 to index
    %c0_142 = arith.constant 0 : index
    %c0_143 = arith.constant 0 : index
    %509 = vector.load %arg15[%508, %c0_142, %c0_143] : memref<8x8x128xf32, #tpu.memory_space<vmem>>, vector<1x8x128xf32>
    %510 = vector.shape_cast %509 : vector<1x8x128xf32> to vector<8x128xf32>
    %511 = vector.shape_cast %507 : vector<8x128xf32> to vector<1x8x128xf32>
    tpu.vector_store %arg15[%508, %c0_142, %c0_143], %511 {strides = array<i32>} : memref<8x8x128xf32, #tpu.memory_space<vmem>>, vector<1x8x128xf32>,
    %c6_i32_144 = arith.constant 6 : i32
    %512 = arith.index_cast %c6_i32_144 : i32 to index
    %c0_145 = arith.constant 0 : index
    %c0_146 = arith.constant 0 : index
    %513 = vector.load %arg13[%512, %c0_145, %c0_146] : memref<8x8x512xf32, #tpu.memory_space<vmem>>, vector<1x8x512xf32>
    %514 = vector.shape_cast %513 : vector<1x8x512xf32> to vector<8x512xf32>
    %515 = vector.extract_strided_slice %507 {offsets = [0, 0], sizes = [8, 16], strides = [1, 1]} : vector<8x128xf32> to vector<8x16xf32>
    %cst_147 = arith.constant dense<0.000000e+00> : vector<8x512xf32>
    %516 = tpu.matmul %515, %300, %cst_147 {dimension_numbers = #tpu.dot_dimension_numbers<[1], [0], [0], [1], [0, 0, 1, 1], [], []>} : vector<8x16xf32>, vector<16x512xf32>, vector<8x512xf32> -> vector<8x512xf32>
    %517 = arith.addf %514, %516 : vector<8x512xf32>
    %518 = vector.extract_strided_slice %517 {offsets = [0, 0], sizes = [8, 128], strides = [1, 1]} : vector<8x512xf32> to vector<8x128xf32>
    %519 = arith.negf %518 : vector<8x128xf32>
    %520 = math.exp %519 : vector<8x128xf32>
    %cst_148 = arith.constant 1.000000e+00 : f32
    %521 = vector.broadcast %cst_148 : f32 to vector<8x128xf32>
    %522 = arith.addf %521, %520 : vector<8x128xf32>
    %523 = arith.divf %521, %522 : vector<8x128xf32>
    %524 = vector.extract_strided_slice %517 {offsets = [0, 128], sizes = [8, 128], strides = [1, 1]} : vector<8x512xf32> to vector<8x128xf32>
    %525 = arith.negf %524 : vector<8x128xf32>
    %526 = math.exp %525 : vector<8x128xf32>
    %cst_149 = arith.constant 1.000000e+00 : f32
    %527 = vector.broadcast %cst_149 : f32 to vector<8x128xf32>
    %528 = arith.addf %527, %526 : vector<8x128xf32>
    %529 = arith.divf %527, %528 : vector<8x128xf32>
    %530 = vector.extract_strided_slice %517 {offsets = [0, 256], sizes = [8, 128], strides = [1, 1]} : vector<8x512xf32> to vector<8x128xf32>
    %531 = math.tanh %530 : vector<8x128xf32>
    %532 = vector.extract_strided_slice %517 {offsets = [0, 384], sizes = [8, 128], strides = [1, 1]} : vector<8x512xf32> to vector<8x128xf32>
    %533 = arith.negf %532 : vector<8x128xf32>
    %534 = math.exp %533 : vector<8x128xf32>
    %cst_150 = arith.constant 1.000000e+00 : f32
    %535 = vector.broadcast %cst_150 : f32 to vector<8x128xf32>
    %536 = arith.addf %535, %534 : vector<8x128xf32>
    %537 = arith.divf %535, %536 : vector<8x128xf32>
    %538 = arith.mulf %529, %505 : vector<8x128xf32>
    %539 = arith.mulf %523, %531 : vector<8x128xf32>
    %540 = arith.addf %538, %539 : vector<8x128xf32>
    %541 = math.tanh %540 : vector<8x128xf32>
    %542 = arith.mulf %537, %541 : vector<8x128xf32>
    %543 = arith.index_cast %c6_i32_144 : i32 to index
    %c0_151 = arith.constant 0 : index
    %c0_152 = arith.constant 0 : index
    %544 = vector.load %arg15[%543, %c0_151, %c0_152] : memref<8x8x128xf32, #tpu.memory_space<vmem>>, vector<1x8x128xf32>
    %545 = vector.shape_cast %544 : vector<1x8x128xf32> to vector<8x128xf32>
    %546 = vector.shape_cast %542 : vector<8x128xf32> to vector<1x8x128xf32>
    tpu.vector_store %arg15[%543, %c0_151, %c0_152], %546 {strides = array<i32>} : memref<8x8x128xf32, #tpu.memory_space<vmem>>, vector<1x8x128xf32>,
    %c7_i32_153 = arith.constant 7 : i32
    %547 = arith.index_cast %c7_i32_153 : i32 to index
    %c0_154 = arith.constant 0 : index
    %c0_155 = arith.constant 0 : index
    %548 = vector.load %arg13[%547, %c0_154, %c0_155] : memref<8x8x512xf32, #tpu.memory_space<vmem>>, vector<1x8x512xf32>
    %549 = vector.shape_cast %548 : vector<1x8x512xf32> to vector<8x512xf32>
    %550 = vector.extract_strided_slice %542 {offsets = [0, 0], sizes = [8, 16], strides = [1, 1]} : vector<8x128xf32> to vector<8x16xf32>
    %cst_156 = arith.constant dense<0.000000e+00> : vector<8x512xf32>
    %551 = tpu.matmul %550, %300, %cst_156 {dimension_numbers = #tpu.dot_dimension_numbers<[1], [0], [0], [1], [0, 0, 1, 1], [], []>} : vector<8x16xf32>, vector<16x512xf32>, vector<8x512xf32> -> vector<8x512xf32>
    %552 = arith.addf %549, %551 : vector<8x512xf32>
    %553 = vector.extract_strided_slice %552 {offsets = [0, 0], sizes = [8, 128], strides = [1, 1]} : vector<8x512xf32> to vector<8x128xf32>
    %554 = arith.negf %553 : vector<8x128xf32>
    %555 = math.exp %554 : vector<8x128xf32>
    %cst_157 = arith.constant 1.000000e+00 : f32
    %556 = vector.broadcast %cst_157 : f32 to vector<8x128xf32>
    %557 = arith.addf %556, %555 : vector<8x128xf32>
    %558 = arith.divf %556, %557 : vector<8x128xf32>
    %559 = vector.extract_strided_slice %552 {offsets = [0, 128], sizes = [8, 128], strides = [1, 1]} : vector<8x512xf32> to vector<8x128xf32>
    %560 = arith.negf %559 : vector<8x128xf32>
    %561 = math.exp %560 : vector<8x128xf32>
    %cst_158 = arith.constant 1.000000e+00 : f32
    %562 = vector.broadcast %cst_158 : f32 to vector<8x128xf32>
    %563 = arith.addf %562, %561 : vector<8x128xf32>
    %564 = arith.divf %562, %563 : vector<8x128xf32>
    %565 = vector.extract_strided_slice %552 {offsets = [0, 256], sizes = [8, 128], strides = [1, 1]} : vector<8x512xf32> to vector<8x128xf32>
    %566 = math.tanh %565 : vector<8x128xf32>
    %567 = vector.extract_strided_slice %552 {offsets = [0, 384], sizes = [8, 128], strides = [1, 1]} : vector<8x512xf32> to vector<8x128xf32>
    %568 = arith.negf %567 : vector<8x128xf32>
    %569 = math.exp %568 : vector<8x128xf32>
    %cst_159 = arith.constant 1.000000e+00 : f32
    %570 = vector.broadcast %cst_159 : f32 to vector<8x128xf32>
    %571 = arith.addf %570, %569 : vector<8x128xf32>
    %572 = arith.divf %570, %571 : vector<8x128xf32>
    %573 = arith.mulf %564, %540 : vector<8x128xf32>
    %574 = arith.mulf %558, %566 : vector<8x128xf32>
    %575 = arith.addf %573, %574 : vector<8x128xf32>
    %576 = math.tanh %575 : vector<8x128xf32>
    %577 = arith.mulf %572, %576 : vector<8x128xf32>
    %578 = arith.index_cast %c7_i32_153 : i32 to index
    %c0_160 = arith.constant 0 : index
    %c0_161 = arith.constant 0 : index
    %579 = vector.load %arg15[%578, %c0_160, %c0_161] : memref<8x8x128xf32, #tpu.memory_space<vmem>>, vector<1x8x128xf32>
    %580 = vector.shape_cast %579 : vector<1x8x128xf32> to vector<8x128xf32>
    %581 = vector.shape_cast %577 : vector<8x128xf32> to vector<1x8x128xf32>
    tpu.vector_store %arg15[%578, %c0_160, %c0_161], %581 {strides = array<i32>} : memref<8x8x128xf32, #tpu.memory_space<vmem>>, vector<1x8x128xf32>,
    %c8_i32_162 = arith.constant 8 : i32
    %c0_163 = arith.constant 0 : index
    %c0_164 = arith.constant 0 : index
    %c0_165 = arith.constant 0 : index
    %582 = vector.load %arg15[%c0_163, %c0_164, %c0_165] : memref<8x8x128xf32, #tpu.memory_space<vmem>>, vector<8x8x128xf32>
    %583 = vector.shape_cast %582 : vector<8x8x128xf32> to vector<64x128xf32>
    %c0_166 = arith.constant 0 : index
    %c0_167 = arith.constant 0 : index
    %584 = vector.load %arg7[%c0_166, %c0_167] : memref<128x512xf32, #tpu.memory_space<vmem>>, vector<128x512xf32>
    %cst_168 = arith.constant dense<0.000000e+00> : vector<64x512xf32>
    %585 = tpu.matmul %583, %584, %cst_168 {dimension_numbers = #tpu.dot_dimension_numbers<[1], [0], [0], [1], [0, 0, 1, 1], [], []>} : vector<64x128xf32>, vector<128x512xf32>, vector<64x512xf32> -> vector<64x512xf32>
    %c0_169 = arith.constant 0 : index
    %c0_170 = arith.constant 0 : index
    %586 = vector.load %arg9[%c0_169, %c0_170] : memref<1x512xf32, #tpu.memory_space<vmem>>, vector<1x512xf32>
    %587 = vector.broadcast %586 : vector<1x512xf32> to vector<64x512xf32>
    %588 = arith.addf %585, %587 : vector<64x512xf32>
    %589 = vector.shape_cast %588 : vector<64x512xf32> to vector<8x8x512xf32>
    %c0_171 = arith.constant 0 : index
    %c0_172 = arith.constant 0 : index
    %c0_173 = arith.constant 0 : index
    %590 = vector.load %arg13[%c0_171, %c0_172, %c0_173] : memref<8x8x512xf32, #tpu.memory_space<vmem>>, vector<8x8x512xf32>
    tpu.vector_store %arg13[%c0_171, %c0_172, %c0_173], %589 {strides = array<i32>} : memref<8x8x512xf32, #tpu.memory_space<vmem>>, vector<8x8x512xf32>,
    %c0_174 = arith.constant 0 : index
    %c0_175 = arith.constant 0 : index
    %591 = vector.load %arg8[%c0_174, %c0_175] : memref<8x512xf32, #tpu.memory_space<vmem>>, vector<8x512xf32>
    %cst_176 = arith.constant 0.000000e+00 : f32
    %592 = vector.broadcast %cst_176 : f32 to vector<8x128xf32>
    %c0_i32_177 = arith.constant 0 : i32
    %593 = arith.index_cast %c0_i32_177 : i32 to index
    %c0_178 = arith.constant 0 : index
    %c0_179 = arith.constant 0 : index
    %594 = vector.load %arg13[%593, %c0_178, %c0_179] : memref<8x8x512xf32, #tpu.memory_space<vmem>>, vector<1x8x512xf32>
    %595 = vector.shape_cast %594 : vector<1x8x512xf32> to vector<8x512xf32>
    %596 = vector.extract_strided_slice %592 {offsets = [0, 0], sizes = [8, 8], strides = [1, 1]} : vector<8x128xf32> to vector<8x8xf32>
    %cst_180 = arith.constant dense<0.000000e+00> : vector<8x512xf32>
    %597 = tpu.matmul %596, %591, %cst_180 {dimension_numbers = #tpu.dot_dimension_numbers<[1], [0], [0], [1], [0, 0, 1, 1], [], []>} : vector<8x8xf32>, vector<8x512xf32>, vector<8x512xf32> -> vector<8x512xf32>
    %598 = arith.addf %595, %597 : vector<8x512xf32>
    %599 = vector.extract_strided_slice %598 {offsets = [0, 0], sizes = [8, 128], strides = [1, 1]} : vector<8x512xf32> to vector<8x128xf32>
    %600 = arith.negf %599 : vector<8x128xf32>
    %601 = math.exp %600 : vector<8x128xf32>
    %cst_181 = arith.constant 1.000000e+00 : f32
    %602 = vector.broadcast %cst_181 : f32 to vector<8x128xf32>
    %603 = arith.addf %602, %601 : vector<8x128xf32>
    %604 = arith.divf %602, %603 : vector<8x128xf32>
    %605 = vector.extract_strided_slice %598 {offsets = [0, 128], sizes = [8, 128], strides = [1, 1]} : vector<8x512xf32> to vector<8x128xf32>
    %606 = arith.negf %605 : vector<8x128xf32>
    %607 = math.exp %606 : vector<8x128xf32>
    %cst_182 = arith.constant 1.000000e+00 : f32
    %608 = vector.broadcast %cst_182 : f32 to vector<8x128xf32>
    %609 = arith.addf %608, %607 : vector<8x128xf32>
    %610 = arith.divf %608, %609 : vector<8x128xf32>
    %611 = vector.extract_strided_slice %598 {offsets = [0, 256], sizes = [8, 128], strides = [1, 1]} : vector<8x512xf32> to vector<8x128xf32>
    %612 = math.tanh %611 : vector<8x128xf32>
    %613 = vector.extract_strided_slice %598 {offsets = [0, 384], sizes = [8, 128], strides = [1, 1]} : vector<8x512xf32> to vector<8x128xf32>
    %614 = arith.negf %613 : vector<8x128xf32>
    %615 = math.exp %614 : vector<8x128xf32>
    %cst_183 = arith.constant 1.000000e+00 : f32
    %616 = vector.broadcast %cst_183 : f32 to vector<8x128xf32>
    %617 = arith.addf %616, %615 : vector<8x128xf32>
    %618 = arith.divf %616, %617 : vector<8x128xf32>
    %619 = arith.mulf %610, %592 : vector<8x128xf32>
    %620 = arith.mulf %604, %612 : vector<8x128xf32>
    %621 = arith.addf %619, %620 : vector<8x128xf32>
    %622 = math.tanh %621 : vector<8x128xf32>
    %623 = arith.mulf %618, %622 : vector<8x128xf32>
    %624 = arith.index_cast %c0_i32_177 : i32 to index
    %c0_184 = arith.constant 0 : index
    %c0_185 = arith.constant 0 : index
    %625 = vector.load %arg14[%624, %c0_184, %c0_185] : memref<8x8x128xf32, #tpu.memory_space<vmem>>, vector<1x8x128xf32>
    %626 = vector.shape_cast %625 : vector<1x8x128xf32> to vector<8x128xf32>
    %627 = vector.shape_cast %623 : vector<8x128xf32> to vector<1x8x128xf32>
    tpu.vector_store %arg14[%624, %c0_184, %c0_185], %627 {strides = array<i32>} : memref<8x8x128xf32, #tpu.memory_space<vmem>>, vector<1x8x128xf32>,
    %c1_i32_186 = arith.constant 1 : i32
    %628 = arith.index_cast %c1_i32_186 : i32 to index
    %c0_187 = arith.constant 0 : index
    %c0_188 = arith.constant 0 : index
    %629 = vector.load %arg13[%628, %c0_187, %c0_188] : memref<8x8x512xf32, #tpu.memory_space<vmem>>, vector<1x8x512xf32>
    %630 = vector.shape_cast %629 : vector<1x8x512xf32> to vector<8x512xf32>
    %631 = vector.extract_strided_slice %623 {offsets = [0, 0], sizes = [8, 8], strides = [1, 1]} : vector<8x128xf32> to vector<8x8xf32>
    %cst_189 = arith.constant dense<0.000000e+00> : vector<8x512xf32>
    %632 = tpu.matmul %631, %591, %cst_189 {dimension_numbers = #tpu.dot_dimension_numbers<[1], [0], [0], [1], [0, 0, 1, 1], [], []>} : vector<8x8xf32>, vector<8x512xf32>, vector<8x512xf32> -> vector<8x512xf32>
    %633 = arith.addf %630, %632 : vector<8x512xf32>
    %634 = vector.extract_strided_slice %633 {offsets = [0, 0], sizes = [8, 128], strides = [1, 1]} : vector<8x512xf32> to vector<8x128xf32>
    %635 = arith.negf %634 : vector<8x128xf32>
    %636 = math.exp %635 : vector<8x128xf32>
    %cst_190 = arith.constant 1.000000e+00 : f32
    %637 = vector.broadcast %cst_190 : f32 to vector<8x128xf32>
    %638 = arith.addf %637, %636 : vector<8x128xf32>
    %639 = arith.divf %637, %638 : vector<8x128xf32>
    %640 = vector.extract_strided_slice %633 {offsets = [0, 128], sizes = [8, 128], strides = [1, 1]} : vector<8x512xf32> to vector<8x128xf32>
    %641 = arith.negf %640 : vector<8x128xf32>
    %642 = math.exp %641 : vector<8x128xf32>
    %cst_191 = arith.constant 1.000000e+00 : f32
    %643 = vector.broadcast %cst_191 : f32 to vector<8x128xf32>
    %644 = arith.addf %643, %642 : vector<8x128xf32>
    %645 = arith.divf %643, %644 : vector<8x128xf32>
    %646 = vector.extract_strided_slice %633 {offsets = [0, 256], sizes = [8, 128], strides = [1, 1]} : vector<8x512xf32> to vector<8x128xf32>
    %647 = math.tanh %646 : vector<8x128xf32>
    %648 = vector.extract_strided_slice %633 {offsets = [0, 384], sizes = [8, 128], strides = [1, 1]} : vector<8x512xf32> to vector<8x128xf32>
    %649 = arith.negf %648 : vector<8x128xf32>
    %650 = math.exp %649 : vector<8x128xf32>
    %cst_192 = arith.constant 1.000000e+00 : f32
    %651 = vector.broadcast %cst_192 : f32 to vector<8x128xf32>
    %652 = arith.addf %651, %650 : vector<8x128xf32>
    %653 = arith.divf %651, %652 : vector<8x128xf32>
    %654 = arith.mulf %645, %621 : vector<8x128xf32>
    %655 = arith.mulf %639, %647 : vector<8x128xf32>
    %656 = arith.addf %654, %655 : vector<8x128xf32>
    %657 = math.tanh %656 : vector<8x128xf32>
    %658 = arith.mulf %653, %657 : vector<8x128xf32>
    %659 = arith.index_cast %c1_i32_186 : i32 to index
    %c0_193 = arith.constant 0 : index
    %c0_194 = arith.constant 0 : index
    %660 = vector.load %arg14[%659, %c0_193, %c0_194] : memref<8x8x128xf32, #tpu.memory_space<vmem>>, vector<1x8x128xf32>
    %661 = vector.shape_cast %660 : vector<1x8x128xf32> to vector<8x128xf32>
    %662 = vector.shape_cast %658 : vector<8x128xf32> to vector<1x8x128xf32>
    tpu.vector_store %arg14[%659, %c0_193, %c0_194], %662 {strides = array<i32>} : memref<8x8x128xf32, #tpu.memory_space<vmem>>, vector<1x8x128xf32>,
    %c2_i32_195 = arith.constant 2 : i32
    %663 = arith.index_cast %c2_i32_195 : i32 to index
    %c0_196 = arith.constant 0 : index
    %c0_197 = arith.constant 0 : index
    %664 = vector.load %arg13[%663, %c0_196, %c0_197] : memref<8x8x512xf32, #tpu.memory_space<vmem>>, vector<1x8x512xf32>
    %665 = vector.shape_cast %664 : vector<1x8x512xf32> to vector<8x512xf32>
    %666 = vector.extract_strided_slice %658 {offsets = [0, 0], sizes = [8, 8], strides = [1, 1]} : vector<8x128xf32> to vector<8x8xf32>
    %cst_198 = arith.constant dense<0.000000e+00> : vector<8x512xf32>
    %667 = tpu.matmul %666, %591, %cst_198 {dimension_numbers = #tpu.dot_dimension_numbers<[1], [0], [0], [1], [0, 0, 1, 1], [], []>} : vector<8x8xf32>, vector<8x512xf32>, vector<8x512xf32> -> vector<8x512xf32>
    %668 = arith.addf %665, %667 : vector<8x512xf32>
    %669 = vector.extract_strided_slice %668 {offsets = [0, 0], sizes = [8, 128], strides = [1, 1]} : vector<8x512xf32> to vector<8x128xf32>
    %670 = arith.negf %669 : vector<8x128xf32>
    %671 = math.exp %670 : vector<8x128xf32>
    %cst_199 = arith.constant 1.000000e+00 : f32
    %672 = vector.broadcast %cst_199 : f32 to vector<8x128xf32>
    %673 = arith.addf %672, %671 : vector<8x128xf32>
    %674 = arith.divf %672, %673 : vector<8x128xf32>
    %675 = vector.extract_strided_slice %668 {offsets = [0, 128], sizes = [8, 128], strides = [1, 1]} : vector<8x512xf32> to vector<8x128xf32>
    %676 = arith.negf %675 : vector<8x128xf32>
    %677 = math.exp %676 : vector<8x128xf32>
    %cst_200 = arith.constant 1.000000e+00 : f32
    %678 = vector.broadcast %cst_200 : f32 to vector<8x128xf32>
    %679 = arith.addf %678, %677 : vector<8x128xf32>
    %680 = arith.divf %678, %679 : vector<8x128xf32>
    %681 = vector.extract_strided_slice %668 {offsets = [0, 256], sizes = [8, 128], strides = [1, 1]} : vector<8x512xf32> to vector<8x128xf32>
    %682 = math.tanh %681 : vector<8x128xf32>
    %683 = vector.extract_strided_slice %668 {offsets = [0, 384], sizes = [8, 128], strides = [1, 1]} : vector<8x512xf32> to vector<8x128xf32>
    %684 = arith.negf %683 : vector<8x128xf32>
    %685 = math.exp %684 : vector<8x128xf32>
    %cst_201 = arith.constant 1.000000e+00 : f32
    %686 = vector.broadcast %cst_201 : f32 to vector<8x128xf32>
    %687 = arith.addf %686, %685 : vector<8x128xf32>
    %688 = arith.divf %686, %687 : vector<8x128xf32>
    %689 = arith.mulf %680, %656 : vector<8x128xf32>
    %690 = arith.mulf %674, %682 : vector<8x128xf32>
    %691 = arith.addf %689, %690 : vector<8x128xf32>
    %692 = math.tanh %691 : vector<8x128xf32>
    %693 = arith.mulf %688, %692 : vector<8x128xf32>
    %694 = arith.index_cast %c2_i32_195 : i32 to index
    %c0_202 = arith.constant 0 : index
    %c0_203 = arith.constant 0 : index
    %695 = vector.load %arg14[%694, %c0_202, %c0_203] : memref<8x8x128xf32, #tpu.memory_space<vmem>>, vector<1x8x128xf32>
    %696 = vector.shape_cast %695 : vector<1x8x128xf32> to vector<8x128xf32>
    %697 = vector.shape_cast %693 : vector<8x128xf32> to vector<1x8x128xf32>
    tpu.vector_store %arg14[%694, %c0_202, %c0_203], %697 {strides = array<i32>} : memref<8x8x128xf32, #tpu.memory_space<vmem>>, vector<1x8x128xf32>,
    %c3_i32_204 = arith.constant 3 : i32
    %698 = arith.index_cast %c3_i32_204 : i32 to index
    %c0_205 = arith.constant 0 : index
    %c0_206 = arith.constant 0 : index
    %699 = vector.load %arg13[%698, %c0_205, %c0_206] : memref<8x8x512xf32, #tpu.memory_space<vmem>>, vector<1x8x512xf32>
    %700 = vector.shape_cast %699 : vector<1x8x512xf32> to vector<8x512xf32>
    %701 = vector.extract_strided_slice %693 {offsets = [0, 0], sizes = [8, 8], strides = [1, 1]} : vector<8x128xf32> to vector<8x8xf32>
    %cst_207 = arith.constant dense<0.000000e+00> : vector<8x512xf32>
    %702 = tpu.matmul %701, %591, %cst_207 {dimension_numbers = #tpu.dot_dimension_numbers<[1], [0], [0], [1], [0, 0, 1, 1], [], []>} : vector<8x8xf32>, vector<8x512xf32>, vector<8x512xf32> -> vector<8x512xf32>
    %703 = arith.addf %700, %702 : vector<8x512xf32>
    %704 = vector.extract_strided_slice %703 {offsets = [0, 0], sizes = [8, 128], strides = [1, 1]} : vector<8x512xf32> to vector<8x128xf32>
    %705 = arith.negf %704 : vector<8x128xf32>
    %706 = math.exp %705 : vector<8x128xf32>
    %cst_208 = arith.constant 1.000000e+00 : f32
    %707 = vector.broadcast %cst_208 : f32 to vector<8x128xf32>
    %708 = arith.addf %707, %706 : vector<8x128xf32>
    %709 = arith.divf %707, %708 : vector<8x128xf32>
    %710 = vector.extract_strided_slice %703 {offsets = [0, 128], sizes = [8, 128], strides = [1, 1]} : vector<8x512xf32> to vector<8x128xf32>
    %711 = arith.negf %710 : vector<8x128xf32>
    %712 = math.exp %711 : vector<8x128xf32>
    %cst_209 = arith.constant 1.000000e+00 : f32
    %713 = vector.broadcast %cst_209 : f32 to vector<8x128xf32>
    %714 = arith.addf %713, %712 : vector<8x128xf32>
    %715 = arith.divf %713, %714 : vector<8x128xf32>
    %716 = vector.extract_strided_slice %703 {offsets = [0, 256], sizes = [8, 128], strides = [1, 1]} : vector<8x512xf32> to vector<8x128xf32>
    %717 = math.tanh %716 : vector<8x128xf32>
    %718 = vector.extract_strided_slice %703 {offsets = [0, 384], sizes = [8, 128], strides = [1, 1]} : vector<8x512xf32> to vector<8x128xf32>
    %719 = arith.negf %718 : vector<8x128xf32>
    %720 = math.exp %719 : vector<8x128xf32>
    %cst_210 = arith.constant 1.000000e+00 : f32
    %721 = vector.broadcast %cst_210 : f32 to vector<8x128xf32>
    %722 = arith.addf %721, %720 : vector<8x128xf32>
    %723 = arith.divf %721, %722 : vector<8x128xf32>
    %724 = arith.mulf %715, %691 : vector<8x128xf32>
    %725 = arith.mulf %709, %717 : vector<8x128xf32>
    %726 = arith.addf %724, %725 : vector<8x128xf32>
    %727 = math.tanh %726 : vector<8x128xf32>
    %728 = arith.mulf %723, %727 : vector<8x128xf32>
    %729 = arith.index_cast %c3_i32_204 : i32 to index
    %c0_211 = arith.constant 0 : index
    %c0_212 = arith.constant 0 : index
    %730 = vector.load %arg14[%729, %c0_211, %c0_212] : memref<8x8x128xf32, #tpu.memory_space<vmem>>, vector<1x8x128xf32>
    %731 = vector.shape_cast %730 : vector<1x8x128xf32> to vector<8x128xf32>
    %732 = vector.shape_cast %728 : vector<8x128xf32> to vector<1x8x128xf32>
    tpu.vector_store %arg14[%729, %c0_211, %c0_212], %732 {strides = array<i32>} : memref<8x8x128xf32, #tpu.memory_space<vmem>>, vector<1x8x128xf32>,
    %c4_i32_213 = arith.constant 4 : i32
    %733 = arith.index_cast %c4_i32_213 : i32 to index
    %c0_214 = arith.constant 0 : index
    %c0_215 = arith.constant 0 : index
    %734 = vector.load %arg13[%733, %c0_214, %c0_215] : memref<8x8x512xf32, #tpu.memory_space<vmem>>, vector<1x8x512xf32>
    %735 = vector.shape_cast %734 : vector<1x8x512xf32> to vector<8x512xf32>
    %736 = vector.extract_strided_slice %728 {offsets = [0, 0], sizes = [8, 8], strides = [1, 1]} : vector<8x128xf32> to vector<8x8xf32>
    %cst_216 = arith.constant dense<0.000000e+00> : vector<8x512xf32>
    %737 = tpu.matmul %736, %591, %cst_216 {dimension_numbers = #tpu.dot_dimension_numbers<[1], [0], [0], [1], [0, 0, 1, 1], [], []>} : vector<8x8xf32>, vector<8x512xf32>, vector<8x512xf32> -> vector<8x512xf32>
    %738 = arith.addf %735, %737 : vector<8x512xf32>
    %739 = vector.extract_strided_slice %738 {offsets = [0, 0], sizes = [8, 128], strides = [1, 1]} : vector<8x512xf32> to vector<8x128xf32>
    %740 = arith.negf %739 : vector<8x128xf32>
    %741 = math.exp %740 : vector<8x128xf32>
    %cst_217 = arith.constant 1.000000e+00 : f32
    %742 = vector.broadcast %cst_217 : f32 to vector<8x128xf32>
    %743 = arith.addf %742, %741 : vector<8x128xf32>
    %744 = arith.divf %742, %743 : vector<8x128xf32>
    %745 = vector.extract_strided_slice %738 {offsets = [0, 128], sizes = [8, 128], strides = [1, 1]} : vector<8x512xf32> to vector<8x128xf32>
    %746 = arith.negf %745 : vector<8x128xf32>
    %747 = math.exp %746 : vector<8x128xf32>
    %cst_218 = arith.constant 1.000000e+00 : f32
    %748 = vector.broadcast %cst_218 : f32 to vector<8x128xf32>
    %749 = arith.addf %748, %747 : vector<8x128xf32>
    %750 = arith.divf %748, %749 : vector<8x128xf32>
    %751 = vector.extract_strided_slice %738 {offsets = [0, 256], sizes = [8, 128], strides = [1, 1]} : vector<8x512xf32> to vector<8x128xf32>
    %752 = math.tanh %751 : vector<8x128xf32>
    %753 = vector.extract_strided_slice %738 {offsets = [0, 384], sizes = [8, 128], strides = [1, 1]} : vector<8x512xf32> to vector<8x128xf32>
    %754 = arith.negf %753 : vector<8x128xf32>
    %755 = math.exp %754 : vector<8x128xf32>
    %cst_219 = arith.constant 1.000000e+00 : f32
    %756 = vector.broadcast %cst_219 : f32 to vector<8x128xf32>
    %757 = arith.addf %756, %755 : vector<8x128xf32>
    %758 = arith.divf %756, %757 : vector<8x128xf32>
    %759 = arith.mulf %750, %726 : vector<8x128xf32>
    %760 = arith.mulf %744, %752 : vector<8x128xf32>
    %761 = arith.addf %759, %760 : vector<8x128xf32>
    %762 = math.tanh %761 : vector<8x128xf32>
    %763 = arith.mulf %758, %762 : vector<8x128xf32>
    %764 = arith.index_cast %c4_i32_213 : i32 to index
    %c0_220 = arith.constant 0 : index
    %c0_221 = arith.constant 0 : index
    %765 = vector.load %arg14[%764, %c0_220, %c0_221] : memref<8x8x128xf32, #tpu.memory_space<vmem>>, vector<1x8x128xf32>
    %766 = vector.shape_cast %765 : vector<1x8x128xf32> to vector<8x128xf32>
    %767 = vector.shape_cast %763 : vector<8x128xf32> to vector<1x8x128xf32>
    tpu.vector_store %arg14[%764, %c0_220, %c0_221], %767 {strides = array<i32>} : memref<8x8x128xf32, #tpu.memory_space<vmem>>, vector<1x8x128xf32>,
    %c5_i32_222 = arith.constant 5 : i32
    %768 = arith.index_cast %c5_i32_222 : i32 to index
    %c0_223 = arith.constant 0 : index
    %c0_224 = arith.constant 0 : index
    %769 = vector.load %arg13[%768, %c0_223, %c0_224] : memref<8x8x512xf32, #tpu.memory_space<vmem>>, vector<1x8x512xf32>
    %770 = vector.shape_cast %769 : vector<1x8x512xf32> to vector<8x512xf32>
    %771 = vector.extract_strided_slice %763 {offsets = [0, 0], sizes = [8, 8], strides = [1, 1]} : vector<8x128xf32> to vector<8x8xf32>
    %cst_225 = arith.constant dense<0.000000e+00> : vector<8x512xf32>
    %772 = tpu.matmul %771, %591, %cst_225 {dimension_numbers = #tpu.dot_dimension_numbers<[1], [0], [0], [1], [0, 0, 1, 1], [], []>} : vector<8x8xf32>, vector<8x512xf32>, vector<8x512xf32> -> vector<8x512xf32>
    %773 = arith.addf %770, %772 : vector<8x512xf32>
    %774 = vector.extract_strided_slice %773 {offsets = [0, 0], sizes = [8, 128], strides = [1, 1]} : vector<8x512xf32> to vector<8x128xf32>
    %775 = arith.negf %774 : vector<8x128xf32>
    %776 = math.exp %775 : vector<8x128xf32>
    %cst_226 = arith.constant 1.000000e+00 : f32
    %777 = vector.broadcast %cst_226 : f32 to vector<8x128xf32>
    %778 = arith.addf %777, %776 : vector<8x128xf32>
    %779 = arith.divf %777, %778 : vector<8x128xf32>
    %780 = vector.extract_strided_slice %773 {offsets = [0, 128], sizes = [8, 128], strides = [1, 1]} : vector<8x512xf32> to vector<8x128xf32>
    %781 = arith.negf %780 : vector<8x128xf32>
    %782 = math.exp %781 : vector<8x128xf32>
    %cst_227 = arith.constant 1.000000e+00 : f32
    %783 = vector.broadcast %cst_227 : f32 to vector<8x128xf32>
    %784 = arith.addf %783, %782 : vector<8x128xf32>
    %785 = arith.divf %783, %784 : vector<8x128xf32>
    %786 = vector.extract_strided_slice %773 {offsets = [0, 256], sizes = [8, 128], strides = [1, 1]} : vector<8x512xf32> to vector<8x128xf32>
    %787 = math.tanh %786 : vector<8x128xf32>
    %788 = vector.extract_strided_slice %773 {offsets = [0, 384], sizes = [8, 128], strides = [1, 1]} : vector<8x512xf32> to vector<8x128xf32>
    %789 = arith.negf %788 : vector<8x128xf32>
    %790 = math.exp %789 : vector<8x128xf32>
    %cst_228 = arith.constant 1.000000e+00 : f32
    %791 = vector.broadcast %cst_228 : f32 to vector<8x128xf32>
    %792 = arith.addf %791, %790 : vector<8x128xf32>
    %793 = arith.divf %791, %792 : vector<8x128xf32>
    %794 = arith.mulf %785, %761 : vector<8x128xf32>
    %795 = arith.mulf %779, %787 : vector<8x128xf32>
    %796 = arith.addf %794, %795 : vector<8x128xf32>
    %797 = math.tanh %796 : vector<8x128xf32>
    %798 = arith.mulf %793, %797 : vector<8x128xf32>
    %799 = arith.index_cast %c5_i32_222 : i32 to index
    %c0_229 = arith.constant 0 : index
    %c0_230 = arith.constant 0 : index
    %800 = vector.load %arg14[%799, %c0_229, %c0_230] : memref<8x8x128xf32, #tpu.memory_space<vmem>>, vector<1x8x128xf32>
    %801 = vector.shape_cast %800 : vector<1x8x128xf32> to vector<8x128xf32>
    %802 = vector.shape_cast %798 : vector<8x128xf32> to vector<1x8x128xf32>
    tpu.vector_store %arg14[%799, %c0_229, %c0_230], %802 {strides = array<i32>} : memref<8x8x128xf32, #tpu.memory_space<vmem>>, vector<1x8x128xf32>,
    %c6_i32_231 = arith.constant 6 : i32
    %803 = arith.index_cast %c6_i32_231 : i32 to index
    %c0_232 = arith.constant 0 : index
    %c0_233 = arith.constant 0 : index
    %804 = vector.load %arg13[%803, %c0_232, %c0_233] : memref<8x8x512xf32, #tpu.memory_space<vmem>>, vector<1x8x512xf32>
    %805 = vector.shape_cast %804 : vector<1x8x512xf32> to vector<8x512xf32>
    %806 = vector.extract_strided_slice %798 {offsets = [0, 0], sizes = [8, 8], strides = [1, 1]} : vector<8x128xf32> to vector<8x8xf32>
    %cst_234 = arith.constant dense<0.000000e+00> : vector<8x512xf32>
    %807 = tpu.matmul %806, %591, %cst_234 {dimension_numbers = #tpu.dot_dimension_numbers<[1], [0], [0], [1], [0, 0, 1, 1], [], []>} : vector<8x8xf32>, vector<8x512xf32>, vector<8x512xf32> -> vector<8x512xf32>
    %808 = arith.addf %805, %807 : vector<8x512xf32>
    %809 = vector.extract_strided_slice %808 {offsets = [0, 0], sizes = [8, 128], strides = [1, 1]} : vector<8x512xf32> to vector<8x128xf32>
    %810 = arith.negf %809 : vector<8x128xf32>
    %811 = math.exp %810 : vector<8x128xf32>
    %cst_235 = arith.constant 1.000000e+00 : f32
    %812 = vector.broadcast %cst_235 : f32 to vector<8x128xf32>
    %813 = arith.addf %812, %811 : vector<8x128xf32>
    %814 = arith.divf %812, %813 : vector<8x128xf32>
    %815 = vector.extract_strided_slice %808 {offsets = [0, 128], sizes = [8, 128], strides = [1, 1]} : vector<8x512xf32> to vector<8x128xf32>
    %816 = arith.negf %815 : vector<8x128xf32>
    %817 = math.exp %816 : vector<8x128xf32>
    %cst_236 = arith.constant 1.000000e+00 : f32
    %818 = vector.broadcast %cst_236 : f32 to vector<8x128xf32>
    %819 = arith.addf %818, %817 : vector<8x128xf32>
    %820 = arith.divf %818, %819 : vector<8x128xf32>
    %821 = vector.extract_strided_slice %808 {offsets = [0, 256], sizes = [8, 128], strides = [1, 1]} : vector<8x512xf32> to vector<8x128xf32>
    %822 = math.tanh %821 : vector<8x128xf32>
    %823 = vector.extract_strided_slice %808 {offsets = [0, 384], sizes = [8, 128], strides = [1, 1]} : vector<8x512xf32> to vector<8x128xf32>
    %824 = arith.negf %823 : vector<8x128xf32>
    %825 = math.exp %824 : vector<8x128xf32>
    %cst_237 = arith.constant 1.000000e+00 : f32
    %826 = vector.broadcast %cst_237 : f32 to vector<8x128xf32>
    %827 = arith.addf %826, %825 : vector<8x128xf32>
    %828 = arith.divf %826, %827 : vector<8x128xf32>
    %829 = arith.mulf %820, %796 : vector<8x128xf32>
    %830 = arith.mulf %814, %822 : vector<8x128xf32>
    %831 = arith.addf %829, %830 : vector<8x128xf32>
    %832 = math.tanh %831 : vector<8x128xf32>
    %833 = arith.mulf %828, %832 : vector<8x128xf32>
    %834 = arith.index_cast %c6_i32_231 : i32 to index
    %c0_238 = arith.constant 0 : index
    %c0_239 = arith.constant 0 : index
    %835 = vector.load %arg14[%834, %c0_238, %c0_239] : memref<8x8x128xf32, #tpu.memory_space<vmem>>, vector<1x8x128xf32>
    %836 = vector.shape_cast %835 : vector<1x8x128xf32> to vector<8x128xf32>
    %837 = vector.shape_cast %833 : vector<8x128xf32> to vector<1x8x128xf32>
    tpu.vector_store %arg14[%834, %c0_238, %c0_239], %837 {strides = array<i32>} : memref<8x8x128xf32, #tpu.memory_space<vmem>>, vector<1x8x128xf32>,
    %c7_i32_240 = arith.constant 7 : i32
    %838 = arith.index_cast %c7_i32_240 : i32 to index
    %c0_241 = arith.constant 0 : index
    %c0_242 = arith.constant 0 : index
    %839 = vector.load %arg13[%838, %c0_241, %c0_242] : memref<8x8x512xf32, #tpu.memory_space<vmem>>, vector<1x8x512xf32>
    %840 = vector.shape_cast %839 : vector<1x8x512xf32> to vector<8x512xf32>
    %841 = vector.extract_strided_slice %833 {offsets = [0, 0], sizes = [8, 8], strides = [1, 1]} : vector<8x128xf32> to vector<8x8xf32>
    %cst_243 = arith.constant dense<0.000000e+00> : vector<8x512xf32>
    %842 = tpu.matmul %841, %591, %cst_243 {dimension_numbers = #tpu.dot_dimension_numbers<[1], [0], [0], [1], [0, 0, 1, 1], [], []>} : vector<8x8xf32>, vector<8x512xf32>, vector<8x512xf32> -> vector<8x512xf32>
    %843 = arith.addf %840, %842 : vector<8x512xf32>
    %844 = vector.extract_strided_slice %843 {offsets = [0, 0], sizes = [8, 128], strides = [1, 1]} : vector<8x512xf32> to vector<8x128xf32>
    %845 = arith.negf %844 : vector<8x128xf32>
    %846 = math.exp %845 : vector<8x128xf32>
    %cst_244 = arith.constant 1.000000e+00 : f32
    %847 = vector.broadcast %cst_244 : f32 to vector<8x128xf32>
    %848 = arith.addf %847, %846 : vector<8x128xf32>
    %849 = arith.divf %847, %848 : vector<8x128xf32>
    %850 = vector.extract_strided_slice %843 {offsets = [0, 128], sizes = [8, 128], strides = [1, 1]} : vector<8x512xf32> to vector<8x128xf32>
    %851 = arith.negf %850 : vector<8x128xf32>
    %852 = math.exp %851 : vector<8x128xf32>
    %cst_245 = arith.constant 1.000000e+00 : f32
    %853 = vector.broadcast %cst_245 : f32 to vector<8x128xf32>
    %854 = arith.addf %853, %852 : vector<8x128xf32>
    %855 = arith.divf %853, %854 : vector<8x128xf32>
    %856 = vector.extract_strided_slice %843 {offsets = [0, 256], sizes = [8, 128], strides = [1, 1]} : vector<8x512xf32> to vector<8x128xf32>
    %857 = math.tanh %856 : vector<8x128xf32>
    %858 = vector.extract_strided_slice %843 {offsets = [0, 384], sizes = [8, 128], strides = [1, 1]} : vector<8x512xf32> to vector<8x128xf32>
    %859 = arith.negf %858 : vector<8x128xf32>
    %860 = math.exp %859 : vector<8x128xf32>
    %cst_246 = arith.constant 1.000000e+00 : f32
    %861 = vector.broadcast %cst_246 : f32 to vector<8x128xf32>
    %862 = arith.addf %861, %860 : vector<8x128xf32>
    %863 = arith.divf %861, %862 : vector<8x128xf32>
    %864 = arith.mulf %855, %831 : vector<8x128xf32>
    %865 = arith.mulf %849, %857 : vector<8x128xf32>
    %866 = arith.addf %864, %865 : vector<8x128xf32>
    %867 = math.tanh %866 : vector<8x128xf32>
    %868 = arith.mulf %863, %867 : vector<8x128xf32>
    %869 = arith.index_cast %c7_i32_240 : i32 to index
    %c0_247 = arith.constant 0 : index
    %c0_248 = arith.constant 0 : index
    %870 = vector.load %arg14[%869, %c0_247, %c0_248] : memref<8x8x128xf32, #tpu.memory_space<vmem>>, vector<1x8x128xf32>
    %871 = vector.shape_cast %870 : vector<1x8x128xf32> to vector<8x128xf32>
    %872 = vector.shape_cast %868 : vector<8x128xf32> to vector<1x8x128xf32>
    tpu.vector_store %arg14[%869, %c0_247, %c0_248], %872 {strides = array<i32>} : memref<8x8x128xf32, #tpu.memory_space<vmem>>, vector<1x8x128xf32>,
    %c8_i32_249 = arith.constant 8 : i32
    %c0_250 = arith.constant 0 : index
    %c0_251 = arith.constant 0 : index
    %c0_252 = arith.constant 0 : index
    %873 = vector.load %arg14[%c0_250, %c0_251, %c0_252] : memref<8x8x128xf32, #tpu.memory_space<vmem>>, vector<8x8x128xf32>
    %874 = vector.shape_cast %873 : vector<8x8x128xf32> to vector<64x128xf32>
    %c0_253 = arith.constant 0 : index
    %c0_254 = arith.constant 0 : index
    %875 = vector.load %arg10[%c0_253, %c0_254] : memref<128x128xf32, #tpu.memory_space<vmem>>, vector<128x128xf32>
    %cst_255 = arith.constant dense<0.000000e+00> : vector<64x128xf32>
    %876 = tpu.matmul %874, %875, %cst_255 {dimension_numbers = #tpu.dot_dimension_numbers<[1], [0], [0], [1], [0, 0, 1, 1], [], []>} : vector<64x128xf32>, vector<128x128xf32>, vector<64x128xf32> -> vector<64x128xf32>
    %c0_256 = arith.constant 0 : index
    %c0_257 = arith.constant 0 : index
    %877 = vector.load %arg11[%c0_256, %c0_257] : memref<1x128xf32, #tpu.memory_space<vmem>>, vector<1x128xf32>
    %878 = vector.broadcast %877 : vector<1x128xf32> to vector<64x128xf32>
    %879 = arith.addf %876, %878 : vector<64x128xf32>
    %880 = vector.shape_cast %879 : vector<64x128xf32> to vector<8x8x128xf32>
    %c0_258 = arith.constant 0 : index
    %c0_259 = arith.constant 0 : index
    %c0_260 = arith.constant 0 : index
    %881 = vector.load %arg12[%c0_258, %c0_259, %c0_260] : memref<8x8x128xf32, #tpu.memory_space<vmem>>, vector<8x8x128xf32>
    tpu.vector_store %arg12[%c0_258, %c0_259, %c0_260], %880 {strides = array<i32>} : memref<8x8x128xf32, #tpu.memory_space<vmem>>, vector<8x8x128xf32>,
    return
  }
}

</mosaic_0001>

<llo_original>
// kernel: stacked_easy_lstm_forward.1
$region0: #{stacked_easy_lstm_forward.1}
  #allocation0 [shape = 'u32[]', space=smem, size = 0x4, offset = 0x4, fixed_abs, tag = 'smem constant byte address 0x4 - core index']
  #allocation1 [shape = 'u32[144,128]{1,0:T(1,128)}', space=vmem, size = 0x12000, scoped, tag = 'internal scratch']
  #allocation2 [shape = 'f32[8,8,512]{2,1,0:T(8,128)}', space=vmem, size = 0x20000, scoped, tag = 'scratch operand']
  #allocation3 [shape = 'f32[8,8,128]{2,1,0:T(8,128)}', space=vmem, size = 0x8000, scoped, tag = 'scratch operand']
  #allocation4 [shape = 'f32[8,8,128]{2,1,0:T(8,128)}', space=vmem, size = 0x8000, scoped, tag = 'scratch operand']
  %s0 = inlined_call_operand.vmem [shape: f32[8,8,8], index: 0, kind: input, shape index: {}]
  %s1 = inlined_call_operand.vmem [shape: f32[8,512], index: 1, kind: input, shape index: {}]
  %s2 = inlined_call_operand.vmem [shape: f32[32,512], index: 2, kind: input, shape index: {}]
  %s3 = inlined_call_operand.vmem [shape: f32[1,512], index: 3, kind: input, shape index: {}]
  %s4 = inlined_call_operand.vmem [shape: f32[128,512], index: 4, kind: input, shape index: {}]
  %s5 = inlined_call_operand.vmem [shape: f32[16,512], index: 5, kind: input, shape index: {}]
  %s6 = inlined_call_operand.vmem [shape: f32[1,512], index: 6, kind: input, shape index: {}]
  %s7 = inlined_call_operand.vmem [shape: f32[128,512], index: 7, kind: input, shape index: {}]
  %s8 = inlined_call_operand.vmem [shape: f32[8,512], index: 8, kind: input, shape index: {}]
  %s9 = inlined_call_operand.vmem [shape: f32[1,512], index: 9, kind: input, shape index: {}]
  %s10 = inlined_call_operand.vmem [shape: f32[128,128], index: 10, kind: input, shape index: {}]
  %s11 = inlined_call_operand.vmem [shape: f32[1,128], index: 11, kind: input, shape index: {}]
  %s12 = inlined_call_operand.vmem [shape: f32[8,8,128], index: 12, kind: output, shape index: {}]
  %s13 = sld [smem:[#allocation0]]
  $region58: #{stacked_easy_lstm_forward.1} parent=0
    _
  %s15 = ssub.s32 1, %s13
  %s16 = scalar_select 0, %s15, %s13
  // Predicated region
  $region2: #{stacked_easy_lstm_forward.1} parent=0 // pred_check
    _
  $region3: #{stacked_easy_lstm_forward.1} parent=0 // pred_check_branch
    %18 = sbr.rel (0) target = $region5
  $region4: #{stacked_easy_lstm_forward.1} parent=0 // pred_region
    _
  $region5: #{stacked_easy_lstm_forward.1} parent=0 // pred_fallthru
    _
  // Predicated region
  $region6: #{stacked_easy_lstm_forward.1} parent=0 // pred_check
    _
  $region7: #{stacked_easy_lstm_forward.1} parent=0 // pred_check_branch
    %20 = sbr.rel (0) target = $region9
  $region8: #{stacked_easy_lstm_forward.1} parent=0 // pred_region
    _
  $region9: #{stacked_easy_lstm_forward.1} parent=0 // pred_fallthru
    _
  // Predicated region
  $region10: #{stacked_easy_lstm_forward.1} parent=0 // pred_check
    _
  $region11: #{stacked_easy_lstm_forward.1} parent=0 // pred_check_branch
    %22 = sbr.rel (0) target = $region13
  $region12: #{stacked_easy_lstm_forward.1} parent=0 // pred_region
    _
  $region13: #{stacked_easy_lstm_forward.1} parent=0 // pred_fallthru
    _
  // Predicated region
  $region14: #{stacked_easy_lstm_forward.1} parent=0 // pred_check
    _
  $region15: #{stacked_easy_lstm_forward.1} parent=0 // pred_check_branch
    %24 = sbr.rel (0) target = $region17
  $region16: #{stacked_easy_lstm_forward.1} parent=0 // pred_region
    _
  $region17: #{stacked_easy_lstm_forward.1} parent=0 // pred_fallthru
    _
  // Predicated region
  $region18: #{stacked_easy_lstm_forward.1} parent=0 // pred_check
    _
  $region19: #{stacked_easy_lstm_forward.1} parent=0 // pred_check_branch
    %26 = sbr.rel (0) target = $region21
  $region20: #{stacked_easy_lstm_forward.1} parent=0 // pred_region
    _
  $region21: #{stacked_easy_lstm_forward.1} parent=0 // pred_fallthru
    _
  // Predicated region
  $region22: #{stacked_easy_lstm_forward.1} parent=0 // pred_check
    _
  $region23: #{stacked_easy_lstm_forward.1} parent=0 // pred_check_branch
    %28 = sbr.rel (0) target = $region25
  $region24: #{stacked_easy_lstm_forward.1} parent=0 // pred_region
    _
  $region25: #{stacked_easy_lstm_forward.1} parent=0 // pred_fallthru
    _
  // Predicated region
  $region26: #{stacked_easy_lstm_forward.1} parent=0 // pred_check
    _
  $region27: #{stacked_easy_lstm_forward.1} parent=0 // pred_check_branch
    %30 = sbr.rel (0) target = $region29
  $region28: #{stacked_easy_lstm_forward.1} parent=0 // pred_region
    _
  $region29: #{stacked_easy_lstm_forward.1} parent=0 // pred_fallthru
    _
  // Predicated region
  $region30: #{stacked_easy_lstm_forward.1} parent=0 // pred_check
    _
  $region31: #{stacked_easy_lstm_forward.1} parent=0 // pred_check_branch
    %32 = sbr.rel (0) target = $region33
  $region32: #{stacked_easy_lstm_forward.1} parent=0 // pred_region
    _
  $region33: #{stacked_easy_lstm_forward.1} parent=0 // pred_fallthru
    _
  // Predicated region
  $region34: #{stacked_easy_lstm_forward.1} parent=0 // pred_check
    _
  $region35: #{stacked_easy_lstm_forward.1} parent=0 // pred_check_branch
    %34 = sbr.rel (0) target = $region37
  $region36: #{stacked_easy_lstm_forward.1} parent=0 // pred_region
    _
  $region37: #{stacked_easy_lstm_forward.1} parent=0 // pred_fallthru
    _
  // Predicated region
  $region38: #{stacked_easy_lstm_forward.1} parent=0 // pred_check
    _
  $region39: #{stacked_easy_lstm_forward.1} parent=0 // pred_check_branch
    %36 = sbr.rel (0) target = $region41
  $region40: #{stacked_easy_lstm_forward.1} parent=0 // pred_region
    _
  $region41: #{stacked_easy_lstm_forward.1} parent=0 // pred_fallthru
    _
  // Predicated region
  $region42: #{stacked_easy_lstm_forward.1} parent=0 // pred_check
    _
  $region43: #{stacked_easy_lstm_forward.1} parent=0 // pred_check_branch
    %38 = sbr.rel (0) target = $region45
  $region44: #{stacked_easy_lstm_forward.1} parent=0 // pred_region
    _
  $region45: #{stacked_easy_lstm_forward.1} parent=0 // pred_fallthru
    _
  // Predicated region
  $region46: #{stacked_easy_lstm_forward.1} parent=0 // pred_check
    _
  $region47: #{stacked_easy_lstm_forward.1} parent=0 // pred_check_branch
    %40 = sbr.rel (0) target = $region49
  $region48: #{stacked_easy_lstm_forward.1} parent=0 // pred_region
    _
  $region49: #{stacked_easy_lstm_forward.1} parent=0 // pred_fallthru
    _
  %v41 = vld [vmem:[%s0] sm:$0xff]
  %v42 = vld [vmem:[%s0 + $0x8] sm:$0xff]
  %v43 = vld [vmem:[%s0 + $0x10] sm:$0xff]
  %v44 = vld [vmem:[%s0 + $0x18] sm:$0xff]
  %v45 = vld [vmem:[%s0 + $0x20] sm:$0xff]
  %v46 = vld [vmem:[%s0 + $0x28] sm:$0xff]
  %v47 = vld [vmem:[%s0 + $0x30] sm:$0xff]
  %v48 = vld [vmem:[%s0 + $0x38] sm:$0xff]
  %v49 = vld [vmem:[%s1] sm:$0xff]
  %v50 = vld [vmem:[%s1 + $0x8] sm:$0xff]
  %v51 = vld [vmem:[%s1 + $0x10] sm:$0xff]
  %v52 = vld [vmem:[%s1 + $0x18] sm:$0xff]
  %v53 = vld [vmem:[%s3] sm:$0xf]
  %v55 = vlaneseq
  %v56 = vshrl.u32 %v55, 7
  %v57 = vsub.s32 0, %v56
  %v58 = vrot.slane %v53, %v57
  %v59 = vlaneseq
  %v60 = vshrl.u32 %v59, 7
  %v61 = vsub.s32 1, %v60
  %v62 = vrot.slane %v53, %v61
  %v63 = vlaneseq
  %v64 = vshrl.u32 %v63, 7
  %v65 = vsub.s32 2, %v64
  %v66 = vrot.slane %v53, %v65
  %v67 = vlaneseq
  %v68 = vshrl.u32 %v67, 7
  %v69 = vsub.s32 3, %v68
  %v70 = vrot.slane %v53, %v69
  %vm75 = vcmask 64512
  %v77 = vsel %vm75, %v41, 0
  %v80 = vsel %vm75, %v42, 0
  %v83 = vsel %vm75, %v43, 0
  %v86 = vsel %vm75, %v44, 0
  %v89 = vsel %vm75, %v45, 0
  %v92 = vsel %vm75, %v46, 0
  %v95 = vsel %vm75, %v47, 0
  %v98 = vsel %vm75, %v48, 0
  %100 = vmatprep.subr.mxu0 0.0
  %101 = vmatpush1.msra.mxu0 0.0
  %102 = vmatprep.subr.mxu0 0.0
  %103 = vmatpush1.msra.mxu0 0.0
  %104 = vmatprep.subr.mxu0 0.0
  %105 = vmatpush1.msra.mxu0 0.0
  %106 = vmatprep.subr.mxu0 0.0
  %107 = vmatpush1.msra.mxu0 0.0
  %108 = vmatprep.subr.mxu0 0.0
  %109 = vmatpush1.msra.mxu0 0.0
  %110 = vmatprep.subr.mxu0 0.0
  %111 = vmatpush1.msra.mxu0 0.0
  %112 = vmatprep.subr.mxu0 0.0
  %113 = vmatpush1.msra.mxu0 0.0
  %114 = vmatprep.subr.mxu0 0.0
  %115 = vmatpush1.msra.mxu0 0.0
  %116 = vmatprep.subr.mxu0 0.0
  %117 = vmatpush1.msra.mxu0 0.0
  %118 = vmatprep.subr.mxu0 0.0
  %119 = vmatpush1.msra.mxu0 0.0
  %120 = vmatprep.subr.mxu0 0.0
  %121 = vmatpush1.msra.mxu0 0.0
  %122 = vmatprep.subr.mxu0 0.0
  %123 = vmatpush1.msra.mxu0 0.0
  %124 = vmatprep.subr.mxu0 0.0
  %125 = vmatpush1.msra.mxu0 0.0
  %126 = vmatprep.subr.mxu0 0.0
  %127 = vmatpush1.msra.mxu0 0.0
  %128 = vmatprep.subr.mxu0 0.0
  %129 = vmatpush1.msra.mxu0 0.0
  %130 = vmatprep.subr.mxu0 %v50
  %131 = vmatpush1.msra.mxu0 %v49
  %132 = vmatprep.subr.mxu0 0.0
  %133 = vmatpush2.msra.mxu0 0.0
  %134 = vmatprep.subr.mxu0 0.0
  %135 = vmatpush2.msra.mxu0 0.0
  %136 = vmatprep.subr.mxu0 0.0
  %137 = vmatpush2.msra.mxu0 0.0
  %138 = vmatprep.subr.mxu0 0.0
  %139 = vmatpush2.msra.mxu0 0.0
  %140 = vmatprep.subr.mxu0 0.0
  %141 = vmatpush2.msra.mxu0 0.0
  %142 = vmatprep.subr.mxu0 0.0
  %143 = vmatpush2.msra.mxu0 0.0
  %144 = vmatprep.subr.mxu0 0.0
  %145 = vmatpush2.msra.mxu0 0.0
  %146 = vmatprep.subr.mxu0 0.0
  %147 = vmatpush2.msra.mxu0 0.0
  %148 = vmatprep.subr.mxu0 0.0
  %149 = vmatpush2.msra.mxu0 0.0
  %150 = vmatprep.subr.mxu0 0.0
  %151 = vmatpush2.msra.mxu0 0.0
  %152 = vmatprep.subr.mxu0 0.0
  %153 = vmatpush2.msra.mxu0 0.0
  %154 = vmatprep.subr.mxu0 0.0
  %155 = vmatpush2.msra.mxu0 0.0
  %156 = vmatprep.subr.mxu0 0.0
  %157 = vmatpush2.msra.mxu0 0.0
  %158 = vmatprep.subr.mxu0 0.0
  %159 = vmatpush2.msra.mxu0 0.0
  %160 = vmatprep.subr.mxu0 0.0
  %161 = vmatpush2.msra.mxu0 0.0
  %162 = vmatprep.subr.mxu0 0.0
  %163 = vmatpush2.msra.mxu0 0.0
  %164 = vmatprep.mubr.f32.mxu0 0.0
  %165 = vmatmul.mubr.f32.gmra.mxu0 %v77
  %v166 = vpop.f32.mrf.mxu0
  %v167 = vadd.f32 %v58, %v166
  %v168 = vpop.f32.mrf.mxu0
  %v169 = vadd.f32 %v62, %v168
  %170 = vmatprep.mubr.f32.mxu0 0.0
  %171 = vmatmul.mubr.f32.gmra.mxu0 %v80
  %v172 = vpop.f32.mrf.mxu0
  %v173 = vadd.f32 %v58, %v172
  %v174 = vpop.f32.mrf.mxu0
  %v175 = vadd.f32 %v62, %v174
  %176 = vmatprep.mubr.f32.mxu0 0.0
  %177 = vmatmul.mubr.f32.gmra.mxu0 %v83
  %v178 = vpop.f32.mrf.mxu0
  %v179 = vadd.f32 %v58, %v178
  %v180 = vpop.f32.mrf.mxu0
  %v181 = vadd.f32 %v62, %v180
  %182 = vmatprep.mubr.f32.mxu0 0.0
  %183 = vmatmul.mubr.f32.gmra.mxu0 %v86
  %v184 = vpop.f32.mrf.mxu0
  %v185 = vadd.f32 %v58, %v184
  %v186 = vpop.f32.mrf.mxu0
  %v187 = vadd.f32 %v62, %v186
  %188 = vmatprep.mubr.f32.mxu0 0.0
  %189 = vmatmul.mubr.f32.gmra.mxu0 %v89
  %v190 = vpop.f32.mrf.mxu0
  %v191 = vadd.f32 %v58, %v190
  %v192 = vpop.f32.mrf.mxu0
  %v193 = vadd.f32 %v62, %v192
  %194 = vmatprep.mubr.f32.mxu0 0.0
  %195 = vmatmul.mubr.f32.gmra.mxu0 %v92
  %v196 = vpop.f32.mrf.mxu0
  %v197 = vadd.f32 %v58, %v196
  %v198 = vpop.f32.mrf.mxu0
  %v199 = vadd.f32 %v62, %v198
  %200 = vmatprep.mubr.f32.mxu0 0.0
  %201 = vmatmul.mubr.f32.gmra.mxu0 %v95
  %v202 = vpop.f32.mrf.mxu0
  %v203 = vadd.f32 %v58, %v202
  %v204 = vpop.f32.mrf.mxu0
  %v205 = vadd.f32 %v62, %v204
  %206 = vmatprep.mubr.f32.mxu0 0.0
  %207 = vmatmul.mubr.f32.gmra.mxu0 %v98
  %v208 = vpop.f32.mrf.mxu0
  %v209 = vadd.f32 %v58, %v208
  %v210 = vpop.f32.mrf.mxu0
  %v211 = vadd.f32 %v62, %v210
  %212 = vdwg.mxu0
  %213 = vmatprep.subr.mxu0 0.0
  %214 = vmatpush1.msra.mxu0 0.0
  %215 = vmatprep.subr.mxu0 0.0
  %216 = vmatpush1.msra.mxu0 0.0
  %217 = vmatprep.subr.mxu0 0.0
  %218 = vmatpush1.msra.mxu0 0.0
  %219 = vmatprep.subr.mxu0 0.0
  %220 = vmatpush1.msra.mxu0 0.0
  %221 = vmatprep.subr.mxu0 0.0
  %222 = vmatpush1.msra.mxu0 0.0
  %223 = vmatprep.subr.mxu0 0.0
  %224 = vmatpush1.msra.mxu0 0.0
  %225 = vmatprep.subr.mxu0 0.0
  %226 = vmatpush1.msra.mxu0 0.0
  %227 = vmatprep.subr.mxu0 0.0
  %228 = vmatpush1.msra.mxu0 0.0
  %229 = vmatprep.subr.mxu0 0.0
  %230 = vmatpush1.msra.mxu0 0.0
  %231 = vmatprep.subr.mxu0 0.0
  %232 = vmatpush1.msra.mxu0 0.0
  %233 = vmatprep.subr.mxu0 0.0
  %234 = vmatpush1.msra.mxu0 0.0
  %235 = vmatprep.subr.mxu0 0.0
  %236 = vmatpush1.msra.mxu0 0.0
  %237 = vmatprep.subr.mxu0 0.0
  %238 = vmatpush1.msra.mxu0 0.0
  %239 = vmatprep.subr.mxu0 0.0
  %240 = vmatpush1.msra.mxu0 0.0
  %241 = vmatprep.subr.mxu0 0.0
  %242 = vmatpush1.msra.mxu0 0.0
  %243 = vmatprep.subr.mxu0 %v52
  %244 = vmatpush1.msra.mxu0 %v51
  %245 = vmatprep.subr.mxu0 0.0
  %246 = vmatpush2.msra.mxu0 0.0
  %247 = vmatprep.subr.mxu0 0.0
  %248 = vmatpush2.msra.mxu0 0.0
  %249 = vmatprep.subr.mxu0 0.0
  %250 = vmatpush2.msra.mxu0 0.0
  %251 = vmatprep.subr.mxu0 0.0
  %252 = vmatpush2.msra.mxu0 0.0
  %253 = vmatprep.subr.mxu0 0.0
  %254 = vmatpush2.msra.mxu0 0.0
  %255 = vmatprep.subr.mxu0 0.0
  %256 = vmatpush2.msra.mxu0 0.0
  %257 = vmatprep.subr.mxu0 0.0
  %258 = vmatpush2.msra.mxu0 0.0
  %259 = vmatprep.subr.mxu0 0.0
  %260 = vmatpush2.msra.mxu0 0.0
  %261 = vmatprep.subr.mxu0 0.0
  %262 = vmatpush2.msra.mxu0 0.0
  %263 = vmatprep.subr.mxu0 0.0
  %264 = vmatpush2.msra.mxu0 0.0
  %265 = vmatprep.subr.mxu0 0.0
  %266 = vmatpush2.msra.mxu0 0.0
  %267 = vmatprep.subr.mxu0 0.0
  %268 = vmatpush2.msra.mxu0 0.0
  %269 = vmatprep.subr.mxu0 0.0
  %270 = vmatpush2.msra.mxu0 0.0
  %271 = vmatprep.subr.mxu0 0.0
  %272 = vmatpush2.msra.mxu0 0.0
  %273 = vmatprep.subr.mxu0 0.0
  %274 = vmatpush2.msra.mxu0 0.0
  %275 = vmatprep.subr.mxu0 0.0
  %276 = vmatpush2.msra.mxu0 0.0
  %277 = vmatprep.mubr.f32.mxu0 0.0
  %278 = vmatmul.mubr.f32.gmra.mxu0 %v77
  %v279 = vpop.f32.mrf.mxu0
  %v280 = vadd.f32 %v66, %v279
  %v281 = vpop.f32.mrf.mxu0
  %v282 = vadd.f32 %v70, %v281
  %283 = vmatprep.mubr.f32.mxu0 0.0
  %284 = vmatmul.mubr.f32.gmra.mxu0 %v80
  %v285 = vpop.f32.mrf.mxu0
  %v286 = vadd.f32 %v66, %v285
  %v287 = vpop.f32.mrf.mxu0
  %v288 = vadd.f32 %v70, %v287
  %289 = vmatprep.mubr.f32.mxu0 0.0
  %290 = vmatmul.mubr.f32.gmra.mxu0 %v83
  %v291 = vpop.f32.mrf.mxu0
  %v292 = vadd.f32 %v66, %v291
  %v293 = vpop.f32.mrf.mxu0
  %v294 = vadd.f32 %v70, %v293
  %295 = vmatprep.mubr.f32.mxu0 0.0
  %296 = vmatmul.mubr.f32.gmra.mxu0 %v86
  %v297 = vpop.f32.mrf.mxu0
  %v298 = vadd.f32 %v66, %v297
  %v299 = vpop.f32.mrf.mxu0
  %v300 = vadd.f32 %v70, %v299
  %301 = vmatprep.mubr.f32.mxu0 0.0
  %302 = vmatmul.mubr.f32.gmra.mxu0 %v89
  %v303 = vpop.f32.mrf.mxu0
  %v304 = vadd.f32 %v66, %v303
  %v305 = vpop.f32.mrf.mxu0
  %v306 = vadd.f32 %v70, %v305
  %307 = vmatprep.mubr.f32.mxu0 0.0
  %308 = vmatmul.mubr.f32.gmra.mxu0 %v92
  %v309 = vpop.f32.mrf.mxu0
  %v310 = vadd.f32 %v66, %v309
  %v311 = vpop.f32.mrf.mxu0
  %v312 = vadd.f32 %v70, %v311
  %313 = vmatprep.mubr.f32.mxu0 0.0
  %314 = vmatmul.mubr.f32.gmra.mxu0 %v95
  %v315 = vpop.f32.mrf.mxu0
  %v316 = vadd.f32 %v66, %v315
  %v317 = vpop.f32.mrf.mxu0
  %v318 = vadd.f32 %v70, %v317
  %319 = vmatprep.mubr.f32.mxu0 0.0
  %320 = vmatmul.mubr.f32.gmra.mxu0 %v98
  %v321 = vpop.f32.mrf.mxu0
  %v322 = vadd.f32 %v66, %v321
  %v323 = vpop.f32.mrf.mxu0
  %v324 = vadd.f32 %v70, %v323
  %325 = vdwg.mxu0
  %326 = vst [vmem:[#allocation2] sm:$0xff] %v167
  %327 = vst [vmem:[#allocation2 + $0x8] sm:$0xff] %v169
  %328 = vst [vmem:[#allocation2 + $0x10] sm:$0xff] %v280
  %329 = vst [vmem:[#allocation2 + $0x18] sm:$0xff] %v282
  %330 = vst [vmem:[#allocation2 + $0x20] sm:$0xff] %v173
  %331 = vst [vmem:[#allocation2 + $0x28] sm:$0xff] %v175
  %332 = vst [vmem:[#allocation2 + $0x30] sm:$0xff] %v286
  %333 = vst [vmem:[#allocation2 + $0x38] sm:$0xff] %v288
  %334 = vst [vmem:[#allocation2 + $0x40] sm:$0xff] %v179
  %335 = vst [vmem:[#allocation2 + $0x48] sm:$0xff] %v181
  %336 = vst [vmem:[#allocation2 + $0x50] sm:$0xff] %v292
  %337 = vst [vmem:[#allocation2 + $0x58] sm:$0xff] %v294
  %338 = vst [vmem:[#allocation2 + $0x60] sm:$0xff] %v185
  %339 = vst [vmem:[#allocation2 + $0x68] sm:$0xff] %v187
  %340 = vst [vmem:[#allocation2 + $0x70] sm:$0xff] %v298
  %341 = vst [vmem:[#allocation2 + $0x78] sm:$0xff] %v300
  %342 = vst [vmem:[#allocation2 + $0x80] sm:$0xff] %v191
  %343 = vst [vmem:[#allocation2 + $0x88] sm:$0xff] %v193
  %344 = vst [vmem:[#allocation2 + $0x90] sm:$0xff] %v304
  %345 = vst [vmem:[#allocation2 + $0x98] sm:$0xff] %v306
  %346 = vst [vmem:[#allocation2 + $0xa0] sm:$0xff] %v197
  %347 = vst [vmem:[#allocation2 + $0xa8] sm:$0xff] %v199
  %348 = vst [vmem:[#allocation2 + $0xb0] sm:$0xff] %v310
  %349 = vst [vmem:[#allocation2 + $0xb8] sm:$0xff] %v312
  %350 = vst [vmem:[#allocation2 + $0xc0] sm:$0xff] %v203
  %351 = vst [vmem:[#allocation2 + $0xc8] sm:$0xff] %v205
  %352 = vst [vmem:[#allocation2 + $0xd0] sm:$0xff] %v316
  %353 = vst [vmem:[#allocation2 + $0xd8] sm:$0xff] %v318
  %354 = vst [vmem:[#allocation2 + $0xe0] sm:$0xff] %v209
  %355 = vst [vmem:[#allocation2 + $0xe8] sm:$0xff] %v211
  %356 = vst [vmem:[#allocation2 + $0xf0] sm:$0xff] %v322
  %357 = vst [vmem:[#allocation2 + $0xf8] sm:$0xff] %v324
  %v358 = vld [vmem:[%s2] sm:$0xff]
  %v359 = vld [vmem:[%s2 + $0x8] sm:$0xff]
  %v360 = vld [vmem:[%s2 + $0x10] sm:$0xff]
  %v361 = vld [vmem:[%s2 + $0x18] sm:$0xff]
  %v362 = vld [vmem:[%s2 + $0x20] sm:$0xff]
  %v363 = vld [vmem:[%s2 + $0x28] sm:$0xff]
  %v364 = vld [vmem:[%s2 + $0x30] sm:$0xff]
  %v365 = vld [vmem:[%s2 + $0x38] sm:$0xff]
  %v366 = vld [vmem:[%s2 + $0x40] sm:$0xff]
  %v367 = vld [vmem:[%s2 + $0x48] sm:$0xff]
  %v368 = vld [vmem:[%s2 + $0x50] sm:$0xff]
  %v369 = vld [vmem:[%s2 + $0x58] sm:$0xff]
  %v370 = vld [vmem:[%s2 + $0x60] sm:$0xff]
  %v371 = vld [vmem:[%s2 + $0x68] sm:$0xff]
  %v372 = vld [vmem:[%s2 + $0x70] sm:$0xff]
  %v373 = vld [vmem:[%s2 + $0x78] sm:$0xff]
  %v374 = vld [vmem:[#allocation2] sm:$0xff]
  %v375 = vld [vmem:[#allocation2 + $0x8] sm:$0xff]
  %v376 = vld [vmem:[#allocation2 + $0x10] sm:$0xff]
  %v377 = vld [vmem:[#allocation2 + $0x18] sm:$0xff]
  %vm378 = vcmask 261120
  %v380 = vsel %vm378, 0.0, 0
  %382 = vmatprep.subr.mxu0 0.0
  %383 = vmatpush1.msra.mxu0 0.0
  %384 = vmatprep.subr.mxu0 0.0
  %385 = vmatpush1.msra.mxu0 0.0
  %386 = vmatprep.subr.mxu0 0.0
  %387 = vmatpush1.msra.mxu0 0.0
  %388 = vmatprep.subr.mxu0 0.0
  %389 = vmatpush1.msra.mxu0 0.0
  %390 = vmatprep.subr.mxu0 0.0
  %391 = vmatpush1.msra.mxu0 0.0
  %392 = vmatprep.subr.mxu0 0.0
  %393 = vmatpush1.msra.mxu0 0.0
  %394 = vmatprep.subr.mxu0 0.0
  %395 = vmatpush1.msra.mxu0 0.0
  %396 = vmatprep.subr.mxu0 0.0
  %397 = vmatpush1.msra.mxu0 0.0
  %398 = vmatprep.subr.mxu0 0.0
  %399 = vmatpush1.msra.mxu0 0.0
  %400 = vmatprep.subr.mxu0 0.0
  %401 = vmatpush1.msra.mxu0 0.0
  %402 = vmatprep.subr.mxu0 0.0
  %403 = vmatpush1.msra.mxu0 0.0
  %404 = vmatprep.subr.mxu0 0.0
  %405 = vmatpush1.msra.mxu0 0.0
  %406 = vmatprep.subr.mxu0 %v371
  %407 = vmatpush1.msra.mxu0 %v370
  %408 = vmatprep.subr.mxu0 %v367
  %409 = vmatpush1.msra.mxu0 %v366
  %410 = vmatprep.subr.mxu0 %v363
  %411 = vmatpush1.msra.mxu0 %v362
  %412 = vmatprep.subr.mxu0 %v359
  %413 = vmatpush1.msra.mxu0 %v358
  %414 = vmatprep.subr.mxu0 0.0
  %415 = vmatpush2.msra.mxu0 0.0
  %416 = vmatprep.subr.mxu0 0.0
  %417 = vmatpush2.msra.mxu0 0.0
  %418 = vmatprep.subr.mxu0 0.0
  %419 = vmatpush2.msra.mxu0 0.0
  %420 = vmatprep.subr.mxu0 0.0
  %421 = vmatpush2.msra.mxu0 0.0
  %422 = vmatprep.subr.mxu0 0.0
  %423 = vmatpush2.msra.mxu0 0.0
  %424 = vmatprep.subr.mxu0 0.0
  %425 = vmatpush2.msra.mxu0 0.0
  %426 = vmatprep.subr.mxu0 0.0
  %427 = vmatpush2.msra.mxu0 0.0
  %428 = vmatprep.subr.mxu0 0.0
  %429 = vmatpush2.msra.mxu0 0.0
  %430 = vmatprep.subr.mxu0 0.0
  %431 = vmatpush2.msra.mxu0 0.0
  %432 = vmatprep.subr.mxu0 0.0
  %433 = vmatpush2.msra.mxu0 0.0
  %434 = vmatprep.subr.mxu0 0.0
  %435 = vmatpush2.msra.mxu0 0.0
  %436 = vmatprep.subr.mxu0 0.0
  %437 = vmatpush2.msra.mxu0 0.0
  %438 = vmatprep.subr.mxu0 0.0
  %439 = vmatpush2.msra.mxu0 0.0
  %440 = vmatprep.subr.mxu0 0.0
  %441 = vmatpush2.msra.mxu0 0.0
  %442 = vmatprep.subr.mxu0 0.0
  %443 = vmatpush2.msra.mxu0 0.0
  %444 = vmatprep.subr.mxu0 0.0
  %445 = vmatpush2.msra.mxu0 0.0
  %446 = vmatprep.mubr.f32.mxu0 0.0
  %447 = vmatmul.mubr.f32.gmra.mxu0 %v380
  %v448 = vpop.f32.mrf.mxu0
  %v449 = vadd.f32 0.0, %v448
  %v450 = vpop.f32.mrf.mxu0
  %v451 = vadd.f32 0.0, %v450
  %452 = vdwg.mxu0
  %453 = vmatprep.subr.mxu0 0.0
  %454 = vmatpush1.msra.mxu0 0.0
  %455 = vmatprep.subr.mxu0 0.0
  %456 = vmatpush1.msra.mxu0 0.0
  %457 = vmatprep.subr.mxu0 0.0
  %458 = vmatpush1.msra.mxu0 0.0
  %459 = vmatprep.subr.mxu0 0.0
  %460 = vmatpush1.msra.mxu0 0.0
  %461 = vmatprep.subr.mxu0 0.0
  %462 = vmatpush1.msra.mxu0 0.0
  %463 = vmatprep.subr.mxu0 0.0
  %464 = vmatpush1.msra.mxu0 0.0
  %465 = vmatprep.subr.mxu0 0.0
  %466 = vmatpush1.msra.mxu0 0.0
  %467 = vmatprep.subr.mxu0 0.0
  %468 = vmatpush1.msra.mxu0 0.0
  %469 = vmatprep.subr.mxu0 0.0
  %470 = vmatpush1.msra.mxu0 0.0
  %471 = vmatprep.subr.mxu0 0.0
  %472 = vmatpush1.msra.mxu0 0.0
  %473 = vmatprep.subr.mxu0 0.0
  %474 = vmatpush1.msra.mxu0 0.0
  %475 = vmatprep.subr.mxu0 0.0
  %476 = vmatpush1.msra.mxu0 0.0
  %477 = vmatprep.subr.mxu0 %v373
  %478 = vmatpush1.msra.mxu0 %v372
  %479 = vmatprep.subr.mxu0 %v369
  %480 = vmatpush1.msra.mxu0 %v368
  %481 = vmatprep.subr.mxu0 %v365
  %482 = vmatpush1.msra.mxu0 %v364
  %483 = vmatprep.subr.mxu0 %v361
  %484 = vmatpush1.msra.mxu0 %v360
  %485 = vmatprep.subr.mxu0 0.0
  %486 = vmatpush2.msra.mxu0 0.0
  %487 = vmatprep.subr.mxu0 0.0
  %488 = vmatpush2.msra.mxu0 0.0
  %489 = vmatprep.subr.mxu0 0.0
  %490 = vmatpush2.msra.mxu0 0.0
  %491 = vmatprep.subr.mxu0 0.0
  %492 = vmatpush2.msra.mxu0 0.0
  %493 = vmatprep.subr.mxu0 0.0
  %494 = vmatpush2.msra.mxu0 0.0
  %495 = vmatprep.subr.mxu0 0.0
  %496 = vmatpush2.msra.mxu0 0.0
  %497 = vmatprep.subr.mxu0 0.0
  %498 = vmatpush2.msra.mxu0 0.0
  %499 = vmatprep.subr.mxu0 0.0
  %500 = vmatpush2.msra.mxu0 0.0
  %501 = vmatprep.subr.mxu0 0.0
  %502 = vmatpush2.msra.mxu0 0.0
  %503 = vmatprep.subr.mxu0 0.0
  %504 = vmatpush2.msra.mxu0 0.0
  %505 = vmatprep.subr.mxu0 0.0
  %506 = vmatpush2.msra.mxu0 0.0
  %507 = vmatprep.subr.mxu0 0.0
  %508 = vmatpush2.msra.mxu0 0.0
  %509 = vmatprep.subr.mxu0 0.0
  %510 = vmatpush2.msra.mxu0 0.0
  %511 = vmatprep.subr.mxu0 0.0
  %512 = vmatpush2.msra.mxu0 0.0
  %513 = vmatprep.subr.mxu0 0.0
  %514 = vmatpush2.msra.mxu0 0.0
  %515 = vmatprep.subr.mxu0 0.0
  %516 = vmatpush2.msra.mxu0 0.0
  %517 = vmatprep.mubr.f32.mxu0 0.0
  %518 = vmatmul.mubr.f32.gmra.mxu0 %v380
  %v519 = vpop.f32.mrf.mxu0
  %v520 = vadd.f32 0.0, %v519
  %v521 = vpop.f32.mrf.mxu0
  %v522 = vadd.f32 0.0, %v521
  %523 = vdwg.mxu0
  %v524 = vadd.f32 %v374, %v449
  %v525 = vadd.f32 %v375, %v451
  %v526 = vadd.f32 %v376, %v520
  %v527 = vadd.f32 %v377, %v522
  %v528 = vxor.u32 %v524, 2147483648
  %v529 = vmul.f32 %v528, 1.442695
  %v530 = vpow.pop %v529
  %v531 = vadd.f32 %v530, 1.0
  %v532 = vrcp.pop %v531
  %v533 = vmul.f32 1.0, %v532
  %v534 = vxor.u32 %v525, 2147483648
  %v535 = vmul.f32 %v534, 1.442695
  %v536 = vpow.pop %v535
  %v537 = vadd.f32 %v536, 1.0
  %v538 = vrcp.pop %v537
  %v539 = vmul.f32 1.0, %v538
  %v540 = vtanh.pop %v526
  %v541 = vxor.u32 %v527, 2147483648
  %v542 = vmul.f32 %v541, 1.442695
  %v543 = vpow.pop %v542
  %v544 = vadd.f32 %v543, 1.0
  %v545 = vrcp.pop %v544
  %v546 = vmul.f32 1.0, %v545
  %v547 = vmul.f32 %v539, 0.0
  %v548 = vmul.f32 %v533, %v540
  %v549 = vadd.f32 %v547, %v548
  %v550 = vtanh.pop %v549
  %v551 = vmul.f32 %v546, %v550
  %552 = vst [vmem:[#allocation3] sm:$0xff] %v551
  %s553 = scalar_lea.vmem [#allocation2], 32
  %v554 = vld [vmem:[%s553] sm:$0xff]
  %v555 = vld [vmem:[%s553 + $0x8] sm:$0xff]
  %v556 = vld [vmem:[%s553 + $0x10] sm:$0xff]
  %v557 = vld [vmem:[%s553 + $0x18] sm:$0xff]
  %v559 = vsel %vm378, %v551, 0
  %561 = vmatprep.subr.mxu0 0.0
  %562 = vmatpush1.msra.mxu0 0.0
  %563 = vmatprep.subr.mxu0 0.0
  %564 = vmatpush1.msra.mxu0 0.0
  %565 = vmatprep.subr.mxu0 0.0
  %566 = vmatpush1.msra.mxu0 0.0
  %567 = vmatprep.subr.mxu0 0.0
  %568 = vmatpush1.msra.mxu0 0.0
  %569 = vmatprep.subr.mxu0 0.0
  %570 = vmatpush1.msra.mxu0 0.0
  %571 = vmatprep.subr.mxu0 0.0
  %572 = vmatpush1.msra.mxu0 0.0
  %573 = vmatprep.subr.mxu0 0.0
  %574 = vmatpush1.msra.mxu0 0.0
  %575 = vmatprep.subr.mxu0 0.0
  %576 = vmatpush1.msra.mxu0 0.0
  %577 = vmatprep.subr.mxu0 0.0
  %578 = vmatpush1.msra.mxu0 0.0
  %579 = vmatprep.subr.mxu0 0.0
  %580 = vmatpush1.msra.mxu0 0.0
  %581 = vmatprep.subr.mxu0 0.0
  %582 = vmatpush1.msra.mxu0 0.0
  %583 = vmatprep.subr.mxu0 0.0
  %584 = vmatpush1.msra.mxu0 0.0
  %585 = vmatprep.subr.mxu0 %v371
  %586 = vmatpush1.msra.mxu0 %v370
  %587 = vmatprep.subr.mxu0 %v367
  %588 = vmatpush1.msra.mxu0 %v366
  %589 = vmatprep.subr.mxu0 %v363
  %590 = vmatpush1.msra.mxu0 %v362
  %591 = vmatprep.subr.mxu0 %v359
  %592 = vmatpush1.msra.mxu0 %v358
  %593 = vmatprep.subr.mxu0 0.0
  %594 = vmatpush2.msra.mxu0 0.0
  %595 = vmatprep.subr.mxu0 0.0
  %596 = vmatpush2.msra.mxu0 0.0
  %597 = vmatprep.subr.mxu0 0.0
  %598 = vmatpush2.msra.mxu0 0.0
  %599 = vmatprep.subr.mxu0 0.0
  %600 = vmatpush2.msra.mxu0 0.0
  %601 = vmatprep.subr.mxu0 0.0
  %602 = vmatpush2.msra.mxu0 0.0
  %603 = vmatprep.subr.mxu0 0.0
  %604 = vmatpush2.msra.mxu0 0.0
  %605 = vmatprep.subr.mxu0 0.0
  %606 = vmatpush2.msra.mxu0 0.0
  %607 = vmatprep.subr.mxu0 0.0
  %608 = vmatpush2.msra.mxu0 0.0
  %609 = vmatprep.subr.mxu0 0.0
  %610 = vmatpush2.msra.mxu0 0.0
  %611 = vmatprep.subr.mxu0 0.0
  %612 = vmatpush2.msra.mxu0 0.0
  %613 = vmatprep.subr.mxu0 0.0
  %614 = vmatpush2.msra.mxu0 0.0
  %615 = vmatprep.subr.mxu0 0.0
  %616 = vmatpush2.msra.mxu0 0.0
  %617 = vmatprep.subr.mxu0 0.0
  %618 = vmatpush2.msra.mxu0 0.0
  %619 = vmatprep.subr.mxu0 0.0
  %620 = vmatpush2.msra.mxu0 0.0
  %621 = vmatprep.subr.mxu0 0.0
  %622 = vmatpush2.msra.mxu0 0.0
  %623 = vmatprep.subr.mxu0 0.0
  %624 = vmatpush2.msra.mxu0 0.0
  %625 = vmatprep.mubr.f32.mxu0 0.0
  %626 = vmatmul.mubr.f32.gmra.mxu0 %v559
  %v627 = vpop.f32.mrf.mxu0
  %v628 = vadd.f32 0.0, %v627
  %v629 = vpop.f32.mrf.mxu0
  %v630 = vadd.f32 0.0, %v629
  %631 = vdwg.mxu0
  %632 = vmatprep.subr.mxu0 0.0
  %633 = vmatpush1.msra.mxu0 0.0
  %634 = vmatprep.subr.mxu0 0.0
  %635 = vmatpush1.msra.mxu0 0.0
  %636 = vmatprep.subr.mxu0 0.0
  %637 = vmatpush1.msra.mxu0 0.0
  %638 = vmatprep.subr.mxu0 0.0
  %639 = vmatpush1.msra.mxu0 0.0
  %640 = vmatprep.subr.mxu0 0.0
  %641 = vmatpush1.msra.mxu0 0.0
  %642 = vmatprep.subr.mxu0 0.0
  %643 = vmatpush1.msra.mxu0 0.0
  %644 = vmatprep.subr.mxu0 0.0
  %645 = vmatpush1.msra.mxu0 0.0
  %646 = vmatprep.subr.mxu0 0.0
  %647 = vmatpush1.msra.mxu0 0.0
  %648 = vmatprep.subr.mxu0 0.0
  %649 = vmatpush1.msra.mxu0 0.0
  %650 = vmatprep.subr.mxu0 0.0
  %651 = vmatpush1.msra.mxu0 0.0
  %652 = vmatprep.subr.mxu0 0.0
  %653 = vmatpush1.msra.mxu0 0.0
  %654 = vmatprep.subr.mxu0 0.0
  %655 = vmatpush1.msra.mxu0 0.0
  %656 = vmatprep.subr.mxu0 %v373
  %657 = vmatpush1.msra.mxu0 %v372
  %658 = vmatprep.subr.mxu0 %v369
  %659 = vmatpush1.msra.mxu0 %v368
  %660 = vmatprep.subr.mxu0 %v365
  %661 = vmatpush1.msra.mxu0 %v364
  %662 = vmatprep.subr.mxu0 %v361
  %663 = vmatpush1.msra.mxu0 %v360
  %664 = vmatprep.subr.mxu0 0.0
  %665 = vmatpush2.msra.mxu0 0.0
  %666 = vmatprep.subr.mxu0 0.0
  %667 = vmatpush2.msra.mxu0 0.0
  %668 = vmatprep.subr.mxu0 0.0
  %669 = vmatpush2.msra.mxu0 0.0
  %670 = vmatprep.subr.mxu0 0.0
  %671 = vmatpush2.msra.mxu0 0.0
  %672 = vmatprep.subr.mxu0 0.0
  %673 = vmatpush2.msra.mxu0 0.0
  %674 = vmatprep.subr.mxu0 0.0
  %675 = vmatpush2.msra.mxu0 0.0
  %676 = vmatprep.subr.mxu0 0.0
  %677 = vmatpush2.msra.mxu0 0.0
  %678 = vmatprep.subr.mxu0 0.0
  %679 = vmatpush2.msra.mxu0 0.0
  %680 = vmatprep.subr.mxu0 0.0
  %681 = vmatpush2.msra.mxu0 0.0
  %682 = vmatprep.subr.mxu0 0.0
  %683 = vmatpush2.msra.mxu0 0.0
  %684 = vmatprep.subr.mxu0 0.0
  %685 = vmatpush2.msra.mxu0 0.0
  %686 = vmatprep.subr.mxu0 0.0
  %687 = vmatpush2.msra.mxu0 0.0
  %688 = vmatprep.subr.mxu0 0.0
  %689 = vmatpush2.msra.mxu0 0.0
  %690 = vmatprep.subr.mxu0 0.0
  %691 = vmatpush2.msra.mxu0 0.0
  %692 = vmatprep.subr.mxu0 0.0
  %693 = vmatpush2.msra.mxu0 0.0
  %694 = vmatprep.subr.mxu0 0.0
  %695 = vmatpush2.msra.mxu0 0.0
  %696 = vmatprep.mubr.f32.mxu0 0.0
  %697 = vmatmul.mubr.f32.gmra.mxu0 %v559
  %v698 = vpop.f32.mrf.mxu0
  %v699 = vadd.f32 0.0, %v698
  %v700 = vpop.f32.mrf.mxu0
  %v701 = vadd.f32 0.0, %v700
  %702 = vdwg.mxu0
  %v703 = vadd.f32 %v554, %v628
  %v704 = vadd.f32 %v555, %v630
  %v705 = vadd.f32 %v556, %v699
  %v706 = vadd.f32 %v557, %v701
  %v707 = vxor.u32 %v703, 2147483648
  %v708 = vmul.f32 %v707, 1.442695
  %v709 = vpow.pop %v708
  %v710 = vadd.f32 %v709, 1.0
  %v711 = vrcp.pop %v710
  %v712 = vmul.f32 1.0, %v711
  %v713 = vxor.u32 %v704, 2147483648
  %v714 = vmul.f32 %v713, 1.442695
  %v715 = vpow.pop %v714
  %v716 = vadd.f32 %v715, 1.0
  %v717 = vrcp.pop %v716
  %v718 = vmul.f32 1.0, %v717
  %v719 = vtanh.pop %v705
  %v720 = vxor.u32 %v706, 2147483648
  %v721 = vmul.f32 %v720, 1.442695
  %v722 = vpow.pop %v721
  %v723 = vadd.f32 %v722, 1.0
  %v724 = vrcp.pop %v723
  %v725 = vmul.f32 1.0, %v724
  %v726 = vmul.f32 %v718, %v549
  %v727 = vmul.f32 %v712, %v719
  %v728 = vadd.f32 %v726, %v727
  %v729 = vtanh.pop %v728
  %v730 = vmul.f32 %v725, %v729
  %s731 = scalar_lea.vmem [#allocation3], 8
  %732 = vst [vmem:[%s731] sm:$0xff] %v730
  %s733 = scalar_lea.vmem [#allocation2], 64
  %v734 = vld [vmem:[%s733] sm:$0xff]
  %v735 = vld [vmem:[%s733 + $0x8] sm:$0xff]
  %v736 = vld [vmem:[%s733 + $0x10] sm:$0xff]
  %v737 = vld [vmem:[%s733 + $0x18] sm:$0xff]
  %v739 = vsel %vm378, %v730, 0
  %741 = vmatprep.subr.mxu0 0.0
  %742 = vmatpush1.msra.mxu0 0.0
  %743 = vmatprep.subr.mxu0 0.0
  %744 = vmatpush1.msra.mxu0 0.0
  %745 = vmatprep.subr.mxu0 0.0
  %746 = vmatpush1.msra.mxu0 0.0
  %747 = vmatprep.subr.mxu0 0.0
  %748 = vmatpush1.msra.mxu0 0.0
  %749 = vmatprep.subr.mxu0 0.0
  %750 = vmatpush1.msra.mxu0 0.0
  %751 = vmatprep.subr.mxu0 0.0
  %752 = vmatpush1.msra.mxu0 0.0
  %753 = vmatprep.subr.mxu0 0.0
  %754 = vmatpush1.msra.mxu0 0.0
  %755 = vmatprep.subr.mxu0 0.0
  %756 = vmatpush1.msra.mxu0 0.0
  %757 = vmatprep.subr.mxu0 0.0
  %758 = vmatpush1.msra.mxu0 0.0
  %759 = vmatprep.subr.mxu0 0.0
  %760 = vmatpush1.msra.mxu0 0.0
  %761 = vmatprep.subr.mxu0 0.0
  %762 = vmatpush1.msra.mxu0 0.0
  %763 = vmatprep.subr.mxu0 0.0
  %764 = vmatpush1.msra.mxu0 0.0
  %765 = vmatprep.subr.mxu0 %v371
  %766 = vmatpush1.msra.mxu0 %v370
  %767 = vmatprep.subr.mxu0 %v367
  %768 = vmatpush1.msra.mxu0 %v366
  %769 = vmatprep.subr.mxu0 %v363
  %770 = vmatpush1.msra.mxu0 %v362
  %771 = vmatprep.subr.mxu0 %v359
  %772 = vmatpush1.msra.mxu0 %v358
  %773 = vmatprep.subr.mxu0 0.0
  %774 = vmatpush2.msra.mxu0 0.0
  %775 = vmatprep.subr.mxu0 0.0
  %776 = vmatpush2.msra.mxu0 0.0
  %777 = vmatprep.subr.mxu0 0.0
  %778 = vmatpush2.msra.mxu0 0.0
  %779 = vmatprep.subr.mxu0 0.0
  %780 = vmatpush2.msra.mxu0 0.0
  %781 = vmatprep.subr.mxu0 0.0
  %782 = vmatpush2.msra.mxu0 0.0
  %783 = vmatprep.subr.mxu0 0.0
  %784 = vmatpush2.msra.mxu0 0.0
  %785 = vmatprep.subr.mxu0 0.0
  %786 = vmatpush2.msra.mxu0 0.0
  %787 = vmatprep.subr.mxu0 0.0
  %788 = vmatpush2.msra.mxu0 0.0
  %789 = vmatprep.subr.mxu0 0.0
  %790 = vmatpush2.msra.mxu0 0.0
  %791 = vmatprep.subr.mxu0 0.0
  %792 = vmatpush2.msra.mxu0 0.0
  %793 = vmatprep.subr.mxu0 0.0
  %794 = vmatpush2.msra.mxu0 0.0
  %795 = vmatprep.subr.mxu0 0.0
  %796 = vmatpush2.msra.mxu0 0.0
  %797 = vmatprep.subr.mxu0 0.0
  %798 = vmatpush2.msra.mxu0 0.0
  %799 = vmatprep.subr.mxu0 0.0
  %800 = vmatpush2.msra.mxu0 0.0
  %801 = vmatprep.subr.mxu0 0.0
  %802 = vmatpush2.msra.mxu0 0.0
  %803 = vmatprep.subr.mxu0 0.0
  %804 = vmatpush2.msra.mxu0 0.0
  %805 = vmatprep.mubr.f32.mxu0 0.0
  %806 = vmatmul.mubr.f32.gmra.mxu0 %v739
  %v807 = vpop.f32.mrf.mxu0
  %v808 = vadd.f32 0.0, %v807
  %v809 = vpop.f32.mrf.mxu0
  %v810 = vadd.f32 0.0, %v809
  %811 = vdwg.mxu0
  %812 = vmatprep.subr.mxu0 0.0
  %813 = vmatpush1.msra.mxu0 0.0
  %814 = vmatprep.subr.mxu0 0.0
  %815 = vmatpush1.msra.mxu0 0.0
  %816 = vmatprep.subr.mxu0 0.0
  %817 = vmatpush1.msra.mxu0 0.0
  %818 = vmatprep.subr.mxu0 0.0
  %819 = vmatpush1.msra.mxu0 0.0
  %820 = vmatprep.subr.mxu0 0.0
  %821 = vmatpush1.msra.mxu0 0.0
  %822 = vmatprep.subr.mxu0 0.0
  %823 = vmatpush1.msra.mxu0 0.0
  %824 = vmatprep.subr.mxu0 0.0
  %825 = vmatpush1.msra.mxu0 0.0
  %826 = vmatprep.subr.mxu0 0.0
  %827 = vmatpush1.msra.mxu0 0.0
  %828 = vmatprep.subr.mxu0 0.0
  %829 = vmatpush1.msra.mxu0 0.0
  %830 = vmatprep.subr.mxu0 0.0
  %831 = vmatpush1.msra.mxu0 0.0
  %832 = vmatprep.subr.mxu0 0.0
  %833 = vmatpush1.msra.mxu0 0.0
  %834 = vmatprep.subr.mxu0 0.0
  %835 = vmatpush1.msra.mxu0 0.0
  %836 = vmatprep.subr.mxu0 %v373
  %837 = vmatpush1.msra.mxu0 %v372
  %838 = vmatprep.subr.mxu0 %v369
  %839 = vmatpush1.msra.mxu0 %v368
  %840 = vmatprep.subr.mxu0 %v365
  %841 = vmatpush1.msra.mxu0 %v364
  %842 = vmatprep.subr.mxu0 %v361
  %843 = vmatpush1.msra.mxu0 %v360
  %844 = vmatprep.subr.mxu0 0.0
  %845 = vmatpush2.msra.mxu0 0.0
  %846 = vmatprep.subr.mxu0 0.0
  %847 = vmatpush2.msra.mxu0 0.0
  %848 = vmatprep.subr.mxu0 0.0
  %849 = vmatpush2.msra.mxu0 0.0
  %850 = vmatprep.subr.mxu0 0.0
  %851 = vmatpush2.msra.mxu0 0.0
  %852 = vmatprep.subr.mxu0 0.0
  %853 = vmatpush2.msra.mxu0 0.0
  %854 = vmatprep.subr.mxu0 0.0
  %855 = vmatpush2.msra.mxu0 0.0
  %856 = vmatprep.subr.mxu0 0.0
  %857 = vmatpush2.msra.mxu0 0.0
  %858 = vmatprep.subr.mxu0 0.0
  %859 = vmatpush2.msra.mxu0 0.0
  %860 = vmatprep.subr.mxu0 0.0
  %861 = vmatpush2.msra.mxu0 0.0
  %862 = vmatprep.subr.mxu0 0.0
  %863 = vmatpush2.msra.mxu0 0.0
  %864 = vmatprep.subr.mxu0 0.0
  %865 = vmatpush2.msra.mxu0 0.0
  %866 = vmatprep.subr.mxu0 0.0
  %867 = vmatpush2.msra.mxu0 0.0
  %868 = vmatprep.subr.mxu0 0.0
  %869 = vmatpush2.msra.mxu0 0.0
  %870 = vmatprep.subr.mxu0 0.0
  %871 = vmatpush2.msra.mxu0 0.0
  %872 = vmatprep.subr.mxu0 0.0
  %873 = vmatpush2.msra.mxu0 0.0
  %874 = vmatprep.subr.mxu0 0.0
  %875 = vmatpush2.msra.mxu0 0.0
  %876 = vmatprep.mubr.f32.mxu0 0.0
  %877 = vmatmul.mubr.f32.gmra.mxu0 %v739
  %v878 = vpop.f32.mrf.mxu0
  %v879 = vadd.f32 0.0, %v878
  %v880 = vpop.f32.mrf.mxu0
  %v881 = vadd.f32 0.0, %v880
  %882 = vdwg.mxu0
  %v883 = vadd.f32 %v734, %v808
  %v884 = vadd.f32 %v735, %v810
  %v885 = vadd.f32 %v736, %v879
  %v886 = vadd.f32 %v737, %v881
  %v887 = vxor.u32 %v883, 2147483648
  %v888 = vmul.f32 %v887, 1.442695
  %v889 = vpow.pop %v888
  %v890 = vadd.f32 %v889, 1.0
  %v891 = vrcp.pop %v890
  %v892 = vmul.f32 1.0, %v891
  %v893 = vxor.u32 %v884, 2147483648
  %v894 = vmul.f32 %v893, 1.442695
  %v895 = vpow.pop %v894
  %v896 = vadd.f32 %v895, 1.0
  %v897 = vrcp.pop %v896
  %v898 = vmul.f32 1.0, %v897
  %v899 = vtanh.pop %v885
  %v900 = vxor.u32 %v886, 2147483648
  %v901 = vmul.f32 %v900, 1.442695
  %v902 = vpow.pop %v901
  %v903 = vadd.f32 %v902, 1.0
  %v904 = vrcp.pop %v903
  %v905 = vmul.f32 1.0, %v904
  %v906 = vmul.f32 %v898, %v728
  %v907 = vmul.f32 %v892, %v899
  %v908 = vadd.f32 %v906, %v907
  %v909 = vtanh.pop %v908
  %v910 = vmul.f32 %v905, %v909
  %s911 = scalar_lea.vmem [#allocation3], 16
  %912 = vst [vmem:[%s911] sm:$0xff] %v910
  %s913 = scalar_lea.vmem [#allocation2], 96
  %v914 = vld [vmem:[%s913] sm:$0xff]
  %v915 = vld [vmem:[%s913 + $0x8] sm:$0xff]
  %v916 = vld [vmem:[%s913 + $0x10] sm:$0xff]
  %v917 = vld [vmem:[%s913 + $0x18] sm:$0xff]
  %v919 = vsel %vm378, %v910, 0
  %921 = vmatprep.subr.mxu0 0.0
  %922 = vmatpush1.msra.mxu0 0.0
  %923 = vmatprep.subr.mxu0 0.0
  %924 = vmatpush1.msra.mxu0 0.0
  %925 = vmatprep.subr.mxu0 0.0
  %926 = vmatpush1.msra.mxu0 0.0
  %927 = vmatprep.subr.mxu0 0.0
  %928 = vmatpush1.msra.mxu0 0.0
  %929 = vmatprep.subr.mxu0 0.0
  %930 = vmatpush1.msra.mxu0 0.0
  %931 = vmatprep.subr.mxu0 0.0
  %932 = vmatpush1.msra.mxu0 0.0
  %933 = vmatprep.subr.mxu0 0.0
  %934 = vmatpush1.msra.mxu0 0.0
  %935 = vmatprep.subr.mxu0 0.0
  %936 = vmatpush1.msra.mxu0 0.0
  %937 = vmatprep.subr.mxu0 0.0
  %938 = vmatpush1.msra.mxu0 0.0
  %939 = vmatprep.subr.mxu0 0.0
  %940 = vmatpush1.msra.mxu0 0.0
  %941 = vmatprep.subr.mxu0 0.0
  %942 = vmatpush1.msra.mxu0 0.0
  %943 = vmatprep.subr.mxu0 0.0
  %944 = vmatpush1.msra.mxu0 0.0
  %945 = vmatprep.subr.mxu0 %v371
  %946 = vmatpush1.msra.mxu0 %v370
  %947 = vmatprep.subr.mxu0 %v367
  %948 = vmatpush1.msra.mxu0 %v366
  %949 = vmatprep.subr.mxu0 %v363
  %950 = vmatpush1.msra.mxu0 %v362
  %951 = vmatprep.subr.mxu0 %v359
  %952 = vmatpush1.msra.mxu0 %v358
  %953 = vmatprep.subr.mxu0 0.0
  %954 = vmatpush2.msra.mxu0 0.0
  %955 = vmatprep.subr.mxu0 0.0
  %956 = vmatpush2.msra.mxu0 0.0
  %957 = vmatprep.subr.mxu0 0.0
  %958 = vmatpush2.msra.mxu0 0.0
  %959 = vmatprep.subr.mxu0 0.0
  %960 = vmatpush2.msra.mxu0 0.0
  %961 = vmatprep.subr.mxu0 0.0
  %962 = vmatpush2.msra.mxu0 0.0
  %963 = vmatprep.subr.mxu0 0.0
  %964 = vmatpush2.msra.mxu0 0.0
  %965 = vmatprep.subr.mxu0 0.0
  %966 = vmatpush2.msra.mxu0 0.0
  %967 = vmatprep.subr.mxu0 0.0
  %968 = vmatpush2.msra.mxu0 0.0
  %969 = vmatprep.subr.mxu0 0.0
  %970 = vmatpush2.msra.mxu0 0.0
  %971 = vmatprep.subr.mxu0 0.0
  %972 = vmatpush2.msra.mxu0 0.0
  %973 = vmatprep.subr.mxu0 0.0
  %974 = vmatpush2.msra.mxu0 0.0
  %975 = vmatprep.subr.mxu0 0.0
  %976 = vmatpush2.msra.mxu0 0.0
  %977 = vmatprep.subr.mxu0 0.0
  %978 = vmatpush2.msra.mxu0 0.0
  %979 = vmatprep.subr.mxu0 0.0
  %980 = vmatpush2.msra.mxu0 0.0
  %981 = vmatprep.subr.mxu0 0.0
  %982 = vmatpush2.msra.mxu0 0.0
  %983 = vmatprep.subr.mxu0 0.0
  %984 = vmatpush2.msra.mxu0 0.0
  %985 = vmatprep.mubr.f32.mxu0 0.0
  %986 = vmatmul.mubr.f32.gmra.mxu0 %v919
  %v987 = vpop.f32.mrf.mxu0
  %v988 = vadd.f32 0.0, %v987
  %v989 = vpop.f32.mrf.mxu0
  %v990 = vadd.f32 0.0, %v989
  %991 = vdwg.mxu0
  %992 = vmatprep.subr.mxu0 0.0
  %993 = vmatpush1.msra.mxu0 0.0
  %994 = vmatprep.subr.mxu0 0.0
  %995 = vmatpush1.msra.mxu0 0.0
  %996 = vmatprep.subr.mxu0 0.0
  %997 = vmatpush1.msra.mxu0 0.0
  %998 = vmatprep.subr.mxu0 0.0
  %999 = vmatpush1.msra.mxu0 0.0
  %1000 = vmatprep.subr.mxu0 0.0
  %1001 = vmatpush1.msra.mxu0 0.0
  %1002 = vmatprep.subr.mxu0 0.0
  %1003 = vmatpush1.msra.mxu0 0.0
  %1004 = vmatprep.subr.mxu0 0.0
  %1005 = vmatpush1.msra.mxu0 0.0
  %1006 = vmatprep.subr.mxu0 0.0
  %1007 = vmatpush1.msra.mxu0 0.0
  %1008 = vmatprep.subr.mxu0 0.0
  %1009 = vmatpush1.msra.mxu0 0.0
  %1010 = vmatprep.subr.mxu0 0.0
  %1011 = vmatpush1.msra.mxu0 0.0
  %1012 = vmatprep.subr.mxu0 0.0
  %1013 = vmatpush1.msra.mxu0 0.0
  %1014 = vmatprep.subr.mxu0 0.0
  %1015 = vmatpush1.msra.mxu0 0.0
  %1016 = vmatprep.subr.mxu0 %v373
  %1017 = vmatpush1.msra.mxu0 %v372
  %1018 = vmatprep.subr.mxu0 %v369
  %1019 = vmatpush1.msra.mxu0 %v368
  %1020 = vmatprep.subr.mxu0 %v365
  %1021 = vmatpush1.msra.mxu0 %v364
  %1022 = vmatprep.subr.mxu0 %v361
  %1023 = vmatpush1.msra.mxu0 %v360
  %1024 = vmatprep.subr.mxu0 0.0
  %1025 = vmatpush2.msra.mxu0 0.0
  %1026 = vmatprep.subr.mxu0 0.0
  %1027 = vmatpush2.msra.mxu0 0.0
  %1028 = vmatprep.subr.mxu0 0.0
  %1029 = vmatpush2.msra.mxu0 0.0
  %1030 = vmatprep.subr.mxu0 0.0
  %1031 = vmatpush2.msra.mxu0 0.0
  %1032 = vmatprep.subr.mxu0 0.0
  %1033 = vmatpush2.msra.mxu0 0.0
  %1034 = vmatprep.subr.mxu0 0.0
  %1035 = vmatpush2.msra.mxu0 0.0
  %1036 = vmatprep.subr.mxu0 0.0
  %1037 = vmatpush2.msra.mxu0 0.0
  %1038 = vmatprep.subr.mxu0 0.0
  %1039 = vmatpush2.msra.mxu0 0.0
  %1040 = vmatprep.subr.mxu0 0.0
  %1041 = vmatpush2.msra.mxu0 0.0
  %1042 = vmatprep.subr.mxu0 0.0
  %1043 = vmatpush2.msra.mxu0 0.0
  %1044 = vmatprep.subr.mxu0 0.0
  %1045 = vmatpush2.msra.mxu0 0.0
  %1046 = vmatprep.subr.mxu0 0.0
  %1047 = vmatpush2.msra.mxu0 0.0
  %1048 = vmatprep.subr.mxu0 0.0
  %1049 = vmatpush2.msra.mxu0 0.0
  %1050 = vmatprep.subr.mxu0 0.0
  %1051 = vmatpush2.msra.mxu0 0.0
  %1052 = vmatprep.subr.mxu0 0.0
  %1053 = vmatpush2.msra.mxu0 0.0
  %1054 = vmatprep.subr.mxu0 0.0
  %1055 = vmatpush2.msra.mxu0 0.0
  %1056 = vmatprep.mubr.f32.mxu0 0.0
  %1057 = vmatmul.mubr.f32.gmra.mxu0 %v919
  %v1058 = vpop.f32.mrf.mxu0
  %v1059 = vadd.f32 0.0, %v1058
  %v1060 = vpop.f32.mrf.mxu0
  %v1061 = vadd.f32 0.0, %v1060
  %1062 = vdwg.mxu0
  %v1063 = vadd.f32 %v914, %v988
  %v1064 = vadd.f32 %v915, %v990
  %v1065 = vadd.f32 %v916, %v1059
  %v1066 = vadd.f32 %v917, %v1061
  %v1067 = vxor.u32 %v1063, 2147483648
  %v1068 = vmul.f32 %v1067, 1.442695
  %v1069 = vpow.pop %v1068
  %v1070 = vadd.f32 %v1069, 1.0
  %v1071 = vrcp.pop %v1070
  %v1072 = vmul.f32 1.0, %v1071
  %v1073 = vxor.u32 %v1064, 2147483648
  %v1074 = vmul.f32 %v1073, 1.442695
  %v1075 = vpow.pop %v1074
  %v1076 = vadd.f32 %v1075, 1.0
  %v1077 = vrcp.pop %v1076
  %v1078 = vmul.f32 1.0, %v1077
  %v1079 = vtanh.pop %v1065
  %v1080 = vxor.u32 %v1066, 2147483648
  %v1081 = vmul.f32 %v1080, 1.442695
  %v1082 = vpow.pop %v1081
  %v1083 = vadd.f32 %v1082, 1.0
  %v1084 = vrcp.pop %v1083
  %v1085 = vmul.f32 1.0, %v1084
  %v1086 = vmul.f32 %v1078, %v908
  %v1087 = vmul.f32 %v1072, %v1079
  %v1088 = vadd.f32 %v1086, %v1087
  %v1089 = vtanh.pop %v1088
  %v1090 = vmul.f32 %v1085, %v1089
  %s1091 = scalar_lea.vmem [#allocation3], 24
  %1092 = vst [vmem:[%s1091] sm:$0xff] %v1090
  %s1093 = scalar_lea.vmem [#allocation2], 128
  %v1094 = vld [vmem:[%s1093] sm:$0xff]
  %v1095 = vld [vmem:[%s1093 + $0x8] sm:$0xff]
  %v1096 = vld [vmem:[%s1093 + $0x10] sm:$0xff]
  %v1097 = vld [vmem:[%s1093 + $0x18] sm:$0xff]
  %v1099 = vsel %vm378, %v1090, 0
  %1101 = vmatprep.subr.mxu0 0.0
  %1102 = vmatpush1.msra.mxu0 0.0
  %1103 = vmatprep.subr.mxu0 0.0
  %1104 = vmatpush1.msra.mxu0 0.0
  %1105 = vmatprep.subr.mxu0 0.0
  %1106 = vmatpush1.msra.mxu0 0.0
  %1107 = vmatprep.subr.mxu0 0.0
  %1108 = vmatpush1.msra.mxu0 0.0
  %1109 = vmatprep.subr.mxu0 0.0
  %1110 = vmatpush1.msra.mxu0 0.0
  %1111 = vmatprep.subr.mxu0 0.0
  %1112 = vmatpush1.msra.mxu0 0.0
  %1113 = vmatprep.subr.mxu0 0.0
  %1114 = vmatpush1.msra.mxu0 0.0
  %1115 = vmatprep.subr.mxu0 0.0
  %1116 = vmatpush1.msra.mxu0 0.0
  %1117 = vmatprep.subr.mxu0 0.0
  %1118 = vmatpush1.msra.mxu0 0.0
  %1119 = vmatprep.subr.mxu0 0.0
  %1120 = vmatpush1.msra.mxu0 0.0
  %1121 = vmatprep.subr.mxu0 0.0
  %1122 = vmatpush1.msra.mxu0 0.0
  %1123 = vmatprep.subr.mxu0 0.0
  %1124 = vmatpush1.msra.mxu0 0.0
  %1125 = vmatprep.subr.mxu0 %v371
  %1126 = vmatpush1.msra.mxu0 %v370
  %1127 = vmatprep.subr.mxu0 %v367
  %1128 = vmatpush1.msra.mxu0 %v366
  %1129 = vmatprep.subr.mxu0 %v363
  %1130 = vmatpush1.msra.mxu0 %v362
  %1131 = vmatprep.subr.mxu0 %v359
  %1132 = vmatpush1.msra.mxu0 %v358
  %1133 = vmatprep.subr.mxu0 0.0
  %1134 = vmatpush2.msra.mxu0 0.0
  %1135 = vmatprep.subr.mxu0 0.0
  %1136 = vmatpush2.msra.mxu0 0.0
  %1137 = vmatprep.subr.mxu0 0.0
  %1138 = vmatpush2.msra.mxu0 0.0
  %1139 = vmatprep.subr.mxu0 0.0
  %1140 = vmatpush2.msra.mxu0 0.0
  %1141 = vmatprep.subr.mxu0 0.0
  %1142 = vmatpush2.msra.mxu0 0.0
  %1143 = vmatprep.subr.mxu0 0.0
  %1144 = vmatpush2.msra.mxu0 0.0
  %1145 = vmatprep.subr.mxu0 0.0
  %1146 = vmatpush2.msra.mxu0 0.0
  %1147 = vmatprep.subr.mxu0 0.0
  %1148 = vmatpush2.msra.mxu0 0.0
  %1149 = vmatprep.subr.mxu0 0.0
  %1150 = vmatpush2.msra.mxu0 0.0
  %1151 = vmatprep.subr.mxu0 0.0
  %1152 = vmatpush2.msra.mxu0 0.0
  %1153 = vmatprep.subr.mxu0 0.0
  %1154 = vmatpush2.msra.mxu0 0.0
  %1155 = vmatprep.subr.mxu0 0.0
  %1156 = vmatpush2.msra.mxu0 0.0
  %1157 = vmatprep.subr.mxu0 0.0
  %1158 = vmatpush2.msra.mxu0 0.0
  %1159 = vmatprep.subr.mxu0 0.0
  %1160 = vmatpush2.msra.mxu0 0.0
  %1161 = vmatprep.subr.mxu0 0.0
  %1162 = vmatpush2.msra.mxu0 0.0
  %1163 = vmatprep.subr.mxu0 0.0
  %1164 = vmatpush2.msra.mxu0 0.0
  %1165 = vmatprep.mubr.f32.mxu0 0.0
  %1166 = vmatmul.mubr.f32.gmra.mxu0 %v1099
  %v1167 = vpop.f32.mrf.mxu0
  %v1168 = vadd.f32 0.0, %v1167
  %v1169 = vpop.f32.mrf.mxu0
  %v1170 = vadd.f32 0.0, %v1169
  %1171 = vdwg.mxu0
  %1172 = vmatprep.subr.mxu0 0.0
  %1173 = vmatpush1.msra.mxu0 0.0
  %1174 = vmatprep.subr.mxu0 0.0
  %1175 = vmatpush1.msra.mxu0 0.0
  %1176 = vmatprep.subr.mxu0 0.0
  %1177 = vmatpush1.msra.mxu0 0.0
  %1178 = vmatprep.subr.mxu0 0.0
  %1179 = vmatpush1.msra.mxu0 0.0
  %1180 = vmatprep.subr.mxu0 0.0
  %1181 = vmatpush1.msra.mxu0 0.0
  %1182 = vmatprep.subr.mxu0 0.0
  %1183 = vmatpush1.msra.mxu0 0.0
  %1184 = vmatprep.subr.mxu0 0.0
  %1185 = vmatpush1.msra.mxu0 0.0
  %1186 = vmatprep.subr.mxu0 0.0
  %1187 = vmatpush1.msra.mxu0 0.0
  %1188 = vmatprep.subr.mxu0 0.0
  %1189 = vmatpush1.msra.mxu0 0.0
  %1190 = vmatprep.subr.mxu0 0.0
  %1191 = vmatpush1.msra.mxu0 0.0
  %1192 = vmatprep.subr.mxu0 0.0
  %1193 = vmatpush1.msra.mxu0 0.0
  %1194 = vmatprep.subr.mxu0 0.0
  %1195 = vmatpush1.msra.mxu0 0.0
  %1196 = vmatprep.subr.mxu0 %v373
  %1197 = vmatpush1.msra.mxu0 %v372
  %1198 = vmatprep.subr.mxu0 %v369
  %1199 = vmatpush1.msra.mxu0 %v368
  %1200 = vmatprep.subr.mxu0 %v365
  %1201 = vmatpush1.msra.mxu0 %v364
  %1202 = vmatprep.subr.mxu0 %v361
  %1203 = vmatpush1.msra.mxu0 %v360
  %1204 = vmatprep.subr.mxu0 0.0
  %1205 = vmatpush2.msra.mxu0 0.0
  %1206 = vmatprep.subr.mxu0 0.0
  %1207 = vmatpush2.msra.mxu0 0.0
  %1208 = vmatprep.subr.mxu0 0.0
  %1209 = vmatpush2.msra.mxu0 0.0
  %1210 = vmatprep.subr.mxu0 0.0
  %1211 = vmatpush2.msra.mxu0 0.0
  %1212 = vmatprep.subr.mxu0 0.0
  %1213 = vmatpush2.msra.mxu0 0.0
  %1214 = vmatprep.subr.mxu0 0.0
  %1215 = vmatpush2.msra.mxu0 0.0
  %1216 = vmatprep.subr.mxu0 0.0
  %1217 = vmatpush2.msra.mxu0 0.0
  %1218 = vmatprep.subr.mxu0 0.0
  %1219 = vmatpush2.msra.mxu0 0.0
  %1220 = vmatprep.subr.mxu0 0.0
  %1221 = vmatpush2.msra.mxu0 0.0
  %1222 = vmatprep.subr.mxu0 0.0
  %1223 = vmatpush2.msra.mxu0 0.0
  %1224 = vmatprep.subr.mxu0 0.0
  %1225 = vmatpush2.msra.mxu0 0.0
  %1226 = vmatprep.subr.mxu0 0.0
  %1227 = vmatpush2.msra.mxu0 0.0
  %1228 = vmatprep.subr.mxu0 0.0
  %1229 = vmatpush2.msra.mxu0 0.0
  %1230 = vmatprep.subr.mxu0 0.0
  %1231 = vmatpush2.msra.mxu0 0.0
  %1232 = vmatprep.subr.mxu0 0.0
  %1233 = vmatpush2.msra.mxu0 0.0
  %1234 = vmatprep.subr.mxu0 0.0
  %1235 = vmatpush2.msra.mxu0 0.0
  %1236 = vmatprep.mubr.f32.mxu0 0.0
  %1237 = vmatmul.mubr.f32.gmra.mxu0 %v1099
  %v1238 = vpop.f32.mrf.mxu0
  %v1239 = vadd.f32 0.0, %v1238
  %v1240 = vpop.f32.mrf.mxu0
  %v1241 = vadd.f32 0.0, %v1240
  %1242 = vdwg.mxu0
  %v1243 = vadd.f32 %v1094, %v1168
  %v1244 = vadd.f32 %v1095, %v1170
  %v1245 = vadd.f32 %v1096, %v1239
  %v1246 = vadd.f32 %v1097, %v1241
  %v1247 = vxor.u32 %v1243, 2147483648
  %v1248 = vmul.f32 %v1247, 1.442695
  %v1249 = vpow.pop %v1248
  %v1250 = vadd.f32 %v1249, 1.0
  %v1251 = vrcp.pop %v1250
  %v1252 = vmul.f32 1.0, %v1251
  %v1253 = vxor.u32 %v1244, 2147483648
  %v1254 = vmul.f32 %v1253, 1.442695
  %v1255 = vpow.pop %v1254
  %v1256 = vadd.f32 %v1255, 1.0
  %v1257 = vrcp.pop %v1256
  %v1258 = vmul.f32 1.0, %v1257
  %v1259 = vtanh.pop %v1245
  %v1260 = vxor.u32 %v1246, 2147483648
  %v1261 = vmul.f32 %v1260, 1.442695
  %v1262 = vpow.pop %v1261
  %v1263 = vadd.f32 %v1262, 1.0
  %v1264 = vrcp.pop %v1263
  %v1265 = vmul.f32 1.0, %v1264
  %v1266 = vmul.f32 %v1258, %v1088
  %v1267 = vmul.f32 %v1252, %v1259
  %v1268 = vadd.f32 %v1266, %v1267
  %v1269 = vtanh.pop %v1268
  %v1270 = vmul.f32 %v1265, %v1269
  %s1271 = scalar_lea.vmem [#allocation3], 32
  %1272 = vst [vmem:[%s1271] sm:$0xff] %v1270
  %s1273 = scalar_lea.vmem [#allocation2], 160
  %v1274 = vld [vmem:[%s1273] sm:$0xff]
  %v1275 = vld [vmem:[%s1273 + $0x8] sm:$0xff]
  %v1276 = vld [vmem:[%s1273 + $0x10] sm:$0xff]
  %v1277 = vld [vmem:[%s1273 + $0x18] sm:$0xff]
  %v1279 = vsel %vm378, %v1270, 0
  %1281 = vmatprep.subr.mxu0 0.0
  %1282 = vmatpush1.msra.mxu0 0.0
  %1283 = vmatprep.subr.mxu0 0.0
  %1284 = vmatpush1.msra.mxu0 0.0
  %1285 = vmatprep.subr.mxu0 0.0
  %1286 = vmatpush1.msra.mxu0 0.0
  %1287 = vmatprep.subr.mxu0 0.0
  %1288 = vmatpush1.msra.mxu0 0.0
  %1289 = vmatprep.subr.mxu0 0.0
  %1290 = vmatpush1.msra.mxu0 0.0
  %1291 = vmatprep.subr.mxu0 0.0
  %1292 = vmatpush1.msra.mxu0 0.0
  %1293 = vmatprep.subr.mxu0 0.0
  %1294 = vmatpush1.msra.mxu0 0.0
  %1295 = vmatprep.subr.mxu0 0.0
  %1296 = vmatpush1.msra.mxu0 0.0
  %1297 = vmatprep.subr.mxu0 0.0
  %1298 = vmatpush1.msra.mxu0 0.0
  %1299 = vmatprep.subr.mxu0 0.0
  %1300 = vmatpush1.msra.mxu0 0.0
  %1301 = vmatprep.subr.mxu0 0.0
  %1302 = vmatpush1.msra.mxu0 0.0
  %1303 = vmatprep.subr.mxu0 0.0
  %1304 = vmatpush1.msra.mxu0 0.0
  %1305 = vmatprep.subr.mxu0 %v371
  %1306 = vmatpush1.msra.mxu0 %v370
  %1307 = vmatprep.subr.mxu0 %v367
  %1308 = vmatpush1.msra.mxu0 %v366
  %1309 = vmatprep.subr.mxu0 %v363
  %1310 = vmatpush1.msra.mxu0 %v362
  %1311 = vmatprep.subr.mxu0 %v359
  %1312 = vmatpush1.msra.mxu0 %v358
  %1313 = vmatprep.subr.mxu0 0.0
  %1314 = vmatpush2.msra.mxu0 0.0
  %1315 = vmatprep.subr.mxu0 0.0
  %1316 = vmatpush2.msra.mxu0 0.0
  %1317 = vmatprep.subr.mxu0 0.0
  %1318 = vmatpush2.msra.mxu0 0.0
  %1319 = vmatprep.subr.mxu0 0.0
  %1320 = vmatpush2.msra.mxu0 0.0
  %1321 = vmatprep.subr.mxu0 0.0
  %1322 = vmatpush2.msra.mxu0 0.0
  %1323 = vmatprep.subr.mxu0 0.0
  %1324 = vmatpush2.msra.mxu0 0.0
  %1325 = vmatprep.subr.mxu0 0.0
  %1326 = vmatpush2.msra.mxu0 0.0
  %1327 = vmatprep.subr.mxu0 0.0
  %1328 = vmatpush2.msra.mxu0 0.0
  %1329 = vmatprep.subr.mxu0 0.0
  %1330 = vmatpush2.msra.mxu0 0.0
  %1331 = vmatprep.subr.mxu0 0.0
  %1332 = vmatpush2.msra.mxu0 0.0
  %1333 = vmatprep.subr.mxu0 0.0
  %1334 = vmatpush2.msra.mxu0 0.0
  %1335 = vmatprep.subr.mxu0 0.0
  %1336 = vmatpush2.msra.mxu0 0.0
  %1337 = vmatprep.subr.mxu0 0.0
  %1338 = vmatpush2.msra.mxu0 0.0
  %1339 = vmatprep.subr.mxu0 0.0
  %1340 = vmatpush2.msra.mxu0 0.0
  %1341 = vmatprep.subr.mxu0 0.0
  %1342 = vmatpush2.msra.mxu0 0.0
  %1343 = vmatprep.subr.mxu0 0.0
  %1344 = vmatpush2.msra.mxu0 0.0
  %1345 = vmatprep.mubr.f32.mxu0 0.0
  %1346 = vmatmul.mubr.f32.gmra.mxu0 %v1279
  %v1347 = vpop.f32.mrf.mxu0
  %v1348 = vadd.f32 0.0, %v1347
  %v1349 = vpop.f32.mrf.mxu0
  %v1350 = vadd.f32 0.0, %v1349
  %1351 = vdwg.mxu0
  %1352 = vmatprep.subr.mxu0 0.0
  %1353 = vmatpush1.msra.mxu0 0.0
  %1354 = vmatprep.subr.mxu0 0.0
  %1355 = vmatpush1.msra.mxu0 0.0
  %1356 = vmatprep.subr.mxu0 0.0
  %1357 = vmatpush1.msra.mxu0 0.0
  %1358 = vmatprep.subr.mxu0 0.0
  %1359 = vmatpush1.msra.mxu0 0.0
  %1360 = vmatprep.subr.mxu0 0.0
  %1361 = vmatpush1.msra.mxu0 0.0
  %1362 = vmatprep.subr.mxu0 0.0
  %1363 = vmatpush1.msra.mxu0 0.0
  %1364 = vmatprep.subr.mxu0 0.0
  %1365 = vmatpush1.msra.mxu0 0.0
  %1366 = vmatprep.subr.mxu0 0.0
  %1367 = vmatpush1.msra.mxu0 0.0
  %1368 = vmatprep.subr.mxu0 0.0
  %1369 = vmatpush1.msra.mxu0 0.0
  %1370 = vmatprep.subr.mxu0 0.0
  %1371 = vmatpush1.msra.mxu0 0.0
  %1372 = vmatprep.subr.mxu0 0.0
  %1373 = vmatpush1.msra.mxu0 0.0
  %1374 = vmatprep.subr.mxu0 0.0
  %1375 = vmatpush1.msra.mxu0 0.0
  %1376 = vmatprep.subr.mxu0 %v373
  %1377 = vmatpush1.msra.mxu0 %v372
  %1378 = vmatprep.subr.mxu0 %v369
  %1379 = vmatpush1.msra.mxu0 %v368
  %1380 = vmatprep.subr.mxu0 %v365
  %1381 = vmatpush1.msra.mxu0 %v364
  %1382 = vmatprep.subr.mxu0 %v361
  %1383 = vmatpush1.msra.mxu0 %v360
  %1384 = vmatprep.subr.mxu0 0.0
  %1385 = vmatpush2.msra.mxu0 0.0
  %1386 = vmatprep.subr.mxu0 0.0
  %1387 = vmatpush2.msra.mxu0 0.0
  %1388 = vmatprep.subr.mxu0 0.0
  %1389 = vmatpush2.msra.mxu0 0.0
  %1390 = vmatprep.subr.mxu0 0.0
  %1391 = vmatpush2.msra.mxu0 0.0
  %1392 = vmatprep.subr.mxu0 0.0
  %1393 = vmatpush2.msra.mxu0 0.0
  %1394 = vmatprep.subr.mxu0 0.0
  %1395 = vmatpush2.msra.mxu0 0.0
  %1396 = vmatprep.subr.mxu0 0.0
  %1397 = vmatpush2.msra.mxu0 0.0
  %1398 = vmatprep.subr.mxu0 0.0
  %1399 = vmatpush2.msra.mxu0 0.0
  %1400 = vmatprep.subr.mxu0 0.0
  %1401 = vmatpush2.msra.mxu0 0.0
  %1402 = vmatprep.subr.mxu0 0.0
  %1403 = vmatpush2.msra.mxu0 0.0
  %1404 = vmatprep.subr.mxu0 0.0
  %1405 = vmatpush2.msra.mxu0 0.0
  %1406 = vmatprep.subr.mxu0 0.0
  %1407 = vmatpush2.msra.mxu0 0.0
  %1408 = vmatprep.subr.mxu0 0.0
  %1409 = vmatpush2.msra.mxu0 0.0
  %1410 = vmatprep.subr.mxu0 0.0
  %1411 = vmatpush2.msra.mxu0 0.0
  %1412 = vmatprep.subr.mxu0 0.0
  %1413 = vmatpush2.msra.mxu0 0.0
  %1414 = vmatprep.subr.mxu0 0.0
  %1415 = vmatpush2.msra.mxu0 0.0
  %1416 = vmatprep.mubr.f32.mxu0 0.0
  %1417 = vmatmul.mubr.f32.gmra.mxu0 %v1279
  %v1418 = vpop.f32.mrf.mxu0
  %v1419 = vadd.f32 0.0, %v1418
  %v1420 = vpop.f32.mrf.mxu0
  %v1421 = vadd.f32 0.0, %v1420
  %1422 = vdwg.mxu0
  %v1423 = vadd.f32 %v1274, %v1348
  %v1424 = vadd.f32 %v1275, %v1350
  %v1425 = vadd.f32 %v1276, %v1419
  %v1426 = vadd.f32 %v1277, %v1421
  %v1427 = vxor.u32 %v1423, 2147483648
  %v1428 = vmul.f32 %v1427, 1.442695
  %v1429 = vpow.pop %v1428
  %v1430 = vadd.f32 %v1429, 1.0
  %v1431 = vrcp.pop %v1430
  %v1432 = vmul.f32 1.0, %v1431
  %v1433 = vxor.u32 %v1424, 2147483648
  %v1434 = vmul.f32 %v1433, 1.442695
  %v1435 = vpow.pop %v1434
  %v1436 = vadd.f32 %v1435, 1.0
  %v1437 = vrcp.pop %v1436
  %v1438 = vmul.f32 1.0, %v1437
  %v1439 = vtanh.pop %v1425
  %v1440 = vxor.u32 %v1426, 2147483648
  %v1441 = vmul.f32 %v1440, 1.442695
  %v1442 = vpow.pop %v1441
  %v1443 = vadd.f32 %v1442, 1.0
  %v1444 = vrcp.pop %v1443
  %v1445 = vmul.f32 1.0, %v1444
  %v1446 = vmul.f32 %v1438, %v1268
  %v1447 = vmul.f32 %v1432, %v1439
  %v1448 = vadd.f32 %v1446, %v1447
  %v1449 = vtanh.pop %v1448
  %v1450 = vmul.f32 %v1445, %v1449
  %s1451 = scalar_lea.vmem [#allocation3], 40
  %1452 = vst [vmem:[%s1451] sm:$0xff] %v1450
  %s1453 = scalar_lea.vmem [#allocation2], 192
  %v1454 = vld [vmem:[%s1453] sm:$0xff]
  %v1455 = vld [vmem:[%s1453 + $0x8] sm:$0xff]
  %v1456 = vld [vmem:[%s1453 + $0x10] sm:$0xff]
  %v1457 = vld [vmem:[%s1453 + $0x18] sm:$0xff]
  %v1459 = vsel %vm378, %v1450, 0
  %1461 = vmatprep.subr.mxu0 0.0
  %1462 = vmatpush1.msra.mxu0 0.0
  %1463 = vmatprep.subr.mxu0 0.0
  %1464 = vmatpush1.msra.mxu0 0.0
  %1465 = vmatprep.subr.mxu0 0.0
  %1466 = vmatpush1.msra.mxu0 0.0
  %1467 = vmatprep.subr.mxu0 0.0
  %1468 = vmatpush1.msra.mxu0 0.0
  %1469 = vmatprep.subr.mxu0 0.0
  %1470 = vmatpush1.msra.mxu0 0.0
  %1471 = vmatprep.subr.mxu0 0.0
  %1472 = vmatpush1.msra.mxu0 0.0
  %1473 = vmatprep.subr.mxu0 0.0
  %1474 = vmatpush1.msra.mxu0 0.0
  %1475 = vmatprep.subr.mxu0 0.0
  %1476 = vmatpush1.msra.mxu0 0.0
  %1477 = vmatprep.subr.mxu0 0.0
  %1478 = vmatpush1.msra.mxu0 0.0
  %1479 = vmatprep.subr.mxu0 0.0
  %1480 = vmatpush1.msra.mxu0 0.0
  %1481 = vmatprep.subr.mxu0 0.0
  %1482 = vmatpush1.msra.mxu0 0.0
  %1483 = vmatprep.subr.mxu0 0.0
  %1484 = vmatpush1.msra.mxu0 0.0
  %1485 = vmatprep.subr.mxu0 %v371
  %1486 = vmatpush1.msra.mxu0 %v370
  %1487 = vmatprep.subr.mxu0 %v367
  %1488 = vmatpush1.msra.mxu0 %v366
  %1489 = vmatprep.subr.mxu0 %v363
  %1490 = vmatpush1.msra.mxu0 %v362
  %1491 = vmatprep.subr.mxu0 %v359
  %1492 = vmatpush1.msra.mxu0 %v358
  %1493 = vmatprep.subr.mxu0 0.0
  %1494 = vmatpush2.msra.mxu0 0.0
  %1495 = vmatprep.subr.mxu0 0.0
  %1496 = vmatpush2.msra.mxu0 0.0
  %1497 = vmatprep.subr.mxu0 0.0
  %1498 = vmatpush2.msra.mxu0 0.0
  %1499 = vmatprep.subr.mxu0 0.0
  %1500 = vmatpush2.msra.mxu0 0.0
  %1501 = vmatprep.subr.mxu0 0.0
  %1502 = vmatpush2.msra.mxu0 0.0
  %1503 = vmatprep.subr.mxu0 0.0
  %1504 = vmatpush2.msra.mxu0 0.0
  %1505 = vmatprep.subr.mxu0 0.0
  %1506 = vmatpush2.msra.mxu0 0.0
  %1507 = vmatprep.subr.mxu0 0.0
  %1508 = vmatpush2.msra.mxu0 0.0
  %1509 = vmatprep.subr.mxu0 0.0
  %1510 = vmatpush2.msra.mxu0 0.0
  %1511 = vmatprep.subr.mxu0 0.0
  %1512 = vmatpush2.msra.mxu0 0.0
  %1513 = vmatprep.subr.mxu0 0.0
  %1514 = vmatpush2.msra.mxu0 0.0
  %1515 = vmatprep.subr.mxu0 0.0
  %1516 = vmatpush2.msra.mxu0 0.0
  %1517 = vmatprep.subr.mxu0 0.0
  %1518 = vmatpush2.msra.mxu0 0.0
  %1519 = vmatprep.subr.mxu0 0.0
  %1520 = vmatpush2.msra.mxu0 0.0
  %1521 = vmatprep.subr.mxu0 0.0
  %1522 = vmatpush2.msra.mxu0 0.0
  %1523 = vmatprep.subr.mxu0 0.0
  %1524 = vmatpush2.msra.mxu0 0.0
  %1525 = vmatprep.mubr.f32.mxu0 0.0
  %1526 = vmatmul.mubr.f32.gmra.mxu0 %v1459
  %v1527 = vpop.f32.mrf.mxu0
  %v1528 = vadd.f32 0.0, %v1527
  %v1529 = vpop.f32.mrf.mxu0
  %v1530 = vadd.f32 0.0, %v1529
  %1531 = vdwg.mxu0
  %1532 = vmatprep.subr.mxu0 0.0
  %1533 = vmatpush1.msra.mxu0 0.0
  %1534 = vmatprep.subr.mxu0 0.0
  %1535 = vmatpush1.msra.mxu0 0.0
  %1536 = vmatprep.subr.mxu0 0.0
  %1537 = vmatpush1.msra.mxu0 0.0
  %1538 = vmatprep.subr.mxu0 0.0
  %1539 = vmatpush1.msra.mxu0 0.0
  %1540 = vmatprep.subr.mxu0 0.0
  %1541 = vmatpush1.msra.mxu0 0.0
  %1542 = vmatprep.subr.mxu0 0.0
  %1543 = vmatpush1.msra.mxu0 0.0
  %1544 = vmatprep.subr.mxu0 0.0
  %1545 = vmatpush1.msra.mxu0 0.0
  %1546 = vmatprep.subr.mxu0 0.0
  %1547 = vmatpush1.msra.mxu0 0.0
  %1548 = vmatprep.subr.mxu0 0.0
  %1549 = vmatpush1.msra.mxu0 0.0
  %1550 = vmatprep.subr.mxu0 0.0
  %1551 = vmatpush1.msra.mxu0 0.0
  %1552 = vmatprep.subr.mxu0 0.0
  %1553 = vmatpush1.msra.mxu0 0.0
  %1554 = vmatprep.subr.mxu0 0.0
  %1555 = vmatpush1.msra.mxu0 0.0
  %1556 = vmatprep.subr.mxu0 %v373
  %1557 = vmatpush1.msra.mxu0 %v372
  %1558 = vmatprep.subr.mxu0 %v369
  %1559 = vmatpush1.msra.mxu0 %v368
  %1560 = vmatprep.subr.mxu0 %v365
  %1561 = vmatpush1.msra.mxu0 %v364
  %1562 = vmatprep.subr.mxu0 %v361
  %1563 = vmatpush1.msra.mxu0 %v360
  %1564 = vmatprep.subr.mxu0 0.0
  %1565 = vmatpush2.msra.mxu0 0.0
  %1566 = vmatprep.subr.mxu0 0.0
  %1567 = vmatpush2.msra.mxu0 0.0
  %1568 = vmatprep.subr.mxu0 0.0
  %1569 = vmatpush2.msra.mxu0 0.0
  %1570 = vmatprep.subr.mxu0 0.0
  %1571 = vmatpush2.msra.mxu0 0.0
  %1572 = vmatprep.subr.mxu0 0.0
  %1573 = vmatpush2.msra.mxu0 0.0
  %1574 = vmatprep.subr.mxu0 0.0
  %1575 = vmatpush2.msra.mxu0 0.0
  %1576 = vmatprep.subr.mxu0 0.0
  %1577 = vmatpush2.msra.mxu0 0.0
  %1578 = vmatprep.subr.mxu0 0.0
  %1579 = vmatpush2.msra.mxu0 0.0
  %1580 = vmatprep.subr.mxu0 0.0
  %1581 = vmatpush2.msra.mxu0 0.0
  %1582 = vmatprep.subr.mxu0 0.0
  %1583 = vmatpush2.msra.mxu0 0.0
  %1584 = vmatprep.subr.mxu0 0.0
  %1585 = vmatpush2.msra.mxu0 0.0
  %1586 = vmatprep.subr.mxu0 0.0
  %1587 = vmatpush2.msra.mxu0 0.0
  %1588 = vmatprep.subr.mxu0 0.0
  %1589 = vmatpush2.msra.mxu0 0.0
  %1590 = vmatprep.subr.mxu0 0.0
  %1591 = vmatpush2.msra.mxu0 0.0
  %1592 = vmatprep.subr.mxu0 0.0
  %1593 = vmatpush2.msra.mxu0 0.0
  %1594 = vmatprep.subr.mxu0 0.0
  %1595 = vmatpush2.msra.mxu0 0.0
  %1596 = vmatprep.mubr.f32.mxu0 0.0
  %1597 = vmatmul.mubr.f32.gmra.mxu0 %v1459
  %v1598 = vpop.f32.mrf.mxu0
  %v1599 = vadd.f32 0.0, %v1598
  %v1600 = vpop.f32.mrf.mxu0
  %v1601 = vadd.f32 0.0, %v1600
  %1602 = vdwg.mxu0
  %v1603 = vadd.f32 %v1454, %v1528
  %v1604 = vadd.f32 %v1455, %v1530
  %v1605 = vadd.f32 %v1456, %v1599
  %v1606 = vadd.f32 %v1457, %v1601
  %v1607 = vxor.u32 %v1603, 2147483648
  %v1608 = vmul.f32 %v1607, 1.442695
  %v1609 = vpow.pop %v1608
  %v1610 = vadd.f32 %v1609, 1.0
  %v1611 = vrcp.pop %v1610
  %v1612 = vmul.f32 1.0, %v1611
  %v1613 = vxor.u32 %v1604, 2147483648
  %v1614 = vmul.f32 %v1613, 1.442695
  %v1615 = vpow.pop %v1614
  %v1616 = vadd.f32 %v1615, 1.0
  %v1617 = vrcp.pop %v1616
  %v1618 = vmul.f32 1.0, %v1617
  %v1619 = vtanh.pop %v1605
  %v1620 = vxor.u32 %v1606, 2147483648
  %v1621 = vmul.f32 %v1620, 1.442695
  %v1622 = vpow.pop %v1621
  %v1623 = vadd.f32 %v1622, 1.0
  %v1624 = vrcp.pop %v1623
  %v1625 = vmul.f32 1.0, %v1624
  %v1626 = vmul.f32 %v1618, %v1448
  %v1627 = vmul.f32 %v1612, %v1619
  %v1628 = vadd.f32 %v1626, %v1627
  %v1629 = vtanh.pop %v1628
  %v1630 = vmul.f32 %v1625, %v1629
  %s1631 = scalar_lea.vmem [#allocation3], 48
  %1632 = vst [vmem:[%s1631] sm:$0xff] %v1630
  %s1633 = scalar_lea.vmem [#allocation2], 224
  %v1634 = vld [vmem:[%s1633] sm:$0xff]
  %v1635 = vld [vmem:[%s1633 + $0x8] sm:$0xff]
  %v1636 = vld [vmem:[%s1633 + $0x10] sm:$0xff]
  %v1637 = vld [vmem:[%s1633 + $0x18] sm:$0xff]
  %v1639 = vsel %vm378, %v1630, 0
  %1641 = vmatprep.subr.mxu0 0.0
  %1642 = vmatpush1.msra.mxu0 0.0
  %1643 = vmatprep.subr.mxu0 0.0
  %1644 = vmatpush1.msra.mxu0 0.0
  %1645 = vmatprep.subr.mxu0 0.0
  %1646 = vmatpush1.msra.mxu0 0.0
  %1647 = vmatprep.subr.mxu0 0.0
  %1648 = vmatpush1.msra.mxu0 0.0
  %1649 = vmatprep.subr.mxu0 0.0
  %1650 = vmatpush1.msra.mxu0 0.0
  %1651 = vmatprep.subr.mxu0 0.0
  %1652 = vmatpush1.msra.mxu0 0.0
  %1653 = vmatprep.subr.mxu0 0.0
  %1654 = vmatpush1.msra.mxu0 0.0
  %1655 = vmatprep.subr.mxu0 0.0
  %1656 = vmatpush1.msra.mxu0 0.0
  %1657 = vmatprep.subr.mxu0 0.0
  %1658 = vmatpush1.msra.mxu0 0.0
  %1659 = vmatprep.subr.mxu0 0.0
  %1660 = vmatpush1.msra.mxu0 0.0
  %1661 = vmatprep.subr.mxu0 0.0
  %1662 = vmatpush1.msra.mxu0 0.0
  %1663 = vmatprep.subr.mxu0 0.0
  %1664 = vmatpush1.msra.mxu0 0.0
  %1665 = vmatprep.subr.mxu0 %v371
  %1666 = vmatpush1.msra.mxu0 %v370
  %1667 = vmatprep.subr.mxu0 %v367
  %1668 = vmatpush1.msra.mxu0 %v366
  %1669 = vmatprep.subr.mxu0 %v363
  %1670 = vmatpush1.msra.mxu0 %v362
  %1671 = vmatprep.subr.mxu0 %v359
  %1672 = vmatpush1.msra.mxu0 %v358
  %1673 = vmatprep.subr.mxu0 0.0
  %1674 = vmatpush2.msra.mxu0 0.0
  %1675 = vmatprep.subr.mxu0 0.0
  %1676 = vmatpush2.msra.mxu0 0.0
  %1677 = vmatprep.subr.mxu0 0.0
  %1678 = vmatpush2.msra.mxu0 0.0
  %1679 = vmatprep.subr.mxu0 0.0
  %1680 = vmatpush2.msra.mxu0 0.0
  %1681 = vmatprep.subr.mxu0 0.0
  %1682 = vmatpush2.msra.mxu0 0.0
  %1683 = vmatprep.subr.mxu0 0.0
  %1684 = vmatpush2.msra.mxu0 0.0
  %1685 = vmatprep.subr.mxu0 0.0
  %1686 = vmatpush2.msra.mxu0 0.0
  %1687 = vmatprep.subr.mxu0 0.0
  %1688 = vmatpush2.msra.mxu0 0.0
  %1689 = vmatprep.subr.mxu0 0.0
  %1690 = vmatpush2.msra.mxu0 0.0
  %1691 = vmatprep.subr.mxu0 0.0
  %1692 = vmatpush2.msra.mxu0 0.0
  %1693 = vmatprep.subr.mxu0 0.0
  %1694 = vmatpush2.msra.mxu0 0.0
  %1695 = vmatprep.subr.mxu0 0.0
  %1696 = vmatpush2.msra.mxu0 0.0
  %1697 = vmatprep.subr.mxu0 0.0
  %1698 = vmatpush2.msra.mxu0 0.0
  %1699 = vmatprep.subr.mxu0 0.0
  %1700 = vmatpush2.msra.mxu0 0.0
  %1701 = vmatprep.subr.mxu0 0.0
  %1702 = vmatpush2.msra.mxu0 0.0
  %1703 = vmatprep.subr.mxu0 0.0
  %1704 = vmatpush2.msra.mxu0 0.0
  %1705 = vmatprep.mubr.f32.mxu0 0.0
  %1706 = vmatmul.mubr.f32.gmra.mxu0 %v1639
  %v1707 = vpop.f32.mrf.mxu0
  %v1708 = vadd.f32 0.0, %v1707
  %v1709 = vpop.f32.mrf.mxu0
  %v1710 = vadd.f32 0.0, %v1709
  %1711 = vdwg.mxu0
  %1712 = vmatprep.subr.mxu0 0.0
  %1713 = vmatpush1.msra.mxu0 0.0
  %1714 = vmatprep.subr.mxu0 0.0
  %1715 = vmatpush1.msra.mxu0 0.0
  %1716 = vmatprep.subr.mxu0 0.0
  %1717 = vmatpush1.msra.mxu0 0.0
  %1718 = vmatprep.subr.mxu0 0.0
  %1719 = vmatpush1.msra.mxu0 0.0
  %1720 = vmatprep.subr.mxu0 0.0
  %1721 = vmatpush1.msra.mxu0 0.0
  %1722 = vmatprep.subr.mxu0 0.0
  %1723 = vmatpush1.msra.mxu0 0.0
  %1724 = vmatprep.subr.mxu0 0.0
  %1725 = vmatpush1.msra.mxu0 0.0
  %1726 = vmatprep.subr.mxu0 0.0
  %1727 = vmatpush1.msra.mxu0 0.0
  %1728 = vmatprep.subr.mxu0 0.0
  %1729 = vmatpush1.msra.mxu0 0.0
  %1730 = vmatprep.subr.mxu0 0.0
  %1731 = vmatpush1.msra.mxu0 0.0
  %1732 = vmatprep.subr.mxu0 0.0
  %1733 = vmatpush1.msra.mxu0 0.0
  %1734 = vmatprep.subr.mxu0 0.0
  %1735 = vmatpush1.msra.mxu0 0.0
  %1736 = vmatprep.subr.mxu0 %v373
  %1737 = vmatpush1.msra.mxu0 %v372
  %1738 = vmatprep.subr.mxu0 %v369
  %1739 = vmatpush1.msra.mxu0 %v368
  %1740 = vmatprep.subr.mxu0 %v365
  %1741 = vmatpush1.msra.mxu0 %v364
  %1742 = vmatprep.subr.mxu0 %v361
  %1743 = vmatpush1.msra.mxu0 %v360
  %1744 = vmatprep.subr.mxu0 0.0
  %1745 = vmatpush2.msra.mxu0 0.0
  %1746 = vmatprep.subr.mxu0 0.0
  %1747 = vmatpush2.msra.mxu0 0.0
  %1748 = vmatprep.subr.mxu0 0.0
  %1749 = vmatpush2.msra.mxu0 0.0
  %1750 = vmatprep.subr.mxu0 0.0
  %1751 = vmatpush2.msra.mxu0 0.0
  %1752 = vmatprep.subr.mxu0 0.0
  %1753 = vmatpush2.msra.mxu0 0.0
  %1754 = vmatprep.subr.mxu0 0.0
  %1755 = vmatpush2.msra.mxu0 0.0
  %1756 = vmatprep.subr.mxu0 0.0
  %1757 = vmatpush2.msra.mxu0 0.0
  %1758 = vmatprep.subr.mxu0 0.0
  %1759 = vmatpush2.msra.mxu0 0.0
  %1760 = vmatprep.subr.mxu0 0.0
  %1761 = vmatpush2.msra.mxu0 0.0
  %1762 = vmatprep.subr.mxu0 0.0
  %1763 = vmatpush2.msra.mxu0 0.0
  %1764 = vmatprep.subr.mxu0 0.0
  %1765 = vmatpush2.msra.mxu0 0.0
  %1766 = vmatprep.subr.mxu0 0.0
  %1767 = vmatpush2.msra.mxu0 0.0
  %1768 = vmatprep.subr.mxu0 0.0
  %1769 = vmatpush2.msra.mxu0 0.0
  %1770 = vmatprep.subr.mxu0 0.0
  %1771 = vmatpush2.msra.mxu0 0.0
  %1772 = vmatprep.subr.mxu0 0.0
  %1773 = vmatpush2.msra.mxu0 0.0
  %1774 = vmatprep.subr.mxu0 0.0
  %1775 = vmatpush2.msra.mxu0 0.0
  %1776 = vmatprep.mubr.f32.mxu0 0.0
  %1777 = vmatmul.mubr.f32.gmra.mxu0 %v1639
  %v1778 = vpop.f32.mrf.mxu0
  %v1779 = vadd.f32 0.0, %v1778
  %v1780 = vpop.f32.mrf.mxu0
  %v1781 = vadd.f32 0.0, %v1780
  %1782 = vdwg.mxu0
  %v1783 = vadd.f32 %v1634, %v1708
  %v1784 = vadd.f32 %v1635, %v1710
  %v1785 = vadd.f32 %v1636, %v1779
  %v1786 = vadd.f32 %v1637, %v1781
  %v1787 = vxor.u32 %v1783, 2147483648
  %v1788 = vmul.f32 %v1787, 1.442695
  %v1789 = vpow.pop %v1788
  %v1790 = vadd.f32 %v1789, 1.0
  %v1791 = vrcp.pop %v1790
  %v1792 = vmul.f32 1.0, %v1791
  %v1793 = vxor.u32 %v1784, 2147483648
  %v1794 = vmul.f32 %v1793, 1.442695
  %v1795 = vpow.pop %v1794
  %v1796 = vadd.f32 %v1795, 1.0
  %v1797 = vrcp.pop %v1796
  %v1798 = vmul.f32 1.0, %v1797
  %v1799 = vtanh.pop %v1785
  %v1800 = vxor.u32 %v1786, 2147483648
  %v1801 = vmul.f32 %v1800, 1.442695
  %v1802 = vpow.pop %v1801
  %v1803 = vadd.f32 %v1802, 1.0
  %v1804 = vrcp.pop %v1803
  %v1805 = vmul.f32 1.0, %v1804
  %v1806 = vmul.f32 %v1798, %v1628
  %v1807 = vmul.f32 %v1792, %v1799
  %v1808 = vadd.f32 %v1806, %v1807
  %v1809 = vtanh.pop %v1808
  %v1810 = vmul.f32 %v1805, %v1809
  %s1811 = scalar_lea.vmem [#allocation3], 56
  %1812 = vst [vmem:[%s1811] sm:$0xff] %v1810
  %v1813 = vld [vmem:[#allocation3] sm:$0xff]
  %v1814 = vld [vmem:[#allocation3 + $0x8] sm:$0xff]
  %v1815 = vld [vmem:[#allocation3 + $0x10] sm:$0xff]
  %v1816 = vld [vmem:[#allocation3 + $0x18] sm:$0xff]
  %v1817 = vld [vmem:[#allocation3 + $0x20] sm:$0xff]
  %v1818 = vld [vmem:[#allocation3 + $0x28] sm:$0xff]
  %v1819 = vld [vmem:[#allocation3 + $0x30] sm:$0xff]
  %v1820 = vld [vmem:[#allocation3 + $0x38] sm:$0xff]
  %v1821 = vld [vmem:[%s4] sm:$0xff]
  %v1822 = vld [vmem:[%s4 + $0x8] sm:$0xff]
  %v1823 = vld [vmem:[%s4 + $0x10] sm:$0xff]
  %v1824 = vld [vmem:[%s4 + $0x18] sm:$0xff]
  %v1825 = vld [vmem:[%s4 + $0x20] sm:$0xff]
  %v1826 = vld [vmem:[%s4 + $0x28] sm:$0xff]
  %v1827 = vld [vmem:[%s4 + $0x30] sm:$0xff]
  %v1828 = vld [vmem:[%s4 + $0x38] sm:$0xff]
  %v1829 = vld [vmem:[%s4 + $0x40] sm:$0xff]
  %v1830 = vld [vmem:[%s4 + $0x48] sm:$0xff]
  %v1831 = vld [vmem:[%s4 + $0x50] sm:$0xff]
  %v1832 = vld [vmem:[%s4 + $0x58] sm:$0xff]
  %v1833 = vld [vmem:[%s4 + $0x60] sm:$0xff]
  %v1834 = vld [vmem:[%s4 + $0x68] sm:$0xff]
  %v1835 = vld [vmem:[%s4 + $0x70] sm:$0xff]
  %v1836 = vld [vmem:[%s4 + $0x78] sm:$0xff]
  %v1837 = vld [vmem:[%s4 + $0x80] sm:$0xff]
  %v1838 = vld [vmem:[%s4 + $0x88] sm:$0xff]
  %v1839 = vld [vmem:[%s4 + $0x90] sm:$0xff]
  %v1840 = vld [vmem:[%s4 + $0x98] sm:$0xff]
  %v1841 = vld [vmem:[%s4 + $0xa0] sm:$0xff]
  %v1842 = vld [vmem:[%s4 + $0xa8] sm:$0xff]
  %v1843 = vld [vmem:[%s4 + $0xb0] sm:$0xff]
  %v1844 = vld [vmem:[%s4 + $0xb8] sm:$0xff]
  %v1845 = vld [vmem:[%s4 + $0xc0] sm:$0xff]
  %v1846 = vld [vmem:[%s4 + $0xc8] sm:$0xff]
  %v1847 = vld [vmem:[%s4 + $0xd0] sm:$0xff]
  %v1848 = vld [vmem:[%s4 + $0xd8] sm:$0xff]
  %v1849 = vld [vmem:[%s4 + $0xe0] sm:$0xff]
  %v1850 = vld [vmem:[%s4 + $0xe8] sm:$0xff]
  %v1851 = vld [vmem:[%s4 + $0xf0] sm:$0xff]
  %v1852 = vld [vmem:[%s4 + $0xf8] sm:$0xff]
  %v1853 = vld [vmem:[%s4 + $0x100] sm:$0xff]
  %v1854 = vld [vmem:[%s4 + $0x108] sm:$0xff]
  %v1855 = vld [vmem:[%s4 + $0x110] sm:$0xff]
  %v1856 = vld [vmem:[%s4 + $0x118] sm:$0xff]
  %v1857 = vld [vmem:[%s4 + $0x120] sm:$0xff]
  %v1858 = vld [vmem:[%s4 + $0x128] sm:$0xff]
  %v1859 = vld [vmem:[%s4 + $0x130] sm:$0xff]
  %v1860 = vld [vmem:[%s4 + $0x138] sm:$0xff]
  %v1861 = vld [vmem:[%s4 + $0x140] sm:$0xff]
  %v1862 = vld [vmem:[%s4 + $0x148] sm:$0xff]
  %v1863 = vld [vmem:[%s4 + $0x150] sm:$0xff]
  %v1864 = vld [vmem:[%s4 + $0x158] sm:$0xff]
  %v1865 = vld [vmem:[%s4 + $0x160] sm:$0xff]
  %v1866 = vld [vmem:[%s4 + $0x168] sm:$0xff]
  %v1867 = vld [vmem:[%s4 + $0x170] sm:$0xff]
  %v1868 = vld [vmem:[%s4 + $0x178] sm:$0xff]
  %v1869 = vld [vmem:[%s4 + $0x180] sm:$0xff]
  %v1870 = vld [vmem:[%s4 + $0x188] sm:$0xff]
  %v1871 = vld [vmem:[%s4 + $0x190] sm:$0xff]
  %v1872 = vld [vmem:[%s4 + $0x198] sm:$0xff]
  %v1873 = vld [vmem:[%s4 + $0x1a0] sm:$0xff]
  %v1874 = vld [vmem:[%s4 + $0x1a8] sm:$0xff]
  %v1875 = vld [vmem:[%s4 + $0x1b0] sm:$0xff]
  %v1876 = vld [vmem:[%s4 + $0x1b8] sm:$0xff]
  %v1877 = vld [vmem:[%s4 + $0x1c0] sm:$0xff]
  %v1878 = vld [vmem:[%s4 + $0x1c8] sm:$0xff]
  %v1879 = vld [vmem:[%s4 + $0x1d0] sm:$0xff]
  %v1880 = vld [vmem:[%s4 + $0x1d8] sm:$0xff]
  %v1881 = vld [vmem:[%s4 + $0x1e0] sm:$0xff]
  %v1882 = vld [vmem:[%s4 + $0x1e8] sm:$0xff]
  %v1883 = vld [vmem:[%s4 + $0x1f0] sm:$0xff]
  %v1884 = vld [vmem:[%s4 + $0x1f8] sm:$0xff]
  %v1885 = vld [vmem:[%s6] sm:$0xf]
  %v1887 = vlaneseq
  %v1888 = vshrl.u32 %v1887, 7
  %v1889 = vsub.s32 0, %v1888
  %v1890 = vrot.slane %v1885, %v1889
  %v1891 = vlaneseq
  %v1892 = vshrl.u32 %v1891, 7
  %v1893 = vsub.s32 1, %v1892
  %v1894 = vrot.slane %v1885, %v1893
  %v1895 = vlaneseq
  %v1896 = vshrl.u32 %v1895, 7
  %v1897 = vsub.s32 2, %v1896
  %v1898 = vrot.slane %v1885, %v1897
  %v1899 = vlaneseq
  %v1900 = vshrl.u32 %v1899, 7
  %v1901 = vsub.s32 3, %v1900
  %v1902 = vrot.slane %v1885, %v1901
  %1907 = vmatprep.subr.mxu0 %v1882
  %1908 = vmatpush1.msra.mxu0 %v1881
  %1909 = vmatprep.subr.mxu0 %v1878
  %1910 = vmatpush1.msra.mxu0 %v1877
  %1911 = vmatprep.subr.mxu0 %v1874
  %1912 = vmatpush1.msra.mxu0 %v1873
  %1913 = vmatprep.subr.mxu0 %v1870
  %1914 = vmatpush1.msra.mxu0 %v1869
  %1915 = vmatprep.subr.mxu0 %v1866
  %1916 = vmatpush1.msra.mxu0 %v1865
  %1917 = vmatprep.subr.mxu0 %v1862
  %1918 = vmatpush1.msra.mxu0 %v1861
  %1919 = vmatprep.subr.mxu0 %v1858
  %1920 = vmatpush1.msra.mxu0 %v1857
  %1921 = vmatprep.subr.mxu0 %v1854
  %1922 = vmatpush1.msra.mxu0 %v1853
  %1923 = vmatprep.subr.mxu0 %v1850
  %1924 = vmatpush1.msra.mxu0 %v1849
  %1925 = vmatprep.subr.mxu0 %v1846
  %1926 = vmatpush1.msra.mxu0 %v1845
  %1927 = vmatprep.subr.mxu0 %v1842
  %1928 = vmatpush1.msra.mxu0 %v1841
  %1929 = vmatprep.subr.mxu0 %v1838
  %1930 = vmatpush1.msra.mxu0 %v1837
  %1931 = vmatprep.subr.mxu0 %v1834
  %1932 = vmatpush1.msra.mxu0 %v1833
  %1933 = vmatprep.subr.mxu0 %v1830
  %1934 = vmatpush1.msra.mxu0 %v1829
  %1935 = vmatprep.subr.mxu0 %v1826
  %1936 = vmatpush1.msra.mxu0 %v1825
  %1937 = vmatprep.subr.mxu0 %v1822
  %1938 = vmatpush1.msra.mxu0 %v1821
  %1939 = vmatprep.subr.mxu0 0.0
  %1940 = vmatpush2.msra.mxu0 0.0
  %1941 = vmatprep.subr.mxu0 0.0
  %1942 = vmatpush2.msra.mxu0 0.0
  %1943 = vmatprep.subr.mxu0 0.0
  %1944 = vmatpush2.msra.mxu0 0.0
  %1945 = vmatprep.subr.mxu0 0.0
  %1946 = vmatpush2.msra.mxu0 0.0
  %1947 = vmatprep.subr.mxu0 0.0
  %1948 = vmatpush2.msra.mxu0 0.0
  %1949 = vmatprep.subr.mxu0 0.0
  %1950 = vmatpush2.msra.mxu0 0.0
  %1951 = vmatprep.subr.mxu0 0.0
  %1952 = vmatpush2.msra.mxu0 0.0
  %1953 = vmatprep.subr.mxu0 0.0
  %1954 = vmatpush2.msra.mxu0 0.0
  %1955 = vmatprep.subr.mxu0 0.0
  %1956 = vmatpush2.msra.mxu0 0.0
  %1957 = vmatprep.subr.mxu0 0.0
  %1958 = vmatpush2.msra.mxu0 0.0
  %1959 = vmatprep.subr.mxu0 0.0
  %1960 = vmatpush2.msra.mxu0 0.0
  %1961 = vmatprep.subr.mxu0 0.0
  %1962 = vmatpush2.msra.mxu0 0.0
  %1963 = vmatprep.subr.mxu0 0.0
  %1964 = vmatpush2.msra.mxu0 0.0
  %1965 = vmatprep.subr.mxu0 0.0
  %1966 = vmatpush2.msra.mxu0 0.0
  %1967 = vmatprep.subr.mxu0 0.0
  %1968 = vmatpush2.msra.mxu0 0.0
  %1969 = vmatprep.subr.mxu0 0.0
  %1970 = vmatpush2.msra.mxu0 0.0
  %1971 = vmatprep.mubr.f32.mxu0 0.0
  %1972 = vmatmul.mubr.f32.gmra.mxu0 %v1813
  %v1973 = vpop.f32.mrf.mxu0
  %v1974 = vadd.f32 %v1890, %v1973
  %v1975 = vpop.f32.mrf.mxu0
  %v1976 = vadd.f32 %v1894, %v1975
  %1977 = vmatprep.mubr.f32.mxu0 0.0
  %1978 = vmatmul.mubr.f32.gmra.mxu0 %v1814
  %v1979 = vpop.f32.mrf.mxu0
  %v1980 = vadd.f32 %v1890, %v1979
  %v1981 = vpop.f32.mrf.mxu0
  %v1982 = vadd.f32 %v1894, %v1981
  %1983 = vmatprep.mubr.f32.mxu0 0.0
  %1984 = vmatmul.mubr.f32.gmra.mxu0 %v1815
  %v1985 = vpop.f32.mrf.mxu0
  %v1986 = vadd.f32 %v1890, %v1985
  %v1987 = vpop.f32.mrf.mxu0
  %v1988 = vadd.f32 %v1894, %v1987
  %1989 = vmatprep.mubr.f32.mxu0 0.0
  %1990 = vmatmul.mubr.f32.gmra.mxu0 %v1816
  %v1991 = vpop.f32.mrf.mxu0
  %v1992 = vadd.f32 %v1890, %v1991
  %v1993 = vpop.f32.mrf.mxu0
  %v1994 = vadd.f32 %v1894, %v1993
  %1995 = vmatprep.mubr.f32.mxu0 0.0
  %1996 = vmatmul.mubr.f32.gmra.mxu0 %v1817
  %v1997 = vpop.f32.mrf.mxu0
  %v1998 = vadd.f32 %v1890, %v1997
  %v1999 = vpop.f32.mrf.mxu0
  %v2000 = vadd.f32 %v1894, %v1999
  %2001 = vmatprep.mubr.f32.mxu0 0.0
  %2002 = vmatmul.mubr.f32.gmra.mxu0 %v1818
  %v2003 = vpop.f32.mrf.mxu0
  %v2004 = vadd.f32 %v1890, %v2003
  %v2005 = vpop.f32.mrf.mxu0
  %v2006 = vadd.f32 %v1894, %v2005
  %2007 = vmatprep.mubr.f32.mxu0 0.0
  %2008 = vmatmul.mubr.f32.gmra.mxu0 %v1819
  %v2009 = vpop.f32.mrf.mxu0
  %v2010 = vadd.f32 %v1890, %v2009
  %v2011 = vpop.f32.mrf.mxu0
  %v2012 = vadd.f32 %v1894, %v2011
  %2013 = vmatprep.mubr.f32.mxu0 0.0
  %2014 = vmatmul.mubr.f32.gmra.mxu0 %v1820
  %v2015 = vpop.f32.mrf.mxu0
  %v2016 = vadd.f32 %v1890, %v2015
  %v2017 = vpop.f32.mrf.mxu0
  %v2018 = vadd.f32 %v1894, %v2017
  %2019 = vdwg.mxu0
  %2020 = vmatprep.subr.mxu0 %v1884
  %2021 = vmatpush1.msra.mxu0 %v1883
  %2022 = vmatprep.subr.mxu0 %v1880
  %2023 = vmatpush1.msra.mxu0 %v1879
  %2024 = vmatprep.subr.mxu0 %v1876
  %2025 = vmatpush1.msra.mxu0 %v1875
  %2026 = vmatprep.subr.mxu0 %v1872
  %2027 = vmatpush1.msra.mxu0 %v1871
  %2028 = vmatprep.subr.mxu0 %v1868
  %2029 = vmatpush1.msra.mxu0 %v1867
  %2030 = vmatprep.subr.mxu0 %v1864
  %2031 = vmatpush1.msra.mxu0 %v1863
  %2032 = vmatprep.subr.mxu0 %v1860
  %2033 = vmatpush1.msra.mxu0 %v1859
  %2034 = vmatprep.subr.mxu0 %v1856
  %2035 = vmatpush1.msra.mxu0 %v1855
  %2036 = vmatprep.subr.mxu0 %v1852
  %2037 = vmatpush1.msra.mxu0 %v1851
  %2038 = vmatprep.subr.mxu0 %v1848
  %2039 = vmatpush1.msra.mxu0 %v1847
  %2040 = vmatprep.subr.mxu0 %v1844
  %2041 = vmatpush1.msra.mxu0 %v1843
  %2042 = vmatprep.subr.mxu0 %v1840
  %2043 = vmatpush1.msra.mxu0 %v1839
  %2044 = vmatprep.subr.mxu0 %v1836
  %2045 = vmatpush1.msra.mxu0 %v1835
  %2046 = vmatprep.subr.mxu0 %v1832
  %2047 = vmatpush1.msra.mxu0 %v1831
  %2048 = vmatprep.subr.mxu0 %v1828
  %2049 = vmatpush1.msra.mxu0 %v1827
  %2050 = vmatprep.subr.mxu0 %v1824
  %2051 = vmatpush1.msra.mxu0 %v1823
  %2052 = vmatprep.subr.mxu0 0.0
  %2053 = vmatpush2.msra.mxu0 0.0
  %2054 = vmatprep.subr.mxu0 0.0
  %2055 = vmatpush2.msra.mxu0 0.0
  %2056 = vmatprep.subr.mxu0 0.0
  %2057 = vmatpush2.msra.mxu0 0.0
  %2058 = vmatprep.subr.mxu0 0.0
  %2059 = vmatpush2.msra.mxu0 0.0
  %2060 = vmatprep.subr.mxu0 0.0
  %2061 = vmatpush2.msra.mxu0 0.0
  %2062 = vmatprep.subr.mxu0 0.0
  %2063 = vmatpush2.msra.mxu0 0.0
  %2064 = vmatprep.subr.mxu0 0.0
  %2065 = vmatpush2.msra.mxu0 0.0
  %2066 = vmatprep.subr.mxu0 0.0
  %2067 = vmatpush2.msra.mxu0 0.0
  %2068 = vmatprep.subr.mxu0 0.0
  %2069 = vmatpush2.msra.mxu0 0.0
  %2070 = vmatprep.subr.mxu0 0.0
  %2071 = vmatpush2.msra.mxu0 0.0
  %2072 = vmatprep.subr.mxu0 0.0
  %2073 = vmatpush2.msra.mxu0 0.0
  %2074 = vmatprep.subr.mxu0 0.0
  %2075 = vmatpush2.msra.mxu0 0.0
  %2076 = vmatprep.subr.mxu0 0.0
  %2077 = vmatpush2.msra.mxu0 0.0
  %2078 = vmatprep.subr.mxu0 0.0
  %2079 = vmatpush2.msra.mxu0 0.0
  %2080 = vmatprep.subr.mxu0 0.0
  %2081 = vmatpush2.msra.mxu0 0.0
  %2082 = vmatprep.subr.mxu0 0.0
  %2083 = vmatpush2.msra.mxu0 0.0
  %2084 = vmatprep.mubr.f32.mxu0 0.0
  %2085 = vmatmul.mubr.f32.gmra.mxu0 %v1813
  %v2086 = vpop.f32.mrf.mxu0
  %v2087 = vadd.f32 %v1898, %v2086
  %v2088 = vpop.f32.mrf.mxu0
  %v2089 = vadd.f32 %v1902, %v2088
  %2090 = vmatprep.mubr.f32.mxu0 0.0
  %2091 = vmatmul.mubr.f32.gmra.mxu0 %v1814
  %v2092 = vpop.f32.mrf.mxu0
  %v2093 = vadd.f32 %v1898, %v2092
  %v2094 = vpop.f32.mrf.mxu0
  %v2095 = vadd.f32 %v1902, %v2094
  %2096 = vmatprep.mubr.f32.mxu0 0.0
  %2097 = vmatmul.mubr.f32.gmra.mxu0 %v1815
  %v2098 = vpop.f32.mrf.mxu0
  %v2099 = vadd.f32 %v1898, %v2098
  %v2100 = vpop.f32.mrf.mxu0
  %v2101 = vadd.f32 %v1902, %v2100
  %2102 = vmatprep.mubr.f32.mxu0 0.0
  %2103 = vmatmul.mubr.f32.gmra.mxu0 %v1816
  %v2104 = vpop.f32.mrf.mxu0
  %v2105 = vadd.f32 %v1898, %v2104
  %v2106 = vpop.f32.mrf.mxu0
  %v2107 = vadd.f32 %v1902, %v2106
  %2108 = vmatprep.mubr.f32.mxu0 0.0
  %2109 = vmatmul.mubr.f32.gmra.mxu0 %v1817
  %v2110 = vpop.f32.mrf.mxu0
  %v2111 = vadd.f32 %v1898, %v2110
  %v2112 = vpop.f32.mrf.mxu0
  %v2113 = vadd.f32 %v1902, %v2112
  %2114 = vmatprep.mubr.f32.mxu0 0.0
  %2115 = vmatmul.mubr.f32.gmra.mxu0 %v1818
  %v2116 = vpop.f32.mrf.mxu0
  %v2117 = vadd.f32 %v1898, %v2116
  %v2118 = vpop.f32.mrf.mxu0
  %v2119 = vadd.f32 %v1902, %v2118
  %2120 = vmatprep.mubr.f32.mxu0 0.0
  %2121 = vmatmul.mubr.f32.gmra.mxu0 %v1819
  %v2122 = vpop.f32.mrf.mxu0
  %v2123 = vadd.f32 %v1898, %v2122
  %v2124 = vpop.f32.mrf.mxu0
  %v2125 = vadd.f32 %v1902, %v2124
  %2126 = vmatprep.mubr.f32.mxu0 0.0
  %2127 = vmatmul.mubr.f32.gmra.mxu0 %v1820
  %v2128 = vpop.f32.mrf.mxu0
  %v2129 = vadd.f32 %v1898, %v2128
  %v2130 = vpop.f32.mrf.mxu0
  %v2131 = vadd.f32 %v1902, %v2130
  %2132 = vdwg.mxu0
  %2133 = vst [vmem:[#allocation2] sm:$0xff] %v1974
  %2134 = vst [vmem:[#allocation2 + $0x8] sm:$0xff] %v1976
  %2135 = vst [vmem:[#allocation2 + $0x10] sm:$0xff] %v2087
  %2136 = vst [vmem:[#allocation2 + $0x18] sm:$0xff] %v2089
  %2137 = vst [vmem:[#allocation2 + $0x20] sm:$0xff] %v1980
  %2138 = vst [vmem:[#allocation2 + $0x28] sm:$0xff] %v1982
  %2139 = vst [vmem:[#allocation2 + $0x30] sm:$0xff] %v2093
  %2140 = vst [vmem:[#allocation2 + $0x38] sm:$0xff] %v2095
  %2141 = vst [vmem:[#allocation2 + $0x40] sm:$0xff] %v1986
  %2142 = vst [vmem:[#allocation2 + $0x48] sm:$0xff] %v1988
  %2143 = vst [vmem:[#allocation2 + $0x50] sm:$0xff] %v2099
  %2144 = vst [vmem:[#allocation2 + $0x58] sm:$0xff] %v2101
  %2145 = vst [vmem:[#allocation2 + $0x60] sm:$0xff] %v1992
  %2146 = vst [vmem:[#allocation2 + $0x68] sm:$0xff] %v1994
  %2147 = vst [vmem:[#allocation2 + $0x70] sm:$0xff] %v2105
  %2148 = vst [vmem:[#allocation2 + $0x78] sm:$0xff] %v2107
  %2149 = vst [vmem:[#allocation2 + $0x80] sm:$0xff] %v1998
  %2150 = vst [vmem:[#allocation2 + $0x88] sm:$0xff] %v2000
  %2151 = vst [vmem:[#allocation2 + $0x90] sm:$0xff] %v2111
  %2152 = vst [vmem:[#allocation2 + $0x98] sm:$0xff] %v2113
  %2153 = vst [vmem:[#allocation2 + $0xa0] sm:$0xff] %v2004
  %2154 = vst [vmem:[#allocation2 + $0xa8] sm:$0xff] %v2006
  %2155 = vst [vmem:[#allocation2 + $0xb0] sm:$0xff] %v2117
  %2156 = vst [vmem:[#allocation2 + $0xb8] sm:$0xff] %v2119
  %2157 = vst [vmem:[#allocation2 + $0xc0] sm:$0xff] %v2010
  %2158 = vst [vmem:[#allocation2 + $0xc8] sm:$0xff] %v2012
  %2159 = vst [vmem:[#allocation2 + $0xd0] sm:$0xff] %v2123
  %2160 = vst [vmem:[#allocation2 + $0xd8] sm:$0xff] %v2125
  %2161 = vst [vmem:[#allocation2 + $0xe0] sm:$0xff] %v2016
  %2162 = vst [vmem:[#allocation2 + $0xe8] sm:$0xff] %v2018
  %2163 = vst [vmem:[#allocation2 + $0xf0] sm:$0xff] %v2129
  %2164 = vst [vmem:[#allocation2 + $0xf8] sm:$0xff] %v2131
  %v2165 = vld [vmem:[%s5] sm:$0xff]
  %v2166 = vld [vmem:[%s5 + $0x8] sm:$0xff]
  %v2167 = vld [vmem:[%s5 + $0x10] sm:$0xff]
  %v2168 = vld [vmem:[%s5 + $0x18] sm:$0xff]
  %v2169 = vld [vmem:[%s5 + $0x20] sm:$0xff]
  %v2170 = vld [vmem:[%s5 + $0x28] sm:$0xff]
  %v2171 = vld [vmem:[%s5 + $0x30] sm:$0xff]
  %v2172 = vld [vmem:[%s5 + $0x38] sm:$0xff]
  %v2173 = vld [vmem:[#allocation2] sm:$0xff]
  %v2174 = vld [vmem:[#allocation2 + $0x8] sm:$0xff]
  %v2175 = vld [vmem:[#allocation2 + $0x10] sm:$0xff]
  %v2176 = vld [vmem:[#allocation2 + $0x18] sm:$0xff]
  %vm2177 = vcmask 130048
  %v2178 = vsel %vm2177, 0.0, 0
  %2180 = vmatprep.subr.mxu0 0.0
  %2181 = vmatpush1.msra.mxu0 0.0
  %2182 = vmatprep.subr.mxu0 0.0
  %2183 = vmatpush1.msra.mxu0 0.0
  %2184 = vmatprep.subr.mxu0 0.0
  %2185 = vmatpush1.msra.mxu0 0.0
  %2186 = vmatprep.subr.mxu0 0.0
  %2187 = vmatpush1.msra.mxu0 0.0
  %2188 = vmatprep.subr.mxu0 0.0
  %2189 = vmatpush1.msra.mxu0 0.0
  %2190 = vmatprep.subr.mxu0 0.0
  %2191 = vmatpush1.msra.mxu0 0.0
  %2192 = vmatprep.subr.mxu0 0.0
  %2193 = vmatpush1.msra.mxu0 0.0
  %2194 = vmatprep.subr.mxu0 0.0
  %2195 = vmatpush1.msra.mxu0 0.0
  %2196 = vmatprep.subr.mxu0 0.0
  %2197 = vmatpush1.msra.mxu0 0.0
  %2198 = vmatprep.subr.mxu0 0.0
  %2199 = vmatpush1.msra.mxu0 0.0
  %2200 = vmatprep.subr.mxu0 0.0
  %2201 = vmatpush1.msra.mxu0 0.0
  %2202 = vmatprep.subr.mxu0 0.0
  %2203 = vmatpush1.msra.mxu0 0.0
  %2204 = vmatprep.subr.mxu0 0.0
  %2205 = vmatpush1.msra.mxu0 0.0
  %2206 = vmatprep.subr.mxu0 0.0
  %2207 = vmatpush1.msra.mxu0 0.0
  %2208 = vmatprep.subr.mxu0 %v2170
  %2209 = vmatpush1.msra.mxu0 %v2169
  %2210 = vmatprep.subr.mxu0 %v2166
  %2211 = vmatpush1.msra.mxu0 %v2165
  %2212 = vmatprep.subr.mxu0 0.0
  %2213 = vmatpush2.msra.mxu0 0.0
  %2214 = vmatprep.subr.mxu0 0.0
  %2215 = vmatpush2.msra.mxu0 0.0
  %2216 = vmatprep.subr.mxu0 0.0
  %2217 = vmatpush2.msra.mxu0 0.0
  %2218 = vmatprep.subr.mxu0 0.0
  %2219 = vmatpush2.msra.mxu0 0.0
  %2220 = vmatprep.subr.mxu0 0.0
  %2221 = vmatpush2.msra.mxu0 0.0
  %2222 = vmatprep.subr.mxu0 0.0
  %2223 = vmatpush2.msra.mxu0 0.0
  %2224 = vmatprep.subr.mxu0 0.0
  %2225 = vmatpush2.msra.mxu0 0.0
  %2226 = vmatprep.subr.mxu0 0.0
  %2227 = vmatpush2.msra.mxu0 0.0
  %2228 = vmatprep.subr.mxu0 0.0
  %2229 = vmatpush2.msra.mxu0 0.0
  %2230 = vmatprep.subr.mxu0 0.0
  %2231 = vmatpush2.msra.mxu0 0.0
  %2232 = vmatprep.subr.mxu0 0.0
  %2233 = vmatpush2.msra.mxu0 0.0
  %2234 = vmatprep.subr.mxu0 0.0
  %2235 = vmatpush2.msra.mxu0 0.0
  %2236 = vmatprep.subr.mxu0 0.0
  %2237 = vmatpush2.msra.mxu0 0.0
  %2238 = vmatprep.subr.mxu0 0.0
  %2239 = vmatpush2.msra.mxu0 0.0
  %2240 = vmatprep.subr.mxu0 0.0
  %2241 = vmatpush2.msra.mxu0 0.0
  %2242 = vmatprep.subr.mxu0 0.0
  %2243 = vmatpush2.msra.mxu0 0.0
  %2244 = vmatprep.mubr.f32.mxu0 0.0
  %2245 = vmatmul.mubr.f32.gmra.mxu0 %v2178
  %v2246 = vpop.f32.mrf.mxu0
  %v2247 = vadd.f32 0.0, %v2246
  %v2248 = vpop.f32.mrf.mxu0
  %v2249 = vadd.f32 0.0, %v2248
  %2250 = vdwg.mxu0
  %2251 = vmatprep.subr.mxu0 0.0
  %2252 = vmatpush1.msra.mxu0 0.0
  %2253 = vmatprep.subr.mxu0 0.0
  %2254 = vmatpush1.msra.mxu0 0.0
  %2255 = vmatprep.subr.mxu0 0.0
  %2256 = vmatpush1.msra.mxu0 0.0
  %2257 = vmatprep.subr.mxu0 0.0
  %2258 = vmatpush1.msra.mxu0 0.0
  %2259 = vmatprep.subr.mxu0 0.0
  %2260 = vmatpush1.msra.mxu0 0.0
  %2261 = vmatprep.subr.mxu0 0.0
  %2262 = vmatpush1.msra.mxu0 0.0
  %2263 = vmatprep.subr.mxu0 0.0
  %2264 = vmatpush1.msra.mxu0 0.0
  %2265 = vmatprep.subr.mxu0 0.0
  %2266 = vmatpush1.msra.mxu0 0.0
  %2267 = vmatprep.subr.mxu0 0.0
  %2268 = vmatpush1.msra.mxu0 0.0
  %2269 = vmatprep.subr.mxu0 0.0
  %2270 = vmatpush1.msra.mxu0 0.0
  %2271 = vmatprep.subr.mxu0 0.0
  %2272 = vmatpush1.msra.mxu0 0.0
  %2273 = vmatprep.subr.mxu0 0.0
  %2274 = vmatpush1.msra.mxu0 0.0
  %2275 = vmatprep.subr.mxu0 0.0
  %2276 = vmatpush1.msra.mxu0 0.0
  %2277 = vmatprep.subr.mxu0 0.0
  %2278 = vmatpush1.msra.mxu0 0.0
  %2279 = vmatprep.subr.mxu0 %v2172
  %2280 = vmatpush1.msra.mxu0 %v2171
  %2281 = vmatprep.subr.mxu0 %v2168
  %2282 = vmatpush1.msra.mxu0 %v2167
  %2283 = vmatprep.subr.mxu0 0.0
  %2284 = vmatpush2.msra.mxu0 0.0
  %2285 = vmatprep.subr.mxu0 0.0
  %2286 = vmatpush2.msra.mxu0 0.0
  %2287 = vmatprep.subr.mxu0 0.0
  %2288 = vmatpush2.msra.mxu0 0.0
  %2289 = vmatprep.subr.mxu0 0.0
  %2290 = vmatpush2.msra.mxu0 0.0
  %2291 = vmatprep.subr.mxu0 0.0
  %2292 = vmatpush2.msra.mxu0 0.0
  %2293 = vmatprep.subr.mxu0 0.0
  %2294 = vmatpush2.msra.mxu0 0.0
  %2295 = vmatprep.subr.mxu0 0.0
  %2296 = vmatpush2.msra.mxu0 0.0
  %2297 = vmatprep.subr.mxu0 0.0
  %2298 = vmatpush2.msra.mxu0 0.0
  %2299 = vmatprep.subr.mxu0 0.0
  %2300 = vmatpush2.msra.mxu0 0.0
  %2301 = vmatprep.subr.mxu0 0.0
  %2302 = vmatpush2.msra.mxu0 0.0
  %2303 = vmatprep.subr.mxu0 0.0
  %2304 = vmatpush2.msra.mxu0 0.0
  %2305 = vmatprep.subr.mxu0 0.0
  %2306 = vmatpush2.msra.mxu0 0.0
  %2307 = vmatprep.subr.mxu0 0.0
  %2308 = vmatpush2.msra.mxu0 0.0
  %2309 = vmatprep.subr.mxu0 0.0
  %2310 = vmatpush2.msra.mxu0 0.0
  %2311 = vmatprep.subr.mxu0 0.0
  %2312 = vmatpush2.msra.mxu0 0.0
  %2313 = vmatprep.subr.mxu0 0.0
  %2314 = vmatpush2.msra.mxu0 0.0
  %2315 = vmatprep.mubr.f32.mxu0 0.0
  %2316 = vmatmul.mubr.f32.gmra.mxu0 %v2178
  %v2317 = vpop.f32.mrf.mxu0
  %v2318 = vadd.f32 0.0, %v2317
  %v2319 = vpop.f32.mrf.mxu0
  %v2320 = vadd.f32 0.0, %v2319
  %2321 = vdwg.mxu0
  %v2322 = vadd.f32 %v2173, %v2247
  %v2323 = vadd.f32 %v2174, %v2249
  %v2324 = vadd.f32 %v2175, %v2318
  %v2325 = vadd.f32 %v2176, %v2320
  %v2326 = vxor.u32 %v2322, 2147483648
  %v2327 = vmul.f32 %v2326, 1.442695
  %v2328 = vpow.pop %v2327
  %v2329 = vadd.f32 %v2328, 1.0
  %v2330 = vrcp.pop %v2329
  %v2331 = vmul.f32 1.0, %v2330
  %v2332 = vxor.u32 %v2323, 2147483648
  %v2333 = vmul.f32 %v2332, 1.442695
  %v2334 = vpow.pop %v2333
  %v2335 = vadd.f32 %v2334, 1.0
  %v2336 = vrcp.pop %v2335
  %v2337 = vmul.f32 1.0, %v2336
  %v2338 = vtanh.pop %v2324
  %v2339 = vxor.u32 %v2325, 2147483648
  %v2340 = vmul.f32 %v2339, 1.442695
  %v2341 = vpow.pop %v2340
  %v2342 = vadd.f32 %v2341, 1.0
  %v2343 = vrcp.pop %v2342
  %v2344 = vmul.f32 1.0, %v2343
  %v2345 = vmul.f32 %v2337, 0.0
  %v2346 = vmul.f32 %v2331, %v2338
  %v2347 = vadd.f32 %v2345, %v2346
  %v2348 = vtanh.pop %v2347
  %v2349 = vmul.f32 %v2344, %v2348
  %2350 = vst [vmem:[#allocation4] sm:$0xff] %v2349
  %v2351 = vld [vmem:[%s553] sm:$0xff]
  %v2352 = vld [vmem:[%s553 + $0x8] sm:$0xff]
  %v2353 = vld [vmem:[%s553 + $0x10] sm:$0xff]
  %v2354 = vld [vmem:[%s553 + $0x18] sm:$0xff]
  %v2356 = vsel %vm2177, %v2349, 0
  %2358 = vmatprep.subr.mxu0 0.0
  %2359 = vmatpush1.msra.mxu0 0.0
  %2360 = vmatprep.subr.mxu0 0.0
  %2361 = vmatpush1.msra.mxu0 0.0
  %2362 = vmatprep.subr.mxu0 0.0
  %2363 = vmatpush1.msra.mxu0 0.0
  %2364 = vmatprep.subr.mxu0 0.0
  %2365 = vmatpush1.msra.mxu0 0.0
  %2366 = vmatprep.subr.mxu0 0.0
  %2367 = vmatpush1.msra.mxu0 0.0
  %2368 = vmatprep.subr.mxu0 0.0
  %2369 = vmatpush1.msra.mxu0 0.0
  %2370 = vmatprep.subr.mxu0 0.0
  %2371 = vmatpush1.msra.mxu0 0.0
  %2372 = vmatprep.subr.mxu0 0.0
  %2373 = vmatpush1.msra.mxu0 0.0
  %2374 = vmatprep.subr.mxu0 0.0
  %2375 = vmatpush1.msra.mxu0 0.0
  %2376 = vmatprep.subr.mxu0 0.0
  %2377 = vmatpush1.msra.mxu0 0.0
  %2378 = vmatprep.subr.mxu0 0.0
  %2379 = vmatpush1.msra.mxu0 0.0
  %2380 = vmatprep.subr.mxu0 0.0
  %2381 = vmatpush1.msra.mxu0 0.0
  %2382 = vmatprep.subr.mxu0 0.0
  %2383 = vmatpush1.msra.mxu0 0.0
  %2384 = vmatprep.subr.mxu0 0.0
  %2385 = vmatpush1.msra.mxu0 0.0
  %2386 = vmatprep.subr.mxu0 %v2170
  %2387 = vmatpush1.msra.mxu0 %v2169
  %2388 = vmatprep.subr.mxu0 %v2166
  %2389 = vmatpush1.msra.mxu0 %v2165
  %2390 = vmatprep.subr.mxu0 0.0
  %2391 = vmatpush2.msra.mxu0 0.0
  %2392 = vmatprep.subr.mxu0 0.0
  %2393 = vmatpush2.msra.mxu0 0.0
  %2394 = vmatprep.subr.mxu0 0.0
  %2395 = vmatpush2.msra.mxu0 0.0
  %2396 = vmatprep.subr.mxu0 0.0
  %2397 = vmatpush2.msra.mxu0 0.0
  %2398 = vmatprep.subr.mxu0 0.0
  %2399 = vmatpush2.msra.mxu0 0.0
  %2400 = vmatprep.subr.mxu0 0.0
  %2401 = vmatpush2.msra.mxu0 0.0
  %2402 = vmatprep.subr.mxu0 0.0
  %2403 = vmatpush2.msra.mxu0 0.0
  %2404 = vmatprep.subr.mxu0 0.0
  %2405 = vmatpush2.msra.mxu0 0.0
  %2406 = vmatprep.subr.mxu0 0.0
  %2407 = vmatpush2.msra.mxu0 0.0
  %2408 = vmatprep.subr.mxu0 0.0
  %2409 = vmatpush2.msra.mxu0 0.0
  %2410 = vmatprep.subr.mxu0 0.0
  %2411 = vmatpush2.msra.mxu0 0.0
  %2412 = vmatprep.subr.mxu0 0.0
  %2413 = vmatpush2.msra.mxu0 0.0
  %2414 = vmatprep.subr.mxu0 0.0
  %2415 = vmatpush2.msra.mxu0 0.0
  %2416 = vmatprep.subr.mxu0 0.0
  %2417 = vmatpush2.msra.mxu0 0.0
  %2418 = vmatprep.subr.mxu0 0.0
  %2419 = vmatpush2.msra.mxu0 0.0
  %2420 = vmatprep.subr.mxu0 0.0
  %2421 = vmatpush2.msra.mxu0 0.0
  %2422 = vmatprep.mubr.f32.mxu0 0.0
  %2423 = vmatmul.mubr.f32.gmra.mxu0 %v2356
  %v2424 = vpop.f32.mrf.mxu0
  %v2425 = vadd.f32 0.0, %v2424
  %v2426 = vpop.f32.mrf.mxu0
  %v2427 = vadd.f32 0.0, %v2426
  %2428 = vdwg.mxu0
  %2429 = vmatprep.subr.mxu0 0.0
  %2430 = vmatpush1.msra.mxu0 0.0
  %2431 = vmatprep.subr.mxu0 0.0
  %2432 = vmatpush1.msra.mxu0 0.0
  %2433 = vmatprep.subr.mxu0 0.0
  %2434 = vmatpush1.msra.mxu0 0.0
  %2435 = vmatprep.subr.mxu0 0.0
  %2436 = vmatpush1.msra.mxu0 0.0
  %2437 = vmatprep.subr.mxu0 0.0
  %2438 = vmatpush1.msra.mxu0 0.0
  %2439 = vmatprep.subr.mxu0 0.0
  %2440 = vmatpush1.msra.mxu0 0.0
  %2441 = vmatprep.subr.mxu0 0.0
  %2442 = vmatpush1.msra.mxu0 0.0
  %2443 = vmatprep.subr.mxu0 0.0
  %2444 = vmatpush1.msra.mxu0 0.0
  %2445 = vmatprep.subr.mxu0 0.0
  %2446 = vmatpush1.msra.mxu0 0.0
  %2447 = vmatprep.subr.mxu0 0.0
  %2448 = vmatpush1.msra.mxu0 0.0
  %2449 = vmatprep.subr.mxu0 0.0
  %2450 = vmatpush1.msra.mxu0 0.0
  %2451 = vmatprep.subr.mxu0 0.0
  %2452 = vmatpush1.msra.mxu0 0.0
  %2453 = vmatprep.subr.mxu0 0.0
  %2454 = vmatpush1.msra.mxu0 0.0
  %2455 = vmatprep.subr.mxu0 0.0
  %2456 = vmatpush1.msra.mxu0 0.0
  %2457 = vmatprep.subr.mxu0 %v2172
  %2458 = vmatpush1.msra.mxu0 %v2171
  %2459 = vmatprep.subr.mxu0 %v2168
  %2460 = vmatpush1.msra.mxu0 %v2167
  %2461 = vmatprep.subr.mxu0 0.0
  %2462 = vmatpush2.msra.mxu0 0.0
  %2463 = vmatprep.subr.mxu0 0.0
  %2464 = vmatpush2.msra.mxu0 0.0
  %2465 = vmatprep.subr.mxu0 0.0
  %2466 = vmatpush2.msra.mxu0 0.0
  %2467 = vmatprep.subr.mxu0 0.0
  %2468 = vmatpush2.msra.mxu0 0.0
  %2469 = vmatprep.subr.mxu0 0.0
  %2470 = vmatpush2.msra.mxu0 0.0
  %2471 = vmatprep.subr.mxu0 0.0
  %2472 = vmatpush2.msra.mxu0 0.0
  %2473 = vmatprep.subr.mxu0 0.0
  %2474 = vmatpush2.msra.mxu0 0.0
  %2475 = vmatprep.subr.mxu0 0.0
  %2476 = vmatpush2.msra.mxu0 0.0
  %2477 = vmatprep.subr.mxu0 0.0
  %2478 = vmatpush2.msra.mxu0 0.0
  %2479 = vmatprep.subr.mxu0 0.0
  %2480 = vmatpush2.msra.mxu0 0.0
  %2481 = vmatprep.subr.mxu0 0.0
  %2482 = vmatpush2.msra.mxu0 0.0
  %2483 = vmatprep.subr.mxu0 0.0
  %2484 = vmatpush2.msra.mxu0 0.0
  %2485 = vmatprep.subr.mxu0 0.0
  %2486 = vmatpush2.msra.mxu0 0.0
  %2487 = vmatprep.subr.mxu0 0.0
  %2488 = vmatpush2.msra.mxu0 0.0
  %2489 = vmatprep.subr.mxu0 0.0
  %2490 = vmatpush2.msra.mxu0 0.0
  %2491 = vmatprep.subr.mxu0 0.0
  %2492 = vmatpush2.msra.mxu0 0.0
  %2493 = vmatprep.mubr.f32.mxu0 0.0
  %2494 = vmatmul.mubr.f32.gmra.mxu0 %v2356
  %v2495 = vpop.f32.mrf.mxu0
  %v2496 = vadd.f32 0.0, %v2495
  %v2497 = vpop.f32.mrf.mxu0
  %v2498 = vadd.f32 0.0, %v2497
  %2499 = vdwg.mxu0
  %v2500 = vadd.f32 %v2351, %v2425
  %v2501 = vadd.f32 %v2352, %v2427
  %v2502 = vadd.f32 %v2353, %v2496
  %v2503 = vadd.f32 %v2354, %v2498
  %v2504 = vxor.u32 %v2500, 2147483648
  %v2505 = vmul.f32 %v2504, 1.442695
  %v2506 = vpow.pop %v2505
  %v2507 = vadd.f32 %v2506, 1.0
  %v2508 = vrcp.pop %v2507
  %v2509 = vmul.f32 1.0, %v2508
  %v2510 = vxor.u32 %v2501, 2147483648
  %v2511 = vmul.f32 %v2510, 1.442695
  %v2512 = vpow.pop %v2511
  %v2513 = vadd.f32 %v2512, 1.0
  %v2514 = vrcp.pop %v2513
  %v2515 = vmul.f32 1.0, %v2514
  %v2516 = vtanh.pop %v2502
  %v2517 = vxor.u32 %v2503, 2147483648
  %v2518 = vmul.f32 %v2517, 1.442695
  %v2519 = vpow.pop %v2518
  %v2520 = vadd.f32 %v2519, 1.0
  %v2521 = vrcp.pop %v2520
  %v2522 = vmul.f32 1.0, %v2521
  %v2523 = vmul.f32 %v2515, %v2347
  %v2524 = vmul.f32 %v2509, %v2516
  %v2525 = vadd.f32 %v2523, %v2524
  %v2526 = vtanh.pop %v2525
  %v2527 = vmul.f32 %v2522, %v2526
  %s2528 = scalar_lea.vmem [#allocation4], 8
  %2529 = vst [vmem:[%s2528] sm:$0xff] %v2527
  %v2530 = vld [vmem:[%s733] sm:$0xff]
  %v2531 = vld [vmem:[%s733 + $0x8] sm:$0xff]
  %v2532 = vld [vmem:[%s733 + $0x10] sm:$0xff]
  %v2533 = vld [vmem:[%s733 + $0x18] sm:$0xff]
  %v2535 = vsel %vm2177, %v2527, 0
  %2537 = vmatprep.subr.mxu0 0.0
  %2538 = vmatpush1.msra.mxu0 0.0
  %2539 = vmatprep.subr.mxu0 0.0
  %2540 = vmatpush1.msra.mxu0 0.0
  %2541 = vmatprep.subr.mxu0 0.0
  %2542 = vmatpush1.msra.mxu0 0.0
  %2543 = vmatprep.subr.mxu0 0.0
  %2544 = vmatpush1.msra.mxu0 0.0
  %2545 = vmatprep.subr.mxu0 0.0
  %2546 = vmatpush1.msra.mxu0 0.0
  %2547 = vmatprep.subr.mxu0 0.0
  %2548 = vmatpush1.msra.mxu0 0.0
  %2549 = vmatprep.subr.mxu0 0.0
  %2550 = vmatpush1.msra.mxu0 0.0
  %2551 = vmatprep.subr.mxu0 0.0
  %2552 = vmatpush1.msra.mxu0 0.0
  %2553 = vmatprep.subr.mxu0 0.0
  %2554 = vmatpush1.msra.mxu0 0.0
  %2555 = vmatprep.subr.mxu0 0.0
  %2556 = vmatpush1.msra.mxu0 0.0
  %2557 = vmatprep.subr.mxu0 0.0
  %2558 = vmatpush1.msra.mxu0 0.0
  %2559 = vmatprep.subr.mxu0 0.0
  %2560 = vmatpush1.msra.mxu0 0.0
  %2561 = vmatprep.subr.mxu0 0.0
  %2562 = vmatpush1.msra.mxu0 0.0
  %2563 = vmatprep.subr.mxu0 0.0
  %2564 = vmatpush1.msra.mxu0 0.0
  %2565 = vmatprep.subr.mxu0 %v2170
  %2566 = vmatpush1.msra.mxu0 %v2169
  %2567 = vmatprep.subr.mxu0 %v2166
  %2568 = vmatpush1.msra.mxu0 %v2165
  %2569 = vmatprep.subr.mxu0 0.0
  %2570 = vmatpush2.msra.mxu0 0.0
  %2571 = vmatprep.subr.mxu0 0.0
  %2572 = vmatpush2.msra.mxu0 0.0
  %2573 = vmatprep.subr.mxu0 0.0
  %2574 = vmatpush2.msra.mxu0 0.0
  %2575 = vmatprep.subr.mxu0 0.0
  %2576 = vmatpush2.msra.mxu0 0.0
  %2577 = vmatprep.subr.mxu0 0.0
  %2578 = vmatpush2.msra.mxu0 0.0
  %2579 = vmatprep.subr.mxu0 0.0
  %2580 = vmatpush2.msra.mxu0 0.0
  %2581 = vmatprep.subr.mxu0 0.0
  %2582 = vmatpush2.msra.mxu0 0.0
  %2583 = vmatprep.subr.mxu0 0.0
  %2584 = vmatpush2.msra.mxu0 0.0
  %2585 = vmatprep.subr.mxu0 0.0
  %2586 = vmatpush2.msra.mxu0 0.0
  %2587 = vmatprep.subr.mxu0 0.0
  %2588 = vmatpush2.msra.mxu0 0.0
  %2589 = vmatprep.subr.mxu0 0.0
  %2590 = vmatpush2.msra.mxu0 0.0
  %2591 = vmatprep.subr.mxu0 0.0
  %2592 = vmatpush2.msra.mxu0 0.0
  %2593 = vmatprep.subr.mxu0 0.0
  %2594 = vmatpush2.msra.mxu0 0.0
  %2595 = vmatprep.subr.mxu0 0.0
  %2596 = vmatpush2.msra.mxu0 0.0
  %2597 = vmatprep.subr.mxu0 0.0
  %2598 = vmatpush2.msra.mxu0 0.0
  %2599 = vmatprep.subr.mxu0 0.0
  %2600 = vmatpush2.msra.mxu0 0.0
  %2601 = vmatprep.mubr.f32.mxu0 0.0
  %2602 = vmatmul.mubr.f32.gmra.mxu0 %v2535
  %v2603 = vpop.f32.mrf.mxu0
  %v2604 = vadd.f32 0.0, %v2603
  %v2605 = vpop.f32.mrf.mxu0
  %v2606 = vadd.f32 0.0, %v2605
  %2607 = vdwg.mxu0
  %2608 = vmatprep.subr.mxu0 0.0
  %2609 = vmatpush1.msra.mxu0 0.0
  %2610 = vmatprep.subr.mxu0 0.0
  %2611 = vmatpush1.msra.mxu0 0.0
  %2612 = vmatprep.subr.mxu0 0.0
  %2613 = vmatpush1.msra.mxu0 0.0
  %2614 = vmatprep.subr.mxu0 0.0
  %2615 = vmatpush1.msra.mxu0 0.0
  %2616 = vmatprep.subr.mxu0 0.0
  %2617 = vmatpush1.msra.mxu0 0.0
  %2618 = vmatprep.subr.mxu0 0.0
  %2619 = vmatpush1.msra.mxu0 0.0
  %2620 = vmatprep.subr.mxu0 0.0
  %2621 = vmatpush1.msra.mxu0 0.0
  %2622 = vmatprep.subr.mxu0 0.0
  %2623 = vmatpush1.msra.mxu0 0.0
  %2624 = vmatprep.subr.mxu0 0.0
  %2625 = vmatpush1.msra.mxu0 0.0
  %2626 = vmatprep.subr.mxu0 0.0
  %2627 = vmatpush1.msra.mxu0 0.0
  %2628 = vmatprep.subr.mxu0 0.0
  %2629 = vmatpush1.msra.mxu0 0.0
  %2630 = vmatprep.subr.mxu0 0.0
  %2631 = vmatpush1.msra.mxu0 0.0
  %2632 = vmatprep.subr.mxu0 0.0
  %2633 = vmatpush1.msra.mxu0 0.0
  %2634 = vmatprep.subr.mxu0 0.0
  %2635 = vmatpush1.msra.mxu0 0.0
  %2636 = vmatprep.subr.mxu0 %v2172
  %2637 = vmatpush1.msra.mxu0 %v2171
  %2638 = vmatprep.subr.mxu0 %v2168
  %2639 = vmatpush1.msra.mxu0 %v2167
  %2640 = vmatprep.subr.mxu0 0.0
  %2641 = vmatpush2.msra.mxu0 0.0
  %2642 = vmatprep.subr.mxu0 0.0
  %2643 = vmatpush2.msra.mxu0 0.0
  %2644 = vmatprep.subr.mxu0 0.0
  %2645 = vmatpush2.msra.mxu0 0.0
  %2646 = vmatprep.subr.mxu0 0.0
  %2647 = vmatpush2.msra.mxu0 0.0
  %2648 = vmatprep.subr.mxu0 0.0
  %2649 = vmatpush2.msra.mxu0 0.0
  %2650 = vmatprep.subr.mxu0 0.0
  %2651 = vmatpush2.msra.mxu0 0.0
  %2652 = vmatprep.subr.mxu0 0.0
  %2653 = vmatpush2.msra.mxu0 0.0
  %2654 = vmatprep.subr.mxu0 0.0
  %2655 = vmatpush2.msra.mxu0 0.0
  %2656 = vmatprep.subr.mxu0 0.0
  %2657 = vmatpush2.msra.mxu0 0.0
  %2658 = vmatprep.subr.mxu0 0.0
  %2659 = vmatpush2.msra.mxu0 0.0
  %2660 = vmatprep.subr.mxu0 0.0
  %2661 = vmatpush2.msra.mxu0 0.0
  %2662 = vmatprep.subr.mxu0 0.0
  %2663 = vmatpush2.msra.mxu0 0.0
  %2664 = vmatprep.subr.mxu0 0.0
  %2665 = vmatpush2.msra.mxu0 0.0
  %2666 = vmatprep.subr.mxu0 0.0
  %2667 = vmatpush2.msra.mxu0 0.0
  %2668 = vmatprep.subr.mxu0 0.0
  %2669 = vmatpush2.msra.mxu0 0.0
  %2670 = vmatprep.subr.mxu0 0.0
  %2671 = vmatpush2.msra.mxu0 0.0
  %2672 = vmatprep.mubr.f32.mxu0 0.0
  %2673 = vmatmul.mubr.f32.gmra.mxu0 %v2535
  %v2674 = vpop.f32.mrf.mxu0
  %v2675 = vadd.f32 0.0, %v2674
  %v2676 = vpop.f32.mrf.mxu0
  %v2677 = vadd.f32 0.0, %v2676
  %2678 = vdwg.mxu0
  %v2679 = vadd.f32 %v2530, %v2604
  %v2680 = vadd.f32 %v2531, %v2606
  %v2681 = vadd.f32 %v2532, %v2675
  %v2682 = vadd.f32 %v2533, %v2677
  %v2683 = vxor.u32 %v2679, 2147483648
  %v2684 = vmul.f32 %v2683, 1.442695
  %v2685 = vpow.pop %v2684
  %v2686 = vadd.f32 %v2685, 1.0
  %v2687 = vrcp.pop %v2686
  %v2688 = vmul.f32 1.0, %v2687
  %v2689 = vxor.u32 %v2680, 2147483648
  %v2690 = vmul.f32 %v2689, 1.442695
  %v2691 = vpow.pop %v2690
  %v2692 = vadd.f32 %v2691, 1.0
  %v2693 = vrcp.pop %v2692
  %v2694 = vmul.f32 1.0, %v2693
  %v2695 = vtanh.pop %v2681
  %v2696 = vxor.u32 %v2682, 2147483648
  %v2697 = vmul.f32 %v2696, 1.442695
  %v2698 = vpow.pop %v2697
  %v2699 = vadd.f32 %v2698, 1.0
  %v2700 = vrcp.pop %v2699
  %v2701 = vmul.f32 1.0, %v2700
  %v2702 = vmul.f32 %v2694, %v2525
  %v2703 = vmul.f32 %v2688, %v2695
  %v2704 = vadd.f32 %v2702, %v2703
  %v2705 = vtanh.pop %v2704
  %v2706 = vmul.f32 %v2701, %v2705
  %s2707 = scalar_lea.vmem [#allocation4], 16
  %2708 = vst [vmem:[%s2707] sm:$0xff] %v2706
  %v2709 = vld [vmem:[%s913] sm:$0xff]
  %v2710 = vld [vmem:[%s913 + $0x8] sm:$0xff]
  %v2711 = vld [vmem:[%s913 + $0x10] sm:$0xff]
  %v2712 = vld [vmem:[%s913 + $0x18] sm:$0xff]
  %v2714 = vsel %vm2177, %v2706, 0
  %2716 = vmatprep.subr.mxu0 0.0
  %2717 = vmatpush1.msra.mxu0 0.0
  %2718 = vmatprep.subr.mxu0 0.0
  %2719 = vmatpush1.msra.mxu0 0.0
  %2720 = vmatprep.subr.mxu0 0.0
  %2721 = vmatpush1.msra.mxu0 0.0
  %2722 = vmatprep.subr.mxu0 0.0
  %2723 = vmatpush1.msra.mxu0 0.0
  %2724 = vmatprep.subr.mxu0 0.0
  %2725 = vmatpush1.msra.mxu0 0.0
  %2726 = vmatprep.subr.mxu0 0.0
  %2727 = vmatpush1.msra.mxu0 0.0
  %2728 = vmatprep.subr.mxu0 0.0
  %2729 = vmatpush1.msra.mxu0 0.0
  %2730 = vmatprep.subr.mxu0 0.0
  %2731 = vmatpush1.msra.mxu0 0.0
  %2732 = vmatprep.subr.mxu0 0.0
  %2733 = vmatpush1.msra.mxu0 0.0
  %2734 = vmatprep.subr.mxu0 0.0
  %2735 = vmatpush1.msra.mxu0 0.0
  %2736 = vmatprep.subr.mxu0 0.0
  %2737 = vmatpush1.msra.mxu0 0.0
  %2738 = vmatprep.subr.mxu0 0.0
  %2739 = vmatpush1.msra.mxu0 0.0
  %2740 = vmatprep.subr.mxu0 0.0
  %2741 = vmatpush1.msra.mxu0 0.0
  %2742 = vmatprep.subr.mxu0 0.0
  %2743 = vmatpush1.msra.mxu0 0.0
  %2744 = vmatprep.subr.mxu0 %v2170
  %2745 = vmatpush1.msra.mxu0 %v2169
  %2746 = vmatprep.subr.mxu0 %v2166
  %2747 = vmatpush1.msra.mxu0 %v2165
  %2748 = vmatprep.subr.mxu0 0.0
  %2749 = vmatpush2.msra.mxu0 0.0
  %2750 = vmatprep.subr.mxu0 0.0
  %2751 = vmatpush2.msra.mxu0 0.0
  %2752 = vmatprep.subr.mxu0 0.0
  %2753 = vmatpush2.msra.mxu0 0.0
  %2754 = vmatprep.subr.mxu0 0.0
  %2755 = vmatpush2.msra.mxu0 0.0
  %2756 = vmatprep.subr.mxu0 0.0
  %2757 = vmatpush2.msra.mxu0 0.0
  %2758 = vmatprep.subr.mxu0 0.0
  %2759 = vmatpush2.msra.mxu0 0.0
  %2760 = vmatprep.subr.mxu0 0.0
  %2761 = vmatpush2.msra.mxu0 0.0
  %2762 = vmatprep.subr.mxu0 0.0
  %2763 = vmatpush2.msra.mxu0 0.0
  %2764 = vmatprep.subr.mxu0 0.0
  %2765 = vmatpush2.msra.mxu0 0.0
  %2766 = vmatprep.subr.mxu0 0.0
  %2767 = vmatpush2.msra.mxu0 0.0
  %2768 = vmatprep.subr.mxu0 0.0
  %2769 = vmatpush2.msra.mxu0 0.0
  %2770 = vmatprep.subr.mxu0 0.0
  %2771 = vmatpush2.msra.mxu0 0.0
  %2772 = vmatprep.subr.mxu0 0.0
  %2773 = vmatpush2.msra.mxu0 0.0
  %2774 = vmatprep.subr.mxu0 0.0
  %2775 = vmatpush2.msra.mxu0 0.0
  %2776 = vmatprep.subr.mxu0 0.0
  %2777 = vmatpush2.msra.mxu0 0.0
  %2778 = vmatprep.subr.mxu0 0.0
  %2779 = vmatpush2.msra.mxu0 0.0
  %2780 = vmatprep.mubr.f32.mxu0 0.0
  %2781 = vmatmul.mubr.f32.gmra.mxu0 %v2714
  %v2782 = vpop.f32.mrf.mxu0
  %v2783 = vadd.f32 0.0, %v2782
  %v2784 = vpop.f32.mrf.mxu0
  %v2785 = vadd.f32 0.0, %v2784
  %2786 = vdwg.mxu0
  %2787 = vmatprep.subr.mxu0 0.0
  %2788 = vmatpush1.msra.mxu0 0.0
  %2789 = vmatprep.subr.mxu0 0.0
  %2790 = vmatpush1.msra.mxu0 0.0
  %2791 = vmatprep.subr.mxu0 0.0
  %2792 = vmatpush1.msra.mxu0 0.0
  %2793 = vmatprep.subr.mxu0 0.0
  %2794 = vmatpush1.msra.mxu0 0.0
  %2795 = vmatprep.subr.mxu0 0.0
  %2796 = vmatpush1.msra.mxu0 0.0
  %2797 = vmatprep.subr.mxu0 0.0
  %2798 = vmatpush1.msra.mxu0 0.0
  %2799 = vmatprep.subr.mxu0 0.0
  %2800 = vmatpush1.msra.mxu0 0.0
  %2801 = vmatprep.subr.mxu0 0.0
  %2802 = vmatpush1.msra.mxu0 0.0
  %2803 = vmatprep.subr.mxu0 0.0
  %2804 = vmatpush1.msra.mxu0 0.0
  %2805 = vmatprep.subr.mxu0 0.0
  %2806 = vmatpush1.msra.mxu0 0.0
  %2807 = vmatprep.subr.mxu0 0.0
  %2808 = vmatpush1.msra.mxu0 0.0
  %2809 = vmatprep.subr.mxu0 0.0
  %2810 = vmatpush1.msra.mxu0 0.0
  %2811 = vmatprep.subr.mxu0 0.0
  %2812 = vmatpush1.msra.mxu0 0.0
  %2813 = vmatprep.subr.mxu0 0.0
  %2814 = vmatpush1.msra.mxu0 0.0
  %2815 = vmatprep.subr.mxu0 %v2172
  %2816 = vmatpush1.msra.mxu0 %v2171
  %2817 = vmatprep.subr.mxu0 %v2168
  %2818 = vmatpush1.msra.mxu0 %v2167
  %2819 = vmatprep.subr.mxu0 0.0
  %2820 = vmatpush2.msra.mxu0 0.0
  %2821 = vmatprep.subr.mxu0 0.0
  %2822 = vmatpush2.msra.mxu0 0.0
  %2823 = vmatprep.subr.mxu0 0.0
  %2824 = vmatpush2.msra.mxu0 0.0
  %2825 = vmatprep.subr.mxu0 0.0
  %2826 = vmatpush2.msra.mxu0 0.0
  %2827 = vmatprep.subr.mxu0 0.0
  %2828 = vmatpush2.msra.mxu0 0.0
  %2829 = vmatprep.subr.mxu0 0.0
  %2830 = vmatpush2.msra.mxu0 0.0
  %2831 = vmatprep.subr.mxu0 0.0
  %2832 = vmatpush2.msra.mxu0 0.0
  %2833 = vmatprep.subr.mxu0 0.0
  %2834 = vmatpush2.msra.mxu0 0.0
  %2835 = vmatprep.subr.mxu0 0.0
  %2836 = vmatpush2.msra.mxu0 0.0
  %2837 = vmatprep.subr.mxu0 0.0
  %2838 = vmatpush2.msra.mxu0 0.0
  %2839 = vmatprep.subr.mxu0 0.0
  %2840 = vmatpush2.msra.mxu0 0.0
  %2841 = vmatprep.subr.mxu0 0.0
  %2842 = vmatpush2.msra.mxu0 0.0
  %2843 = vmatprep.subr.mxu0 0.0
  %2844 = vmatpush2.msra.mxu0 0.0
  %2845 = vmatprep.subr.mxu0 0.0
  %2846 = vmatpush2.msra.mxu0 0.0
  %2847 = vmatprep.subr.mxu0 0.0
  %2848 = vmatpush2.msra.mxu0 0.0
  %2849 = vmatprep.subr.mxu0 0.0
  %2850 = vmatpush2.msra.mxu0 0.0
  %2851 = vmatprep.mubr.f32.mxu0 0.0
  %2852 = vmatmul.mubr.f32.gmra.mxu0 %v2714
  %v2853 = vpop.f32.mrf.mxu0
  %v2854 = vadd.f32 0.0, %v2853
  %v2855 = vpop.f32.mrf.mxu0
  %v2856 = vadd.f32 0.0, %v2855
  %2857 = vdwg.mxu0
  %v2858 = vadd.f32 %v2709, %v2783
  %v2859 = vadd.f32 %v2710, %v2785
  %v2860 = vadd.f32 %v2711, %v2854
  %v2861 = vadd.f32 %v2712, %v2856
  %v2862 = vxor.u32 %v2858, 2147483648
  %v2863 = vmul.f32 %v2862, 1.442695
  %v2864 = vpow.pop %v2863
  %v2865 = vadd.f32 %v2864, 1.0
  %v2866 = vrcp.pop %v2865
  %v2867 = vmul.f32 1.0, %v2866
  %v2868 = vxor.u32 %v2859, 2147483648
  %v2869 = vmul.f32 %v2868, 1.442695
  %v2870 = vpow.pop %v2869
  %v2871 = vadd.f32 %v2870, 1.0
  %v2872 = vrcp.pop %v2871
  %v2873 = vmul.f32 1.0, %v2872
  %v2874 = vtanh.pop %v2860
  %v2875 = vxor.u32 %v2861, 2147483648
  %v2876 = vmul.f32 %v2875, 1.442695
  %v2877 = vpow.pop %v2876
  %v2878 = vadd.f32 %v2877, 1.0
  %v2879 = vrcp.pop %v2878
  %v2880 = vmul.f32 1.0, %v2879
  %v2881 = vmul.f32 %v2873, %v2704
  %v2882 = vmul.f32 %v2867, %v2874
  %v2883 = vadd.f32 %v2881, %v2882
  %v2884 = vtanh.pop %v2883
  %v2885 = vmul.f32 %v2880, %v2884
  %s2886 = scalar_lea.vmem [#allocation4], 24
  %2887 = vst [vmem:[%s2886] sm:$0xff] %v2885
  %v2888 = vld [vmem:[%s1093] sm:$0xff]
  %v2889 = vld [vmem:[%s1093 + $0x8] sm:$0xff]
  %v2890 = vld [vmem:[%s1093 + $0x10] sm:$0xff]
  %v2891 = vld [vmem:[%s1093 + $0x18] sm:$0xff]
  %v2893 = vsel %vm2177, %v2885, 0
  %2895 = vmatprep.subr.mxu0 0.0
  %2896 = vmatpush1.msra.mxu0 0.0
  %2897 = vmatprep.subr.mxu0 0.0
  %2898 = vmatpush1.msra.mxu0 0.0
  %2899 = vmatprep.subr.mxu0 0.0
  %2900 = vmatpush1.msra.mxu0 0.0
  %2901 = vmatprep.subr.mxu0 0.0
  %2902 = vmatpush1.msra.mxu0 0.0
  %2903 = vmatprep.subr.mxu0 0.0
  %2904 = vmatpush1.msra.mxu0 0.0
  %2905 = vmatprep.subr.mxu0 0.0
  %2906 = vmatpush1.msra.mxu0 0.0
  %2907 = vmatprep.subr.mxu0 0.0
  %2908 = vmatpush1.msra.mxu0 0.0
  %2909 = vmatprep.subr.mxu0 0.0
  %2910 = vmatpush1.msra.mxu0 0.0
  %2911 = vmatprep.subr.mxu0 0.0
  %2912 = vmatpush1.msra.mxu0 0.0
  %2913 = vmatprep.subr.mxu0 0.0
  %2914 = vmatpush1.msra.mxu0 0.0
  %2915 = vmatprep.subr.mxu0 0.0
  %2916 = vmatpush1.msra.mxu0 0.0
  %2917 = vmatprep.subr.mxu0 0.0
  %2918 = vmatpush1.msra.mxu0 0.0
  %2919 = vmatprep.subr.mxu0 0.0
  %2920 = vmatpush1.msra.mxu0 0.0
  %2921 = vmatprep.subr.mxu0 0.0
  %2922 = vmatpush1.msra.mxu0 0.0
  %2923 = vmatprep.subr.mxu0 %v2170
  %2924 = vmatpush1.msra.mxu0 %v2169
  %2925 = vmatprep.subr.mxu0 %v2166
  %2926 = vmatpush1.msra.mxu0 %v2165
  %2927 = vmatprep.subr.mxu0 0.0
  %2928 = vmatpush2.msra.mxu0 0.0
  %2929 = vmatprep.subr.mxu0 0.0
  %2930 = vmatpush2.msra.mxu0 0.0
  %2931 = vmatprep.subr.mxu0 0.0
  %2932 = vmatpush2.msra.mxu0 0.0
  %2933 = vmatprep.subr.mxu0 0.0
  %2934 = vmatpush2.msra.mxu0 0.0
  %2935 = vmatprep.subr.mxu0 0.0
  %2936 = vmatpush2.msra.mxu0 0.0
  %2937 = vmatprep.subr.mxu0 0.0
  %2938 = vmatpush2.msra.mxu0 0.0
  %2939 = vmatprep.subr.mxu0 0.0
  %2940 = vmatpush2.msra.mxu0 0.0
  %2941 = vmatprep.subr.mxu0 0.0
  %2942 = vmatpush2.msra.mxu0 0.0
  %2943 = vmatprep.subr.mxu0 0.0
  %2944 = vmatpush2.msra.mxu0 0.0
  %2945 = vmatprep.subr.mxu0 0.0
  %2946 = vmatpush2.msra.mxu0 0.0
  %2947 = vmatprep.subr.mxu0 0.0
  %2948 = vmatpush2.msra.mxu0 0.0
  %2949 = vmatprep.subr.mxu0 0.0
  %2950 = vmatpush2.msra.mxu0 0.0
  %2951 = vmatprep.subr.mxu0 0.0
  %2952 = vmatpush2.msra.mxu0 0.0
  %2953 = vmatprep.subr.mxu0 0.0
  %2954 = vmatpush2.msra.mxu0 0.0
  %2955 = vmatprep.subr.mxu0 0.0
  %2956 = vmatpush2.msra.mxu0 0.0
  %2957 = vmatprep.subr.mxu0 0.0
  %2958 = vmatpush2.msra.mxu0 0.0
  %2959 = vmatprep.mubr.f32.mxu0 0.0
  %2960 = vmatmul.mubr.f32.gmra.mxu0 %v2893
  %v2961 = vpop.f32.mrf.mxu0
  %v2962 = vadd.f32 0.0, %v2961
  %v2963 = vpop.f32.mrf.mxu0
  %v2964 = vadd.f32 0.0, %v2963
  %2965 = vdwg.mxu0
  %2966 = vmatprep.subr.mxu0 0.0
  %2967 = vmatpush1.msra.mxu0 0.0
  %2968 = vmatprep.subr.mxu0 0.0
  %2969 = vmatpush1.msra.mxu0 0.0
  %2970 = vmatprep.subr.mxu0 0.0
  %2971 = vmatpush1.msra.mxu0 0.0
  %2972 = vmatprep.subr.mxu0 0.0
  %2973 = vmatpush1.msra.mxu0 0.0
  %2974 = vmatprep.subr.mxu0 0.0
  %2975 = vmatpush1.msra.mxu0 0.0
  %2976 = vmatprep.subr.mxu0 0.0
  %2977 = vmatpush1.msra.mxu0 0.0
  %2978 = vmatprep.subr.mxu0 0.0
  %2979 = vmatpush1.msra.mxu0 0.0
  %2980 = vmatprep.subr.mxu0 0.0
  %2981 = vmatpush1.msra.mxu0 0.0
  %2982 = vmatprep.subr.mxu0 0.0
  %2983 = vmatpush1.msra.mxu0 0.0
  %2984 = vmatprep.subr.mxu0 0.0
  %2985 = vmatpush1.msra.mxu0 0.0
  %2986 = vmatprep.subr.mxu0 0.0
  %2987 = vmatpush1.msra.mxu0 0.0
  %2988 = vmatprep.subr.mxu0 0.0
  %2989 = vmatpush1.msra.mxu0 0.0
  %2990 = vmatprep.subr.mxu0 0.0
  %2991 = vmatpush1.msra.mxu0 0.0
  %2992 = vmatprep.subr.mxu0 0.0
  %2993 = vmatpush1.msra.mxu0 0.0
  %2994 = vmatprep.subr.mxu0 %v2172
  %2995 = vmatpush1.msra.mxu0 %v2171
  %2996 = vmatprep.subr.mxu0 %v2168
  %2997 = vmatpush1.msra.mxu0 %v2167
  %2998 = vmatprep.subr.mxu0 0.0
  %2999 = vmatpush2.msra.mxu0 0.0
  %3000 = vmatprep.subr.mxu0 0.0
  %3001 = vmatpush2.msra.mxu0 0.0
  %3002 = vmatprep.subr.mxu0 0.0
  %3003 = vmatpush2.msra.mxu0 0.0
  %3004 = vmatprep.subr.mxu0 0.0
  %3005 = vmatpush2.msra.mxu0 0.0
  %3006 = vmatprep.subr.mxu0 0.0
  %3007 = vmatpush2.msra.mxu0 0.0
  %3008 = vmatprep.subr.mxu0 0.0
  %3009 = vmatpush2.msra.mxu0 0.0
  %3010 = vmatprep.subr.mxu0 0.0
  %3011 = vmatpush2.msra.mxu0 0.0
  %3012 = vmatprep.subr.mxu0 0.0
  %3013 = vmatpush2.msra.mxu0 0.0
  %3014 = vmatprep.subr.mxu0 0.0
  %3015 = vmatpush2.msra.mxu0 0.0
  %3016 = vmatprep.subr.mxu0 0.0
  %3017 = vmatpush2.msra.mxu0 0.0
  %3018 = vmatprep.subr.mxu0 0.0
  %3019 = vmatpush2.msra.mxu0 0.0
  %3020 = vmatprep.subr.mxu0 0.0
  %3021 = vmatpush2.msra.mxu0 0.0
  %3022 = vmatprep.subr.mxu0 0.0
  %3023 = vmatpush2.msra.mxu0 0.0
  %3024 = vmatprep.subr.mxu0 0.0
  %3025 = vmatpush2.msra.mxu0 0.0
  %3026 = vmatprep.subr.mxu0 0.0
  %3027 = vmatpush2.msra.mxu0 0.0
  %3028 = vmatprep.subr.mxu0 0.0
  %3029 = vmatpush2.msra.mxu0 0.0
  %3030 = vmatprep.mubr.f32.mxu0 0.0
  %3031 = vmatmul.mubr.f32.gmra.mxu0 %v2893
  %v3032 = vpop.f32.mrf.mxu0
  %v3033 = vadd.f32 0.0, %v3032
  %v3034 = vpop.f32.mrf.mxu0
  %v3035 = vadd.f32 0.0, %v3034
  %3036 = vdwg.mxu0
  %v3037 = vadd.f32 %v2888, %v2962
  %v3038 = vadd.f32 %v2889, %v2964
  %v3039 = vadd.f32 %v2890, %v3033
  %v3040 = vadd.f32 %v2891, %v3035
  %v3041 = vxor.u32 %v3037, 2147483648
  %v3042 = vmul.f32 %v3041, 1.442695
  %v3043 = vpow.pop %v3042
  %v3044 = vadd.f32 %v3043, 1.0
  %v3045 = vrcp.pop %v3044
  %v3046 = vmul.f32 1.0, %v3045
  %v3047 = vxor.u32 %v3038, 2147483648
  %v3048 = vmul.f32 %v3047, 1.442695
  %v3049 = vpow.pop %v3048
  %v3050 = vadd.f32 %v3049, 1.0
  %v3051 = vrcp.pop %v3050
  %v3052 = vmul.f32 1.0, %v3051
  %v3053 = vtanh.pop %v3039
  %v3054 = vxor.u32 %v3040, 2147483648
  %v3055 = vmul.f32 %v3054, 1.442695
  %v3056 = vpow.pop %v3055
  %v3057 = vadd.f32 %v3056, 1.0
  %v3058 = vrcp.pop %v3057
  %v3059 = vmul.f32 1.0, %v3058
  %v3060 = vmul.f32 %v3052, %v2883
  %v3061 = vmul.f32 %v3046, %v3053
  %v3062 = vadd.f32 %v3060, %v3061
  %v3063 = vtanh.pop %v3062
  %v3064 = vmul.f32 %v3059, %v3063
  %s3065 = scalar_lea.vmem [#allocation4], 32
  %3066 = vst [vmem:[%s3065] sm:$0xff] %v3064
  %v3067 = vld [vmem:[%s1273] sm:$0xff]
  %v3068 = vld [vmem:[%s1273 + $0x8] sm:$0xff]
  %v3069 = vld [vmem:[%s1273 + $0x10] sm:$0xff]
  %v3070 = vld [vmem:[%s1273 + $0x18] sm:$0xff]
  %v3072 = vsel %vm2177, %v3064, 0
  %3074 = vmatprep.subr.mxu0 0.0
  %3075 = vmatpush1.msra.mxu0 0.0
  %3076 = vmatprep.subr.mxu0 0.0
  %3077 = vmatpush1.msra.mxu0 0.0
  %3078 = vmatprep.subr.mxu0 0.0
  %3079 = vmatpush1.msra.mxu0 0.0
  %3080 = vmatprep.subr.mxu0 0.0
  %3081 = vmatpush1.msra.mxu0 0.0
  %3082 = vmatprep.subr.mxu0 0.0
  %3083 = vmatpush1.msra.mxu0 0.0
  %3084 = vmatprep.subr.mxu0 0.0
  %3085 = vmatpush1.msra.mxu0 0.0
  %3086 = vmatprep.subr.mxu0 0.0
  %3087 = vmatpush1.msra.mxu0 0.0
  %3088 = vmatprep.subr.mxu0 0.0
  %3089 = vmatpush1.msra.mxu0 0.0
  %3090 = vmatprep.subr.mxu0 0.0
  %3091 = vmatpush1.msra.mxu0 0.0
  %3092 = vmatprep.subr.mxu0 0.0
  %3093 = vmatpush1.msra.mxu0 0.0
  %3094 = vmatprep.subr.mxu0 0.0
  %3095 = vmatpush1.msra.mxu0 0.0
  %3096 = vmatprep.subr.mxu0 0.0
  %3097 = vmatpush1.msra.mxu0 0.0
  %3098 = vmatprep.subr.mxu0 0.0
  %3099 = vmatpush1.msra.mxu0 0.0
  %3100 = vmatprep.subr.mxu0 0.0
  %3101 = vmatpush1.msra.mxu0 0.0
  %3102 = vmatprep.subr.mxu0 %v2170
  %3103 = vmatpush1.msra.mxu0 %v2169
  %3104 = vmatprep.subr.mxu0 %v2166
  %3105 = vmatpush1.msra.mxu0 %v2165
  %3106 = vmatprep.subr.mxu0 0.0
  %3107 = vmatpush2.msra.mxu0 0.0
  %3108 = vmatprep.subr.mxu0 0.0
  %3109 = vmatpush2.msra.mxu0 0.0
  %3110 = vmatprep.subr.mxu0 0.0
  %3111 = vmatpush2.msra.mxu0 0.0
  %3112 = vmatprep.subr.mxu0 0.0
  %3113 = vmatpush2.msra.mxu0 0.0
  %3114 = vmatprep.subr.mxu0 0.0
  %3115 = vmatpush2.msra.mxu0 0.0
  %3116 = vmatprep.subr.mxu0 0.0
  %3117 = vmatpush2.msra.mxu0 0.0
  %3118 = vmatprep.subr.mxu0 0.0
  %3119 = vmatpush2.msra.mxu0 0.0
  %3120 = vmatprep.subr.mxu0 0.0
  %3121 = vmatpush2.msra.mxu0 0.0
  %3122 = vmatprep.subr.mxu0 0.0
  %3123 = vmatpush2.msra.mxu0 0.0
  %3124 = vmatprep.subr.mxu0 0.0
  %3125 = vmatpush2.msra.mxu0 0.0
  %3126 = vmatprep.subr.mxu0 0.0
  %3127 = vmatpush2.msra.mxu0 0.0
  %3128 = vmatprep.subr.mxu0 0.0
  %3129 = vmatpush2.msra.mxu0 0.0
  %3130 = vmatprep.subr.mxu0 0.0
  %3131 = vmatpush2.msra.mxu0 0.0
  %3132 = vmatprep.subr.mxu0 0.0
  %3133 = vmatpush2.msra.mxu0 0.0
  %3134 = vmatprep.subr.mxu0 0.0
  %3135 = vmatpush2.msra.mxu0 0.0
  %3136 = vmatprep.subr.mxu0 0.0
  %3137 = vmatpush2.msra.mxu0 0.0
  %3138 = vmatprep.mubr.f32.mxu0 0.0
  %3139 = vmatmul.mubr.f32.gmra.mxu0 %v3072
  %v3140 = vpop.f32.mrf.mxu0
  %v3141 = vadd.f32 0.0, %v3140
  %v3142 = vpop.f32.mrf.mxu0
  %v3143 = vadd.f32 0.0, %v3142
  %3144 = vdwg.mxu0
  %3145 = vmatprep.subr.mxu0 0.0
  %3146 = vmatpush1.msra.mxu0 0.0
  %3147 = vmatprep.subr.mxu0 0.0
  %3148 = vmatpush1.msra.mxu0 0.0
  %3149 = vmatprep.subr.mxu0 0.0
  %3150 = vmatpush1.msra.mxu0 0.0
  %3151 = vmatprep.subr.mxu0 0.0
  %3152 = vmatpush1.msra.mxu0 0.0
  %3153 = vmatprep.subr.mxu0 0.0
  %3154 = vmatpush1.msra.mxu0 0.0
  %3155 = vmatprep.subr.mxu0 0.0
  %3156 = vmatpush1.msra.mxu0 0.0
  %3157 = vmatprep.subr.mxu0 0.0
  %3158 = vmatpush1.msra.mxu0 0.0
  %3159 = vmatprep.subr.mxu0 0.0
  %3160 = vmatpush1.msra.mxu0 0.0
  %3161 = vmatprep.subr.mxu0 0.0
  %3162 = vmatpush1.msra.mxu0 0.0
  %3163 = vmatprep.subr.mxu0 0.0
  %3164 = vmatpush1.msra.mxu0 0.0
  %3165 = vmatprep.subr.mxu0 0.0
  %3166 = vmatpush1.msra.mxu0 0.0
  %3167 = vmatprep.subr.mxu0 0.0
  %3168 = vmatpush1.msra.mxu0 0.0
  %3169 = vmatprep.subr.mxu0 0.0
  %3170 = vmatpush1.msra.mxu0 0.0
  %3171 = vmatprep.subr.mxu0 0.0
  %3172 = vmatpush1.msra.mxu0 0.0
  %3173 = vmatprep.subr.mxu0 %v2172
  %3174 = vmatpush1.msra.mxu0 %v2171
  %3175 = vmatprep.subr.mxu0 %v2168
  %3176 = vmatpush1.msra.mxu0 %v2167
  %3177 = vmatprep.subr.mxu0 0.0
  %3178 = vmatpush2.msra.mxu0 0.0
  %3179 = vmatprep.subr.mxu0 0.0
  %3180 = vmatpush2.msra.mxu0 0.0
  %3181 = vmatprep.subr.mxu0 0.0
  %3182 = vmatpush2.msra.mxu0 0.0
  %3183 = vmatprep.subr.mxu0 0.0
  %3184 = vmatpush2.msra.mxu0 0.0
  %3185 = vmatprep.subr.mxu0 0.0
  %3186 = vmatpush2.msra.mxu0 0.0
  %3187 = vmatprep.subr.mxu0 0.0
  %3188 = vmatpush2.msra.mxu0 0.0
  %3189 = vmatprep.subr.mxu0 0.0
  %3190 = vmatpush2.msra.mxu0 0.0
  %3191 = vmatprep.subr.mxu0 0.0
  %3192 = vmatpush2.msra.mxu0 0.0
  %3193 = vmatprep.subr.mxu0 0.0
  %3194 = vmatpush2.msra.mxu0 0.0
  %3195 = vmatprep.subr.mxu0 0.0
  %3196 = vmatpush2.msra.mxu0 0.0
  %3197 = vmatprep.subr.mxu0 0.0
  %3198 = vmatpush2.msra.mxu0 0.0
  %3199 = vmatprep.subr.mxu0 0.0
  %3200 = vmatpush2.msra.mxu0 0.0
  %3201 = vmatprep.subr.mxu0 0.0
  %3202 = vmatpush2.msra.mxu0 0.0
  %3203 = vmatprep.subr.mxu0 0.0
  %3204 = vmatpush2.msra.mxu0 0.0
  %3205 = vmatprep.subr.mxu0 0.0
  %3206 = vmatpush2.msra.mxu0 0.0
  %3207 = vmatprep.subr.mxu0 0.0
  %3208 = vmatpush2.msra.mxu0 0.0
  %3209 = vmatprep.mubr.f32.mxu0 0.0
  %3210 = vmatmul.mubr.f32.gmra.mxu0 %v3072
  %v3211 = vpop.f32.mrf.mxu0
  %v3212 = vadd.f32 0.0, %v3211
  %v3213 = vpop.f32.mrf.mxu0
  %v3214 = vadd.f32 0.0, %v3213
  %3215 = vdwg.mxu0
  %v3216 = vadd.f32 %v3067, %v3141
  %v3217 = vadd.f32 %v3068, %v3143
  %v3218 = vadd.f32 %v3069, %v3212
  %v3219 = vadd.f32 %v3070, %v3214
  %v3220 = vxor.u32 %v3216, 2147483648
  %v3221 = vmul.f32 %v3220, 1.442695
  %v3222 = vpow.pop %v3221
  %v3223 = vadd.f32 %v3222, 1.0
  %v3224 = vrcp.pop %v3223
  %v3225 = vmul.f32 1.0, %v3224
  %v3226 = vxor.u32 %v3217, 2147483648
  %v3227 = vmul.f32 %v3226, 1.442695
  %v3228 = vpow.pop %v3227
  %v3229 = vadd.f32 %v3228, 1.0
  %v3230 = vrcp.pop %v3229
  %v3231 = vmul.f32 1.0, %v3230
  %v3232 = vtanh.pop %v3218
  %v3233 = vxor.u32 %v3219, 2147483648
  %v3234 = vmul.f32 %v3233, 1.442695
  %v3235 = vpow.pop %v3234
  %v3236 = vadd.f32 %v3235, 1.0
  %v3237 = vrcp.pop %v3236
  %v3238 = vmul.f32 1.0, %v3237
  %v3239 = vmul.f32 %v3231, %v3062
  %v3240 = vmul.f32 %v3225, %v3232
  %v3241 = vadd.f32 %v3239, %v3240
  %v3242 = vtanh.pop %v3241
  %v3243 = vmul.f32 %v3238, %v3242
  %s3244 = scalar_lea.vmem [#allocation4], 40
  %3245 = vst [vmem:[%s3244] sm:$0xff] %v3243
  %v3246 = vld [vmem:[%s1453] sm:$0xff]
  %v3247 = vld [vmem:[%s1453 + $0x8] sm:$0xff]
  %v3248 = vld [vmem:[%s1453 + $0x10] sm:$0xff]
  %v3249 = vld [vmem:[%s1453 + $0x18] sm:$0xff]
  %v3251 = vsel %vm2177, %v3243, 0
  %3253 = vmatprep.subr.mxu0 0.0
  %3254 = vmatpush1.msra.mxu0 0.0
  %3255 = vmatprep.subr.mxu0 0.0
  %3256 = vmatpush1.msra.mxu0 0.0
  %3257 = vmatprep.subr.mxu0 0.0
  %3258 = vmatpush1.msra.mxu0 0.0
  %3259 = vmatprep.subr.mxu0 0.0
  %3260 = vmatpush1.msra.mxu0 0.0
  %3261 = vmatprep.subr.mxu0 0.0
  %3262 = vmatpush1.msra.mxu0 0.0
  %3263 = vmatprep.subr.mxu0 0.0
  %3264 = vmatpush1.msra.mxu0 0.0
  %3265 = vmatprep.subr.mxu0 0.0
  %3266 = vmatpush1.msra.mxu0 0.0
  %3267 = vmatprep.subr.mxu0 0.0
  %3268 = vmatpush1.msra.mxu0 0.0
  %3269 = vmatprep.subr.mxu0 0.0
  %3270 = vmatpush1.msra.mxu0 0.0
  %3271 = vmatprep.subr.mxu0 0.0
  %3272 = vmatpush1.msra.mxu0 0.0
  %3273 = vmatprep.subr.mxu0 0.0
  %3274 = vmatpush1.msra.mxu0 0.0
  %3275 = vmatprep.subr.mxu0 0.0
  %3276 = vmatpush1.msra.mxu0 0.0
  %3277 = vmatprep.subr.mxu0 0.0
  %3278 = vmatpush1.msra.mxu0 0.0
  %3279 = vmatprep.subr.mxu0 0.0
  %3280 = vmatpush1.msra.mxu0 0.0
  %3281 = vmatprep.subr.mxu0 %v2170
  %3282 = vmatpush1.msra.mxu0 %v2169
  %3283 = vmatprep.subr.mxu0 %v2166
  %3284 = vmatpush1.msra.mxu0 %v2165
  %3285 = vmatprep.subr.mxu0 0.0
  %3286 = vmatpush2.msra.mxu0 0.0
  %3287 = vmatprep.subr.mxu0 0.0
  %3288 = vmatpush2.msra.mxu0 0.0
  %3289 = vmatprep.subr.mxu0 0.0
  %3290 = vmatpush2.msra.mxu0 0.0
  %3291 = vmatprep.subr.mxu0 0.0
  %3292 = vmatpush2.msra.mxu0 0.0
  %3293 = vmatprep.subr.mxu0 0.0
  %3294 = vmatpush2.msra.mxu0 0.0
  %3295 = vmatprep.subr.mxu0 0.0
  %3296 = vmatpush2.msra.mxu0 0.0
  %3297 = vmatprep.subr.mxu0 0.0
  %3298 = vmatpush2.msra.mxu0 0.0
  %3299 = vmatprep.subr.mxu0 0.0
  %3300 = vmatpush2.msra.mxu0 0.0
  %3301 = vmatprep.subr.mxu0 0.0
  %3302 = vmatpush2.msra.mxu0 0.0
  %3303 = vmatprep.subr.mxu0 0.0
  %3304 = vmatpush2.msra.mxu0 0.0
  %3305 = vmatprep.subr.mxu0 0.0
  %3306 = vmatpush2.msra.mxu0 0.0
  %3307 = vmatprep.subr.mxu0 0.0
  %3308 = vmatpush2.msra.mxu0 0.0
  %3309 = vmatprep.subr.mxu0 0.0
  %3310 = vmatpush2.msra.mxu0 0.0
  %3311 = vmatprep.subr.mxu0 0.0
  %3312 = vmatpush2.msra.mxu0 0.0
  %3313 = vmatprep.subr.mxu0 0.0
  %3314 = vmatpush2.msra.mxu0 0.0
  %3315 = vmatprep.subr.mxu0 0.0
  %3316 = vmatpush2.msra.mxu0 0.0
  %3317 = vmatprep.mubr.f32.mxu0 0.0
  %3318 = vmatmul.mubr.f32.gmra.mxu0 %v3251
  %v3319 = vpop.f32.mrf.mxu0
  %v3320 = vadd.f32 0.0, %v3319
  %v3321 = vpop.f32.mrf.mxu0
  %v3322 = vadd.f32 0.0, %v3321
  %3323 = vdwg.mxu0
  %3324 = vmatprep.subr.mxu0 0.0
  %3325 = vmatpush1.msra.mxu0 0.0
  %3326 = vmatprep.subr.mxu0 0.0
  %3327 = vmatpush1.msra.mxu0 0.0
  %3328 = vmatprep.subr.mxu0 0.0
  %3329 = vmatpush1.msra.mxu0 0.0
  %3330 = vmatprep.subr.mxu0 0.0
  %3331 = vmatpush1.msra.mxu0 0.0
  %3332 = vmatprep.subr.mxu0 0.0
  %3333 = vmatpush1.msra.mxu0 0.0
  %3334 = vmatprep.subr.mxu0 0.0
  %3335 = vmatpush1.msra.mxu0 0.0
  %3336 = vmatprep.subr.mxu0 0.0
  %3337 = vmatpush1.msra.mxu0 0.0
  %3338 = vmatprep.subr.mxu0 0.0
  %3339 = vmatpush1.msra.mxu0 0.0
  %3340 = vmatprep.subr.mxu0 0.0
  %3341 = vmatpush1.msra.mxu0 0.0
  %3342 = vmatprep.subr.mxu0 0.0
  %3343 = vmatpush1.msra.mxu0 0.0
  %3344 = vmatprep.subr.mxu0 0.0
  %3345 = vmatpush1.msra.mxu0 0.0
  %3346 = vmatprep.subr.mxu0 0.0
  %3347 = vmatpush1.msra.mxu0 0.0
  %3348 = vmatprep.subr.mxu0 0.0
  %3349 = vmatpush1.msra.mxu0 0.0
  %3350 = vmatprep.subr.mxu0 0.0
  %3351 = vmatpush1.msra.mxu0 0.0
  %3352 = vmatprep.subr.mxu0 %v2172
  %3353 = vmatpush1.msra.mxu0 %v2171
  %3354 = vmatprep.subr.mxu0 %v2168
  %3355 = vmatpush1.msra.mxu0 %v2167
  %3356 = vmatprep.subr.mxu0 0.0
  %3357 = vmatpush2.msra.mxu0 0.0
  %3358 = vmatprep.subr.mxu0 0.0
  %3359 = vmatpush2.msra.mxu0 0.0
  %3360 = vmatprep.subr.mxu0 0.0
  %3361 = vmatpush2.msra.mxu0 0.0
  %3362 = vmatprep.subr.mxu0 0.0
  %3363 = vmatpush2.msra.mxu0 0.0
  %3364 = vmatprep.subr.mxu0 0.0
  %3365 = vmatpush2.msra.mxu0 0.0
  %3366 = vmatprep.subr.mxu0 0.0
  %3367 = vmatpush2.msra.mxu0 0.0
  %3368 = vmatprep.subr.mxu0 0.0
  %3369 = vmatpush2.msra.mxu0 0.0
  %3370 = vmatprep.subr.mxu0 0.0
  %3371 = vmatpush2.msra.mxu0 0.0
  %3372 = vmatprep.subr.mxu0 0.0
  %3373 = vmatpush2.msra.mxu0 0.0
  %3374 = vmatprep.subr.mxu0 0.0
  %3375 = vmatpush2.msra.mxu0 0.0
  %3376 = vmatprep.subr.mxu0 0.0
  %3377 = vmatpush2.msra.mxu0 0.0
  %3378 = vmatprep.subr.mxu0 0.0
  %3379 = vmatpush2.msra.mxu0 0.0
  %3380 = vmatprep.subr.mxu0 0.0
  %3381 = vmatpush2.msra.mxu0 0.0
  %3382 = vmatprep.subr.mxu0 0.0
  %3383 = vmatpush2.msra.mxu0 0.0
  %3384 = vmatprep.subr.mxu0 0.0
  %3385 = vmatpush2.msra.mxu0 0.0
  %3386 = vmatprep.subr.mxu0 0.0
  %3387 = vmatpush2.msra.mxu0 0.0
  %3388 = vmatprep.mubr.f32.mxu0 0.0
  %3389 = vmatmul.mubr.f32.gmra.mxu0 %v3251
  %v3390 = vpop.f32.mrf.mxu0
  %v3391 = vadd.f32 0.0, %v3390
  %v3392 = vpop.f32.mrf.mxu0
  %v3393 = vadd.f32 0.0, %v3392
  %3394 = vdwg.mxu0
  %v3395 = vadd.f32 %v3246, %v3320
  %v3396 = vadd.f32 %v3247, %v3322
  %v3397 = vadd.f32 %v3248, %v3391
  %v3398 = vadd.f32 %v3249, %v3393
  %v3399 = vxor.u32 %v3395, 2147483648
  %v3400 = vmul.f32 %v3399, 1.442695
  %v3401 = vpow.pop %v3400
  %v3402 = vadd.f32 %v3401, 1.0
  %v3403 = vrcp.pop %v3402
  %v3404 = vmul.f32 1.0, %v3403
  %v3405 = vxor.u32 %v3396, 2147483648
  %v3406 = vmul.f32 %v3405, 1.442695
  %v3407 = vpow.pop %v3406
  %v3408 = vadd.f32 %v3407, 1.0
  %v3409 = vrcp.pop %v3408
  %v3410 = vmul.f32 1.0, %v3409
  %v3411 = vtanh.pop %v3397
  %v3412 = vxor.u32 %v3398, 2147483648
  %v3413 = vmul.f32 %v3412, 1.442695
  %v3414 = vpow.pop %v3413
  %v3415 = vadd.f32 %v3414, 1.0
  %v3416 = vrcp.pop %v3415
  %v3417 = vmul.f32 1.0, %v3416
  %v3418 = vmul.f32 %v3410, %v3241
  %v3419 = vmul.f32 %v3404, %v3411
  %v3420 = vadd.f32 %v3418, %v3419
  %v3421 = vtanh.pop %v3420
  %v3422 = vmul.f32 %v3417, %v3421
  %s3423 = scalar_lea.vmem [#allocation4], 48
  %3424 = vst [vmem:[%s3423] sm:$0xff] %v3422
  %v3425 = vld [vmem:[%s1633] sm:$0xff]
  %v3426 = vld [vmem:[%s1633 + $0x8] sm:$0xff]
  %v3427 = vld [vmem:[%s1633 + $0x10] sm:$0xff]
  %v3428 = vld [vmem:[%s1633 + $0x18] sm:$0xff]
  %v3430 = vsel %vm2177, %v3422, 0
  %3432 = vmatprep.subr.mxu0 0.0
  %3433 = vmatpush1.msra.mxu0 0.0
  %3434 = vmatprep.subr.mxu0 0.0
  %3435 = vmatpush1.msra.mxu0 0.0
  %3436 = vmatprep.subr.mxu0 0.0
  %3437 = vmatpush1.msra.mxu0 0.0
  %3438 = vmatprep.subr.mxu0 0.0
  %3439 = vmatpush1.msra.mxu0 0.0
  %3440 = vmatprep.subr.mxu0 0.0
  %3441 = vmatpush1.msra.mxu0 0.0
  %3442 = vmatprep.subr.mxu0 0.0
  %3443 = vmatpush1.msra.mxu0 0.0
  %3444 = vmatprep.subr.mxu0 0.0
  %3445 = vmatpush1.msra.mxu0 0.0
  %3446 = vmatprep.subr.mxu0 0.0
  %3447 = vmatpush1.msra.mxu0 0.0
  %3448 = vmatprep.subr.mxu0 0.0
  %3449 = vmatpush1.msra.mxu0 0.0
  %3450 = vmatprep.subr.mxu0 0.0
  %3451 = vmatpush1.msra.mxu0 0.0
  %3452 = vmatprep.subr.mxu0 0.0
  %3453 = vmatpush1.msra.mxu0 0.0
  %3454 = vmatprep.subr.mxu0 0.0
  %3455 = vmatpush1.msra.mxu0 0.0
  %3456 = vmatprep.subr.mxu0 0.0
  %3457 = vmatpush1.msra.mxu0 0.0
  %3458 = vmatprep.subr.mxu0 0.0
  %3459 = vmatpush1.msra.mxu0 0.0
  %3460 = vmatprep.subr.mxu0 %v2170
  %3461 = vmatpush1.msra.mxu0 %v2169
  %3462 = vmatprep.subr.mxu0 %v2166
  %3463 = vmatpush1.msra.mxu0 %v2165
  %3464 = vmatprep.subr.mxu0 0.0
  %3465 = vmatpush2.msra.mxu0 0.0
  %3466 = vmatprep.subr.mxu0 0.0
  %3467 = vmatpush2.msra.mxu0 0.0
  %3468 = vmatprep.subr.mxu0 0.0
  %3469 = vmatpush2.msra.mxu0 0.0
  %3470 = vmatprep.subr.mxu0 0.0
  %3471 = vmatpush2.msra.mxu0 0.0
  %3472 = vmatprep.subr.mxu0 0.0
  %3473 = vmatpush2.msra.mxu0 0.0
  %3474 = vmatprep.subr.mxu0 0.0
  %3475 = vmatpush2.msra.mxu0 0.0
  %3476 = vmatprep.subr.mxu0 0.0
  %3477 = vmatpush2.msra.mxu0 0.0
  %3478 = vmatprep.subr.mxu0 0.0
  %3479 = vmatpush2.msra.mxu0 0.0
  %3480 = vmatprep.subr.mxu0 0.0
  %3481 = vmatpush2.msra.mxu0 0.0
  %3482 = vmatprep.subr.mxu0 0.0
  %3483 = vmatpush2.msra.mxu0 0.0
  %3484 = vmatprep.subr.mxu0 0.0
  %3485 = vmatpush2.msra.mxu0 0.0
  %3486 = vmatprep.subr.mxu0 0.0
  %3487 = vmatpush2.msra.mxu0 0.0
  %3488 = vmatprep.subr.mxu0 0.0
  %3489 = vmatpush2.msra.mxu0 0.0
  %3490 = vmatprep.subr.mxu0 0.0
  %3491 = vmatpush2.msra.mxu0 0.0
  %3492 = vmatprep.subr.mxu0 0.0
  %3493 = vmatpush2.msra.mxu0 0.0
  %3494 = vmatprep.subr.mxu0 0.0
  %3495 = vmatpush2.msra.mxu0 0.0
  %3496 = vmatprep.mubr.f32.mxu0 0.0
  %3497 = vmatmul.mubr.f32.gmra.mxu0 %v3430
  %v3498 = vpop.f32.mrf.mxu0
  %v3499 = vadd.f32 0.0, %v3498
  %v3500 = vpop.f32.mrf.mxu0
  %v3501 = vadd.f32 0.0, %v3500
  %3502 = vdwg.mxu0
  %3503 = vmatprep.subr.mxu0 0.0
  %3504 = vmatpush1.msra.mxu0 0.0
  %3505 = vmatprep.subr.mxu0 0.0
  %3506 = vmatpush1.msra.mxu0 0.0
  %3507 = vmatprep.subr.mxu0 0.0
  %3508 = vmatpush1.msra.mxu0 0.0
  %3509 = vmatprep.subr.mxu0 0.0
  %3510 = vmatpush1.msra.mxu0 0.0
  %3511 = vmatprep.subr.mxu0 0.0
  %3512 = vmatpush1.msra.mxu0 0.0
  %3513 = vmatprep.subr.mxu0 0.0
  %3514 = vmatpush1.msra.mxu0 0.0
  %3515 = vmatprep.subr.mxu0 0.0
  %3516 = vmatpush1.msra.mxu0 0.0
  %3517 = vmatprep.subr.mxu0 0.0
  %3518 = vmatpush1.msra.mxu0 0.0
  %3519 = vmatprep.subr.mxu0 0.0
  %3520 = vmatpush1.msra.mxu0 0.0
  %3521 = vmatprep.subr.mxu0 0.0
  %3522 = vmatpush1.msra.mxu0 0.0
  %3523 = vmatprep.subr.mxu0 0.0
  %3524 = vmatpush1.msra.mxu0 0.0
  %3525 = vmatprep.subr.mxu0 0.0
  %3526 = vmatpush1.msra.mxu0 0.0
  %3527 = vmatprep.subr.mxu0 0.0
  %3528 = vmatpush1.msra.mxu0 0.0
  %3529 = vmatprep.subr.mxu0 0.0
  %3530 = vmatpush1.msra.mxu0 0.0
  %3531 = vmatprep.subr.mxu0 %v2172
  %3532 = vmatpush1.msra.mxu0 %v2171
  %3533 = vmatprep.subr.mxu0 %v2168
  %3534 = vmatpush1.msra.mxu0 %v2167
  %3535 = vmatprep.subr.mxu0 0.0
  %3536 = vmatpush2.msra.mxu0 0.0
  %3537 = vmatprep.subr.mxu0 0.0
  %3538 = vmatpush2.msra.mxu0 0.0
  %3539 = vmatprep.subr.mxu0 0.0
  %3540 = vmatpush2.msra.mxu0 0.0
  %3541 = vmatprep.subr.mxu0 0.0
  %3542 = vmatpush2.msra.mxu0 0.0
  %3543 = vmatprep.subr.mxu0 0.0
  %3544 = vmatpush2.msra.mxu0 0.0
  %3545 = vmatprep.subr.mxu0 0.0
  %3546 = vmatpush2.msra.mxu0 0.0
  %3547 = vmatprep.subr.mxu0 0.0
  %3548 = vmatpush2.msra.mxu0 0.0
  %3549 = vmatprep.subr.mxu0 0.0
  %3550 = vmatpush2.msra.mxu0 0.0
  %3551 = vmatprep.subr.mxu0 0.0
  %3552 = vmatpush2.msra.mxu0 0.0
  %3553 = vmatprep.subr.mxu0 0.0
  %3554 = vmatpush2.msra.mxu0 0.0
  %3555 = vmatprep.subr.mxu0 0.0
  %3556 = vmatpush2.msra.mxu0 0.0
  %3557 = vmatprep.subr.mxu0 0.0
  %3558 = vmatpush2.msra.mxu0 0.0
  %3559 = vmatprep.subr.mxu0 0.0
  %3560 = vmatpush2.msra.mxu0 0.0
  %3561 = vmatprep.subr.mxu0 0.0
  %3562 = vmatpush2.msra.mxu0 0.0
  %3563 = vmatprep.subr.mxu0 0.0
  %3564 = vmatpush2.msra.mxu0 0.0
  %3565 = vmatprep.subr.mxu0 0.0
  %3566 = vmatpush2.msra.mxu0 0.0
  %3567 = vmatprep.mubr.f32.mxu0 0.0
  %3568 = vmatmul.mubr.f32.gmra.mxu0 %v3430
  %v3569 = vpop.f32.mrf.mxu0
  %v3570 = vadd.f32 0.0, %v3569
  %v3571 = vpop.f32.mrf.mxu0
  %v3572 = vadd.f32 0.0, %v3571
  %3573 = vdwg.mxu0
  %v3574 = vadd.f32 %v3425, %v3499
  %v3575 = vadd.f32 %v3426, %v3501
  %v3576 = vadd.f32 %v3427, %v3570
  %v3577 = vadd.f32 %v3428, %v3572
  %v3578 = vxor.u32 %v3574, 2147483648
  %v3579 = vmul.f32 %v3578, 1.442695
  %v3580 = vpow.pop %v3579
  %v3581 = vadd.f32 %v3580, 1.0
  %v3582 = vrcp.pop %v3581
  %v3583 = vmul.f32 1.0, %v3582
  %v3584 = vxor.u32 %v3575, 2147483648
  %v3585 = vmul.f32 %v3584, 1.442695
  %v3586 = vpow.pop %v3585
  %v3587 = vadd.f32 %v3586, 1.0
  %v3588 = vrcp.pop %v3587
  %v3589 = vmul.f32 1.0, %v3588
  %v3590 = vtanh.pop %v3576
  %v3591 = vxor.u32 %v3577, 2147483648
  %v3592 = vmul.f32 %v3591, 1.442695
  %v3593 = vpow.pop %v3592
  %v3594 = vadd.f32 %v3593, 1.0
  %v3595 = vrcp.pop %v3594
  %v3596 = vmul.f32 1.0, %v3595
  %v3597 = vmul.f32 %v3589, %v3420
  %v3598 = vmul.f32 %v3583, %v3590
  %v3599 = vadd.f32 %v3597, %v3598
  %v3600 = vtanh.pop %v3599
  %v3601 = vmul.f32 %v3596, %v3600
  %s3602 = scalar_lea.vmem [#allocation4], 56
  %3603 = vst [vmem:[%s3602] sm:$0xff] %v3601
  %v3604 = vld [vmem:[#allocation4] sm:$0xff]
  %v3605 = vld [vmem:[#allocation4 + $0x8] sm:$0xff]
  %v3606 = vld [vmem:[#allocation4 + $0x10] sm:$0xff]
  %v3607 = vld [vmem:[#allocation4 + $0x18] sm:$0xff]
  %v3608 = vld [vmem:[#allocation4 + $0x20] sm:$0xff]
  %v3609 = vld [vmem:[#allocation4 + $0x28] sm:$0xff]
  %v3610 = vld [vmem:[#allocation4 + $0x30] sm:$0xff]
  %v3611 = vld [vmem:[#allocation4 + $0x38] sm:$0xff]
  %v3612 = vld [vmem:[%s7] sm:$0xff]
  %v3613 = vld [vmem:[%s7 + $0x8] sm:$0xff]
  %v3614 = vld [vmem:[%s7 + $0x10] sm:$0xff]
  %v3615 = vld [vmem:[%s7 + $0x18] sm:$0xff]
  %v3616 = vld [vmem:[%s7 + $0x20] sm:$0xff]
  %v3617 = vld [vmem:[%s7 + $0x28] sm:$0xff]
  %v3618 = vld [vmem:[%s7 + $0x30] sm:$0xff]
  %v3619 = vld [vmem:[%s7 + $0x38] sm:$0xff]
  %v3620 = vld [vmem:[%s7 + $0x40] sm:$0xff]
  %v3621 = vld [vmem:[%s7 + $0x48] sm:$0xff]
  %v3622 = vld [vmem:[%s7 + $0x50] sm:$0xff]
  %v3623 = vld [vmem:[%s7 + $0x58] sm:$0xff]
  %v3624 = vld [vmem:[%s7 + $0x60] sm:$0xff]
  %v3625 = vld [vmem:[%s7 + $0x68] sm:$0xff]
  %v3626 = vld [vmem:[%s7 + $0x70] sm:$0xff]
  %v3627 = vld [vmem:[%s7 + $0x78] sm:$0xff]
  %v3628 = vld [vmem:[%s7 + $0x80] sm:$0xff]
  %v3629 = vld [vmem:[%s7 + $0x88] sm:$0xff]
  %v3630 = vld [vmem:[%s7 + $0x90] sm:$0xff]
  %v3631 = vld [vmem:[%s7 + $0x98] sm:$0xff]
  %v3632 = vld [vmem:[%s7 + $0xa0] sm:$0xff]
  %v3633 = vld [vmem:[%s7 + $0xa8] sm:$0xff]
  %v3634 = vld [vmem:[%s7 + $0xb0] sm:$0xff]
  %v3635 = vld [vmem:[%s7 + $0xb8] sm:$0xff]
  %v3636 = vld [vmem:[%s7 + $0xc0] sm:$0xff]
  %v3637 = vld [vmem:[%s7 + $0xc8] sm:$0xff]
  %v3638 = vld [vmem:[%s7 + $0xd0] sm:$0xff]
  %v3639 = vld [vmem:[%s7 + $0xd8] sm:$0xff]
  %v3640 = vld [vmem:[%s7 + $0xe0] sm:$0xff]
  %v3641 = vld [vmem:[%s7 + $0xe8] sm:$0xff]
  %v3642 = vld [vmem:[%s7 + $0xf0] sm:$0xff]
  %v3643 = vld [vmem:[%s7 + $0xf8] sm:$0xff]
  %v3644 = vld [vmem:[%s7 + $0x100] sm:$0xff]
  %v3645 = vld [vmem:[%s7 + $0x108] sm:$0xff]
  %v3646 = vld [vmem:[%s7 + $0x110] sm:$0xff]
  %v3647 = vld [vmem:[%s7 + $0x118] sm:$0xff]
  %v3648 = vld [vmem:[%s7 + $0x120] sm:$0xff]
  %v3649 = vld [vmem:[%s7 + $0x128] sm:$0xff]
  %v3650 = vld [vmem:[%s7 + $0x130] sm:$0xff]
  %v3651 = vld [vmem:[%s7 + $0x138] sm:$0xff]
  %v3652 = vld [vmem:[%s7 + $0x140] sm:$0xff]
  %v3653 = vld [vmem:[%s7 + $0x148] sm:$0xff]
  %v3654 = vld [vmem:[%s7 + $0x150] sm:$0xff]
  %v3655 = vld [vmem:[%s7 + $0x158] sm:$0xff]
  %v3656 = vld [vmem:[%s7 + $0x160] sm:$0xff]
  %v3657 = vld [vmem:[%s7 + $0x168] sm:$0xff]
  %v3658 = vld [vmem:[%s7 + $0x170] sm:$0xff]
  %v3659 = vld [vmem:[%s7 + $0x178] sm:$0xff]
  %v3660 = vld [vmem:[%s7 + $0x180] sm:$0xff]
  %v3661 = vld [vmem:[%s7 + $0x188] sm:$0xff]
  %v3662 = vld [vmem:[%s7 + $0x190] sm:$0xff]
  %v3663 = vld [vmem:[%s7 + $0x198] sm:$0xff]
  %v3664 = vld [vmem:[%s7 + $0x1a0] sm:$0xff]
  %v3665 = vld [vmem:[%s7 + $0x1a8] sm:$0xff]
  %v3666 = vld [vmem:[%s7 + $0x1b0] sm:$0xff]
  %v3667 = vld [vmem:[%s7 + $0x1b8] sm:$0xff]
  %v3668 = vld [vmem:[%s7 + $0x1c0] sm:$0xff]
  %v3669 = vld [vmem:[%s7 + $0x1c8] sm:$0xff]
  %v3670 = vld [vmem:[%s7 + $0x1d0] sm:$0xff]
  %v3671 = vld [vmem:[%s7 + $0x1d8] sm:$0xff]
  %v3672 = vld [vmem:[%s7 + $0x1e0] sm:$0xff]
  %v3673 = vld [vmem:[%s7 + $0x1e8] sm:$0xff]
  %v3674 = vld [vmem:[%s7 + $0x1f0] sm:$0xff]
  %v3675 = vld [vmem:[%s7 + $0x1f8] sm:$0xff]
  %v3676 = vld [vmem:[%s9] sm:$0xf]
  %v3678 = vlaneseq
  %v3679 = vshrl.u32 %v3678, 7
  %v3680 = vsub.s32 0, %v3679
  %v3681 = vrot.slane %v3676, %v3680
  %v3682 = vlaneseq
  %v3683 = vshrl.u32 %v3682, 7
  %v3684 = vsub.s32 1, %v3683
  %v3685 = vrot.slane %v3676, %v3684
  %v3686 = vlaneseq
  %v3687 = vshrl.u32 %v3686, 7
  %v3688 = vsub.s32 2, %v3687
  %v3689 = vrot.slane %v3676, %v3688
  %v3690 = vlaneseq
  %v3691 = vshrl.u32 %v3690, 7
  %v3692 = vsub.s32 3, %v3691
  %v3693 = vrot.slane %v3676, %v3692
  %3698 = vmatprep.subr.mxu0 %v3673
  %3699 = vmatpush1.msra.mxu0 %v3672
  %3700 = vmatprep.subr.mxu0 %v3669
  %3701 = vmatpush1.msra.mxu0 %v3668
  %3702 = vmatprep.subr.mxu0 %v3665
  %3703 = vmatpush1.msra.mxu0 %v3664
  %3704 = vmatprep.subr.mxu0 %v3661
  %3705 = vmatpush1.msra.mxu0 %v3660
  %3706 = vmatprep.subr.mxu0 %v3657
  %3707 = vmatpush1.msra.mxu0 %v3656
  %3708 = vmatprep.subr.mxu0 %v3653
  %3709 = vmatpush1.msra.mxu0 %v3652
  %3710 = vmatprep.subr.mxu0 %v3649
  %3711 = vmatpush1.msra.mxu0 %v3648
  %3712 = vmatprep.subr.mxu0 %v3645
  %3713 = vmatpush1.msra.mxu0 %v3644
  %3714 = vmatprep.subr.mxu0 %v3641
  %3715 = vmatpush1.msra.mxu0 %v3640
  %3716 = vmatprep.subr.mxu0 %v3637
  %3717 = vmatpush1.msra.mxu0 %v3636
  %3718 = vmatprep.subr.mxu0 %v3633
  %3719 = vmatpush1.msra.mxu0 %v3632
  %3720 = vmatprep.subr.mxu0 %v3629
  %3721 = vmatpush1.msra.mxu0 %v3628
  %3722 = vmatprep.subr.mxu0 %v3625
  %3723 = vmatpush1.msra.mxu0 %v3624
  %3724 = vmatprep.subr.mxu0 %v3621
  %3725 = vmatpush1.msra.mxu0 %v3620
  %3726 = vmatprep.subr.mxu0 %v3617
  %3727 = vmatpush1.msra.mxu0 %v3616
  %3728 = vmatprep.subr.mxu0 %v3613
  %3729 = vmatpush1.msra.mxu0 %v3612
  %3730 = vmatprep.subr.mxu0 0.0
  %3731 = vmatpush2.msra.mxu0 0.0
  %3732 = vmatprep.subr.mxu0 0.0
  %3733 = vmatpush2.msra.mxu0 0.0
  %3734 = vmatprep.subr.mxu0 0.0
  %3735 = vmatpush2.msra.mxu0 0.0
  %3736 = vmatprep.subr.mxu0 0.0
  %3737 = vmatpush2.msra.mxu0 0.0
  %3738 = vmatprep.subr.mxu0 0.0
  %3739 = vmatpush2.msra.mxu0 0.0
  %3740 = vmatprep.subr.mxu0 0.0
  %3741 = vmatpush2.msra.mxu0 0.0
  %3742 = vmatprep.subr.mxu0 0.0
  %3743 = vmatpush2.msra.mxu0 0.0
  %3744 = vmatprep.subr.mxu0 0.0
  %3745 = vmatpush2.msra.mxu0 0.0
  %3746 = vmatprep.subr.mxu0 0.0
  %3747 = vmatpush2.msra.mxu0 0.0
  %3748 = vmatprep.subr.mxu0 0.0
  %3749 = vmatpush2.msra.mxu0 0.0
  %3750 = vmatprep.subr.mxu0 0.0
  %3751 = vmatpush2.msra.mxu0 0.0
  %3752 = vmatprep.subr.mxu0 0.0
  %3753 = vmatpush2.msra.mxu0 0.0
  %3754 = vmatprep.subr.mxu0 0.0
  %3755 = vmatpush2.msra.mxu0 0.0
  %3756 = vmatprep.subr.mxu0 0.0
  %3757 = vmatpush2.msra.mxu0 0.0
  %3758 = vmatprep.subr.mxu0 0.0
  %3759 = vmatpush2.msra.mxu0 0.0
  %3760 = vmatprep.subr.mxu0 0.0
  %3761 = vmatpush2.msra.mxu0 0.0
  %3762 = vmatprep.mubr.f32.mxu0 0.0
  %3763 = vmatmul.mubr.f32.gmra.mxu0 %v3604
  %v3764 = vpop.f32.mrf.mxu0
  %v3765 = vadd.f32 %v3681, %v3764
  %v3766 = vpop.f32.mrf.mxu0
  %v3767 = vadd.f32 %v3685, %v3766
  %3768 = vmatprep.mubr.f32.mxu0 0.0
  %3769 = vmatmul.mubr.f32.gmra.mxu0 %v3605
  %v3770 = vpop.f32.mrf.mxu0
  %v3771 = vadd.f32 %v3681, %v3770
  %v3772 = vpop.f32.mrf.mxu0
  %v3773 = vadd.f32 %v3685, %v3772
  %3774 = vmatprep.mubr.f32.mxu0 0.0
  %3775 = vmatmul.mubr.f32.gmra.mxu0 %v3606
  %v3776 = vpop.f32.mrf.mxu0
  %v3777 = vadd.f32 %v3681, %v3776
  %v3778 = vpop.f32.mrf.mxu0
  %v3779 = vadd.f32 %v3685, %v3778
  %3780 = vmatprep.mubr.f32.mxu0 0.0
  %3781 = vmatmul.mubr.f32.gmra.mxu0 %v3607
  %v3782 = vpop.f32.mrf.mxu0
  %v3783 = vadd.f32 %v3681, %v3782
  %v3784 = vpop.f32.mrf.mxu0
  %v3785 = vadd.f32 %v3685, %v3784
  %3786 = vmatprep.mubr.f32.mxu0 0.0
  %3787 = vmatmul.mubr.f32.gmra.mxu0 %v3608
  %v3788 = vpop.f32.mrf.mxu0
  %v3789 = vadd.f32 %v3681, %v3788
  %v3790 = vpop.f32.mrf.mxu0
  %v3791 = vadd.f32 %v3685, %v3790
  %3792 = vmatprep.mubr.f32.mxu0 0.0
  %3793 = vmatmul.mubr.f32.gmra.mxu0 %v3609
  %v3794 = vpop.f32.mrf.mxu0
  %v3795 = vadd.f32 %v3681, %v3794
  %v3796 = vpop.f32.mrf.mxu0
  %v3797 = vadd.f32 %v3685, %v3796
  %3798 = vmatprep.mubr.f32.mxu0 0.0
  %3799 = vmatmul.mubr.f32.gmra.mxu0 %v3610
  %v3800 = vpop.f32.mrf.mxu0
  %v3801 = vadd.f32 %v3681, %v3800
  %v3802 = vpop.f32.mrf.mxu0
  %v3803 = vadd.f32 %v3685, %v3802
  %3804 = vmatprep.mubr.f32.mxu0 0.0
  %3805 = vmatmul.mubr.f32.gmra.mxu0 %v3611
  %v3806 = vpop.f32.mrf.mxu0
  %v3807 = vadd.f32 %v3681, %v3806
  %v3808 = vpop.f32.mrf.mxu0
  %v3809 = vadd.f32 %v3685, %v3808
  %3810 = vdwg.mxu0
  %3811 = vmatprep.subr.mxu0 %v3675
  %3812 = vmatpush1.msra.mxu0 %v3674
  %3813 = vmatprep.subr.mxu0 %v3671
  %3814 = vmatpush1.msra.mxu0 %v3670
  %3815 = vmatprep.subr.mxu0 %v3667
  %3816 = vmatpush1.msra.mxu0 %v3666
  %3817 = vmatprep.subr.mxu0 %v3663
  %3818 = vmatpush1.msra.mxu0 %v3662
  %3819 = vmatprep.subr.mxu0 %v3659
  %3820 = vmatpush1.msra.mxu0 %v3658
  %3821 = vmatprep.subr.mxu0 %v3655
  %3822 = vmatpush1.msra.mxu0 %v3654
  %3823 = vmatprep.subr.mxu0 %v3651
  %3824 = vmatpush1.msra.mxu0 %v3650
  %3825 = vmatprep.subr.mxu0 %v3647
  %3826 = vmatpush1.msra.mxu0 %v3646
  %3827 = vmatprep.subr.mxu0 %v3643
  %3828 = vmatpush1.msra.mxu0 %v3642
  %3829 = vmatprep.subr.mxu0 %v3639
  %3830 = vmatpush1.msra.mxu0 %v3638
  %3831 = vmatprep.subr.mxu0 %v3635
  %3832 = vmatpush1.msra.mxu0 %v3634
  %3833 = vmatprep.subr.mxu0 %v3631
  %3834 = vmatpush1.msra.mxu0 %v3630
  %3835 = vmatprep.subr.mxu0 %v3627
  %3836 = vmatpush1.msra.mxu0 %v3626
  %3837 = vmatprep.subr.mxu0 %v3623
  %3838 = vmatpush1.msra.mxu0 %v3622
  %3839 = vmatprep.subr.mxu0 %v3619
  %3840 = vmatpush1.msra.mxu0 %v3618
  %3841 = vmatprep.subr.mxu0 %v3615
  %3842 = vmatpush1.msra.mxu0 %v3614
  %3843 = vmatprep.subr.mxu0 0.0
  %3844 = vmatpush2.msra.mxu0 0.0
  %3845 = vmatprep.subr.mxu0 0.0
  %3846 = vmatpush2.msra.mxu0 0.0
  %3847 = vmatprep.subr.mxu0 0.0
  %3848 = vmatpush2.msra.mxu0 0.0
  %3849 = vmatprep.subr.mxu0 0.0
  %3850 = vmatpush2.msra.mxu0 0.0
  %3851 = vmatprep.subr.mxu0 0.0
  %3852 = vmatpush2.msra.mxu0 0.0
  %3853 = vmatprep.subr.mxu0 0.0
  %3854 = vmatpush2.msra.mxu0 0.0
  %3855 = vmatprep.subr.mxu0 0.0
  %3856 = vmatpush2.msra.mxu0 0.0
  %3857 = vmatprep.subr.mxu0 0.0
  %3858 = vmatpush2.msra.mxu0 0.0
  %3859 = vmatprep.subr.mxu0 0.0
  %3860 = vmatpush2.msra.mxu0 0.0
  %3861 = vmatprep.subr.mxu0 0.0
  %3862 = vmatpush2.msra.mxu0 0.0
  %3863 = vmatprep.subr.mxu0 0.0
  %3864 = vmatpush2.msra.mxu0 0.0
  %3865 = vmatprep.subr.mxu0 0.0
  %3866 = vmatpush2.msra.mxu0 0.0
  %3867 = vmatprep.subr.mxu0 0.0
  %3868 = vmatpush2.msra.mxu0 0.0
  %3869 = vmatprep.subr.mxu0 0.0
  %3870 = vmatpush2.msra.mxu0 0.0
  %3871 = vmatprep.subr.mxu0 0.0
  %3872 = vmatpush2.msra.mxu0 0.0
  %3873 = vmatprep.subr.mxu0 0.0
  %3874 = vmatpush2.msra.mxu0 0.0
  %3875 = vmatprep.mubr.f32.mxu0 0.0
  %3876 = vmatmul.mubr.f32.gmra.mxu0 %v3604
  %v3877 = vpop.f32.mrf.mxu0
  %v3878 = vadd.f32 %v3689, %v3877
  %v3879 = vpop.f32.mrf.mxu0
  %v3880 = vadd.f32 %v3693, %v3879
  %3881 = vmatprep.mubr.f32.mxu0 0.0
  %3882 = vmatmul.mubr.f32.gmra.mxu0 %v3605
  %v3883 = vpop.f32.mrf.mxu0
  %v3884 = vadd.f32 %v3689, %v3883
  %v3885 = vpop.f32.mrf.mxu0
  %v3886 = vadd.f32 %v3693, %v3885
  %3887 = vmatprep.mubr.f32.mxu0 0.0
  %3888 = vmatmul.mubr.f32.gmra.mxu0 %v3606
  %v3889 = vpop.f32.mrf.mxu0
  %v3890 = vadd.f32 %v3689, %v3889
  %v3891 = vpop.f32.mrf.mxu0
  %v3892 = vadd.f32 %v3693, %v3891
  %3893 = vmatprep.mubr.f32.mxu0 0.0
  %3894 = vmatmul.mubr.f32.gmra.mxu0 %v3607
  %v3895 = vpop.f32.mrf.mxu0
  %v3896 = vadd.f32 %v3689, %v3895
  %v3897 = vpop.f32.mrf.mxu0
  %v3898 = vadd.f32 %v3693, %v3897
  %3899 = vmatprep.mubr.f32.mxu0 0.0
  %3900 = vmatmul.mubr.f32.gmra.mxu0 %v3608
  %v3901 = vpop.f32.mrf.mxu0
  %v3902 = vadd.f32 %v3689, %v3901
  %v3903 = vpop.f32.mrf.mxu0
  %v3904 = vadd.f32 %v3693, %v3903
  %3905 = vmatprep.mubr.f32.mxu0 0.0
  %3906 = vmatmul.mubr.f32.gmra.mxu0 %v3609
  %v3907 = vpop.f32.mrf.mxu0
  %v3908 = vadd.f32 %v3689, %v3907
  %v3909 = vpop.f32.mrf.mxu0
  %v3910 = vadd.f32 %v3693, %v3909
  %3911 = vmatprep.mubr.f32.mxu0 0.0
  %3912 = vmatmul.mubr.f32.gmra.mxu0 %v3610
  %v3913 = vpop.f32.mrf.mxu0
  %v3914 = vadd.f32 %v3689, %v3913
  %v3915 = vpop.f32.mrf.mxu0
  %v3916 = vadd.f32 %v3693, %v3915
  %3917 = vmatprep.mubr.f32.mxu0 0.0
  %3918 = vmatmul.mubr.f32.gmra.mxu0 %v3611
  %v3919 = vpop.f32.mrf.mxu0
  %v3920 = vadd.f32 %v3689, %v3919
  %v3921 = vpop.f32.mrf.mxu0
  %v3922 = vadd.f32 %v3693, %v3921
  %3923 = vdwg.mxu0
  %3924 = vst [vmem:[#allocation2] sm:$0xff] %v3765
  %3925 = vst [vmem:[#allocation2 + $0x8] sm:$0xff] %v3767
  %3926 = vst [vmem:[#allocation2 + $0x10] sm:$0xff] %v3878
  %3927 = vst [vmem:[#allocation2 + $0x18] sm:$0xff] %v3880
  %3928 = vst [vmem:[#allocation2 + $0x20] sm:$0xff] %v3771
  %3929 = vst [vmem:[#allocation2 + $0x28] sm:$0xff] %v3773
  %3930 = vst [vmem:[#allocation2 + $0x30] sm:$0xff] %v3884
  %3931 = vst [vmem:[#allocation2 + $0x38] sm:$0xff] %v3886
  %3932 = vst [vmem:[#allocation2 + $0x40] sm:$0xff] %v3777
  %3933 = vst [vmem:[#allocation2 + $0x48] sm:$0xff] %v3779
  %3934 = vst [vmem:[#allocation2 + $0x50] sm:$0xff] %v3890
  %3935 = vst [vmem:[#allocation2 + $0x58] sm:$0xff] %v3892
  %3936 = vst [vmem:[#allocation2 + $0x60] sm:$0xff] %v3783
  %3937 = vst [vmem:[#allocation2 + $0x68] sm:$0xff] %v3785
  %3938 = vst [vmem:[#allocation2 + $0x70] sm:$0xff] %v3896
  %3939 = vst [vmem:[#allocation2 + $0x78] sm:$0xff] %v3898
  %3940 = vst [vmem:[#allocation2 + $0x80] sm:$0xff] %v3789
  %3941 = vst [vmem:[#allocation2 + $0x88] sm:$0xff] %v3791
  %3942 = vst [vmem:[#allocation2 + $0x90] sm:$0xff] %v3902
  %3943 = vst [vmem:[#allocation2 + $0x98] sm:$0xff] %v3904
  %3944 = vst [vmem:[#allocation2 + $0xa0] sm:$0xff] %v3795
  %3945 = vst [vmem:[#allocation2 + $0xa8] sm:$0xff] %v3797
  %3946 = vst [vmem:[#allocation2 + $0xb0] sm:$0xff] %v3908
  %3947 = vst [vmem:[#allocation2 + $0xb8] sm:$0xff] %v3910
  %3948 = vst [vmem:[#allocation2 + $0xc0] sm:$0xff] %v3801
  %3949 = vst [vmem:[#allocation2 + $0xc8] sm:$0xff] %v3803
  %3950 = vst [vmem:[#allocation2 + $0xd0] sm:$0xff] %v3914
  %3951 = vst [vmem:[#allocation2 + $0xd8] sm:$0xff] %v3916
  %3952 = vst [vmem:[#allocation2 + $0xe0] sm:$0xff] %v3807
  %3953 = vst [vmem:[#allocation2 + $0xe8] sm:$0xff] %v3809
  %3954 = vst [vmem:[#allocation2 + $0xf0] sm:$0xff] %v3920
  %3955 = vst [vmem:[#allocation2 + $0xf8] sm:$0xff] %v3922
  %v3956 = vld [vmem:[%s8] sm:$0xff]
  %v3957 = vld [vmem:[%s8 + $0x8] sm:$0xff]
  %v3958 = vld [vmem:[%s8 + $0x10] sm:$0xff]
  %v3959 = vld [vmem:[%s8 + $0x18] sm:$0xff]
  %v3960 = vld [vmem:[#allocation2] sm:$0xff]
  %v3961 = vld [vmem:[#allocation2 + $0x8] sm:$0xff]
  %v3962 = vld [vmem:[#allocation2 + $0x10] sm:$0xff]
  %v3963 = vld [vmem:[#allocation2 + $0x18] sm:$0xff]
  %v3964 = vsel %vm75, 0.0, 0
  %3966 = vmatprep.subr.mxu0 0.0
  %3967 = vmatpush1.msra.mxu0 0.0
  %3968 = vmatprep.subr.mxu0 0.0
  %3969 = vmatpush1.msra.mxu0 0.0
  %3970 = vmatprep.subr.mxu0 0.0
  %3971 = vmatpush1.msra.mxu0 0.0
  %3972 = vmatprep.subr.mxu0 0.0
  %3973 = vmatpush1.msra.mxu0 0.0
  %3974 = vmatprep.subr.mxu0 0.0
  %3975 = vmatpush1.msra.mxu0 0.0
  %3976 = vmatprep.subr.mxu0 0.0
  %3977 = vmatpush1.msra.mxu0 0.0
  %3978 = vmatprep.subr.mxu0 0.0
  %3979 = vmatpush1.msra.mxu0 0.0
  %3980 = vmatprep.subr.mxu0 0.0
  %3981 = vmatpush1.msra.mxu0 0.0
  %3982 = vmatprep.subr.mxu0 0.0
  %3983 = vmatpush1.msra.mxu0 0.0
  %3984 = vmatprep.subr.mxu0 0.0
  %3985 = vmatpush1.msra.mxu0 0.0
  %3986 = vmatprep.subr.mxu0 0.0
  %3987 = vmatpush1.msra.mxu0 0.0
  %3988 = vmatprep.subr.mxu0 0.0
  %3989 = vmatpush1.msra.mxu0 0.0
  %3990 = vmatprep.subr.mxu0 0.0
  %3991 = vmatpush1.msra.mxu0 0.0
  %3992 = vmatprep.subr.mxu0 0.0
  %3993 = vmatpush1.msra.mxu0 0.0
  %3994 = vmatprep.subr.mxu0 0.0
  %3995 = vmatpush1.msra.mxu0 0.0
  %3996 = vmatprep.subr.mxu0 %v3957
  %3997 = vmatpush1.msra.mxu0 %v3956
  %3998 = vmatprep.subr.mxu0 0.0
  %3999 = vmatpush2.msra.mxu0 0.0
  %4000 = vmatprep.subr.mxu0 0.0
  %4001 = vmatpush2.msra.mxu0 0.0
  %4002 = vmatprep.subr.mxu0 0.0
  %4003 = vmatpush2.msra.mxu0 0.0
  %4004 = vmatprep.subr.mxu0 0.0
  %4005 = vmatpush2.msra.mxu0 0.0
  %4006 = vmatprep.subr.mxu0 0.0
  %4007 = vmatpush2.msra.mxu0 0.0
  %4008 = vmatprep.subr.mxu0 0.0
  %4009 = vmatpush2.msra.mxu0 0.0
  %4010 = vmatprep.subr.mxu0 0.0
  %4011 = vmatpush2.msra.mxu0 0.0
  %4012 = vmatprep.subr.mxu0 0.0
  %4013 = vmatpush2.msra.mxu0 0.0
  %4014 = vmatprep.subr.mxu0 0.0
  %4015 = vmatpush2.msra.mxu0 0.0
  %4016 = vmatprep.subr.mxu0 0.0
  %4017 = vmatpush2.msra.mxu0 0.0
  %4018 = vmatprep.subr.mxu0 0.0
  %4019 = vmatpush2.msra.mxu0 0.0
  %4020 = vmatprep.subr.mxu0 0.0
  %4021 = vmatpush2.msra.mxu0 0.0
  %4022 = vmatprep.subr.mxu0 0.0
  %4023 = vmatpush2.msra.mxu0 0.0
  %4024 = vmatprep.subr.mxu0 0.0
  %4025 = vmatpush2.msra.mxu0 0.0
  %4026 = vmatprep.subr.mxu0 0.0
  %4027 = vmatpush2.msra.mxu0 0.0
  %4028 = vmatprep.subr.mxu0 0.0
  %4029 = vmatpush2.msra.mxu0 0.0
  %4030 = vmatprep.mubr.f32.mxu0 0.0
  %4031 = vmatmul.mubr.f32.gmra.mxu0 %v3964
  %v4032 = vpop.f32.mrf.mxu0
  %v4033 = vadd.f32 0.0, %v4032
  %v4034 = vpop.f32.mrf.mxu0
  %v4035 = vadd.f32 0.0, %v4034
  %4036 = vdwg.mxu0
  %4037 = vmatprep.subr.mxu0 0.0
  %4038 = vmatpush1.msra.mxu0 0.0
  %4039 = vmatprep.subr.mxu0 0.0
  %4040 = vmatpush1.msra.mxu0 0.0
  %4041 = vmatprep.subr.mxu0 0.0
  %4042 = vmatpush1.msra.mxu0 0.0
  %4043 = vmatprep.subr.mxu0 0.0
  %4044 = vmatpush1.msra.mxu0 0.0
  %4045 = vmatprep.subr.mxu0 0.0
  %4046 = vmatpush1.msra.mxu0 0.0
  %4047 = vmatprep.subr.mxu0 0.0
  %4048 = vmatpush1.msra.mxu0 0.0
  %4049 = vmatprep.subr.mxu0 0.0
  %4050 = vmatpush1.msra.mxu0 0.0
  %4051 = vmatprep.subr.mxu0 0.0
  %4052 = vmatpush1.msra.mxu0 0.0
  %4053 = vmatprep.subr.mxu0 0.0
  %4054 = vmatpush1.msra.mxu0 0.0
  %4055 = vmatprep.subr.mxu0 0.0
  %4056 = vmatpush1.msra.mxu0 0.0
  %4057 = vmatprep.subr.mxu0 0.0
  %4058 = vmatpush1.msra.mxu0 0.0
  %4059 = vmatprep.subr.mxu0 0.0
  %4060 = vmatpush1.msra.mxu0 0.0
  %4061 = vmatprep.subr.mxu0 0.0
  %4062 = vmatpush1.msra.mxu0 0.0
  %4063 = vmatprep.subr.mxu0 0.0
  %4064 = vmatpush1.msra.mxu0 0.0
  %4065 = vmatprep.subr.mxu0 0.0
  %4066 = vmatpush1.msra.mxu0 0.0
  %4067 = vmatprep.subr.mxu0 %v3959
  %4068 = vmatpush1.msra.mxu0 %v3958
  %4069 = vmatprep.subr.mxu0 0.0
  %4070 = vmatpush2.msra.mxu0 0.0
  %4071 = vmatprep.subr.mxu0 0.0
  %4072 = vmatpush2.msra.mxu0 0.0
  %4073 = vmatprep.subr.mxu0 0.0
  %4074 = vmatpush2.msra.mxu0 0.0
  %4075 = vmatprep.subr.mxu0 0.0
  %4076 = vmatpush2.msra.mxu0 0.0
  %4077 = vmatprep.subr.mxu0 0.0
  %4078 = vmatpush2.msra.mxu0 0.0
  %4079 = vmatprep.subr.mxu0 0.0
  %4080 = vmatpush2.msra.mxu0 0.0
  %4081 = vmatprep.subr.mxu0 0.0
  %4082 = vmatpush2.msra.mxu0 0.0
  %4083 = vmatprep.subr.mxu0 0.0
  %4084 = vmatpush2.msra.mxu0 0.0
  %4085 = vmatprep.subr.mxu0 0.0
  %4086 = vmatpush2.msra.mxu0 0.0
  %4087 = vmatprep.subr.mxu0 0.0
  %4088 = vmatpush2.msra.mxu0 0.0
  %4089 = vmatprep.subr.mxu0 0.0
  %4090 = vmatpush2.msra.mxu0 0.0
  %4091 = vmatprep.subr.mxu0 0.0
  %4092 = vmatpush2.msra.mxu0 0.0
  %4093 = vmatprep.subr.mxu0 0.0
  %4094 = vmatpush2.msra.mxu0 0.0
  %4095 = vmatprep.subr.mxu0 0.0
  %4096 = vmatpush2.msra.mxu0 0.0
  %4097 = vmatprep.subr.mxu0 0.0
  %4098 = vmatpush2.msra.mxu0 0.0
  %4099 = vmatprep.subr.mxu0 0.0
  %4100 = vmatpush2.msra.mxu0 0.0
  %4101 = vmatprep.mubr.f32.mxu0 0.0
  %4102 = vmatmul.mubr.f32.gmra.mxu0 %v3964
  %v4103 = vpop.f32.mrf.mxu0
  %v4104 = vadd.f32 0.0, %v4103
  %v4105 = vpop.f32.mrf.mxu0
  %v4106 = vadd.f32 0.0, %v4105
  %4107 = vdwg.mxu0
  %v4108 = vadd.f32 %v3960, %v4033
  %v4109 = vadd.f32 %v3961, %v4035
  %v4110 = vadd.f32 %v3962, %v4104
  %v4111 = vadd.f32 %v3963, %v4106
  %v4112 = vxor.u32 %v4108, 2147483648
  %v4113 = vmul.f32 %v4112, 1.442695
  %v4114 = vpow.pop %v4113
  %v4115 = vadd.f32 %v4114, 1.0
  %v4116 = vrcp.pop %v4115
  %v4117 = vmul.f32 1.0, %v4116
  %v4118 = vxor.u32 %v4109, 2147483648
  %v4119 = vmul.f32 %v4118, 1.442695
  %v4120 = vpow.pop %v4119
  %v4121 = vadd.f32 %v4120, 1.0
  %v4122 = vrcp.pop %v4121
  %v4123 = vmul.f32 1.0, %v4122
  %v4124 = vtanh.pop %v4110
  %v4125 = vxor.u32 %v4111, 2147483648
  %v4126 = vmul.f32 %v4125, 1.442695
  %v4127 = vpow.pop %v4126
  %v4128 = vadd.f32 %v4127, 1.0
  %v4129 = vrcp.pop %v4128
  %v4130 = vmul.f32 1.0, %v4129
  %v4131 = vmul.f32 %v4123, 0.0
  %v4132 = vmul.f32 %v4117, %v4124
  %v4133 = vadd.f32 %v4131, %v4132
  %v4134 = vtanh.pop %v4133
  %v4135 = vmul.f32 %v4130, %v4134
  %4136 = vst [vmem:[#allocation3] sm:$0xff] %v4135
  %v4137 = vld [vmem:[%s553] sm:$0xff]
  %v4138 = vld [vmem:[%s553 + $0x8] sm:$0xff]
  %v4139 = vld [vmem:[%s553 + $0x10] sm:$0xff]
  %v4140 = vld [vmem:[%s553 + $0x18] sm:$0xff]
  %v4142 = vsel %vm75, %v4135, 0
  %4144 = vmatprep.subr.mxu0 0.0
  %4145 = vmatpush1.msra.mxu0 0.0
  %4146 = vmatprep.subr.mxu0 0.0
  %4147 = vmatpush1.msra.mxu0 0.0
  %4148 = vmatprep.subr.mxu0 0.0
  %4149 = vmatpush1.msra.mxu0 0.0
  %4150 = vmatprep.subr.mxu0 0.0
  %4151 = vmatpush1.msra.mxu0 0.0
  %4152 = vmatprep.subr.mxu0 0.0
  %4153 = vmatpush1.msra.mxu0 0.0
  %4154 = vmatprep.subr.mxu0 0.0
  %4155 = vmatpush1.msra.mxu0 0.0
  %4156 = vmatprep.subr.mxu0 0.0
  %4157 = vmatpush1.msra.mxu0 0.0
  %4158 = vmatprep.subr.mxu0 0.0
  %4159 = vmatpush1.msra.mxu0 0.0
  %4160 = vmatprep.subr.mxu0 0.0
  %4161 = vmatpush1.msra.mxu0 0.0
  %4162 = vmatprep.subr.mxu0 0.0
  %4163 = vmatpush1.msra.mxu0 0.0
  %4164 = vmatprep.subr.mxu0 0.0
  %4165 = vmatpush1.msra.mxu0 0.0
  %4166 = vmatprep.subr.mxu0 0.0
  %4167 = vmatpush1.msra.mxu0 0.0
  %4168 = vmatprep.subr.mxu0 0.0
  %4169 = vmatpush1.msra.mxu0 0.0
  %4170 = vmatprep.subr.mxu0 0.0
  %4171 = vmatpush1.msra.mxu0 0.0
  %4172 = vmatprep.subr.mxu0 0.0
  %4173 = vmatpush1.msra.mxu0 0.0
  %4174 = vmatprep.subr.mxu0 %v3957
  %4175 = vmatpush1.msra.mxu0 %v3956
  %4176 = vmatprep.subr.mxu0 0.0
  %4177 = vmatpush2.msra.mxu0 0.0
  %4178 = vmatprep.subr.mxu0 0.0
  %4179 = vmatpush2.msra.mxu0 0.0
  %4180 = vmatprep.subr.mxu0 0.0
  %4181 = vmatpush2.msra.mxu0 0.0
  %4182 = vmatprep.subr.mxu0 0.0
  %4183 = vmatpush2.msra.mxu0 0.0
  %4184 = vmatprep.subr.mxu0 0.0
  %4185 = vmatpush2.msra.mxu0 0.0
  %4186 = vmatprep.subr.mxu0 0.0
  %4187 = vmatpush2.msra.mxu0 0.0
  %4188 = vmatprep.subr.mxu0 0.0
  %4189 = vmatpush2.msra.mxu0 0.0
  %4190 = vmatprep.subr.mxu0 0.0
  %4191 = vmatpush2.msra.mxu0 0.0
  %4192 = vmatprep.subr.mxu0 0.0
  %4193 = vmatpush2.msra.mxu0 0.0
  %4194 = vmatprep.subr.mxu0 0.0
  %4195 = vmatpush2.msra.mxu0 0.0
  %4196 = vmatprep.subr.mxu0 0.0
  %4197 = vmatpush2.msra.mxu0 0.0
  %4198 = vmatprep.subr.mxu0 0.0
  %4199 = vmatpush2.msra.mxu0 0.0
  %4200 = vmatprep.subr.mxu0 0.0
  %4201 = vmatpush2.msra.mxu0 0.0
  %4202 = vmatprep.subr.mxu0 0.0
  %4203 = vmatpush2.msra.mxu0 0.0
  %4204 = vmatprep.subr.mxu0 0.0
  %4205 = vmatpush2.msra.mxu0 0.0
  %4206 = vmatprep.subr.mxu0 0.0
  %4207 = vmatpush2.msra.mxu0 0.0
  %4208 = vmatprep.mubr.f32.mxu0 0.0
  %4209 = vmatmul.mubr.f32.gmra.mxu0 %v4142
  %v4210 = vpop.f32.mrf.mxu0
  %v4211 = vadd.f32 0.0, %v4210
  %v4212 = vpop.f32.mrf.mxu0
  %v4213 = vadd.f32 0.0, %v4212
  %4214 = vdwg.mxu0
  %4215 = vmatprep.subr.mxu0 0.0
  %4216 = vmatpush1.msra.mxu0 0.0
  %4217 = vmatprep.subr.mxu0 0.0
  %4218 = vmatpush1.msra.mxu0 0.0
  %4219 = vmatprep.subr.mxu0 0.0
  %4220 = vmatpush1.msra.mxu0 0.0
  %4221 = vmatprep.subr.mxu0 0.0
  %4222 = vmatpush1.msra.mxu0 0.0
  %4223 = vmatprep.subr.mxu0 0.0
  %4224 = vmatpush1.msra.mxu0 0.0
  %4225 = vmatprep.subr.mxu0 0.0
  %4226 = vmatpush1.msra.mxu0 0.0
  %4227 = vmatprep.subr.mxu0 0.0
  %4228 = vmatpush1.msra.mxu0 0.0
  %4229 = vmatprep.subr.mxu0 0.0
  %4230 = vmatpush1.msra.mxu0 0.0
  %4231 = vmatprep.subr.mxu0 0.0
  %4232 = vmatpush1.msra.mxu0 0.0
  %4233 = vmatprep.subr.mxu0 0.0
  %4234 = vmatpush1.msra.mxu0 0.0
  %4235 = vmatprep.subr.mxu0 0.0
  %4236 = vmatpush1.msra.mxu0 0.0
  %4237 = vmatprep.subr.mxu0 0.0
  %4238 = vmatpush1.msra.mxu0 0.0
  %4239 = vmatprep.subr.mxu0 0.0
  %4240 = vmatpush1.msra.mxu0 0.0
  %4241 = vmatprep.subr.mxu0 0.0
  %4242 = vmatpush1.msra.mxu0 0.0
  %4243 = vmatprep.subr.mxu0 0.0
  %4244 = vmatpush1.msra.mxu0 0.0
  %4245 = vmatprep.subr.mxu0 %v3959
  %4246 = vmatpush1.msra.mxu0 %v3958
  %4247 = vmatprep.subr.mxu0 0.0
  %4248 = vmatpush2.msra.mxu0 0.0
  %4249 = vmatprep.subr.mxu0 0.0
  %4250 = vmatpush2.msra.mxu0 0.0
  %4251 = vmatprep.subr.mxu0 0.0
  %4252 = vmatpush2.msra.mxu0 0.0
  %4253 = vmatprep.subr.mxu0 0.0
  %4254 = vmatpush2.msra.mxu0 0.0
  %4255 = vmatprep.subr.mxu0 0.0
  %4256 = vmatpush2.msra.mxu0 0.0
  %4257 = vmatprep.subr.mxu0 0.0
  %4258 = vmatpush2.msra.mxu0 0.0
  %4259 = vmatprep.subr.mxu0 0.0
  %4260 = vmatpush2.msra.mxu0 0.0
  %4261 = vmatprep.subr.mxu0 0.0
  %4262 = vmatpush2.msra.mxu0 0.0
  %4263 = vmatprep.subr.mxu0 0.0
  %4264 = vmatpush2.msra.mxu0 0.0
  %4265 = vmatprep.subr.mxu0 0.0
  %4266 = vmatpush2.msra.mxu0 0.0
  %4267 = vmatprep.subr.mxu0 0.0
  %4268 = vmatpush2.msra.mxu0 0.0
  %4269 = vmatprep.subr.mxu0 0.0
  %4270 = vmatpush2.msra.mxu0 0.0
  %4271 = vmatprep.subr.mxu0 0.0
  %4272 = vmatpush2.msra.mxu0 0.0
  %4273 = vmatprep.subr.mxu0 0.0
  %4274 = vmatpush2.msra.mxu0 0.0
  %4275 = vmatprep.subr.mxu0 0.0
  %4276 = vmatpush2.msra.mxu0 0.0
  %4277 = vmatprep.subr.mxu0 0.0
  %4278 = vmatpush2.msra.mxu0 0.0
  %4279 = vmatprep.mubr.f32.mxu0 0.0
  %4280 = vmatmul.mubr.f32.gmra.mxu0 %v4142
  %v4281 = vpop.f32.mrf.mxu0
  %v4282 = vadd.f32 0.0, %v4281
  %v4283 = vpop.f32.mrf.mxu0
  %v4284 = vadd.f32 0.0, %v4283
  %4285 = vdwg.mxu0
  %v4286 = vadd.f32 %v4137, %v4211
  %v4287 = vadd.f32 %v4138, %v4213
  %v4288 = vadd.f32 %v4139, %v4282
  %v4289 = vadd.f32 %v4140, %v4284
  %v4290 = vxor.u32 %v4286, 2147483648
  %v4291 = vmul.f32 %v4290, 1.442695
  %v4292 = vpow.pop %v4291
  %v4293 = vadd.f32 %v4292, 1.0
  %v4294 = vrcp.pop %v4293
  %v4295 = vmul.f32 1.0, %v4294
  %v4296 = vxor.u32 %v4287, 2147483648
  %v4297 = vmul.f32 %v4296, 1.442695
  %v4298 = vpow.pop %v4297
  %v4299 = vadd.f32 %v4298, 1.0
  %v4300 = vrcp.pop %v4299
  %v4301 = vmul.f32 1.0, %v4300
  %v4302 = vtanh.pop %v4288
  %v4303 = vxor.u32 %v4289, 2147483648
  %v4304 = vmul.f32 %v4303, 1.442695
  %v4305 = vpow.pop %v4304
  %v4306 = vadd.f32 %v4305, 1.0
  %v4307 = vrcp.pop %v4306
  %v4308 = vmul.f32 1.0, %v4307
  %v4309 = vmul.f32 %v4301, %v4133
  %v4310 = vmul.f32 %v4295, %v4302
  %v4311 = vadd.f32 %v4309, %v4310
  %v4312 = vtanh.pop %v4311
  %v4313 = vmul.f32 %v4308, %v4312
  %4314 = vst [vmem:[%s731] sm:$0xff] %v4313
  %v4315 = vld [vmem:[%s733] sm:$0xff]
  %v4316 = vld [vmem:[%s733 + $0x8] sm:$0xff]
  %v4317 = vld [vmem:[%s733 + $0x10] sm:$0xff]
  %v4318 = vld [vmem:[%s733 + $0x18] sm:$0xff]
  %v4320 = vsel %vm75, %v4313, 0
  %4322 = vmatprep.subr.mxu0 0.0
  %4323 = vmatpush1.msra.mxu0 0.0
  %4324 = vmatprep.subr.mxu0 0.0
  %4325 = vmatpush1.msra.mxu0 0.0
  %4326 = vmatprep.subr.mxu0 0.0
  %4327 = vmatpush1.msra.mxu0 0.0
  %4328 = vmatprep.subr.mxu0 0.0
  %4329 = vmatpush1.msra.mxu0 0.0
  %4330 = vmatprep.subr.mxu0 0.0
  %4331 = vmatpush1.msra.mxu0 0.0
  %4332 = vmatprep.subr.mxu0 0.0
  %4333 = vmatpush1.msra.mxu0 0.0
  %4334 = vmatprep.subr.mxu0 0.0
  %4335 = vmatpush1.msra.mxu0 0.0
  %4336 = vmatprep.subr.mxu0 0.0
  %4337 = vmatpush1.msra.mxu0 0.0
  %4338 = vmatprep.subr.mxu0 0.0
  %4339 = vmatpush1.msra.mxu0 0.0
  %4340 = vmatprep.subr.mxu0 0.0
  %4341 = vmatpush1.msra.mxu0 0.0
  %4342 = vmatprep.subr.mxu0 0.0
  %4343 = vmatpush1.msra.mxu0 0.0
  %4344 = vmatprep.subr.mxu0 0.0
  %4345 = vmatpush1.msra.mxu0 0.0
  %4346 = vmatprep.subr.mxu0 0.0
  %4347 = vmatpush1.msra.mxu0 0.0
  %4348 = vmatprep.subr.mxu0 0.0
  %4349 = vmatpush1.msra.mxu0 0.0
  %4350 = vmatprep.subr.mxu0 0.0
  %4351 = vmatpush1.msra.mxu0 0.0
  %4352 = vmatprep.subr.mxu0 %v3957
  %4353 = vmatpush1.msra.mxu0 %v3956
  %4354 = vmatprep.subr.mxu0 0.0
  %4355 = vmatpush2.msra.mxu0 0.0
  %4356 = vmatprep.subr.mxu0 0.0
  %4357 = vmatpush2.msra.mxu0 0.0
  %4358 = vmatprep.subr.mxu0 0.0
  %4359 = vmatpush2.msra.mxu0 0.0
  %4360 = vmatprep.subr.mxu0 0.0
  %4361 = vmatpush2.msra.mxu0 0.0
  %4362 = vmatprep.subr.mxu0 0.0
  %4363 = vmatpush2.msra.mxu0 0.0
  %4364 = vmatprep.subr.mxu0 0.0
  %4365 = vmatpush2.msra.mxu0 0.0
  %4366 = vmatprep.subr.mxu0 0.0
  %4367 = vmatpush2.msra.mxu0 0.0
  %4368 = vmatprep.subr.mxu0 0.0
  %4369 = vmatpush2.msra.mxu0 0.0
  %4370 = vmatprep.subr.mxu0 0.0
  %4371 = vmatpush2.msra.mxu0 0.0
  %4372 = vmatprep.subr.mxu0 0.0
  %4373 = vmatpush2.msra.mxu0 0.0
  %4374 = vmatprep.subr.mxu0 0.0
  %4375 = vmatpush2.msra.mxu0 0.0
  %4376 = vmatprep.subr.mxu0 0.0
  %4377 = vmatpush2.msra.mxu0 0.0
  %4378 = vmatprep.subr.mxu0 0.0
  %4379 = vmatpush2.msra.mxu0 0.0
  %4380 = vmatprep.subr.mxu0 0.0
  %4381 = vmatpush2.msra.mxu0 0.0
  %4382 = vmatprep.subr.mxu0 0.0
  %4383 = vmatpush2.msra.mxu0 0.0
  %4384 = vmatprep.subr.mxu0 0.0
  %4385 = vmatpush2.msra.mxu0 0.0
  %4386 = vmatprep.mubr.f32.mxu0 0.0
  %4387 = vmatmul.mubr.f32.gmra.mxu0 %v4320
  %v4388 = vpop.f32.mrf.mxu0
  %v4389 = vadd.f32 0.0, %v4388
  %v4390 = vpop.f32.mrf.mxu0
  %v4391 = vadd.f32 0.0, %v4390
  %4392 = vdwg.mxu0
  %4393 = vmatprep.subr.mxu0 0.0
  %4394 = vmatpush1.msra.mxu0 0.0
  %4395 = vmatprep.subr.mxu0 0.0
  %4396 = vmatpush1.msra.mxu0 0.0
  %4397 = vmatprep.subr.mxu0 0.0
  %4398 = vmatpush1.msra.mxu0 0.0
  %4399 = vmatprep.subr.mxu0 0.0
  %4400 = vmatpush1.msra.mxu0 0.0
  %4401 = vmatprep.subr.mxu0 0.0
  %4402 = vmatpush1.msra.mxu0 0.0
  %4403 = vmatprep.subr.mxu0 0.0
  %4404 = vmatpush1.msra.mxu0 0.0
  %4405 = vmatprep.subr.mxu0 0.0
  %4406 = vmatpush1.msra.mxu0 0.0
  %4407 = vmatprep.subr.mxu0 0.0
  %4408 = vmatpush1.msra.mxu0 0.0
  %4409 = vmatprep.subr.mxu0 0.0
  %4410 = vmatpush1.msra.mxu0 0.0
  %4411 = vmatprep.subr.mxu0 0.0
  %4412 = vmatpush1.msra.mxu0 0.0
  %4413 = vmatprep.subr.mxu0 0.0
  %4414 = vmatpush1.msra.mxu0 0.0
  %4415 = vmatprep.subr.mxu0 0.0
  %4416 = vmatpush1.msra.mxu0 0.0
  %4417 = vmatprep.subr.mxu0 0.0
  %4418 = vmatpush1.msra.mxu0 0.0
  %4419 = vmatprep.subr.mxu0 0.0
  %4420 = vmatpush1.msra.mxu0 0.0
  %4421 = vmatprep.subr.mxu0 0.0
  %4422 = vmatpush1.msra.mxu0 0.0
  %4423 = vmatprep.subr.mxu0 %v3959
  %4424 = vmatpush1.msra.mxu0 %v3958
  %4425 = vmatprep.subr.mxu0 0.0
  %4426 = vmatpush2.msra.mxu0 0.0
  %4427 = vmatprep.subr.mxu0 0.0
  %4428 = vmatpush2.msra.mxu0 0.0
  %4429 = vmatprep.subr.mxu0 0.0
  %4430 = vmatpush2.msra.mxu0 0.0
  %4431 = vmatprep.subr.mxu0 0.0
  %4432 = vmatpush2.msra.mxu0 0.0
  %4433 = vmatprep.subr.mxu0 0.0
  %4434 = vmatpush2.msra.mxu0 0.0
  %4435 = vmatprep.subr.mxu0 0.0
  %4436 = vmatpush2.msra.mxu0 0.0
  %4437 = vmatprep.subr.mxu0 0.0
  %4438 = vmatpush2.msra.mxu0 0.0
  %4439 = vmatprep.subr.mxu0 0.0
  %4440 = vmatpush2.msra.mxu0 0.0
  %4441 = vmatprep.subr.mxu0 0.0
  %4442 = vmatpush2.msra.mxu0 0.0
  %4443 = vmatprep.subr.mxu0 0.0
  %4444 = vmatpush2.msra.mxu0 0.0
  %4445 = vmatprep.subr.mxu0 0.0
  %4446 = vmatpush2.msra.mxu0 0.0
  %4447 = vmatprep.subr.mxu0 0.0
  %4448 = vmatpush2.msra.mxu0 0.0
  %4449 = vmatprep.subr.mxu0 0.0
  %4450 = vmatpush2.msra.mxu0 0.0
  %4451 = vmatprep.subr.mxu0 0.0
  %4452 = vmatpush2.msra.mxu0 0.0
  %4453 = vmatprep.subr.mxu0 0.0
  %4454 = vmatpush2.msra.mxu0 0.0
  %4455 = vmatprep.subr.mxu0 0.0
  %4456 = vmatpush2.msra.mxu0 0.0
  %4457 = vmatprep.mubr.f32.mxu0 0.0
  %4458 = vmatmul.mubr.f32.gmra.mxu0 %v4320
  %v4459 = vpop.f32.mrf.mxu0
  %v4460 = vadd.f32 0.0, %v4459
  %v4461 = vpop.f32.mrf.mxu0
  %v4462 = vadd.f32 0.0, %v4461
  %4463 = vdwg.mxu0
  %v4464 = vadd.f32 %v4315, %v4389
  %v4465 = vadd.f32 %v4316, %v4391
  %v4466 = vadd.f32 %v4317, %v4460
  %v4467 = vadd.f32 %v4318, %v4462
  %v4468 = vxor.u32 %v4464, 2147483648
  %v4469 = vmul.f32 %v4468, 1.442695
  %v4470 = vpow.pop %v4469
  %v4471 = vadd.f32 %v4470, 1.0
  %v4472 = vrcp.pop %v4471
  %v4473 = vmul.f32 1.0, %v4472
  %v4474 = vxor.u32 %v4465, 2147483648
  %v4475 = vmul.f32 %v4474, 1.442695
  %v4476 = vpow.pop %v4475
  %v4477 = vadd.f32 %v4476, 1.0
  %v4478 = vrcp.pop %v4477
  %v4479 = vmul.f32 1.0, %v4478
  %v4480 = vtanh.pop %v4466
  %v4481 = vxor.u32 %v4467, 2147483648
  %v4482 = vmul.f32 %v4481, 1.442695
  %v4483 = vpow.pop %v4482
  %v4484 = vadd.f32 %v4483, 1.0
  %v4485 = vrcp.pop %v4484
  %v4486 = vmul.f32 1.0, %v4485
  %v4487 = vmul.f32 %v4479, %v4311
  %v4488 = vmul.f32 %v4473, %v4480
  %v4489 = vadd.f32 %v4487, %v4488
  %v4490 = vtanh.pop %v4489
  %v4491 = vmul.f32 %v4486, %v4490
  %4492 = vst [vmem:[%s911] sm:$0xff] %v4491
  %v4493 = vld [vmem:[%s913] sm:$0xff]
  %v4494 = vld [vmem:[%s913 + $0x8] sm:$0xff]
  %v4495 = vld [vmem:[%s913 + $0x10] sm:$0xff]
  %v4496 = vld [vmem:[%s913 + $0x18] sm:$0xff]
  %v4498 = vsel %vm75, %v4491, 0
  %4500 = vmatprep.subr.mxu0 0.0
  %4501 = vmatpush1.msra.mxu0 0.0
  %4502 = vmatprep.subr.mxu0 0.0
  %4503 = vmatpush1.msra.mxu0 0.0
  %4504 = vmatprep.subr.mxu0 0.0
  %4505 = vmatpush1.msra.mxu0 0.0
  %4506 = vmatprep.subr.mxu0 0.0
  %4507 = vmatpush1.msra.mxu0 0.0
  %4508 = vmatprep.subr.mxu0 0.0
  %4509 = vmatpush1.msra.mxu0 0.0
  %4510 = vmatprep.subr.mxu0 0.0
  %4511 = vmatpush1.msra.mxu0 0.0
  %4512 = vmatprep.subr.mxu0 0.0
  %4513 = vmatpush1.msra.mxu0 0.0
  %4514 = vmatprep.subr.mxu0 0.0
  %4515 = vmatpush1.msra.mxu0 0.0
  %4516 = vmatprep.subr.mxu0 0.0
  %4517 = vmatpush1.msra.mxu0 0.0
  %4518 = vmatprep.subr.mxu0 0.0
  %4519 = vmatpush1.msra.mxu0 0.0
  %4520 = vmatprep.subr.mxu0 0.0
  %4521 = vmatpush1.msra.mxu0 0.0
  %4522 = vmatprep.subr.mxu0 0.0
  %4523 = vmatpush1.msra.mxu0 0.0
  %4524 = vmatprep.subr.mxu0 0.0
  %4525 = vmatpush1.msra.mxu0 0.0
  %4526 = vmatprep.subr.mxu0 0.0
  %4527 = vmatpush1.msra.mxu0 0.0
  %4528 = vmatprep.subr.mxu0 0.0
  %4529 = vmatpush1.msra.mxu0 0.0
  %4530 = vmatprep.subr.mxu0 %v3957
  %4531 = vmatpush1.msra.mxu0 %v3956
  %4532 = vmatprep.subr.mxu0 0.0
  %4533 = vmatpush2.msra.mxu0 0.0
  %4534 = vmatprep.subr.mxu0 0.0
  %4535 = vmatpush2.msra.mxu0 0.0
  %4536 = vmatprep.subr.mxu0 0.0
  %4537 = vmatpush2.msra.mxu0 0.0
  %4538 = vmatprep.subr.mxu0 0.0
  %4539 = vmatpush2.msra.mxu0 0.0
  %4540 = vmatprep.subr.mxu0 0.0
  %4541 = vmatpush2.msra.mxu0 0.0
  %4542 = vmatprep.subr.mxu0 0.0
  %4543 = vmatpush2.msra.mxu0 0.0
  %4544 = vmatprep.subr.mxu0 0.0
  %4545 = vmatpush2.msra.mxu0 0.0
  %4546 = vmatprep.subr.mxu0 0.0
  %4547 = vmatpush2.msra.mxu0 0.0
  %4548 = vmatprep.subr.mxu0 0.0
  %4549 = vmatpush2.msra.mxu0 0.0
  %4550 = vmatprep.subr.mxu0 0.0
  %4551 = vmatpush2.msra.mxu0 0.0
  %4552 = vmatprep.subr.mxu0 0.0
  %4553 = vmatpush2.msra.mxu0 0.0
  %4554 = vmatprep.subr.mxu0 0.0
  %4555 = vmatpush2.msra.mxu0 0.0
  %4556 = vmatprep.subr.mxu0 0.0
  %4557 = vmatpush2.msra.mxu0 0.0
  %4558 = vmatprep.subr.mxu0 0.0
  %4559 = vmatpush2.msra.mxu0 0.0
  %4560 = vmatprep.subr.mxu0 0.0
  %4561 = vmatpush2.msra.mxu0 0.0
  %4562 = vmatprep.subr.mxu0 0.0
  %4563 = vmatpush2.msra.mxu0 0.0
  %4564 = vmatprep.mubr.f32.mxu0 0.0
  %4565 = vmatmul.mubr.f32.gmra.mxu0 %v4498
  %v4566 = vpop.f32.mrf.mxu0
  %v4567 = vadd.f32 0.0, %v4566
  %v4568 = vpop.f32.mrf.mxu0
  %v4569 = vadd.f32 0.0, %v4568
  %4570 = vdwg.mxu0
  %4571 = vmatprep.subr.mxu0 0.0
  %4572 = vmatpush1.msra.mxu0 0.0
  %4573 = vmatprep.subr.mxu0 0.0
  %4574 = vmatpush1.msra.mxu0 0.0
  %4575 = vmatprep.subr.mxu0 0.0
  %4576 = vmatpush1.msra.mxu0 0.0
  %4577 = vmatprep.subr.mxu0 0.0
  %4578 = vmatpush1.msra.mxu0 0.0
  %4579 = vmatprep.subr.mxu0 0.0
  %4580 = vmatpush1.msra.mxu0 0.0
  %4581 = vmatprep.subr.mxu0 0.0
  %4582 = vmatpush1.msra.mxu0 0.0
  %4583 = vmatprep.subr.mxu0 0.0
  %4584 = vmatpush1.msra.mxu0 0.0
  %4585 = vmatprep.subr.mxu0 0.0
  %4586 = vmatpush1.msra.mxu0 0.0
  %4587 = vmatprep.subr.mxu0 0.0
  %4588 = vmatpush1.msra.mxu0 0.0
  %4589 = vmatprep.subr.mxu0 0.0
  %4590 = vmatpush1.msra.mxu0 0.0
  %4591 = vmatprep.subr.mxu0 0.0
  %4592 = vmatpush1.msra.mxu0 0.0
  %4593 = vmatprep.subr.mxu0 0.0
  %4594 = vmatpush1.msra.mxu0 0.0
  %4595 = vmatprep.subr.mxu0 0.0
  %4596 = vmatpush1.msra.mxu0 0.0
  %4597 = vmatprep.subr.mxu0 0.0
  %4598 = vmatpush1.msra.mxu0 0.0
  %4599 = vmatprep.subr.mxu0 0.0
  %4600 = vmatpush1.msra.mxu0 0.0
  %4601 = vmatprep.subr.mxu0 %v3959
  %4602 = vmatpush1.msra.mxu0 %v3958
  %4603 = vmatprep.subr.mxu0 0.0
  %4604 = vmatpush2.msra.mxu0 0.0
  %4605 = vmatprep.subr.mxu0 0.0
  %4606 = vmatpush2.msra.mxu0 0.0
  %4607 = vmatprep.subr.mxu0 0.0
  %4608 = vmatpush2.msra.mxu0 0.0
  %4609 = vmatprep.subr.mxu0 0.0
  %4610 = vmatpush2.msra.mxu0 0.0
  %4611 = vmatprep.subr.mxu0 0.0
  %4612 = vmatpush2.msra.mxu0 0.0
  %4613 = vmatprep.subr.mxu0 0.0
  %4614 = vmatpush2.msra.mxu0 0.0
  %4615 = vmatprep.subr.mxu0 0.0
  %4616 = vmatpush2.msra.mxu0 0.0
  %4617 = vmatprep.subr.mxu0 0.0
  %4618 = vmatpush2.msra.mxu0 0.0
  %4619 = vmatprep.subr.mxu0 0.0
  %4620 = vmatpush2.msra.mxu0 0.0
  %4621 = vmatprep.subr.mxu0 0.0
  %4622 = vmatpush2.msra.mxu0 0.0
  %4623 = vmatprep.subr.mxu0 0.0
  %4624 = vmatpush2.msra.mxu0 0.0
  %4625 = vmatprep.subr.mxu0 0.0
  %4626 = vmatpush2.msra.mxu0 0.0
  %4627 = vmatprep.subr.mxu0 0.0
  %4628 = vmatpush2.msra.mxu0 0.0
  %4629 = vmatprep.subr.mxu0 0.0
  %4630 = vmatpush2.msra.mxu0 0.0
  %4631 = vmatprep.subr.mxu0 0.0
  %4632 = vmatpush2.msra.mxu0 0.0
  %4633 = vmatprep.subr.mxu0 0.0
  %4634 = vmatpush2.msra.mxu0 0.0
  %4635 = vmatprep.mubr.f32.mxu0 0.0
  %4636 = vmatmul.mubr.f32.gmra.mxu0 %v4498
  %v4637 = vpop.f32.mrf.mxu0
  %v4638 = vadd.f32 0.0, %v4637
  %v4639 = vpop.f32.mrf.mxu0
  %v4640 = vadd.f32 0.0, %v4639
  %4641 = vdwg.mxu0
  %v4642 = vadd.f32 %v4493, %v4567
  %v4643 = vadd.f32 %v4494, %v4569
  %v4644 = vadd.f32 %v4495, %v4638
  %v4645 = vadd.f32 %v4496, %v4640
  %v4646 = vxor.u32 %v4642, 2147483648
  %v4647 = vmul.f32 %v4646, 1.442695
  %v4648 = vpow.pop %v4647
  %v4649 = vadd.f32 %v4648, 1.0
  %v4650 = vrcp.pop %v4649
  %v4651 = vmul.f32 1.0, %v4650
  %v4652 = vxor.u32 %v4643, 2147483648
  %v4653 = vmul.f32 %v4652, 1.442695
  %v4654 = vpow.pop %v4653
  %v4655 = vadd.f32 %v4654, 1.0
  %v4656 = vrcp.pop %v4655
  %v4657 = vmul.f32 1.0, %v4656
  %v4658 = vtanh.pop %v4644
  %v4659 = vxor.u32 %v4645, 2147483648
  %v4660 = vmul.f32 %v4659, 1.442695
  %v4661 = vpow.pop %v4660
  %v4662 = vadd.f32 %v4661, 1.0
  %v4663 = vrcp.pop %v4662
  %v4664 = vmul.f32 1.0, %v4663
  %v4665 = vmul.f32 %v4657, %v4489
  %v4666 = vmul.f32 %v4651, %v4658
  %v4667 = vadd.f32 %v4665, %v4666
  %v4668 = vtanh.pop %v4667
  %v4669 = vmul.f32 %v4664, %v4668
  %4670 = vst [vmem:[%s1091] sm:$0xff] %v4669
  %v4671 = vld [vmem:[%s1093] sm:$0xff]
  %v4672 = vld [vmem:[%s1093 + $0x8] sm:$0xff]
  %v4673 = vld [vmem:[%s1093 + $0x10] sm:$0xff]
  %v4674 = vld [vmem:[%s1093 + $0x18] sm:$0xff]
  %v4676 = vsel %vm75, %v4669, 0
  %4678 = vmatprep.subr.mxu0 0.0
  %4679 = vmatpush1.msra.mxu0 0.0
  %4680 = vmatprep.subr.mxu0 0.0
  %4681 = vmatpush1.msra.mxu0 0.0
  %4682 = vmatprep.subr.mxu0 0.0
  %4683 = vmatpush1.msra.mxu0 0.0
  %4684 = vmatprep.subr.mxu0 0.0
  %4685 = vmatpush1.msra.mxu0 0.0
  %4686 = vmatprep.subr.mxu0 0.0
  %4687 = vmatpush1.msra.mxu0 0.0
  %4688 = vmatprep.subr.mxu0 0.0
  %4689 = vmatpush1.msra.mxu0 0.0
  %4690 = vmatprep.subr.mxu0 0.0
  %4691 = vmatpush1.msra.mxu0 0.0
  %4692 = vmatprep.subr.mxu0 0.0
  %4693 = vmatpush1.msra.mxu0 0.0
  %4694 = vmatprep.subr.mxu0 0.0
  %4695 = vmatpush1.msra.mxu0 0.0
  %4696 = vmatprep.subr.mxu0 0.0
  %4697 = vmatpush1.msra.mxu0 0.0
  %4698 = vmatprep.subr.mxu0 0.0
  %4699 = vmatpush1.msra.mxu0 0.0
  %4700 = vmatprep.subr.mxu0 0.0
  %4701 = vmatpush1.msra.mxu0 0.0
  %4702 = vmatprep.subr.mxu0 0.0
  %4703 = vmatpush1.msra.mxu0 0.0
  %4704 = vmatprep.subr.mxu0 0.0
  %4705 = vmatpush1.msra.mxu0 0.0
  %4706 = vmatprep.subr.mxu0 0.0
  %4707 = vmatpush1.msra.mxu0 0.0
  %4708 = vmatprep.subr.mxu0 %v3957
  %4709 = vmatpush1.msra.mxu0 %v3956
  %4710 = vmatprep.subr.mxu0 0.0
  %4711 = vmatpush2.msra.mxu0 0.0
  %4712 = vmatprep.subr.mxu0 0.0
  %4713 = vmatpush2.msra.mxu0 0.0
  %4714 = vmatprep.subr.mxu0 0.0
  %4715 = vmatpush2.msra.mxu0 0.0
  %4716 = vmatprep.subr.mxu0 0.0
  %4717 = vmatpush2.msra.mxu0 0.0
  %4718 = vmatprep.subr.mxu0 0.0
  %4719 = vmatpush2.msra.mxu0 0.0
  %4720 = vmatprep.subr.mxu0 0.0
  %4721 = vmatpush2.msra.mxu0 0.0
  %4722 = vmatprep.subr.mxu0 0.0
  %4723 = vmatpush2.msra.mxu0 0.0
  %4724 = vmatprep.subr.mxu0 0.0
  %4725 = vmatpush2.msra.mxu0 0.0
  %4726 = vmatprep.subr.mxu0 0.0
  %4727 = vmatpush2.msra.mxu0 0.0
  %4728 = vmatprep.subr.mxu0 0.0
  %4729 = vmatpush2.msra.mxu0 0.0
  %4730 = vmatprep.subr.mxu0 0.0
  %4731 = vmatpush2.msra.mxu0 0.0
  %4732 = vmatprep.subr.mxu0 0.0
  %4733 = vmatpush2.msra.mxu0 0.0
  %4734 = vmatprep.subr.mxu0 0.0
  %4735 = vmatpush2.msra.mxu0 0.0
  %4736 = vmatprep.subr.mxu0 0.0
  %4737 = vmatpush2.msra.mxu0 0.0
  %4738 = vmatprep.subr.mxu0 0.0
  %4739 = vmatpush2.msra.mxu0 0.0
  %4740 = vmatprep.subr.mxu0 0.0
  %4741 = vmatpush2.msra.mxu0 0.0
  %4742 = vmatprep.mubr.f32.mxu0 0.0
  %4743 = vmatmul.mubr.f32.gmra.mxu0 %v4676
  %v4744 = vpop.f32.mrf.mxu0
  %v4745 = vadd.f32 0.0, %v4744
  %v4746 = vpop.f32.mrf.mxu0
  %v4747 = vadd.f32 0.0, %v4746
  %4748 = vdwg.mxu0
  %4749 = vmatprep.subr.mxu0 0.0
  %4750 = vmatpush1.msra.mxu0 0.0
  %4751 = vmatprep.subr.mxu0 0.0
  %4752 = vmatpush1.msra.mxu0 0.0
  %4753 = vmatprep.subr.mxu0 0.0
  %4754 = vmatpush1.msra.mxu0 0.0
  %4755 = vmatprep.subr.mxu0 0.0
  %4756 = vmatpush1.msra.mxu0 0.0
  %4757 = vmatprep.subr.mxu0 0.0
  %4758 = vmatpush1.msra.mxu0 0.0
  %4759 = vmatprep.subr.mxu0 0.0
  %4760 = vmatpush1.msra.mxu0 0.0
  %4761 = vmatprep.subr.mxu0 0.0
  %4762 = vmatpush1.msra.mxu0 0.0
  %4763 = vmatprep.subr.mxu0 0.0
  %4764 = vmatpush1.msra.mxu0 0.0
  %4765 = vmatprep.subr.mxu0 0.0
  %4766 = vmatpush1.msra.mxu0 0.0
  %4767 = vmatprep.subr.mxu0 0.0
  %4768 = vmatpush1.msra.mxu0 0.0
  %4769 = vmatprep.subr.mxu0 0.0
  %4770 = vmatpush1.msra.mxu0 0.0
  %4771 = vmatprep.subr.mxu0 0.0
  %4772 = vmatpush1.msra.mxu0 0.0
  %4773 = vmatprep.subr.mxu0 0.0
  %4774 = vmatpush1.msra.mxu0 0.0
  %4775 = vmatprep.subr.mxu0 0.0
  %4776 = vmatpush1.msra.mxu0 0.0
  %4777 = vmatprep.subr.mxu0 0.0
  %4778 = vmatpush1.msra.mxu0 0.0
  %4779 = vmatprep.subr.mxu0 %v3959
  %4780 = vmatpush1.msra.mxu0 %v3958
  %4781 = vmatprep.subr.mxu0 0.0
  %4782 = vmatpush2.msra.mxu0 0.0
  %4783 = vmatprep.subr.mxu0 0.0
  %4784 = vmatpush2.msra.mxu0 0.0
  %4785 = vmatprep.subr.mxu0 0.0
  %4786 = vmatpush2.msra.mxu0 0.0
  %4787 = vmatprep.subr.mxu0 0.0
  %4788 = vmatpush2.msra.mxu0 0.0
  %4789 = vmatprep.subr.mxu0 0.0
  %4790 = vmatpush2.msra.mxu0 0.0
  %4791 = vmatprep.subr.mxu0 0.0
  %4792 = vmatpush2.msra.mxu0 0.0
  %4793 = vmatprep.subr.mxu0 0.0
  %4794 = vmatpush2.msra.mxu0 0.0
  %4795 = vmatprep.subr.mxu0 0.0
  %4796 = vmatpush2.msra.mxu0 0.0
  %4797 = vmatprep.subr.mxu0 0.0
  %4798 = vmatpush2.msra.mxu0 0.0
  %4799 = vmatprep.subr.mxu0 0.0
  %4800 = vmatpush2.msra.mxu0 0.0
  %4801 = vmatprep.subr.mxu0 0.0
  %4802 = vmatpush2.msra.mxu0 0.0
  %4803 = vmatprep.subr.mxu0 0.0
  %4804 = vmatpush2.msra.mxu0 0.0
  %4805 = vmatprep.subr.mxu0 0.0
  %4806 = vmatpush2.msra.mxu0 0.0
  %4807 = vmatprep.subr.mxu0 0.0
  %4808 = vmatpush2.msra.mxu0 0.0
  %4809 = vmatprep.subr.mxu0 0.0
  %4810 = vmatpush2.msra.mxu0 0.0
  %4811 = vmatprep.subr.mxu0 0.0
  %4812 = vmatpush2.msra.mxu0 0.0
  %4813 = vmatprep.mubr.f32.mxu0 0.0
  %4814 = vmatmul.mubr.f32.gmra.mxu0 %v4676
  %v4815 = vpop.f32.mrf.mxu0
  %v4816 = vadd.f32 0.0, %v4815
  %v4817 = vpop.f32.mrf.mxu0
  %v4818 = vadd.f32 0.0, %v4817
  %4819 = vdwg.mxu0
  %v4820 = vadd.f32 %v4671, %v4745
  %v4821 = vadd.f32 %v4672, %v4747
  %v4822 = vadd.f32 %v4673, %v4816
  %v4823 = vadd.f32 %v4674, %v4818
  %v4824 = vxor.u32 %v4820, 2147483648
  %v4825 = vmul.f32 %v4824, 1.442695
  %v4826 = vpow.pop %v4825
  %v4827 = vadd.f32 %v4826, 1.0
  %v4828 = vrcp.pop %v4827
  %v4829 = vmul.f32 1.0, %v4828
  %v4830 = vxor.u32 %v4821, 2147483648
  %v4831 = vmul.f32 %v4830, 1.442695
  %v4832 = vpow.pop %v4831
  %v4833 = vadd.f32 %v4832, 1.0
  %v4834 = vrcp.pop %v4833
  %v4835 = vmul.f32 1.0, %v4834
  %v4836 = vtanh.pop %v4822
  %v4837 = vxor.u32 %v4823, 2147483648
  %v4838 = vmul.f32 %v4837, 1.442695
  %v4839 = vpow.pop %v4838
  %v4840 = vadd.f32 %v4839, 1.0
  %v4841 = vrcp.pop %v4840
  %v4842 = vmul.f32 1.0, %v4841
  %v4843 = vmul.f32 %v4835, %v4667
  %v4844 = vmul.f32 %v4829, %v4836
  %v4845 = vadd.f32 %v4843, %v4844
  %v4846 = vtanh.pop %v4845
  %v4847 = vmul.f32 %v4842, %v4846
  %4848 = vst [vmem:[%s1271] sm:$0xff] %v4847
  %v4849 = vld [vmem:[%s1273] sm:$0xff]
  %v4850 = vld [vmem:[%s1273 + $0x8] sm:$0xff]
  %v4851 = vld [vmem:[%s1273 + $0x10] sm:$0xff]
  %v4852 = vld [vmem:[%s1273 + $0x18] sm:$0xff]
  %v4854 = vsel %vm75, %v4847, 0
  %4856 = vmatprep.subr.mxu0 0.0
  %4857 = vmatpush1.msra.mxu0 0.0
  %4858 = vmatprep.subr.mxu0 0.0
  %4859 = vmatpush1.msra.mxu0 0.0
  %4860 = vmatprep.subr.mxu0 0.0
  %4861 = vmatpush1.msra.mxu0 0.0
  %4862 = vmatprep.subr.mxu0 0.0
  %4863 = vmatpush1.msra.mxu0 0.0
  %4864 = vmatprep.subr.mxu0 0.0
  %4865 = vmatpush1.msra.mxu0 0.0
  %4866 = vmatprep.subr.mxu0 0.0
  %4867 = vmatpush1.msra.mxu0 0.0
  %4868 = vmatprep.subr.mxu0 0.0
  %4869 = vmatpush1.msra.mxu0 0.0
  %4870 = vmatprep.subr.mxu0 0.0
  %4871 = vmatpush1.msra.mxu0 0.0
  %4872 = vmatprep.subr.mxu0 0.0
  %4873 = vmatpush1.msra.mxu0 0.0
  %4874 = vmatprep.subr.mxu0 0.0
  %4875 = vmatpush1.msra.mxu0 0.0
  %4876 = vmatprep.subr.mxu0 0.0
  %4877 = vmatpush1.msra.mxu0 0.0
  %4878 = vmatprep.subr.mxu0 0.0
  %4879 = vmatpush1.msra.mxu0 0.0
  %4880 = vmatprep.subr.mxu0 0.0
  %4881 = vmatpush1.msra.mxu0 0.0
  %4882 = vmatprep.subr.mxu0 0.0
  %4883 = vmatpush1.msra.mxu0 0.0
  %4884 = vmatprep.subr.mxu0 0.0
  %4885 = vmatpush1.msra.mxu0 0.0
  %4886 = vmatprep.subr.mxu0 %v3957
  %4887 = vmatpush1.msra.mxu0 %v3956
  %4888 = vmatprep.subr.mxu0 0.0
  %4889 = vmatpush2.msra.mxu0 0.0
  %4890 = vmatprep.subr.mxu0 0.0
  %4891 = vmatpush2.msra.mxu0 0.0
  %4892 = vmatprep.subr.mxu0 0.0
  %4893 = vmatpush2.msra.mxu0 0.0
  %4894 = vmatprep.subr.mxu0 0.0
  %4895 = vmatpush2.msra.mxu0 0.0
  %4896 = vmatprep.subr.mxu0 0.0
  %4897 = vmatpush2.msra.mxu0 0.0
  %4898 = vmatprep.subr.mxu0 0.0
  %4899 = vmatpush2.msra.mxu0 0.0
  %4900 = vmatprep.subr.mxu0 0.0
  %4901 = vmatpush2.msra.mxu0 0.0
  %4902 = vmatprep.subr.mxu0 0.0
  %4903 = vmatpush2.msra.mxu0 0.0
  %4904 = vmatprep.subr.mxu0 0.0
  %4905 = vmatpush2.msra.mxu0 0.0
  %4906 = vmatprep.subr.mxu0 0.0
  %4907 = vmatpush2.msra.mxu0 0.0
  %4908 = vmatprep.subr.mxu0 0.0
  %4909 = vmatpush2.msra.mxu0 0.0
  %4910 = vmatprep.subr.mxu0 0.0
  %4911 = vmatpush2.msra.mxu0 0.0
  %4912 = vmatprep.subr.mxu0 0.0
  %4913 = vmatpush2.msra.mxu0 0.0
  %4914 = vmatprep.subr.mxu0 0.0
  %4915 = vmatpush2.msra.mxu0 0.0
  %4916 = vmatprep.subr.mxu0 0.0
  %4917 = vmatpush2.msra.mxu0 0.0
  %4918 = vmatprep.subr.mxu0 0.0
  %4919 = vmatpush2.msra.mxu0 0.0
  %4920 = vmatprep.mubr.f32.mxu0 0.0
  %4921 = vmatmul.mubr.f32.gmra.mxu0 %v4854
  %v4922 = vpop.f32.mrf.mxu0
  %v4923 = vadd.f32 0.0, %v4922
  %v4924 = vpop.f32.mrf.mxu0
  %v4925 = vadd.f32 0.0, %v4924
  %4926 = vdwg.mxu0
  %4927 = vmatprep.subr.mxu0 0.0
  %4928 = vmatpush1.msra.mxu0 0.0
  %4929 = vmatprep.subr.mxu0 0.0
  %4930 = vmatpush1.msra.mxu0 0.0
  %4931 = vmatprep.subr.mxu0 0.0
  %4932 = vmatpush1.msra.mxu0 0.0
  %4933 = vmatprep.subr.mxu0 0.0
  %4934 = vmatpush1.msra.mxu0 0.0
  %4935 = vmatprep.subr.mxu0 0.0
  %4936 = vmatpush1.msra.mxu0 0.0
  %4937 = vmatprep.subr.mxu0 0.0
  %4938 = vmatpush1.msra.mxu0 0.0
  %4939 = vmatprep.subr.mxu0 0.0
  %4940 = vmatpush1.msra.mxu0 0.0
  %4941 = vmatprep.subr.mxu0 0.0
  %4942 = vmatpush1.msra.mxu0 0.0
  %4943 = vmatprep.subr.mxu0 0.0
  %4944 = vmatpush1.msra.mxu0 0.0
  %4945 = vmatprep.subr.mxu0 0.0
  %4946 = vmatpush1.msra.mxu0 0.0
  %4947 = vmatprep.subr.mxu0 0.0
  %4948 = vmatpush1.msra.mxu0 0.0
  %4949 = vmatprep.subr.mxu0 0.0
  %4950 = vmatpush1.msra.mxu0 0.0
  %4951 = vmatprep.subr.mxu0 0.0
  %4952 = vmatpush1.msra.mxu0 0.0
  %4953 = vmatprep.subr.mxu0 0.0
  %4954 = vmatpush1.msra.mxu0 0.0
  %4955 = vmatprep.subr.mxu0 0.0
  %4956 = vmatpush1.msra.mxu0 0.0
  %4957 = vmatprep.subr.mxu0 %v3959
  %4958 = vmatpush1.msra.mxu0 %v3958
  %4959 = vmatprep.subr.mxu0 0.0
  %4960 = vmatpush2.msra.mxu0 0.0
  %4961 = vmatprep.subr.mxu0 0.0
  %4962 = vmatpush2.msra.mxu0 0.0
  %4963 = vmatprep.subr.mxu0 0.0
  %4964 = vmatpush2.msra.mxu0 0.0
  %4965 = vmatprep.subr.mxu0 0.0
  %4966 = vmatpush2.msra.mxu0 0.0
  %4967 = vmatprep.subr.mxu0 0.0
  %4968 = vmatpush2.msra.mxu0 0.0
  %4969 = vmatprep.subr.mxu0 0.0
  %4970 = vmatpush2.msra.mxu0 0.0
  %4971 = vmatprep.subr.mxu0 0.0
  %4972 = vmatpush2.msra.mxu0 0.0
  %4973 = vmatprep.subr.mxu0 0.0
  %4974 = vmatpush2.msra.mxu0 0.0
  %4975 = vmatprep.subr.mxu0 0.0
  %4976 = vmatpush2.msra.mxu0 0.0
  %4977 = vmatprep.subr.mxu0 0.0
  %4978 = vmatpush2.msra.mxu0 0.0
  %4979 = vmatprep.subr.mxu0 0.0
  %4980 = vmatpush2.msra.mxu0 0.0
  %4981 = vmatprep.subr.mxu0 0.0
  %4982 = vmatpush2.msra.mxu0 0.0
  %4983 = vmatprep.subr.mxu0 0.0
  %4984 = vmatpush2.msra.mxu0 0.0
  %4985 = vmatprep.subr.mxu0 0.0
  %4986 = vmatpush2.msra.mxu0 0.0
  %4987 = vmatprep.subr.mxu0 0.0
  %4988 = vmatpush2.msra.mxu0 0.0
  %4989 = vmatprep.subr.mxu0 0.0
  %4990 = vmatpush2.msra.mxu0 0.0
  %4991 = vmatprep.mubr.f32.mxu0 0.0
  %4992 = vmatmul.mubr.f32.gmra.mxu0 %v4854
  %v4993 = vpop.f32.mrf.mxu0
  %v4994 = vadd.f32 0.0, %v4993
  %v4995 = vpop.f32.mrf.mxu0
  %v4996 = vadd.f32 0.0, %v4995
  %4997 = vdwg.mxu0
  %v4998 = vadd.f32 %v4849, %v4923
  %v4999 = vadd.f32 %v4850, %v4925
  %v5000 = vadd.f32 %v4851, %v4994
  %v5001 = vadd.f32 %v4852, %v4996
  %v5002 = vxor.u32 %v4998, 2147483648
  %v5003 = vmul.f32 %v5002, 1.442695
  %v5004 = vpow.pop %v5003
  %v5005 = vadd.f32 %v5004, 1.0
  %v5006 = vrcp.pop %v5005
  %v5007 = vmul.f32 1.0, %v5006
  %v5008 = vxor.u32 %v4999, 2147483648
  %v5009 = vmul.f32 %v5008, 1.442695
  %v5010 = vpow.pop %v5009
  %v5011 = vadd.f32 %v5010, 1.0
  %v5012 = vrcp.pop %v5011
  %v5013 = vmul.f32 1.0, %v5012
  %v5014 = vtanh.pop %v5000
  %v5015 = vxor.u32 %v5001, 2147483648
  %v5016 = vmul.f32 %v5015, 1.442695
  %v5017 = vpow.pop %v5016
  %v5018 = vadd.f32 %v5017, 1.0
  %v5019 = vrcp.pop %v5018
  %v5020 = vmul.f32 1.0, %v5019
  %v5021 = vmul.f32 %v5013, %v4845
  %v5022 = vmul.f32 %v5007, %v5014
  %v5023 = vadd.f32 %v5021, %v5022
  %v5024 = vtanh.pop %v5023
  %v5025 = vmul.f32 %v5020, %v5024
  %5026 = vst [vmem:[%s1451] sm:$0xff] %v5025
  %v5027 = vld [vmem:[%s1453] sm:$0xff]
  %v5028 = vld [vmem:[%s1453 + $0x8] sm:$0xff]
  %v5029 = vld [vmem:[%s1453 + $0x10] sm:$0xff]
  %v5030 = vld [vmem:[%s1453 + $0x18] sm:$0xff]
  %v5032 = vsel %vm75, %v5025, 0
  %5034 = vmatprep.subr.mxu0 0.0
  %5035 = vmatpush1.msra.mxu0 0.0
  %5036 = vmatprep.subr.mxu0 0.0
  %5037 = vmatpush1.msra.mxu0 0.0
  %5038 = vmatprep.subr.mxu0 0.0
  %5039 = vmatpush1.msra.mxu0 0.0
  %5040 = vmatprep.subr.mxu0 0.0
  %5041 = vmatpush1.msra.mxu0 0.0
  %5042 = vmatprep.subr.mxu0 0.0
  %5043 = vmatpush1.msra.mxu0 0.0
  %5044 = vmatprep.subr.mxu0 0.0
  %5045 = vmatpush1.msra.mxu0 0.0
  %5046 = vmatprep.subr.mxu0 0.0
  %5047 = vmatpush1.msra.mxu0 0.0
  %5048 = vmatprep.subr.mxu0 0.0
  %5049 = vmatpush1.msra.mxu0 0.0
  %5050 = vmatprep.subr.mxu0 0.0
  %5051 = vmatpush1.msra.mxu0 0.0
  %5052 = vmatprep.subr.mxu0 0.0
  %5053 = vmatpush1.msra.mxu0 0.0
  %5054 = vmatprep.subr.mxu0 0.0
  %5055 = vmatpush1.msra.mxu0 0.0
  %5056 = vmatprep.subr.mxu0 0.0
  %5057 = vmatpush1.msra.mxu0 0.0
  %5058 = vmatprep.subr.mxu0 0.0
  %5059 = vmatpush1.msra.mxu0 0.0
  %5060 = vmatprep.subr.mxu0 0.0
  %5061 = vmatpush1.msra.mxu0 0.0
  %5062 = vmatprep.subr.mxu0 0.0
  %5063 = vmatpush1.msra.mxu0 0.0
  %5064 = vmatprep.subr.mxu0 %v3957
  %5065 = vmatpush1.msra.mxu0 %v3956
  %5066 = vmatprep.subr.mxu0 0.0
  %5067 = vmatpush2.msra.mxu0 0.0
  %5068 = vmatprep.subr.mxu0 0.0
  %5069 = vmatpush2.msra.mxu0 0.0
  %5070 = vmatprep.subr.mxu0 0.0
  %5071 = vmatpush2.msra.mxu0 0.0
  %5072 = vmatprep.subr.mxu0 0.0
  %5073 = vmatpush2.msra.mxu0 0.0
  %5074 = vmatprep.subr.mxu0 0.0
  %5075 = vmatpush2.msra.mxu0 0.0
  %5076 = vmatprep.subr.mxu0 0.0
  %5077 = vmatpush2.msra.mxu0 0.0
  %5078 = vmatprep.subr.mxu0 0.0
  %5079 = vmatpush2.msra.mxu0 0.0
  %5080 = vmatprep.subr.mxu0 0.0
  %5081 = vmatpush2.msra.mxu0 0.0
  %5082 = vmatprep.subr.mxu0 0.0
  %5083 = vmatpush2.msra.mxu0 0.0
  %5084 = vmatprep.subr.mxu0 0.0
  %5085 = vmatpush2.msra.mxu0 0.0
  %5086 = vmatprep.subr.mxu0 0.0
  %5087 = vmatpush2.msra.mxu0 0.0
  %5088 = vmatprep.subr.mxu0 0.0
  %5089 = vmatpush2.msra.mxu0 0.0
  %5090 = vmatprep.subr.mxu0 0.0
  %5091 = vmatpush2.msra.mxu0 0.0
  %5092 = vmatprep.subr.mxu0 0.0
  %5093 = vmatpush2.msra.mxu0 0.0
  %5094 = vmatprep.subr.mxu0 0.0
  %5095 = vmatpush2.msra.mxu0 0.0
  %5096 = vmatprep.subr.mxu0 0.0
  %5097 = vmatpush2.msra.mxu0 0.0
  %5098 = vmatprep.mubr.f32.mxu0 0.0
  %5099 = vmatmul.mubr.f32.gmra.mxu0 %v5032
  %v5100 = vpop.f32.mrf.mxu0
  %v5101 = vadd.f32 0.0, %v5100
  %v5102 = vpop.f32.mrf.mxu0
  %v5103 = vadd.f32 0.0, %v5102
  %5104 = vdwg.mxu0
  %5105 = vmatprep.subr.mxu0 0.0
  %5106 = vmatpush1.msra.mxu0 0.0
  %5107 = vmatprep.subr.mxu0 0.0
  %5108 = vmatpush1.msra.mxu0 0.0
  %5109 = vmatprep.subr.mxu0 0.0
  %5110 = vmatpush1.msra.mxu0 0.0
  %5111 = vmatprep.subr.mxu0 0.0
  %5112 = vmatpush1.msra.mxu0 0.0
  %5113 = vmatprep.subr.mxu0 0.0
  %5114 = vmatpush1.msra.mxu0 0.0
  %5115 = vmatprep.subr.mxu0 0.0
  %5116 = vmatpush1.msra.mxu0 0.0
  %5117 = vmatprep.subr.mxu0 0.0
  %5118 = vmatpush1.msra.mxu0 0.0
  %5119 = vmatprep.subr.mxu0 0.0
  %5120 = vmatpush1.msra.mxu0 0.0
  %5121 = vmatprep.subr.mxu0 0.0
  %5122 = vmatpush1.msra.mxu0 0.0
  %5123 = vmatprep.subr.mxu0 0.0
  %5124 = vmatpush1.msra.mxu0 0.0
  %5125 = vmatprep.subr.mxu0 0.0
  %5126 = vmatpush1.msra.mxu0 0.0
  %5127 = vmatprep.subr.mxu0 0.0
  %5128 = vmatpush1.msra.mxu0 0.0
  %5129 = vmatprep.subr.mxu0 0.0
  %5130 = vmatpush1.msra.mxu0 0.0
  %5131 = vmatprep.subr.mxu0 0.0
  %5132 = vmatpush1.msra.mxu0 0.0
  %5133 = vmatprep.subr.mxu0 0.0
  %5134 = vmatpush1.msra.mxu0 0.0
  %5135 = vmatprep.subr.mxu0 %v3959
  %5136 = vmatpush1.msra.mxu0 %v3958
  %5137 = vmatprep.subr.mxu0 0.0
  %5138 = vmatpush2.msra.mxu0 0.0
  %5139 = vmatprep.subr.mxu0 0.0
  %5140 = vmatpush2.msra.mxu0 0.0
  %5141 = vmatprep.subr.mxu0 0.0
  %5142 = vmatpush2.msra.mxu0 0.0
  %5143 = vmatprep.subr.mxu0 0.0
  %5144 = vmatpush2.msra.mxu0 0.0
  %5145 = vmatprep.subr.mxu0 0.0
  %5146 = vmatpush2.msra.mxu0 0.0
  %5147 = vmatprep.subr.mxu0 0.0
  %5148 = vmatpush2.msra.mxu0 0.0
  %5149 = vmatprep.subr.mxu0 0.0
  %5150 = vmatpush2.msra.mxu0 0.0
  %5151 = vmatprep.subr.mxu0 0.0
  %5152 = vmatpush2.msra.mxu0 0.0
  %5153 = vmatprep.subr.mxu0 0.0
  %5154 = vmatpush2.msra.mxu0 0.0
  %5155 = vmatprep.subr.mxu0 0.0
  %5156 = vmatpush2.msra.mxu0 0.0
  %5157 = vmatprep.subr.mxu0 0.0
  %5158 = vmatpush2.msra.mxu0 0.0
  %5159 = vmatprep.subr.mxu0 0.0
  %5160 = vmatpush2.msra.mxu0 0.0
  %5161 = vmatprep.subr.mxu0 0.0
  %5162 = vmatpush2.msra.mxu0 0.0
  %5163 = vmatprep.subr.mxu0 0.0
  %5164 = vmatpush2.msra.mxu0 0.0
  %5165 = vmatprep.subr.mxu0 0.0
  %5166 = vmatpush2.msra.mxu0 0.0
  %5167 = vmatprep.subr.mxu0 0.0
  %5168 = vmatpush2.msra.mxu0 0.0
  %5169 = vmatprep.mubr.f32.mxu0 0.0
  %5170 = vmatmul.mubr.f32.gmra.mxu0 %v5032
  %v5171 = vpop.f32.mrf.mxu0
  %v5172 = vadd.f32 0.0, %v5171
  %v5173 = vpop.f32.mrf.mxu0
  %v5174 = vadd.f32 0.0, %v5173
  %5175 = vdwg.mxu0
  %v5176 = vadd.f32 %v5027, %v5101
  %v5177 = vadd.f32 %v5028, %v5103
  %v5178 = vadd.f32 %v5029, %v5172
  %v5179 = vadd.f32 %v5030, %v5174
  %v5180 = vxor.u32 %v5176, 2147483648
  %v5181 = vmul.f32 %v5180, 1.442695
  %v5182 = vpow.pop %v5181
  %v5183 = vadd.f32 %v5182, 1.0
  %v5184 = vrcp.pop %v5183
  %v5185 = vmul.f32 1.0, %v5184
  %v5186 = vxor.u32 %v5177, 2147483648
  %v5187 = vmul.f32 %v5186, 1.442695
  %v5188 = vpow.pop %v5187
  %v5189 = vadd.f32 %v5188, 1.0
  %v5190 = vrcp.pop %v5189
  %v5191 = vmul.f32 1.0, %v5190
  %v5192 = vtanh.pop %v5178
  %v5193 = vxor.u32 %v5179, 2147483648
  %v5194 = vmul.f32 %v5193, 1.442695
  %v5195 = vpow.pop %v5194
  %v5196 = vadd.f32 %v5195, 1.0
  %v5197 = vrcp.pop %v5196
  %v5198 = vmul.f32 1.0, %v5197
  %v5199 = vmul.f32 %v5191, %v5023
  %v5200 = vmul.f32 %v5185, %v5192
  %v5201 = vadd.f32 %v5199, %v5200
  %v5202 = vtanh.pop %v5201
  %v5203 = vmul.f32 %v5198, %v5202
  %5204 = vst [vmem:[%s1631] sm:$0xff] %v5203
  %v5205 = vld [vmem:[%s1633] sm:$0xff]
  %v5206 = vld [vmem:[%s1633 + $0x8] sm:$0xff]
  %v5207 = vld [vmem:[%s1633 + $0x10] sm:$0xff]
  %v5208 = vld [vmem:[%s1633 + $0x18] sm:$0xff]
  %v5210 = vsel %vm75, %v5203, 0
  %5212 = vmatprep.subr.mxu0 0.0
  %5213 = vmatpush1.msra.mxu0 0.0
  %5214 = vmatprep.subr.mxu0 0.0
  %5215 = vmatpush1.msra.mxu0 0.0
  %5216 = vmatprep.subr.mxu0 0.0
  %5217 = vmatpush1.msra.mxu0 0.0
  %5218 = vmatprep.subr.mxu0 0.0
  %5219 = vmatpush1.msra.mxu0 0.0
  %5220 = vmatprep.subr.mxu0 0.0
  %5221 = vmatpush1.msra.mxu0 0.0
  %5222 = vmatprep.subr.mxu0 0.0
  %5223 = vmatpush1.msra.mxu0 0.0
  %5224 = vmatprep.subr.mxu0 0.0
  %5225 = vmatpush1.msra.mxu0 0.0
  %5226 = vmatprep.subr.mxu0 0.0
  %5227 = vmatpush1.msra.mxu0 0.0
  %5228 = vmatprep.subr.mxu0 0.0
  %5229 = vmatpush1.msra.mxu0 0.0
  %5230 = vmatprep.subr.mxu0 0.0
  %5231 = vmatpush1.msra.mxu0 0.0
  %5232 = vmatprep.subr.mxu0 0.0
  %5233 = vmatpush1.msra.mxu0 0.0
  %5234 = vmatprep.subr.mxu0 0.0
  %5235 = vmatpush1.msra.mxu0 0.0
  %5236 = vmatprep.subr.mxu0 0.0
  %5237 = vmatpush1.msra.mxu0 0.0
  %5238 = vmatprep.subr.mxu0 0.0
  %5239 = vmatpush1.msra.mxu0 0.0
  %5240 = vmatprep.subr.mxu0 0.0
  %5241 = vmatpush1.msra.mxu0 0.0
  %5242 = vmatprep.subr.mxu0 %v3957
  %5243 = vmatpush1.msra.mxu0 %v3956
  %5244 = vmatprep.subr.mxu0 0.0
  %5245 = vmatpush2.msra.mxu0 0.0
  %5246 = vmatprep.subr.mxu0 0.0
  %5247 = vmatpush2.msra.mxu0 0.0
  %5248 = vmatprep.subr.mxu0 0.0
  %5249 = vmatpush2.msra.mxu0 0.0
  %5250 = vmatprep.subr.mxu0 0.0
  %5251 = vmatpush2.msra.mxu0 0.0
  %5252 = vmatprep.subr.mxu0 0.0
  %5253 = vmatpush2.msra.mxu0 0.0
  %5254 = vmatprep.subr.mxu0 0.0
  %5255 = vmatpush2.msra.mxu0 0.0
  %5256 = vmatprep.subr.mxu0 0.0
  %5257 = vmatpush2.msra.mxu0 0.0
  %5258 = vmatprep.subr.mxu0 0.0
  %5259 = vmatpush2.msra.mxu0 0.0
  %5260 = vmatprep.subr.mxu0 0.0
  %5261 = vmatpush2.msra.mxu0 0.0
  %5262 = vmatprep.subr.mxu0 0.0
  %5263 = vmatpush2.msra.mxu0 0.0
  %5264 = vmatprep.subr.mxu0 0.0
  %5265 = vmatpush2.msra.mxu0 0.0
  %5266 = vmatprep.subr.mxu0 0.0
  %5267 = vmatpush2.msra.mxu0 0.0
  %5268 = vmatprep.subr.mxu0 0.0
  %5269 = vmatpush2.msra.mxu0 0.0
  %5270 = vmatprep.subr.mxu0 0.0
  %5271 = vmatpush2.msra.mxu0 0.0
  %5272 = vmatprep.subr.mxu0 0.0
  %5273 = vmatpush2.msra.mxu0 0.0
  %5274 = vmatprep.subr.mxu0 0.0
  %5275 = vmatpush2.msra.mxu0 0.0
  %5276 = vmatprep.mubr.f32.mxu0 0.0
  %5277 = vmatmul.mubr.f32.gmra.mxu0 %v5210
  %v5278 = vpop.f32.mrf.mxu0
  %v5279 = vadd.f32 0.0, %v5278
  %v5280 = vpop.f32.mrf.mxu0
  %v5281 = vadd.f32 0.0, %v5280
  %5282 = vdwg.mxu0
  %5283 = vmatprep.subr.mxu0 0.0
  %5284 = vmatpush1.msra.mxu0 0.0
  %5285 = vmatprep.subr.mxu0 0.0
  %5286 = vmatpush1.msra.mxu0 0.0
  %5287 = vmatprep.subr.mxu0 0.0
  %5288 = vmatpush1.msra.mxu0 0.0
  %5289 = vmatprep.subr.mxu0 0.0
  %5290 = vmatpush1.msra.mxu0 0.0
  %5291 = vmatprep.subr.mxu0 0.0
  %5292 = vmatpush1.msra.mxu0 0.0
  %5293 = vmatprep.subr.mxu0 0.0
  %5294 = vmatpush1.msra.mxu0 0.0
  %5295 = vmatprep.subr.mxu0 0.0
  %5296 = vmatpush1.msra.mxu0 0.0
  %5297 = vmatprep.subr.mxu0 0.0
  %5298 = vmatpush1.msra.mxu0 0.0
  %5299 = vmatprep.subr.mxu0 0.0
  %5300 = vmatpush1.msra.mxu0 0.0
  %5301 = vmatprep.subr.mxu0 0.0
  %5302 = vmatpush1.msra.mxu0 0.0
  %5303 = vmatprep.subr.mxu0 0.0
  %5304 = vmatpush1.msra.mxu0 0.0
  %5305 = vmatprep.subr.mxu0 0.0
  %5306 = vmatpush1.msra.mxu0 0.0
  %5307 = vmatprep.subr.mxu0 0.0
  %5308 = vmatpush1.msra.mxu0 0.0
  %5309 = vmatprep.subr.mxu0 0.0
  %5310 = vmatpush1.msra.mxu0 0.0
  %5311 = vmatprep.subr.mxu0 0.0
  %5312 = vmatpush1.msra.mxu0 0.0
  %5313 = vmatprep.subr.mxu0 %v3959
  %5314 = vmatpush1.msra.mxu0 %v3958
  %5315 = vmatprep.subr.mxu0 0.0
  %5316 = vmatpush2.msra.mxu0 0.0
  %5317 = vmatprep.subr.mxu0 0.0
  %5318 = vmatpush2.msra.mxu0 0.0
  %5319 = vmatprep.subr.mxu0 0.0
  %5320 = vmatpush2.msra.mxu0 0.0
  %5321 = vmatprep.subr.mxu0 0.0
  %5322 = vmatpush2.msra.mxu0 0.0
  %5323 = vmatprep.subr.mxu0 0.0
  %5324 = vmatpush2.msra.mxu0 0.0
  %5325 = vmatprep.subr.mxu0 0.0
  %5326 = vmatpush2.msra.mxu0 0.0
  %5327 = vmatprep.subr.mxu0 0.0
  %5328 = vmatpush2.msra.mxu0 0.0
  %5329 = vmatprep.subr.mxu0 0.0
  %5330 = vmatpush2.msra.mxu0 0.0
  %5331 = vmatprep.subr.mxu0 0.0
  %5332 = vmatpush2.msra.mxu0 0.0
  %5333 = vmatprep.subr.mxu0 0.0
  %5334 = vmatpush2.msra.mxu0 0.0
  %5335 = vmatprep.subr.mxu0 0.0
  %5336 = vmatpush2.msra.mxu0 0.0
  %5337 = vmatprep.subr.mxu0 0.0
  %5338 = vmatpush2.msra.mxu0 0.0
  %5339 = vmatprep.subr.mxu0 0.0
  %5340 = vmatpush2.msra.mxu0 0.0
  %5341 = vmatprep.subr.mxu0 0.0
  %5342 = vmatpush2.msra.mxu0 0.0
  %5343 = vmatprep.subr.mxu0 0.0
  %5344 = vmatpush2.msra.mxu0 0.0
  %5345 = vmatprep.subr.mxu0 0.0
  %5346 = vmatpush2.msra.mxu0 0.0
  %5347 = vmatprep.mubr.f32.mxu0 0.0
  %5348 = vmatmul.mubr.f32.gmra.mxu0 %v5210
  %v5349 = vpop.f32.mrf.mxu0
  %v5350 = vadd.f32 0.0, %v5349
  %v5351 = vpop.f32.mrf.mxu0
  %v5352 = vadd.f32 0.0, %v5351
  %5353 = vdwg.mxu0
  %v5354 = vadd.f32 %v5205, %v5279
  %v5355 = vadd.f32 %v5206, %v5281
  %v5356 = vadd.f32 %v5207, %v5350
  %v5357 = vadd.f32 %v5208, %v5352
  %v5358 = vxor.u32 %v5354, 2147483648
  %v5359 = vmul.f32 %v5358, 1.442695
  %v5360 = vpow.pop %v5359
  %v5361 = vadd.f32 %v5360, 1.0
  %v5362 = vrcp.pop %v5361
  %v5363 = vmul.f32 1.0, %v5362
  %v5364 = vxor.u32 %v5355, 2147483648
  %v5365 = vmul.f32 %v5364, 1.442695
  %v5366 = vpow.pop %v5365
  %v5367 = vadd.f32 %v5366, 1.0
  %v5368 = vrcp.pop %v5367
  %v5369 = vmul.f32 1.0, %v5368
  %v5370 = vtanh.pop %v5356
  %v5371 = vxor.u32 %v5357, 2147483648
  %v5372 = vmul.f32 %v5371, 1.442695
  %v5373 = vpow.pop %v5372
  %v5374 = vadd.f32 %v5373, 1.0
  %v5375 = vrcp.pop %v5374
  %v5376 = vmul.f32 1.0, %v5375
  %v5377 = vmul.f32 %v5369, %v5201
  %v5378 = vmul.f32 %v5363, %v5370
  %v5379 = vadd.f32 %v5377, %v5378
  %v5380 = vtanh.pop %v5379
  %v5381 = vmul.f32 %v5376, %v5380
  %5382 = vst [vmem:[%s1811] sm:$0xff] %v5381
  %v5383 = vld [vmem:[#allocation3] sm:$0xff]
  %v5384 = vld [vmem:[#allocation3 + $0x8] sm:$0xff]
  %v5385 = vld [vmem:[#allocation3 + $0x10] sm:$0xff]
  %v5386 = vld [vmem:[#allocation3 + $0x18] sm:$0xff]
  %v5387 = vld [vmem:[#allocation3 + $0x20] sm:$0xff]
  %v5388 = vld [vmem:[#allocation3 + $0x28] sm:$0xff]
  %v5389 = vld [vmem:[#allocation3 + $0x30] sm:$0xff]
  %v5390 = vld [vmem:[#allocation3 + $0x38] sm:$0xff]
  %v5391 = vld [vmem:[%s10] sm:$0xff]
  %v5392 = vld [vmem:[%s10 + $0x8] sm:$0xff]
  %v5393 = vld [vmem:[%s10 + $0x10] sm:$0xff]
  %v5394 = vld [vmem:[%s10 + $0x18] sm:$0xff]
  %v5395 = vld [vmem:[%s10 + $0x20] sm:$0xff]
  %v5396 = vld [vmem:[%s10 + $0x28] sm:$0xff]
  %v5397 = vld [vmem:[%s10 + $0x30] sm:$0xff]
  %v5398 = vld [vmem:[%s10 + $0x38] sm:$0xff]
  %v5399 = vld [vmem:[%s10 + $0x40] sm:$0xff]
  %v5400 = vld [vmem:[%s10 + $0x48] sm:$0xff]
  %v5401 = vld [vmem:[%s10 + $0x50] sm:$0xff]
  %v5402 = vld [vmem:[%s10 + $0x58] sm:$0xff]
  %v5403 = vld [vmem:[%s10 + $0x60] sm:$0xff]
  %v5404 = vld [vmem:[%s10 + $0x68] sm:$0xff]
  %v5405 = vld [vmem:[%s10 + $0x70] sm:$0xff]
  %v5406 = vld [vmem:[%s10 + $0x78] sm:$0xff]
  %v5407 = vld [vmem:[%s11] sm:$0x1]
  %v5409 = vlaneseq
  %v5410 = vshrl.u32 %v5409, 7
  %v5411 = vsub.s32 0, %v5410
  %v5412 = vrot.slane %v5407, %v5411
  %5414 = vmatprep.subr.mxu0 0.0
  %5415 = vmatpush1.msra.mxu0 %v5406
  %5416 = vmatprep.subr.mxu0 0.0
  %5417 = vmatpush1.msra.mxu0 %v5405
  %5418 = vmatprep.subr.mxu0 0.0
  %5419 = vmatpush1.msra.mxu0 %v5404
  %5420 = vmatprep.subr.mxu0 0.0
  %5421 = vmatpush1.msra.mxu0 %v5403
  %5422 = vmatprep.subr.mxu0 0.0
  %5423 = vmatpush1.msra.mxu0 %v5402
  %5424 = vmatprep.subr.mxu0 0.0
  %5425 = vmatpush1.msra.mxu0 %v5401
  %5426 = vmatprep.subr.mxu0 0.0
  %5427 = vmatpush1.msra.mxu0 %v5400
  %5428 = vmatprep.subr.mxu0 0.0
  %5429 = vmatpush1.msra.mxu0 %v5399
  %5430 = vmatprep.subr.mxu0 0.0
  %5431 = vmatpush1.msra.mxu0 %v5398
  %5432 = vmatprep.subr.mxu0 0.0
  %5433 = vmatpush1.msra.mxu0 %v5397
  %5434 = vmatprep.subr.mxu0 0.0
  %5435 = vmatpush1.msra.mxu0 %v5396
  %5436 = vmatprep.subr.mxu0 0.0
  %5437 = vmatpush1.msra.mxu0 %v5395
  %5438 = vmatprep.subr.mxu0 0.0
  %5439 = vmatpush1.msra.mxu0 %v5394
  %5440 = vmatprep.subr.mxu0 0.0
  %5441 = vmatpush1.msra.mxu0 %v5393
  %5442 = vmatprep.subr.mxu0 0.0
  %5443 = vmatpush1.msra.mxu0 %v5392
  %5444 = vmatprep.subr.mxu0 0.0
  %5445 = vmatpush1.msra.mxu0 %v5391
  %5446 = vmatprep.subr.mxu0 0.0
  %5447 = vmatpush2.msra.mxu0 0.0
  %5448 = vmatprep.subr.mxu0 0.0
  %5449 = vmatpush2.msra.mxu0 0.0
  %5450 = vmatprep.subr.mxu0 0.0
  %5451 = vmatpush2.msra.mxu0 0.0
  %5452 = vmatprep.subr.mxu0 0.0
  %5453 = vmatpush2.msra.mxu0 0.0
  %5454 = vmatprep.subr.mxu0 0.0
  %5455 = vmatpush2.msra.mxu0 0.0
  %5456 = vmatprep.subr.mxu0 0.0
  %5457 = vmatpush2.msra.mxu0 0.0
  %5458 = vmatprep.subr.mxu0 0.0
  %5459 = vmatpush2.msra.mxu0 0.0
  %5460 = vmatprep.subr.mxu0 0.0
  %5461 = vmatpush2.msra.mxu0 0.0
  %5462 = vmatprep.subr.mxu0 0.0
  %5463 = vmatpush2.msra.mxu0 0.0
  %5464 = vmatprep.subr.mxu0 0.0
  %5465 = vmatpush2.msra.mxu0 0.0
  %5466 = vmatprep.subr.mxu0 0.0
  %5467 = vmatpush2.msra.mxu0 0.0
  %5468 = vmatprep.subr.mxu0 0.0
  %5469 = vmatpush2.msra.mxu0 0.0
  %5470 = vmatprep.subr.mxu0 0.0
  %5471 = vmatpush2.msra.mxu0 0.0
  %5472 = vmatprep.subr.mxu0 0.0
  %5473 = vmatpush2.msra.mxu0 0.0
  %5474 = vmatprep.subr.mxu0 0.0
  %5475 = vmatpush2.msra.mxu0 0.0
  %5476 = vmatprep.subr.mxu0 0.0
  %5477 = vmatpush2.msra.mxu0 0.0
  %5478 = vmatprep.mubr.f32.mxu0 0.0
  %5479 = vmatmul.mubr.f32.gmra.mxu0 %v5383
  %v5480 = vpop.f32.mrf.mxu0
  %v5481 = vadd.f32 %v5412, %v5480
  %v5482 = vpop.f32.mrf.mxu0
  %5483 = vmatprep.mubr.f32.mxu0 0.0
  %5484 = vmatmul.mubr.f32.gmra.mxu0 %v5384
  %v5485 = vpop.f32.mrf.mxu0
  %v5486 = vadd.f32 %v5412, %v5485
  %v5487 = vpop.f32.mrf.mxu0
  %5488 = vmatprep.mubr.f32.mxu0 0.0
  %5489 = vmatmul.mubr.f32.gmra.mxu0 %v5385
  %v5490 = vpop.f32.mrf.mxu0
  %v5491 = vadd.f32 %v5412, %v5490
  %v5492 = vpop.f32.mrf.mxu0
  %5493 = vmatprep.mubr.f32.mxu0 0.0
  %5494 = vmatmul.mubr.f32.gmra.mxu0 %v5386
  %v5495 = vpop.f32.mrf.mxu0
  %v5496 = vadd.f32 %v5412, %v5495
  %v5497 = vpop.f32.mrf.mxu0
  %5498 = vmatprep.mubr.f32.mxu0 0.0
  %5499 = vmatmul.mubr.f32.gmra.mxu0 %v5387
  %v5500 = vpop.f32.mrf.mxu0
  %v5501 = vadd.f32 %v5412, %v5500
  %v5502 = vpop.f32.mrf.mxu0
  %5503 = vmatprep.mubr.f32.mxu0 0.0
  %5504 = vmatmul.mubr.f32.gmra.mxu0 %v5388
  %v5505 = vpop.f32.mrf.mxu0
  %v5506 = vadd.f32 %v5412, %v5505
  %v5507 = vpop.f32.mrf.mxu0
  %5508 = vmatprep.mubr.f32.mxu0 0.0
  %5509 = vmatmul.mubr.f32.gmra.mxu0 %v5389
  %v5510 = vpop.f32.mrf.mxu0
  %v5511 = vadd.f32 %v5412, %v5510
  %v5512 = vpop.f32.mrf.mxu0
  %5513 = vmatprep.mubr.f32.mxu0 0.0
  %5514 = vmatmul.mubr.f32.gmra.mxu0 %v5390
  %v5515 = vpop.f32.mrf.mxu0
  %v5516 = vadd.f32 %v5412, %v5515
  %v5517 = vpop.f32.mrf.mxu0
  %5518 = vdwg.mxu0
  %5519 = vst [vmem:[%s12] sm:$0xff] %v5481
  %5520 = vst [vmem:[%s12 + $0x8] sm:$0xff] %v5486
  %5521 = vst [vmem:[%s12 + $0x10] sm:$0xff] %v5491
  %5522 = vst [vmem:[%s12 + $0x18] sm:$0xff] %v5496
  %5523 = vst [vmem:[%s12 + $0x20] sm:$0xff] %v5501
  %5524 = vst [vmem:[%s12 + $0x28] sm:$0xff] %v5506
  %5525 = vst [vmem:[%s12 + $0x30] sm:$0xff] %v5511
  %5526 = vst [vmem:[%s12 + $0x38] sm:$0xff] %v5516
  // Predicated region
  $region50: #{stacked_easy_lstm_forward.1} parent=0 // pred_check
    _
  $region51: #{stacked_easy_lstm_forward.1} parent=0 // pred_check_branch
    %5528 = sbr.rel (0) target = $region53
  $region52: #{stacked_easy_lstm_forward.1} parent=0 // pred_region
    _
  $region53: #{stacked_easy_lstm_forward.1} parent=0 // pred_fallthru
    _
  // Predicated region
  $region54: #{stacked_easy_lstm_forward.1} parent=0 // pred_check
    _
  $region55: #{stacked_easy_lstm_forward.1} parent=0 // pred_check_branch
    %5530 = sbr.rel (0) target = $region57
  $region56: #{stacked_easy_lstm_forward.1} parent=0 // pred_region
    _
  $region57: #{stacked_easy_lstm_forward.1} parent=0 // pred_fallthru
    _

</llo_original>
